<compile_context>
chip_gen: v7x
topology: tpu7x:2x2x1
jax: 0.10.0
libtpu: 0.0.40
codegen_flags: <defaults>
</compile_context>

<pallas_src>
import jax
import jax.numpy as jnp
from jax import lax
from jax.experimental import pallas as pl
from jax.experimental.pallas import tpu as pltpu

EPS = 1e-5


def _vmem_limit_bytes():
    """~96 MiB on 128-MiB parts (v5e/v6e), ~48 MiB on 64-MiB parts (v7x)."""
    cap = 128 * 1024 * 1024
    try:
        cap = int(getattr(pltpu.get_tpu_info(), "vmem_capacity_bytes", cap))
    except Exception:
        pass
    return int(min(100 * 1024 * 1024, cap * 3 // 4))


# ------------------------------ host wrapper -------------------------------
def basic_block_forward(x, params):
    N, H, W, C = x.shape
    Cr = C // 16
    count = float(N * H * W)                    # BN normalizes over (N, H, W)

    # ---- weight-layout plumbing only (no activation math on host) ----
    w1 = params["w1"].reshape(9, C, C).astype(jnp.bfloat16)   # (kh,kw) major
    w2 = params["w2"].reshape(9, C, C).astype(jnp.bfloat16)
    g1, b1 = params["g1"], params["b1"]                        # (1, C)
    g2, b2 = params["g2"], params["b2"]
    wfc1_t = params["wfc1"].T                                  # (C, Cr)
    wfc2 = params["wfc2"]                                      # (Cr, C)
    wsa = params["wsa"].reshape(7 * 7 * 2)                     # (98,)

    cp = pltpu.CompilerParams(
        dimension_semantics=("parallel",),      # v7x: use both TensorCores
        vmem_limit_bytes=_vmem_limit_bytes())

    # -------------------- shared in-kernel helpers -------------------------
    def fill_pad(pad_ref, interior_f32):
        # interior_f32: (H, W, C) f32.  Zero-pad W in-vreg (single concat) so
        # all scratch stores are full (., W+2, C) planes; only the two halo
        # rows are extra stores (no masked packed column stores).
        zcol = jnp.zeros((H, 1, C), jnp.float32)
        rows = jnp.concatenate([zcol, interior_f32, zcol], axis=1)  # (H,W+2,C)
        pad_ref[1:1 + H, :, :] = rows.astype(jnp.bfloat16)
        zrow = jnp.zeros((1, W + 2, C), jnp.bfloat16)
        pad_ref[0:1, :, :] = zrow
        pad_ref[H + 1:H + 2, :, :] = zrow

    def conv3x3_accum(pad_ref, w_ref):
        # 9 accumulated tap matmuls (K = C): no (HW, 9C) im2col blow-up and
        # no lane-concat chains.  bf16 operands, f32 accumulation (the v7x
        # MRB accumulates in place).
        acc = None
        for kh in range(3):
            for kw in range(3):
                lhs = pad_ref[kh:kh + H, kw:kw + W, :].reshape(H * W, C)
                t = jnp.dot(lhs, w_ref[kh * 3 + kw],
                            preferred_element_type=jnp.float32)
                acc = t if acc is None else acc + t
        return acc                                           # (H*W, C) f32

    def partial_stats(acc, s_ref):
        # single-pass per-sample BN partials: [sum; sum-of-squares]
        s_ref[0] = jnp.concatenate(
            [jnp.sum(acc, axis=0, keepdims=True),
             jnp.sum(acc * acc, axis=0, keepdims=True)], axis=0)   # (2, C)

    def bn_scale_shift(s_ref, g_ref, b_ref):
        sums = jnp.sum(s_ref[...], axis=0)                   # (2, C) over batch
        mean = sums[0:1, :] * (1.0 / count)
        var = jnp.maximum(sums[1:2, :] * (1.0 / count) - mean * mean, 0.0)
        scale = lax.rsqrt(var + EPS) * g_ref[...]
        shift = b_ref[...] - mean * scale
        return scale, shift                                   # (1, C) each

    # ----------------------------- kernel 1 ---------------------------------
    def k1(x_ref, w1_ref, y1_ref, s1_ref, pad_ref):
        fill_pad(pad_ref, x_ref[0])
        acc = conv3x3_accum(pad_ref, w1_ref)
        y1_ref[0] = acc.reshape(H, W, C)
        partial_stats(acc, s1_ref)

    # ----------------------------- kernel 2 ---------------------------------
    def k2(y1_ref, s1_ref, g1_ref, b1_ref, w2_ref, y2_ref, s2_ref, pad_ref):
        scale, shift = bn_scale_shift(s1_ref, g1_ref, b1_ref)
        h = jnp.maximum(y1_ref[0].reshape(H * W, C) * scale + shift, 0.0)
        fill_pad(pad_ref, h.reshape(H, W, C))
        acc = conv3x3_accum(pad_ref, w2_ref)
        y2_ref[0] = acc.reshape(H, W, C)
        partial_stats(acc, s2_ref)

    # ----------------------------- kernel 3 ---------------------------------
    def k3(y2_ref, s2_ref, g2_ref, b2_ref, wfc1t_ref, wfc2_ref, wsa_ref,
           x_ref, o_ref, maps_ref):
        scale, shift = bn_scale_shift(s2_ref, g2_ref, b2_ref)
        out = y2_ref[0].reshape(H * W, C) * scale + shift          # (HW, C) f32

        # ---- channel attention (per-sample): two small matmuls ----
        avg_c = jnp.mean(out, axis=0, keepdims=True)               # (1, C)
        max_c = jnp.max(out, axis=0, keepdims=True)                # (1, C)
        pooled = jnp.concatenate([avg_c, max_c], axis=0)           # (2, C)
        hid = jnp.maximum(jnp.dot(pooled, wfc1t_ref[...],
                                  preferred_element_type=jnp.float32), 0.0)
        proj = jnp.dot(hid, wfc2_ref[...],
                       preferred_element_type=jnp.float32)         # (2, C)
        ca = jax.nn.sigmoid(proj[0:1, :] + proj[1:2, :])           # (1, C)
        out3 = (out * ca).reshape(H, W, C)

        # ---- spatial attention: 7x7 conv (pad=3) over [avg, max] maps,
        #      lane-dense (W+6 in lanes), 98 scalar-weighted VPU FMAs ----
        avg_s = jnp.mean(out3, axis=-1)                            # (H, W)
        max_s = jnp.max(out3, axis=-1)                             # (H, W)
        both = jnp.stack([avg_s, max_s], axis=0)                   # (2, H, W)
        zc3 = jnp.zeros((2, H, 3), jnp.float32)
        maps_ref[:, 3:3 + H, :] = jnp.concatenate([zc3, both, zc3], axis=2)
        zr3 = jnp.zeros((2, 3, W + 6), jnp.float32)
        maps_ref[:, 0:3, :] = zr3
        maps_ref[:, H + 3:H + 6, :] = zr3

        sa_acc = jnp.zeros((H, W), jnp.float32)
        for kh in range(7):
            for kw in range(7):
                wa = wsa_ref[kh * 14 + kw * 2 + 0]                 # SMEM scalar
                wm = wsa_ref[kh * 14 + kw * 2 + 1]
                sa_acc = (sa_acc
                          + wa * maps_ref[0, kh:kh + H, kw:kw + W]
                          + wm * maps_ref[1, kh:kh + H, kw:kw + W])
        sa = jax.nn.sigmoid(sa_acc)                                # (H, W)

        # ---- scale, residual (read at point of use), relu ----
        o_ref[0] = jnp.maximum(out3 * sa[:, :, None] + x_ref[0], 0.0)

    # ------------------------------- specs ----------------------------------
    samp = pl.BlockSpec((1, H, W, C), lambda n: (n, 0, 0, 0))
    stat_out = pl.BlockSpec((1, 2, C), lambda n: (n, 0, 0))
    stat_full = pl.BlockSpec((N, 2, C), lambda n: (0, 0, 0))
    vec_c = pl.BlockSpec((1, C), lambda n: (0, 0))
    conv_w = pl.BlockSpec((9, C, C), lambda n: (0, 0, 0))
    smem_spec = pl.BlockSpec(memory_space=pltpu.MemorySpace.SMEM)

    # TODO(synk): for very large per-sample spatial extents (or N == 1), grid
    # additionally over H-row blocks (1-row conv halo, 3-row SA halo).
    # TODO(synk): when C << 128 dominates, fold W*C into the lane dimension for
    # the elementwise/BN/attention math to avoid masked partial stores.

    y1, s1 = pl.pallas_call(
        k1,
        out_shape=(jax.ShapeDtypeStruct((N, H, W, C), jnp.float32),
                   jax.ShapeDtypeStruct((N, 2, C), jnp.float32)),
        grid_spec=pltpu.PrefetchScalarGridSpec(
            num_scalar_prefetch=0, grid=(N,),
            in_specs=[samp, conv_w],
            out_specs=[samp, stat_out],
            scratch_shapes=[pltpu.VMEM((H + 2, W + 2, C), jnp.bfloat16)]),
        compiler_params=cp,
    )(x, w1)

    y2, s2 = pl.pallas_call(
        k2,
        out_shape=(jax.ShapeDtypeStruct((N, H, W, C), jnp.float32),
                   jax.ShapeDtypeStruct((N, 2, C), jnp.float32)),
        grid_spec=pltpu.PrefetchScalarGridSpec(
            num_scalar_prefetch=0, grid=(N,),
            in_specs=[samp, stat_full, vec_c, vec_c, conv_w],
            out_specs=[samp, stat_out],
            scratch_shapes=[pltpu.VMEM((H + 2, W + 2, C), jnp.bfloat16)]),
        compiler_params=cp,
    )(y1, s1, g1, b1, w2)

    out = pl.pallas_call(
        k3,
        out_shape=jax.ShapeDtypeStruct((N, H, W, C), jnp.float32),
        grid_spec=pltpu.PrefetchScalarGridSpec(
            num_scalar_prefetch=0, grid=(N,),
            in_specs=[samp, stat_full, vec_c, vec_c,
                      pl.BlockSpec((C, Cr), lambda n: (0, 0)),
                      pl.BlockSpec((Cr, C), lambda n: (0, 0)),
                      smem_spec, samp],
            out_specs=samp,
            scratch_shapes=[pltpu.VMEM((2, H + 6, W + 6), jnp.float32)]),
        compiler_params=cp,
    )(y2, s2, g2, b2, wfc1_t, wfc2, wsa, x)

    return out


def init_params(key, C):
    assert C >= 16, "ChannelAttention hard-codes C // 16 hidden channels"
    Cr = C // 16
    ks = jax.random.split(key, 5)
    w1 = jax.random.normal(ks[0], (3, 3, C, C), jnp.float32) / (3 * 3 * C) ** 0.5
    w2 = jax.random.normal(ks[1], (3, 3, C, C), jnp.float32) / (3 * 3 * C) ** 0.5
    wfc1 = jax.random.normal(ks[2], (Cr, C), jnp.float32) / C ** 0.5
    wfc2 = jax.random.normal(ks[3], (Cr, C), jnp.float32) / Cr ** 0.5
    wsa = jax.random.normal(ks[4], (7, 7, 2), jnp.float32) / (7 * 7 * 2) ** 0.5
    g1 = jnp.ones((1, C), jnp.float32)
    b1 = jnp.zeros((1, C), jnp.float32)   # torch BatchNorm2d default: weight=1, bias=0
    g2 = jnp.ones((1, C), jnp.float32)
    b2 = jnp.zeros((1, C), jnp.float32)
    return dict(w1=w1, g1=g1, b1=b1, w2=w2, g2=g2, b2=b2,
                wfc1=wfc1, wfc2=wfc2, wsa=wsa)


# --------------------------- pure-JAX reference ----------------------------
def reference_forward(x, p):
    def conv(inp, w, pad):
        return lax.conv_general_dilated(
            inp, w, window_strides=(1, 1), padding=[(pad, pad), (pad, pad)],
            dimension_numbers=("NHWC", "HWIO", "NHWC"))

    def bn(inp, gamma, beta):
        mean = jnp.mean(inp, axis=(0, 1, 2), keepdims=True)
        var = jnp.mean((inp - mean) ** 2, axis=(0, 1, 2), keepdims=True)
        return ((inp - mean) / jnp.sqrt(var + EPS)
                * gamma.reshape(1, 1, 1, -1) + beta.reshape(1, 1, 1, -1))

    out = jax.nn.relu(bn(conv(x, p["w1"], 1), p["g1"], p["b1"]))
    out = bn(conv(out, p["w2"], 1), p["g2"], p["b2"])

    avg = jnp.mean(out, axis=(1, 2))
    mx = jnp.max(out, axis=(1, 2))

    def mlp(v):
        return jax.nn.relu(v @ p["wfc1"].T) @ p["wfc2"]

    ca = jax.nn.sigmoid(mlp(avg) + mlp(mx))
    out = out * ca[:, None, None, :]

    s = jnp.concatenate([jnp.mean(out, axis=-1, keepdims=True),
                         jnp.max(out, axis=-1, keepdims=True)], axis=-1)
    sa = jax.nn.sigmoid(conv(s, p["wsa"].reshape(7, 7, 2, 1), 3))
    out = out * sa
    return jax.nn.relu(out + x)


if __name__ == "__main__":
    key = jax.random.PRNGKey(0)
    kx, kp = jax.random.split(key)
    # NHWC; equivalent to a torch NCHW input of shape (2, 32, 8, 8)
    N, H, W, C = 2, 8, 8, 32
    x = jax.random.normal(kx, (N, H, W, C), jnp.float32)
    params = init_params(kp, C)

    out = jax.block_until_ready(jax.jit(basic_block_forward)(x, params))
    ref = jax.block_until_ready(reference_forward(x, params))

    assert out.shape == (N, H, W, C)
    assert bool(jnp.all(jnp.isfinite(out)))
    # bf16 MXU conv operands (f32 accumulation) -> slightly looser tolerance
    assert bool(jnp.allclose(out, ref, atol=5e-2, rtol=5e-2)), \
        f"max abs diff = {float(jnp.max(jnp.abs(out - ref)))}"
    print("KERNEL_OK")
</pallas_src>

<mosaic_0001>
module attributes {stable_mosaic.version = 11 : i64} {
  func.func @k1(%arg0: i32, %arg1: memref<1x8x8x32xf32, #tpu.memory_space<vmem>>, %arg2: memref<9x32x32xbf16, #tpu.memory_space<vmem>>, %arg3: memref<1x8x8x32xf32, #tpu.memory_space<vmem>>, %arg4: memref<1x2x32xf32, #tpu.memory_space<vmem>>, %arg5: memref<10x10x32xbf16, #tpu.memory_space<vmem>>) attributes {dimension_semantics = [#tpu.dimension_semantics<parallel>], iteration_bounds = array<i64: 2>, scalar_prefetch = 0 : i64, scratch_operands = 1 : i64, tpu.core_type = #tpu.core_type<tc>, window_params = [{transform_indices = @transform_0, window_bounds = array<i64: 1, 8, 8, 32>}, {pipeline_mode = #tpu.pipeline_mode<synchronous>, transform_indices = @transform_1, window_bounds = array<i64: 9, 32, 32>}, {transform_indices = @transform_2, window_bounds = array<i64: 1, 8, 8, 32>}, {transform_indices = @transform_3, window_bounds = array<i64: 1, 2, 32>}]} {
    %c0 = arith.constant 0 : index
    %c0_0 = arith.constant 0 : index
    %c0_1 = arith.constant 0 : index
    %c0_2 = arith.constant 0 : index
    %0 = vector.load %arg1[%c0, %c0_0, %c0_1, %c0_2] : memref<1x8x8x32xf32, #tpu.memory_space<vmem>>, vector<1x8x8x32xf32>
    %1 = vector.shape_cast %0 : vector<1x8x8x32xf32> to vector<8x8x32xf32>
    %cst = arith.constant 0.000000e+00 : f32
    %2 = vector.broadcast %cst : f32 to vector<8x1x32xf32>
    %3 = tpu.concatenate %2, %1, %2 in 1 : vector<8x1x32xf32>, vector<8x8x32xf32>, vector<8x1x32xf32> -> vector<8x10x32xf32>
    %4 = arith.truncf %3 : vector<8x10x32xf32> to vector<8x10x32xbf16>
    %c1 = arith.constant 1 : index
    %c0_3 = arith.constant 0 : index
    %c0_4 = arith.constant 0 : index
    %5 = vector.load %arg5[%c1, %c0_3, %c0_4] : memref<10x10x32xbf16, #tpu.memory_space<vmem>>, vector<8x10x32xbf16>
    tpu.vector_store %arg5[%c1, %c0_3, %c0_4], %4 {strides = array<i32>} : memref<10x10x32xbf16, #tpu.memory_space<vmem>>, vector<8x10x32xbf16>,
    %cst_5 = arith.constant 0.000000e+00 : bf16
    %6 = vector.broadcast %cst_5 : bf16 to vector<1x10x32xbf16>
    %c0_6 = arith.constant 0 : index
    %c0_7 = arith.constant 0 : index
    %c0_8 = arith.constant 0 : index
    %7 = vector.load %arg5[%c0_6, %c0_7, %c0_8] : memref<10x10x32xbf16, #tpu.memory_space<vmem>>, vector<1x10x32xbf16>
    tpu.vector_store %arg5[%c0_6, %c0_7, %c0_8], %6 {strides = array<i32>} : memref<10x10x32xbf16, #tpu.memory_space<vmem>>, vector<1x10x32xbf16>,
    %c9 = arith.constant 9 : index
    %c0_9 = arith.constant 0 : index
    %c0_10 = arith.constant 0 : index
    %8 = vector.load %arg5[%c9, %c0_9, %c0_10] : memref<10x10x32xbf16, #tpu.memory_space<vmem>>, vector<1x10x32xbf16>
    tpu.vector_store %arg5[%c9, %c0_9, %c0_10], %6 {strides = array<i32>} : memref<10x10x32xbf16, #tpu.memory_space<vmem>>, vector<1x10x32xbf16>,
    %c0_11 = arith.constant 0 : index
    %c0_12 = arith.constant 0 : index
    %c0_13 = arith.constant 0 : index
    %9 = vector.load %arg5[%c0_11, %c0_12, %c0_13] : memref<10x10x32xbf16, #tpu.memory_space<vmem>>, vector<8x8x32xbf16>
    %10 = vector.shape_cast %9 : vector<8x8x32xbf16> to vector<64x32xbf16>
    %c0_14 = arith.constant 0 : index
    %c0_15 = arith.constant 0 : index
    %c0_16 = arith.constant 0 : index
    %11 = vector.load %arg2[%c0_14, %c0_15, %c0_16] : memref<9x32x32xbf16, #tpu.memory_space<vmem>>, vector<1x32x32xbf16>
    %12 = vector.shape_cast %11 : vector<1x32x32xbf16> to vector<32x32xbf16>
    %cst_17 = arith.constant dense<0.000000e+00> : vector<64x32xf32>
    %13 = tpu.matmul %10, %12, %cst_17 {dimension_numbers = #tpu.dot_dimension_numbers<[1], [0], [0], [1], [0, 0, 1, 1], [], []>} : vector<64x32xbf16>, vector<32x32xbf16>, vector<64x32xf32> -> vector<64x32xf32>
    %c0_18 = arith.constant 0 : index
    %c1_19 = arith.constant 1 : index
    %c0_20 = arith.constant 0 : index
    %14 = vector.load %arg5[%c0_18, %c1_19, %c0_20] : memref<10x10x32xbf16, #tpu.memory_space<vmem>>, vector<8x8x32xbf16>
    %15 = vector.shape_cast %14 : vector<8x8x32xbf16> to vector<64x32xbf16>
    %c1_21 = arith.constant 1 : index
    %c0_22 = arith.constant 0 : index
    %c0_23 = arith.constant 0 : index
    %16 = vector.load %arg2[%c1_21, %c0_22, %c0_23] : memref<9x32x32xbf16, #tpu.memory_space<vmem>>, vector<1x32x32xbf16>
    %17 = vector.shape_cast %16 : vector<1x32x32xbf16> to vector<32x32xbf16>
    %cst_24 = arith.constant dense<0.000000e+00> : vector<64x32xf32>
    %18 = tpu.matmul %15, %17, %cst_24 {dimension_numbers = #tpu.dot_dimension_numbers<[1], [0], [0], [1], [0, 0, 1, 1], [], []>} : vector<64x32xbf16>, vector<32x32xbf16>, vector<64x32xf32> -> vector<64x32xf32>
    %19 = arith.addf %13, %18 : vector<64x32xf32>
    %c0_25 = arith.constant 0 : index
    %c2 = arith.constant 2 : index
    %c0_26 = arith.constant 0 : index
    %20 = vector.load %arg5[%c0_25, %c2, %c0_26] : memref<10x10x32xbf16, #tpu.memory_space<vmem>>, vector<8x8x32xbf16>
    %21 = vector.shape_cast %20 : vector<8x8x32xbf16> to vector<64x32xbf16>
    %c2_27 = arith.constant 2 : index
    %c0_28 = arith.constant 0 : index
    %c0_29 = arith.constant 0 : index
    %22 = vector.load %arg2[%c2_27, %c0_28, %c0_29] : memref<9x32x32xbf16, #tpu.memory_space<vmem>>, vector<1x32x32xbf16>
    %23 = vector.shape_cast %22 : vector<1x32x32xbf16> to vector<32x32xbf16>
    %cst_30 = arith.constant dense<0.000000e+00> : vector<64x32xf32>
    %24 = tpu.matmul %21, %23, %cst_30 {dimension_numbers = #tpu.dot_dimension_numbers<[1], [0], [0], [1], [0, 0, 1, 1], [], []>} : vector<64x32xbf16>, vector<32x32xbf16>, vector<64x32xf32> -> vector<64x32xf32>
    %25 = arith.addf %19, %24 : vector<64x32xf32>
    %c1_31 = arith.constant 1 : index
    %c0_32 = arith.constant 0 : index
    %c0_33 = arith.constant 0 : index
    %26 = vector.load %arg5[%c1_31, %c0_32, %c0_33] : memref<10x10x32xbf16, #tpu.memory_space<vmem>>, vector<8x8x32xbf16>
    %27 = vector.shape_cast %26 : vector<8x8x32xbf16> to vector<64x32xbf16>
    %c3 = arith.constant 3 : index
    %c0_34 = arith.constant 0 : index
    %c0_35 = arith.constant 0 : index
    %28 = vector.load %arg2[%c3, %c0_34, %c0_35] : memref<9x32x32xbf16, #tpu.memory_space<vmem>>, vector<1x32x32xbf16>
    %29 = vector.shape_cast %28 : vector<1x32x32xbf16> to vector<32x32xbf16>
    %cst_36 = arith.constant dense<0.000000e+00> : vector<64x32xf32>
    %30 = tpu.matmul %27, %29, %cst_36 {dimension_numbers = #tpu.dot_dimension_numbers<[1], [0], [0], [1], [0, 0, 1, 1], [], []>} : vector<64x32xbf16>, vector<32x32xbf16>, vector<64x32xf32> -> vector<64x32xf32>
    %31 = arith.addf %25, %30 : vector<64x32xf32>
    %c1_37 = arith.constant 1 : index
    %c1_38 = arith.constant 1 : index
    %c0_39 = arith.constant 0 : index
    %32 = vector.load %arg5[%c1_37, %c1_38, %c0_39] : memref<10x10x32xbf16, #tpu.memory_space<vmem>>, vector<8x8x32xbf16>
    %33 = vector.shape_cast %32 : vector<8x8x32xbf16> to vector<64x32xbf16>
    %c4 = arith.constant 4 : index
    %c0_40 = arith.constant 0 : index
    %c0_41 = arith.constant 0 : index
    %34 = vector.load %arg2[%c4, %c0_40, %c0_41] : memref<9x32x32xbf16, #tpu.memory_space<vmem>>, vector<1x32x32xbf16>
    %35 = vector.shape_cast %34 : vector<1x32x32xbf16> to vector<32x32xbf16>
    %cst_42 = arith.constant dense<0.000000e+00> : vector<64x32xf32>
    %36 = tpu.matmul %33, %35, %cst_42 {dimension_numbers = #tpu.dot_dimension_numbers<[1], [0], [0], [1], [0, 0, 1, 1], [], []>} : vector<64x32xbf16>, vector<32x32xbf16>, vector<64x32xf32> -> vector<64x32xf32>
    %37 = arith.addf %31, %36 : vector<64x32xf32>
    %c1_43 = arith.constant 1 : index
    %c2_44 = arith.constant 2 : index
    %c0_45 = arith.constant 0 : index
    %38 = vector.load %arg5[%c1_43, %c2_44, %c0_45] : memref<10x10x32xbf16, #tpu.memory_space<vmem>>, vector<8x8x32xbf16>
    %39 = vector.shape_cast %38 : vector<8x8x32xbf16> to vector<64x32xbf16>
    %c5 = arith.constant 5 : index
    %c0_46 = arith.constant 0 : index
    %c0_47 = arith.constant 0 : index
    %40 = vector.load %arg2[%c5, %c0_46, %c0_47] : memref<9x32x32xbf16, #tpu.memory_space<vmem>>, vector<1x32x32xbf16>
    %41 = vector.shape_cast %40 : vector<1x32x32xbf16> to vector<32x32xbf16>
    %cst_48 = arith.constant dense<0.000000e+00> : vector<64x32xf32>
    %42 = tpu.matmul %39, %41, %cst_48 {dimension_numbers = #tpu.dot_dimension_numbers<[1], [0], [0], [1], [0, 0, 1, 1], [], []>} : vector<64x32xbf16>, vector<32x32xbf16>, vector<64x32xf32> -> vector<64x32xf32>
    %43 = arith.addf %37, %42 : vector<64x32xf32>
    %c2_49 = arith.constant 2 : index
    %c0_50 = arith.constant 0 : index
    %c0_51 = arith.constant 0 : index
    %44 = vector.load %arg5[%c2_49, %c0_50, %c0_51] : memref<10x10x32xbf16, #tpu.memory_space<vmem>>, vector<8x8x32xbf16>
    %45 = vector.shape_cast %44 : vector<8x8x32xbf16> to vector<64x32xbf16>
    %c6 = arith.constant 6 : index
    %c0_52 = arith.constant 0 : index
    %c0_53 = arith.constant 0 : index
    %46 = vector.load %arg2[%c6, %c0_52, %c0_53] : memref<9x32x32xbf16, #tpu.memory_space<vmem>>, vector<1x32x32xbf16>
    %47 = vector.shape_cast %46 : vector<1x32x32xbf16> to vector<32x32xbf16>
    %cst_54 = arith.constant dense<0.000000e+00> : vector<64x32xf32>
    %48 = tpu.matmul %45, %47, %cst_54 {dimension_numbers = #tpu.dot_dimension_numbers<[1], [0], [0], [1], [0, 0, 1, 1], [], []>} : vector<64x32xbf16>, vector<32x32xbf16>, vector<64x32xf32> -> vector<64x32xf32>
    %49 = arith.addf %43, %48 : vector<64x32xf32>
    %c2_55 = arith.constant 2 : index
    %c1_56 = arith.constant 1 : index
    %c0_57 = arith.constant 0 : index
    %50 = vector.load %arg5[%c2_55, %c1_56, %c0_57] : memref<10x10x32xbf16, #tpu.memory_space<vmem>>, vector<8x8x32xbf16>
    %51 = vector.shape_cast %50 : vector<8x8x32xbf16> to vector<64x32xbf16>
    %c7 = arith.constant 7 : index
    %c0_58 = arith.constant 0 : index
    %c0_59 = arith.constant 0 : index
    %52 = vector.load %arg2[%c7, %c0_58, %c0_59] : memref<9x32x32xbf16, #tpu.memory_space<vmem>>, vector<1x32x32xbf16>
    %53 = vector.shape_cast %52 : vector<1x32x32xbf16> to vector<32x32xbf16>
    %cst_60 = arith.constant dense<0.000000e+00> : vector<64x32xf32>
    %54 = tpu.matmul %51, %53, %cst_60 {dimension_numbers = #tpu.dot_dimension_numbers<[1], [0], [0], [1], [0, 0, 1, 1], [], []>} : vector<64x32xbf16>, vector<32x32xbf16>, vector<64x32xf32> -> vector<64x32xf32>
    %55 = arith.addf %49, %54 : vector<64x32xf32>
    %c2_61 = arith.constant 2 : index
    %c2_62 = arith.constant 2 : index
    %c0_63 = arith.constant 0 : index
    %56 = vector.load %arg5[%c2_61, %c2_62, %c0_63] : memref<10x10x32xbf16, #tpu.memory_space<vmem>>, vector<8x8x32xbf16>
    %57 = vector.shape_cast %56 : vector<8x8x32xbf16> to vector<64x32xbf16>
    %c8 = arith.constant 8 : index
    %c0_64 = arith.constant 0 : index
    %c0_65 = arith.constant 0 : index
    %58 = vector.load %arg2[%c8, %c0_64, %c0_65] : memref<9x32x32xbf16, #tpu.memory_space<vmem>>, vector<1x32x32xbf16>
    %59 = vector.shape_cast %58 : vector<1x32x32xbf16> to vector<32x32xbf16>
    %cst_66 = arith.constant dense<0.000000e+00> : vector<64x32xf32>
    %60 = tpu.matmul %57, %59, %cst_66 {dimension_numbers = #tpu.dot_dimension_numbers<[1], [0], [0], [1], [0, 0, 1, 1], [], []>} : vector<64x32xbf16>, vector<32x32xbf16>, vector<64x32xf32> -> vector<64x32xf32>
    %61 = arith.addf %55, %60 : vector<64x32xf32>
    %62 = vector.shape_cast %61 : vector<64x32xf32> to vector<8x8x32xf32>
    %c0_67 = arith.constant 0 : index
    %c0_68 = arith.constant 0 : index
    %c0_69 = arith.constant 0 : index
    %c0_70 = arith.constant 0 : index
    %63 = vector.load %arg3[%c0_67, %c0_68, %c0_69, %c0_70] : memref<1x8x8x32xf32, #tpu.memory_space<vmem>>, vector<1x8x8x32xf32>
    %64 = vector.shape_cast %63 : vector<1x8x8x32xf32> to vector<8x8x32xf32>
    %65 = vector.shape_cast %62 : vector<8x8x32xf32> to vector<1x8x8x32xf32>
    tpu.vector_store %arg3[%c0_67, %c0_68, %c0_69, %c0_70], %65 {strides = array<i32>} : memref<1x8x8x32xf32, #tpu.memory_space<vmem>>, vector<1x8x8x32xf32>,
    %cst_71 = arith.constant dense<0.000000e+00> : vector<32xf32>
    %66 = vector.multi_reduction <add>, %61, %cst_71 [0] : vector<64x32xf32> to vector<32xf32>
    %67 = vector.shape_cast %66 : vector<32xf32> to vector<1x32xf32>
    %68 = arith.mulf %61, %61 : vector<64x32xf32>
    %cst_72 = arith.constant dense<0.000000e+00> : vector<32xf32>
    %69 = vector.multi_reduction <add>, %68, %cst_72 [0] : vector<64x32xf32> to vector<32xf32>
    %70 = vector.shape_cast %69 : vector<32xf32> to vector<1x32xf32>
    %71 = tpu.concatenate %67, %70 in 0 : vector<1x32xf32>, vector<1x32xf32> -> vector<2x32xf32>
    %c0_73 = arith.constant 0 : index
    %c0_74 = arith.constant 0 : index
    %c0_75 = arith.constant 0 : index
    %72 = vector.load %arg4[%c0_73, %c0_74, %c0_75] : memref<1x2x32xf32, #tpu.memory_space<vmem>>, vector<1x2x32xf32>
    %73 = vector.shape_cast %72 : vector<1x2x32xf32> to vector<2x32xf32>
    %74 = vector.shape_cast %71 : vector<2x32xf32> to vector<1x2x32xf32>
    tpu.vector_store %arg4[%c0_73, %c0_74, %c0_75], %74 {strides = array<i32>} : memref<1x2x32xf32, #tpu.memory_space<vmem>>, vector<1x2x32xf32>,
    return
  }
  func.func @transform_0(%arg0: i32) -> (i32, i32, i32, i32) {
    %c0_i32 = arith.constant 0 : i32
    %c0_i32_0 = arith.constant 0 : i32
    %c0_i32_1 = arith.constant 0 : i32
    %c0_i32_2 = arith.constant 0 : i32
    return %arg0, %c0_i32, %c0_i32_0, %c0_i32_1 : i32, i32, i32, i32
  }
  func.func @transform_1(%arg0: i32) -> (i32, i32, i32) {
    %c0_i32 = arith.constant 0 : i32
    %c0_i32_0 = arith.constant 0 : i32
    %c0_i32_1 = arith.constant 0 : i32
    %c0_i32_2 = arith.constant 0 : i32
    return %c0_i32, %c0_i32_0, %c0_i32_1 : i32, i32, i32
  }
  func.func @transform_2(%arg0: i32) -> (i32, i32, i32, i32) {
    %c0_i32 = arith.constant 0 : i32
    %c0_i32_0 = arith.constant 0 : i32
    %c0_i32_1 = arith.constant 0 : i32
    %c0_i32_2 = arith.constant 0 : i32
    return %arg0, %c0_i32, %c0_i32_0, %c0_i32_1 : i32, i32, i32, i32
  }
  func.func @transform_3(%arg0: i32) -> (i32, i32, i32) {
    %c0_i32 = arith.constant 0 : i32
    %c0_i32_0 = arith.constant 0 : i32
    %c0_i32_1 = arith.constant 0 : i32
    return %arg0, %c0_i32, %c0_i32_0 : i32, i32, i32
  }
}

module attributes {stable_mosaic.version = 11 : i64} {
  func.func @k2(%arg0: i32, %arg1: memref<1x8x8x32xf32, #tpu.memory_space<vmem>>, %arg2: memref<2x2x32xf32, #tpu.memory_space<vmem>>, %arg3: memref<1x32xf32, #tpu.memory_space<vmem>>, %arg4: memref<1x32xf32, #tpu.memory_space<vmem>>, %arg5: memref<9x32x32xbf16, #tpu.memory_space<vmem>>, %arg6: memref<1x8x8x32xf32, #tpu.memory_space<vmem>>, %arg7: memref<1x2x32xf32, #tpu.memory_space<vmem>>, %arg8: memref<10x10x32xbf16, #tpu.memory_space<vmem>>) attributes {dimension_semantics = [#tpu.dimension_semantics<parallel>], iteration_bounds = array<i64: 2>, scalar_prefetch = 0 : i64, scratch_operands = 1 : i64, tpu.core_type = #tpu.core_type<tc>, window_params = [{transform_indices = @transform_0, window_bounds = array<i64: 1, 8, 8, 32>}, {pipeline_mode = #tpu.pipeline_mode<synchronous>, transform_indices = @transform_1, window_bounds = array<i64: 2, 2, 32>}, {pipeline_mode = #tpu.pipeline_mode<synchronous>, transform_indices = @transform_2, window_bounds = array<i64: 1, 32>}, {pipeline_mode = #tpu.pipeline_mode<synchronous>, transform_indices = @transform_3, window_bounds = array<i64: 1, 32>}, {pipeline_mode = #tpu.pipeline_mode<synchronous>, transform_indices = @transform_4, window_bounds = array<i64: 9, 32, 32>}, {transform_indices = @transform_5, window_bounds = array<i64: 1, 8, 8, 32>}, {transform_indices = @transform_6, window_bounds = array<i64: 1, 2, 32>}]} {
    %c0 = arith.constant 0 : index
    %c0_0 = arith.constant 0 : index
    %c0_1 = arith.constant 0 : index
    %0 = vector.load %arg2[%c0, %c0_0, %c0_1] : memref<2x2x32xf32, #tpu.memory_space<vmem>>, vector<2x2x32xf32>
    %cst = arith.constant dense<0.000000e+00> : vector<2x32xf32>
    %1 = vector.multi_reduction <add>, %0, %cst [0] : vector<2x2x32xf32> to vector<2x32xf32>
    %2 = vector.extract_strided_slice %1 {offsets = [0, 0], sizes = [1, 32], strides = [1, 1]} : vector<2x32xf32> to vector<1x32xf32>
    %cst_2 = arith.constant 7.812500e-03 : f32
    %3 = vector.broadcast %cst_2 : f32 to vector<1x32xf32>
    %4 = arith.mulf %2, %3 : vector<1x32xf32>
    %5 = vector.extract_strided_slice %1 {offsets = [1, 0], sizes = [1, 32], strides = [1, 1]} : vector<2x32xf32> to vector<1x32xf32>
    %cst_3 = arith.constant 7.812500e-03 : f32
    %6 = vector.broadcast %cst_3 : f32 to vector<1x32xf32>
    %7 = arith.mulf %5, %6 : vector<1x32xf32>
    %8 = arith.mulf %4, %4 : vector<1x32xf32>
    %9 = arith.subf %7, %8 : vector<1x32xf32>
    %cst_4 = arith.constant 0.000000e+00 : f32
    %10 = vector.broadcast %cst_4 : f32 to vector<1x32xf32>
    %11 = arith.maximumf %9, %10 : vector<1x32xf32>
    %cst_5 = arith.constant 9.99999974E-6 : f32
    %12 = vector.broadcast %cst_5 : f32 to vector<1x32xf32>
    %13 = arith.addf %11, %12 : vector<1x32xf32>
    %14 = math.rsqrt %13 : vector<1x32xf32>
    %c0_6 = arith.constant 0 : index
    %c0_7 = arith.constant 0 : index
    %15 = vector.load %arg3[%c0_6, %c0_7] : memref<1x32xf32, #tpu.memory_space<vmem>>, vector<1x32xf32>
    %16 = arith.mulf %14, %15 : vector<1x32xf32>
    %c0_8 = arith.constant 0 : index
    %c0_9 = arith.constant 0 : index
    %17 = vector.load %arg4[%c0_8, %c0_9] : memref<1x32xf32, #tpu.memory_space<vmem>>, vector<1x32xf32>
    %18 = arith.mulf %4, %16 : vector<1x32xf32>
    %19 = arith.subf %17, %18 : vector<1x32xf32>
    %c0_10 = arith.constant 0 : index
    %c0_11 = arith.constant 0 : index
    %c0_12 = arith.constant 0 : index
    %c0_13 = arith.constant 0 : index
    %20 = vector.load %arg1[%c0_10, %c0_11, %c0_12, %c0_13] : memref<1x8x8x32xf32, #tpu.memory_space<vmem>>, vector<1x8x8x32xf32>
    %21 = vector.shape_cast %20 : vector<1x8x8x32xf32> to vector<8x8x32xf32>
    %22 = vector.shape_cast %21 : vector<8x8x32xf32> to vector<64x32xf32>
    %23 = vector.broadcast %16 : vector<1x32xf32> to vector<64x32xf32>
    %24 = arith.mulf %22, %23 : vector<64x32xf32>
    %25 = vector.broadcast %19 : vector<1x32xf32> to vector<64x32xf32>
    %26 = arith.addf %24, %25 : vector<64x32xf32>
    %cst_14 = arith.constant 0.000000e+00 : f32
    %27 = vector.broadcast %cst_14 : f32 to vector<64x32xf32>
    %28 = arith.maximumf %26, %27 : vector<64x32xf32>
    %29 = vector.shape_cast %28 : vector<64x32xf32> to vector<8x8x32xf32>
    %cst_15 = arith.constant 0.000000e+00 : f32
    %30 = vector.broadcast %cst_15 : f32 to vector<8x1x32xf32>
    %31 = tpu.concatenate %30, %29, %30 in 1 : vector<8x1x32xf32>, vector<8x8x32xf32>, vector<8x1x32xf32> -> vector<8x10x32xf32>
    %32 = arith.truncf %31 : vector<8x10x32xf32> to vector<8x10x32xbf16>
    %c1 = arith.constant 1 : index
    %c0_16 = arith.constant 0 : index
    %c0_17 = arith.constant 0 : index
    %33 = vector.load %arg8[%c1, %c0_16, %c0_17] : memref<10x10x32xbf16, #tpu.memory_space<vmem>>, vector<8x10x32xbf16>
    tpu.vector_store %arg8[%c1, %c0_16, %c0_17], %32 {strides = array<i32>} : memref<10x10x32xbf16, #tpu.memory_space<vmem>>, vector<8x10x32xbf16>,
    %cst_18 = arith.constant 0.000000e+00 : bf16
    %34 = vector.broadcast %cst_18 : bf16 to vector<1x10x32xbf16>
    %c0_19 = arith.constant 0 : index
    %c0_20 = arith.constant 0 : index
    %c0_21 = arith.constant 0 : index
    %35 = vector.load %arg8[%c0_19, %c0_20, %c0_21] : memref<10x10x32xbf16, #tpu.memory_space<vmem>>, vector<1x10x32xbf16>
    tpu.vector_store %arg8[%c0_19, %c0_20, %c0_21], %34 {strides = array<i32>} : memref<10x10x32xbf16, #tpu.memory_space<vmem>>, vector<1x10x32xbf16>,
    %c9 = arith.constant 9 : index
    %c0_22 = arith.constant 0 : index
    %c0_23 = arith.constant 0 : index
    %36 = vector.load %arg8[%c9, %c0_22, %c0_23] : memref<10x10x32xbf16, #tpu.memory_space<vmem>>, vector<1x10x32xbf16>
    tpu.vector_store %arg8[%c9, %c0_22, %c0_23], %34 {strides = array<i32>} : memref<10x10x32xbf16, #tpu.memory_space<vmem>>, vector<1x10x32xbf16>,
    %c0_24 = arith.constant 0 : index
    %c0_25 = arith.constant 0 : index
    %c0_26 = arith.constant 0 : index
    %37 = vector.load %arg8[%c0_24, %c0_25, %c0_26] : memref<10x10x32xbf16, #tpu.memory_space<vmem>>, vector<8x8x32xbf16>
    %38 = vector.shape_cast %37 : vector<8x8x32xbf16> to vector<64x32xbf16>
    %c0_27 = arith.constant 0 : index
    %c0_28 = arith.constant 0 : index
    %c0_29 = arith.constant 0 : index
    %39 = vector.load %arg5[%c0_27, %c0_28, %c0_29] : memref<9x32x32xbf16, #tpu.memory_space<vmem>>, vector<1x32x32xbf16>
    %40 = vector.shape_cast %39 : vector<1x32x32xbf16> to vector<32x32xbf16>
    %cst_30 = arith.constant dense<0.000000e+00> : vector<64x32xf32>
    %41 = tpu.matmul %38, %40, %cst_30 {dimension_numbers = #tpu.dot_dimension_numbers<[1], [0], [0], [1], [0, 0, 1, 1], [], []>} : vector<64x32xbf16>, vector<32x32xbf16>, vector<64x32xf32> -> vector<64x32xf32>
    %c0_31 = arith.constant 0 : index
    %c1_32 = arith.constant 1 : index
    %c0_33 = arith.constant 0 : index
    %42 = vector.load %arg8[%c0_31, %c1_32, %c0_33] : memref<10x10x32xbf16, #tpu.memory_space<vmem>>, vector<8x8x32xbf16>
    %43 = vector.shape_cast %42 : vector<8x8x32xbf16> to vector<64x32xbf16>
    %c1_34 = arith.constant 1 : index
    %c0_35 = arith.constant 0 : index
    %c0_36 = arith.constant 0 : index
    %44 = vector.load %arg5[%c1_34, %c0_35, %c0_36] : memref<9x32x32xbf16, #tpu.memory_space<vmem>>, vector<1x32x32xbf16>
    %45 = vector.shape_cast %44 : vector<1x32x32xbf16> to vector<32x32xbf16>
    %cst_37 = arith.constant dense<0.000000e+00> : vector<64x32xf32>
    %46 = tpu.matmul %43, %45, %cst_37 {dimension_numbers = #tpu.dot_dimension_numbers<[1], [0], [0], [1], [0, 0, 1, 1], [], []>} : vector<64x32xbf16>, vector<32x32xbf16>, vector<64x32xf32> -> vector<64x32xf32>
    %47 = arith.addf %41, %46 : vector<64x32xf32>
    %c0_38 = arith.constant 0 : index
    %c2 = arith.constant 2 : index
    %c0_39 = arith.constant 0 : index
    %48 = vector.load %arg8[%c0_38, %c2, %c0_39] : memref<10x10x32xbf16, #tpu.memory_space<vmem>>, vector<8x8x32xbf16>
    %49 = vector.shape_cast %48 : vector<8x8x32xbf16> to vector<64x32xbf16>
    %c2_40 = arith.constant 2 : index
    %c0_41 = arith.constant 0 : index
    %c0_42 = arith.constant 0 : index
    %50 = vector.load %arg5[%c2_40, %c0_41, %c0_42] : memref<9x32x32xbf16, #tpu.memory_space<vmem>>, vector<1x32x32xbf16>
    %51 = vector.shape_cast %50 : vector<1x32x32xbf16> to vector<32x32xbf16>
    %cst_43 = arith.constant dense<0.000000e+00> : vector<64x32xf32>
    %52 = tpu.matmul %49, %51, %cst_43 {dimension_numbers = #tpu.dot_dimension_numbers<[1], [0], [0], [1], [0, 0, 1, 1], [], []>} : vector<64x32xbf16>, vector<32x32xbf16>, vector<64x32xf32> -> vector<64x32xf32>
    %53 = arith.addf %47, %52 : vector<64x32xf32>
    %c1_44 = arith.constant 1 : index
    %c0_45 = arith.constant 0 : index
    %c0_46 = arith.constant 0 : index
    %54 = vector.load %arg8[%c1_44, %c0_45, %c0_46] : memref<10x10x32xbf16, #tpu.memory_space<vmem>>, vector<8x8x32xbf16>
    %55 = vector.shape_cast %54 : vector<8x8x32xbf16> to vector<64x32xbf16>
    %c3 = arith.constant 3 : index
    %c0_47 = arith.constant 0 : index
    %c0_48 = arith.constant 0 : index
    %56 = vector.load %arg5[%c3, %c0_47, %c0_48] : memref<9x32x32xbf16, #tpu.memory_space<vmem>>, vector<1x32x32xbf16>
    %57 = vector.shape_cast %56 : vector<1x32x32xbf16> to vector<32x32xbf16>
    %cst_49 = arith.constant dense<0.000000e+00> : vector<64x32xf32>
    %58 = tpu.matmul %55, %57, %cst_49 {dimension_numbers = #tpu.dot_dimension_numbers<[1], [0], [0], [1], [0, 0, 1, 1], [], []>} : vector<64x32xbf16>, vector<32x32xbf16>, vector<64x32xf32> -> vector<64x32xf32>
    %59 = arith.addf %53, %58 : vector<64x32xf32>
    %c1_50 = arith.constant 1 : index
    %c1_51 = arith.constant 1 : index
    %c0_52 = arith.constant 0 : index
    %60 = vector.load %arg8[%c1_50, %c1_51, %c0_52] : memref<10x10x32xbf16, #tpu.memory_space<vmem>>, vector<8x8x32xbf16>
    %61 = vector.shape_cast %60 : vector<8x8x32xbf16> to vector<64x32xbf16>
    %c4 = arith.constant 4 : index
    %c0_53 = arith.constant 0 : index
    %c0_54 = arith.constant 0 : index
    %62 = vector.load %arg5[%c4, %c0_53, %c0_54] : memref<9x32x32xbf16, #tpu.memory_space<vmem>>, vector<1x32x32xbf16>
    %63 = vector.shape_cast %62 : vector<1x32x32xbf16> to vector<32x32xbf16>
    %cst_55 = arith.constant dense<0.000000e+00> : vector<64x32xf32>
    %64 = tpu.matmul %61, %63, %cst_55 {dimension_numbers = #tpu.dot_dimension_numbers<[1], [0], [0], [1], [0, 0, 1, 1], [], []>} : vector<64x32xbf16>, vector<32x32xbf16>, vector<64x32xf32> -> vector<64x32xf32>
    %65 = arith.addf %59, %64 : vector<64x32xf32>
    %c1_56 = arith.constant 1 : index
    %c2_57 = arith.constant 2 : index
    %c0_58 = arith.constant 0 : index
    %66 = vector.load %arg8[%c1_56, %c2_57, %c0_58] : memref<10x10x32xbf16, #tpu.memory_space<vmem>>, vector<8x8x32xbf16>
    %67 = vector.shape_cast %66 : vector<8x8x32xbf16> to vector<64x32xbf16>
    %c5 = arith.constant 5 : index
    %c0_59 = arith.constant 0 : index
    %c0_60 = arith.constant 0 : index
    %68 = vector.load %arg5[%c5, %c0_59, %c0_60] : memref<9x32x32xbf16, #tpu.memory_space<vmem>>, vector<1x32x32xbf16>
    %69 = vector.shape_cast %68 : vector<1x32x32xbf16> to vector<32x32xbf16>
    %cst_61 = arith.constant dense<0.000000e+00> : vector<64x32xf32>
    %70 = tpu.matmul %67, %69, %cst_61 {dimension_numbers = #tpu.dot_dimension_numbers<[1], [0], [0], [1], [0, 0, 1, 1], [], []>} : vector<64x32xbf16>, vector<32x32xbf16>, vector<64x32xf32> -> vector<64x32xf32>
    %71 = arith.addf %65, %70 : vector<64x32xf32>
    %c2_62 = arith.constant 2 : index
    %c0_63 = arith.constant 0 : index
    %c0_64 = arith.constant 0 : index
    %72 = vector.load %arg8[%c2_62, %c0_63, %c0_64] : memref<10x10x32xbf16, #tpu.memory_space<vmem>>, vector<8x8x32xbf16>
    %73 = vector.shape_cast %72 : vector<8x8x32xbf16> to vector<64x32xbf16>
    %c6 = arith.constant 6 : index
    %c0_65 = arith.constant 0 : index
    %c0_66 = arith.constant 0 : index
    %74 = vector.load %arg5[%c6, %c0_65, %c0_66] : memref<9x32x32xbf16, #tpu.memory_space<vmem>>, vector<1x32x32xbf16>
    %75 = vector.shape_cast %74 : vector<1x32x32xbf16> to vector<32x32xbf16>
    %cst_67 = arith.constant dense<0.000000e+00> : vector<64x32xf32>
    %76 = tpu.matmul %73, %75, %cst_67 {dimension_numbers = #tpu.dot_dimension_numbers<[1], [0], [0], [1], [0, 0, 1, 1], [], []>} : vector<64x32xbf16>, vector<32x32xbf16>, vector<64x32xf32> -> vector<64x32xf32>
    %77 = arith.addf %71, %76 : vector<64x32xf32>
    %c2_68 = arith.constant 2 : index
    %c1_69 = arith.constant 1 : index
    %c0_70 = arith.constant 0 : index
    %78 = vector.load %arg8[%c2_68, %c1_69, %c0_70] : memref<10x10x32xbf16, #tpu.memory_space<vmem>>, vector<8x8x32xbf16>
    %79 = vector.shape_cast %78 : vector<8x8x32xbf16> to vector<64x32xbf16>
    %c7 = arith.constant 7 : index
    %c0_71 = arith.constant 0 : index
    %c0_72 = arith.constant 0 : index
    %80 = vector.load %arg5[%c7, %c0_71, %c0_72] : memref<9x32x32xbf16, #tpu.memory_space<vmem>>, vector<1x32x32xbf16>
    %81 = vector.shape_cast %80 : vector<1x32x32xbf16> to vector<32x32xbf16>
    %cst_73 = arith.constant dense<0.000000e+00> : vector<64x32xf32>
    %82 = tpu.matmul %79, %81, %cst_73 {dimension_numbers = #tpu.dot_dimension_numbers<[1], [0], [0], [1], [0, 0, 1, 1], [], []>} : vector<64x32xbf16>, vector<32x32xbf16>, vector<64x32xf32> -> vector<64x32xf32>
    %83 = arith.addf %77, %82 : vector<64x32xf32>
    %c2_74 = arith.constant 2 : index
    %c2_75 = arith.constant 2 : index
    %c0_76 = arith.constant 0 : index
    %84 = vector.load %arg8[%c2_74, %c2_75, %c0_76] : memref<10x10x32xbf16, #tpu.memory_space<vmem>>, vector<8x8x32xbf16>
    %85 = vector.shape_cast %84 : vector<8x8x32xbf16> to vector<64x32xbf16>
    %c8 = arith.constant 8 : index
    %c0_77 = arith.constant 0 : index
    %c0_78 = arith.constant 0 : index
    %86 = vector.load %arg5[%c8, %c0_77, %c0_78] : memref<9x32x32xbf16, #tpu.memory_space<vmem>>, vector<1x32x32xbf16>
    %87 = vector.shape_cast %86 : vector<1x32x32xbf16> to vector<32x32xbf16>
    %cst_79 = arith.constant dense<0.000000e+00> : vector<64x32xf32>
    %88 = tpu.matmul %85, %87, %cst_79 {dimension_numbers = #tpu.dot_dimension_numbers<[1], [0], [0], [1], [0, 0, 1, 1], [], []>} : vector<64x32xbf16>, vector<32x32xbf16>, vector<64x32xf32> -> vector<64x32xf32>
    %89 = arith.addf %83, %88 : vector<64x32xf32>
    %90 = vector.shape_cast %89 : vector<64x32xf32> to vector<8x8x32xf32>
    %c0_80 = arith.constant 0 : index
    %c0_81 = arith.constant 0 : index
    %c0_82 = arith.constant 0 : index
    %c0_83 = arith.constant 0 : index
    %91 = vector.load %arg6[%c0_80, %c0_81, %c0_82, %c0_83] : memref<1x8x8x32xf32, #tpu.memory_space<vmem>>, vector<1x8x8x32xf32>
    %92 = vector.shape_cast %91 : vector<1x8x8x32xf32> to vector<8x8x32xf32>
    %93 = vector.shape_cast %90 : vector<8x8x32xf32> to vector<1x8x8x32xf32>
    tpu.vector_store %arg6[%c0_80, %c0_81, %c0_82, %c0_83], %93 {strides = array<i32>} : memref<1x8x8x32xf32, #tpu.memory_space<vmem>>, vector<1x8x8x32xf32>,
    %cst_84 = arith.constant dense<0.000000e+00> : vector<32xf32>
    %94 = vector.multi_reduction <add>, %89, %cst_84 [0] : vector<64x32xf32> to vector<32xf32>
    %95 = vector.shape_cast %94 : vector<32xf32> to vector<1x32xf32>
    %96 = arith.mulf %89, %89 : vector<64x32xf32>
    %cst_85 = arith.constant dense<0.000000e+00> : vector<32xf32>
    %97 = vector.multi_reduction <add>, %96, %cst_85 [0] : vector<64x32xf32> to vector<32xf32>
    %98 = vector.shape_cast %97 : vector<32xf32> to vector<1x32xf32>
    %99 = tpu.concatenate %95, %98 in 0 : vector<1x32xf32>, vector<1x32xf32> -> vector<2x32xf32>
    %c0_86 = arith.constant 0 : index
    %c0_87 = arith.constant 0 : index
    %c0_88 = arith.constant 0 : index
    %100 = vector.load %arg7[%c0_86, %c0_87, %c0_88] : memref<1x2x32xf32, #tpu.memory_space<vmem>>, vector<1x2x32xf32>
    %101 = vector.shape_cast %100 : vector<1x2x32xf32> to vector<2x32xf32>
    %102 = vector.shape_cast %99 : vector<2x32xf32> to vector<1x2x32xf32>
    tpu.vector_store %arg7[%c0_86, %c0_87, %c0_88], %102 {strides = array<i32>} : memref<1x2x32xf32, #tpu.memory_space<vmem>>, vector<1x2x32xf32>,
    return
  }
  func.func @transform_0(%arg0: i32) -> (i32, i32, i32, i32) {
    %c0_i32 = arith.constant 0 : i32
    %c0_i32_0 = arith.constant 0 : i32
    %c0_i32_1 = arith.constant 0 : i32
    %c0_i32_2 = arith.constant 0 : i32
    return %arg0, %c0_i32, %c0_i32_0, %c0_i32_1 : i32, i32, i32, i32
  }
  func.func @transform_1(%arg0: i32) -> (i32, i32, i32) {
    %c0_i32 = arith.constant 0 : i32
    %c0_i32_0 = arith.constant 0 : i32
    %c0_i32_1 = arith.constant 0 : i32
    %c0_i32_2 = arith.constant 0 : i32
    return %c0_i32, %c0_i32_0, %c0_i32_1 : i32, i32, i32
  }
  func.func @transform_2(%arg0: i32) -> (i32, i32) {
    %c0_i32 = arith.constant 0 : i32
    %c0_i32_0 = arith.constant 0 : i32
    %c0_i32_1 = arith.constant 0 : i32
    return %c0_i32, %c0_i32_0 : i32, i32
  }
  func.func @transform_3(%arg0: i32) -> (i32, i32) {
    %c0_i32 = arith.constant 0 : i32
    %c0_i32_0 = arith.constant 0 : i32
    %c0_i32_1 = arith.constant 0 : i32
    return %c0_i32, %c0_i32_0 : i32, i32
  }
  func.func @transform_4(%arg0: i32) -> (i32, i32, i32) {
    %c0_i32 = arith.constant 0 : i32
    %c0_i32_0 = arith.constant 0 : i32
    %c0_i32_1 = arith.constant 0 : i32
    %c0_i32_2 = arith.constant 0 : i32
    return %c0_i32, %c0_i32_0, %c0_i32_1 : i32, i32, i32
  }
  func.func @transform_5(%arg0: i32) -> (i32, i32, i32, i32) {
    %c0_i32 = arith.constant 0 : i32
    %c0_i32_0 = arith.constant 0 : i32
    %c0_i32_1 = arith.constant 0 : i32
    %c0_i32_2 = arith.constant 0 : i32
    return %arg0, %c0_i32, %c0_i32_0, %c0_i32_1 : i32, i32, i32, i32
  }
  func.func @transform_6(%arg0: i32) -> (i32, i32, i32) {
    %c0_i32 = arith.constant 0 : i32
    %c0_i32_0 = arith.constant 0 : i32
    %c0_i32_1 = arith.constant 0 : i32
    return %arg0, %c0_i32, %c0_i32_0 : i32, i32, i32
  }
}

module attributes {stable_mosaic.version = 11 : i64} {
  func.func @k3(%arg0: i32, %arg1: memref<1x8x8x32xf32, #tpu.memory_space<vmem>>, %arg2: memref<2x2x32xf32, #tpu.memory_space<vmem>>, %arg3: memref<1x32xf32, #tpu.memory_space<vmem>>, %arg4: memref<1x32xf32, #tpu.memory_space<vmem>>, %arg5: memref<32x2xf32, #tpu.memory_space<vmem>>, %arg6: memref<2x32xf32, #tpu.memory_space<vmem>>, %arg7: memref<98xf32, #tpu.memory_space<smem>>, %arg8: memref<1x8x8x32xf32, #tpu.memory_space<vmem>>, %arg9: memref<1x8x8x32xf32, #tpu.memory_space<vmem>>, %arg10: memref<2x14x14xf32, #tpu.memory_space<vmem>>) attributes {dimension_semantics = [#tpu.dimension_semantics<parallel>], iteration_bounds = array<i64: 2>, scalar_prefetch = 0 : i64, scratch_operands = 1 : i64, tpu.core_type = #tpu.core_type<tc>, window_params = [{transform_indices = @transform_0, window_bounds = array<i64: 1, 8, 8, 32>}, {pipeline_mode = #tpu.pipeline_mode<synchronous>, transform_indices = @transform_1, window_bounds = array<i64: 2, 2, 32>}, {pipeline_mode = #tpu.pipeline_mode<synchronous>, transform_indices = @transform_2, window_bounds = array<i64: 1, 32>}, {pipeline_mode = #tpu.pipeline_mode<synchronous>, transform_indices = @transform_3, window_bounds = array<i64: 1, 32>}, {pipeline_mode = #tpu.pipeline_mode<synchronous>, transform_indices = @transform_4, window_bounds = array<i64: 32, 2>}, {pipeline_mode = #tpu.pipeline_mode<synchronous>, transform_indices = @transform_5, window_bounds = array<i64: 2, 32>}, {transform_indices = @transform_6, window_bounds = array<i64: 98>}, {transform_indices = @transform_7, window_bounds = array<i64: 1, 8, 8, 32>}, {transform_indices = @transform_8, window_bounds = array<i64: 1, 8, 8, 32>}]} {
    %c0 = arith.constant 0 : index
    %c0_0 = arith.constant 0 : index
    %c0_1 = arith.constant 0 : index
    %0 = vector.load %arg2[%c0, %c0_0, %c0_1] : memref<2x2x32xf32, #tpu.memory_space<vmem>>, vector<2x2x32xf32>
    %cst = arith.constant dense<0.000000e+00> : vector<2x32xf32>
    %1 = vector.multi_reduction <add>, %0, %cst [0] : vector<2x2x32xf32> to vector<2x32xf32>
    %2 = vector.extract_strided_slice %1 {offsets = [0, 0], sizes = [1, 32], strides = [1, 1]} : vector<2x32xf32> to vector<1x32xf32>
    %cst_2 = arith.constant 7.812500e-03 : f32
    %3 = vector.broadcast %cst_2 : f32 to vector<1x32xf32>
    %4 = arith.mulf %2, %3 : vector<1x32xf32>
    %5 = vector.extract_strided_slice %1 {offsets = [1, 0], sizes = [1, 32], strides = [1, 1]} : vector<2x32xf32> to vector<1x32xf32>
    %cst_3 = arith.constant 7.812500e-03 : f32
    %6 = vector.broadcast %cst_3 : f32 to vector<1x32xf32>
    %7 = arith.mulf %5, %6 : vector<1x32xf32>
    %8 = arith.mulf %4, %4 : vector<1x32xf32>
    %9 = arith.subf %7, %8 : vector<1x32xf32>
    %cst_4 = arith.constant 0.000000e+00 : f32
    %10 = vector.broadcast %cst_4 : f32 to vector<1x32xf32>
    %11 = arith.maximumf %9, %10 : vector<1x32xf32>
    %cst_5 = arith.constant 9.99999974E-6 : f32
    %12 = vector.broadcast %cst_5 : f32 to vector<1x32xf32>
    %13 = arith.addf %11, %12 : vector<1x32xf32>
    %14 = math.rsqrt %13 : vector<1x32xf32>
    %c0_6 = arith.constant 0 : index
    %c0_7 = arith.constant 0 : index
    %15 = vector.load %arg3[%c0_6, %c0_7] : memref<1x32xf32, #tpu.memory_space<vmem>>, vector<1x32xf32>
    %16 = arith.mulf %14, %15 : vector<1x32xf32>
    %c0_8 = arith.constant 0 : index
    %c0_9 = arith.constant 0 : index
    %17 = vector.load %arg4[%c0_8, %c0_9] : memref<1x32xf32, #tpu.memory_space<vmem>>, vector<1x32xf32>
    %18 = arith.mulf %4, %16 : vector<1x32xf32>
    %19 = arith.subf %17, %18 : vector<1x32xf32>
    %c0_10 = arith.constant 0 : index
    %c0_11 = arith.constant 0 : index
    %c0_12 = arith.constant 0 : index
    %c0_13 = arith.constant 0 : index
    %20 = vector.load %arg1[%c0_10, %c0_11, %c0_12, %c0_13] : memref<1x8x8x32xf32, #tpu.memory_space<vmem>>, vector<1x8x8x32xf32>
    %21 = vector.shape_cast %20 : vector<1x8x8x32xf32> to vector<8x8x32xf32>
    %22 = vector.shape_cast %21 : vector<8x8x32xf32> to vector<64x32xf32>
    %23 = vector.broadcast %16 : vector<1x32xf32> to vector<64x32xf32>
    %24 = arith.mulf %22, %23 : vector<64x32xf32>
    %25 = vector.broadcast %19 : vector<1x32xf32> to vector<64x32xf32>
    %26 = arith.addf %24, %25 : vector<64x32xf32>
    %cst_14 = arith.constant dense<0.000000e+00> : vector<32xf32>
    %27 = vector.multi_reduction <add>, %26, %cst_14 [0] : vector<64x32xf32> to vector<32xf32>
    %28 = vector.shape_cast %27 : vector<32xf32> to vector<1x32xf32>
    %cst_15 = arith.constant 6.400000e+01 : f32
    %29 = vector.broadcast %cst_15 : f32 to vector<1x32xf32>
    %30 = arith.divf %28, %29 : vector<1x32xf32>
    %cst_16 = arith.constant dense<0xFF800000> : vector<32xf32>
    %31 = vector.multi_reduction <maximumf>, %26, %cst_16 [0] : vector<64x32xf32> to vector<32xf32>
    %32 = vector.shape_cast %31 : vector<32xf32> to vector<1x32xf32>
    %33 = tpu.concatenate %30, %32 in 0 : vector<1x32xf32>, vector<1x32xf32> -> vector<2x32xf32>
    %c0_17 = arith.constant 0 : index
    %c0_18 = arith.constant 0 : index
    %34 = vector.load %arg5[%c0_17, %c0_18] : memref<32x2xf32, #tpu.memory_space<vmem>>, vector<32x2xf32>
    %cst_19 = arith.constant dense<0.000000e+00> : vector<2x2xf32>
    %35 = tpu.matmul %33, %34, %cst_19 {dimension_numbers = #tpu.dot_dimension_numbers<[1], [0], [0], [1], [0, 0, 1, 1], [], []>} : vector<2x32xf32>, vector<32x2xf32>, vector<2x2xf32> -> vector<2x2xf32>
    %cst_20 = arith.constant 0.000000e+00 : f32
    %36 = vector.broadcast %cst_20 : f32 to vector<2x2xf32>
    %37 = arith.maximumf %35, %36 : vector<2x2xf32>
    %c0_21 = arith.constant 0 : index
    %c0_22 = arith.constant 0 : index
    %38 = vector.load %arg6[%c0_21, %c0_22] : memref<2x32xf32, #tpu.memory_space<vmem>>, vector<2x32xf32>
    %cst_23 = arith.constant dense<0.000000e+00> : vector<2x32xf32>
    %39 = tpu.matmul %37, %38, %cst_23 {dimension_numbers = #tpu.dot_dimension_numbers<[1], [0], [0], [1], [0, 0, 1, 1], [], []>} : vector<2x2xf32>, vector<2x32xf32>, vector<2x32xf32> -> vector<2x32xf32>
    %40 = vector.extract_strided_slice %39 {offsets = [0, 0], sizes = [1, 32], strides = [1, 1]} : vector<2x32xf32> to vector<1x32xf32>
    %41 = vector.extract_strided_slice %39 {offsets = [1, 0], sizes = [1, 32], strides = [1, 1]} : vector<2x32xf32> to vector<1x32xf32>
    %42 = arith.addf %40, %41 : vector<1x32xf32>
    %43 = arith.negf %42 : vector<1x32xf32>
    %44 = math.exp %43 : vector<1x32xf32>
    %cst_24 = arith.constant 1.000000e+00 : f32
    %45 = vector.broadcast %cst_24 : f32 to vector<1x32xf32>
    %46 = arith.addf %45, %44 : vector<1x32xf32>
    %47 = arith.divf %45, %46 : vector<1x32xf32>
    %48 = vector.broadcast %47 : vector<1x32xf32> to vector<64x32xf32>
    %49 = arith.mulf %26, %48 : vector<64x32xf32>
    %50 = vector.shape_cast %49 : vector<64x32xf32> to vector<8x8x32xf32>
    %cst_25 = arith.constant dense<0.000000e+00> : vector<8x8xf32>
    %51 = vector.multi_reduction <add>, %50, %cst_25 [2] : vector<8x8x32xf32> to vector<8x8xf32>
    %cst_26 = arith.constant 3.200000e+01 : f32
    %52 = vector.broadcast %cst_26 : f32 to vector<8x8xf32>
    %53 = arith.divf %51, %52 : vector<8x8xf32>
    %cst_27 = arith.constant dense<0xFF800000> : vector<8x8xf32>
    %54 = vector.multi_reduction <maximumf>, %50, %cst_27 [2] : vector<8x8x32xf32> to vector<8x8xf32>
    %55 = vector.shape_cast %53 : vector<8x8xf32> to vector<1x8x8xf32>
    %56 = vector.shape_cast %54 : vector<8x8xf32> to vector<1x8x8xf32>
    %57 = tpu.concatenate %55, %56 in 0 : vector<1x8x8xf32>, vector<1x8x8xf32> -> vector<2x8x8xf32>
    %cst_28 = arith.constant 0.000000e+00 : f32
    %58 = vector.broadcast %cst_28 : f32 to vector<2x8x3xf32>
    %59 = tpu.concatenate %58, %57, %58 in 2 : vector<2x8x3xf32>, vector<2x8x8xf32>, vector<2x8x3xf32> -> vector<2x8x14xf32>
    %c0_29 = arith.constant 0 : index
    %c3 = arith.constant 3 : index
    %c0_30 = arith.constant 0 : index
    %60 = vector.load %arg10[%c0_29, %c3, %c0_30] : memref<2x14x14xf32, #tpu.memory_space<vmem>>, vector<2x8x14xf32>
    tpu.vector_store %arg10[%c0_29, %c3, %c0_30], %59 {strides = array<i32>} : memref<2x14x14xf32, #tpu.memory_space<vmem>>, vector<2x8x14xf32>,
    %cst_31 = arith.constant 0.000000e+00 : f32
    %61 = vector.broadcast %cst_31 : f32 to vector<2x3x14xf32>
    %c0_32 = arith.constant 0 : index
    %c0_33 = arith.constant 0 : index
    %c0_34 = arith.constant 0 : index
    %62 = vector.load %arg10[%c0_32, %c0_33, %c0_34] : memref<2x14x14xf32, #tpu.memory_space<vmem>>, vector<2x3x14xf32>
    tpu.vector_store %arg10[%c0_32, %c0_33, %c0_34], %61 {strides = array<i32>} : memref<2x14x14xf32, #tpu.memory_space<vmem>>, vector<2x3x14xf32>,
    %c0_35 = arith.constant 0 : index
    %c11 = arith.constant 11 : index
    %c0_36 = arith.constant 0 : index
    %63 = vector.load %arg10[%c0_35, %c11, %c0_36] : memref<2x14x14xf32, #tpu.memory_space<vmem>>, vector<2x3x14xf32>
    tpu.vector_store %arg10[%c0_35, %c11, %c0_36], %61 {strides = array<i32>} : memref<2x14x14xf32, #tpu.memory_space<vmem>>, vector<2x3x14xf32>,
    %cst_37 = arith.constant 0.000000e+00 : f32
    %64 = vector.broadcast %cst_37 : f32 to vector<8x8xf32>
    %c0_38 = arith.constant 0 : index
    %65 = memref.load %arg7[%c0_38] : memref<98xf32, #tpu.memory_space<smem>>
    %c1 = arith.constant 1 : index
    %66 = memref.load %arg7[%c1] : memref<98xf32, #tpu.memory_space<smem>>
    %c0_39 = arith.constant 0 : index
    %c0_40 = arith.constant 0 : index
    %c0_41 = arith.constant 0 : index
    %67 = vector.load %arg10[%c0_39, %c0_40, %c0_41] : memref<2x14x14xf32, #tpu.memory_space<vmem>>, vector<1x8x8xf32>
    %68 = vector.shape_cast %67 : vector<1x8x8xf32> to vector<8x8xf32>
    %69 = vector.broadcast %65 : f32 to vector<8x8xf32>
    %70 = arith.mulf %69, %68 : vector<8x8xf32>
    %71 = arith.addf %64, %70 : vector<8x8xf32>
    %c1_42 = arith.constant 1 : index
    %c0_43 = arith.constant 0 : index
    %c0_44 = arith.constant 0 : index
    %72 = vector.load %arg10[%c1_42, %c0_43, %c0_44] : memref<2x14x14xf32, #tpu.memory_space<vmem>>, vector<1x8x8xf32>
    %73 = vector.shape_cast %72 : vector<1x8x8xf32> to vector<8x8xf32>
    %74 = vector.broadcast %66 : f32 to vector<8x8xf32>
    %75 = arith.mulf %74, %73 : vector<8x8xf32>
    %76 = arith.addf %71, %75 : vector<8x8xf32>
    %c2 = arith.constant 2 : index
    %77 = memref.load %arg7[%c2] : memref<98xf32, #tpu.memory_space<smem>>
    %c3_45 = arith.constant 3 : index
    %78 = memref.load %arg7[%c3_45] : memref<98xf32, #tpu.memory_space<smem>>
    %c0_46 = arith.constant 0 : index
    %c0_47 = arith.constant 0 : index
    %c1_48 = arith.constant 1 : index
    %79 = vector.load %arg10[%c0_46, %c0_47, %c1_48] : memref<2x14x14xf32, #tpu.memory_space<vmem>>, vector<1x8x8xf32>
    %80 = vector.shape_cast %79 : vector<1x8x8xf32> to vector<8x8xf32>
    %81 = vector.broadcast %77 : f32 to vector<8x8xf32>
    %82 = arith.mulf %81, %80 : vector<8x8xf32>
    %83 = arith.addf %76, %82 : vector<8x8xf32>
    %c1_49 = arith.constant 1 : index
    %c0_50 = arith.constant 0 : index
    %c1_51 = arith.constant 1 : index
    %84 = vector.load %arg10[%c1_49, %c0_50, %c1_51] : memref<2x14x14xf32, #tpu.memory_space<vmem>>, vector<1x8x8xf32>
    %85 = vector.shape_cast %84 : vector<1x8x8xf32> to vector<8x8xf32>
    %86 = vector.broadcast %78 : f32 to vector<8x8xf32>
    %87 = arith.mulf %86, %85 : vector<8x8xf32>
    %88 = arith.addf %83, %87 : vector<8x8xf32>
    %c4 = arith.constant 4 : index
    %89 = memref.load %arg7[%c4] : memref<98xf32, #tpu.memory_space<smem>>
    %c5 = arith.constant 5 : index
    %90 = memref.load %arg7[%c5] : memref<98xf32, #tpu.memory_space<smem>>
    %c0_52 = arith.constant 0 : index
    %c0_53 = arith.constant 0 : index
    %c2_54 = arith.constant 2 : index
    %91 = vector.load %arg10[%c0_52, %c0_53, %c2_54] : memref<2x14x14xf32, #tpu.memory_space<vmem>>, vector<1x8x8xf32>
    %92 = vector.shape_cast %91 : vector<1x8x8xf32> to vector<8x8xf32>
    %93 = vector.broadcast %89 : f32 to vector<8x8xf32>
    %94 = arith.mulf %93, %92 : vector<8x8xf32>
    %95 = arith.addf %88, %94 : vector<8x8xf32>
    %c1_55 = arith.constant 1 : index
    %c0_56 = arith.constant 0 : index
    %c2_57 = arith.constant 2 : index
    %96 = vector.load %arg10[%c1_55, %c0_56, %c2_57] : memref<2x14x14xf32, #tpu.memory_space<vmem>>, vector<1x8x8xf32>
    %97 = vector.shape_cast %96 : vector<1x8x8xf32> to vector<8x8xf32>
    %98 = vector.broadcast %90 : f32 to vector<8x8xf32>
    %99 = arith.mulf %98, %97 : vector<8x8xf32>
    %100 = arith.addf %95, %99 : vector<8x8xf32>
    %c6 = arith.constant 6 : index
    %101 = memref.load %arg7[%c6] : memref<98xf32, #tpu.memory_space<smem>>
    %c7 = arith.constant 7 : index
    %102 = memref.load %arg7[%c7] : memref<98xf32, #tpu.memory_space<smem>>
    %c0_58 = arith.constant 0 : index
    %c0_59 = arith.constant 0 : index
    %c3_60 = arith.constant 3 : index
    %103 = vector.load %arg10[%c0_58, %c0_59, %c3_60] : memref<2x14x14xf32, #tpu.memory_space<vmem>>, vector<1x8x8xf32>
    %104 = vector.shape_cast %103 : vector<1x8x8xf32> to vector<8x8xf32>
    %105 = vector.broadcast %101 : f32 to vector<8x8xf32>
    %106 = arith.mulf %105, %104 : vector<8x8xf32>
    %107 = arith.addf %100, %106 : vector<8x8xf32>
    %c1_61 = arith.constant 1 : index
    %c0_62 = arith.constant 0 : index
    %c3_63 = arith.constant 3 : index
    %108 = vector.load %arg10[%c1_61, %c0_62, %c3_63] : memref<2x14x14xf32, #tpu.memory_space<vmem>>, vector<1x8x8xf32>
    %109 = vector.shape_cast %108 : vector<1x8x8xf32> to vector<8x8xf32>
    %110 = vector.broadcast %102 : f32 to vector<8x8xf32>
    %111 = arith.mulf %110, %109 : vector<8x8xf32>
    %112 = arith.addf %107, %111 : vector<8x8xf32>
    %c8 = arith.constant 8 : index
    %113 = memref.load %arg7[%c8] : memref<98xf32, #tpu.memory_space<smem>>
    %c9 = arith.constant 9 : index
    %114 = memref.load %arg7[%c9] : memref<98xf32, #tpu.memory_space<smem>>
    %c0_64 = arith.constant 0 : index
    %c0_65 = arith.constant 0 : index
    %c4_66 = arith.constant 4 : index
    %115 = vector.load %arg10[%c0_64, %c0_65, %c4_66] : memref<2x14x14xf32, #tpu.memory_space<vmem>>, vector<1x8x8xf32>
    %116 = vector.shape_cast %115 : vector<1x8x8xf32> to vector<8x8xf32>
    %117 = vector.broadcast %113 : f32 to vector<8x8xf32>
    %118 = arith.mulf %117, %116 : vector<8x8xf32>
    %119 = arith.addf %112, %118 : vector<8x8xf32>
    %c1_67 = arith.constant 1 : index
    %c0_68 = arith.constant 0 : index
    %c4_69 = arith.constant 4 : index
    %120 = vector.load %arg10[%c1_67, %c0_68, %c4_69] : memref<2x14x14xf32, #tpu.memory_space<vmem>>, vector<1x8x8xf32>
    %121 = vector.shape_cast %120 : vector<1x8x8xf32> to vector<8x8xf32>
    %122 = vector.broadcast %114 : f32 to vector<8x8xf32>
    %123 = arith.mulf %122, %121 : vector<8x8xf32>
    %124 = arith.addf %119, %123 : vector<8x8xf32>
    %c10 = arith.constant 10 : index
    %125 = memref.load %arg7[%c10] : memref<98xf32, #tpu.memory_space<smem>>
    %c11_70 = arith.constant 11 : index
    %126 = memref.load %arg7[%c11_70] : memref<98xf32, #tpu.memory_space<smem>>
    %c0_71 = arith.constant 0 : index
    %c0_72 = arith.constant 0 : index
    %c5_73 = arith.constant 5 : index
    %127 = vector.load %arg10[%c0_71, %c0_72, %c5_73] : memref<2x14x14xf32, #tpu.memory_space<vmem>>, vector<1x8x8xf32>
    %128 = vector.shape_cast %127 : vector<1x8x8xf32> to vector<8x8xf32>
    %129 = vector.broadcast %125 : f32 to vector<8x8xf32>
    %130 = arith.mulf %129, %128 : vector<8x8xf32>
    %131 = arith.addf %124, %130 : vector<8x8xf32>
    %c1_74 = arith.constant 1 : index
    %c0_75 = arith.constant 0 : index
    %c5_76 = arith.constant 5 : index
    %132 = vector.load %arg10[%c1_74, %c0_75, %c5_76] : memref<2x14x14xf32, #tpu.memory_space<vmem>>, vector<1x8x8xf32>
    %133 = vector.shape_cast %132 : vector<1x8x8xf32> to vector<8x8xf32>
    %134 = vector.broadcast %126 : f32 to vector<8x8xf32>
    %135 = arith.mulf %134, %133 : vector<8x8xf32>
    %136 = arith.addf %131, %135 : vector<8x8xf32>
    %c12 = arith.constant 12 : index
    %137 = memref.load %arg7[%c12] : memref<98xf32, #tpu.memory_space<smem>>
    %c13 = arith.constant 13 : index
    %138 = memref.load %arg7[%c13] : memref<98xf32, #tpu.memory_space<smem>>
    %c0_77 = arith.constant 0 : index
    %c0_78 = arith.constant 0 : index
    %c6_79 = arith.constant 6 : index
    %139 = vector.load %arg10[%c0_77, %c0_78, %c6_79] : memref<2x14x14xf32, #tpu.memory_space<vmem>>, vector<1x8x8xf32>
    %140 = vector.shape_cast %139 : vector<1x8x8xf32> to vector<8x8xf32>
    %141 = vector.broadcast %137 : f32 to vector<8x8xf32>
    %142 = arith.mulf %141, %140 : vector<8x8xf32>
    %143 = arith.addf %136, %142 : vector<8x8xf32>
    %c1_80 = arith.constant 1 : index
    %c0_81 = arith.constant 0 : index
    %c6_82 = arith.constant 6 : index
    %144 = vector.load %arg10[%c1_80, %c0_81, %c6_82] : memref<2x14x14xf32, #tpu.memory_space<vmem>>, vector<1x8x8xf32>
    %145 = vector.shape_cast %144 : vector<1x8x8xf32> to vector<8x8xf32>
    %146 = vector.broadcast %138 : f32 to vector<8x8xf32>
    %147 = arith.mulf %146, %145 : vector<8x8xf32>
    %148 = arith.addf %143, %147 : vector<8x8xf32>
    %c14 = arith.constant 14 : index
    %149 = memref.load %arg7[%c14] : memref<98xf32, #tpu.memory_space<smem>>
    %c15 = arith.constant 15 : index
    %150 = memref.load %arg7[%c15] : memref<98xf32, #tpu.memory_space<smem>>
    %c0_83 = arith.constant 0 : index
    %c1_84 = arith.constant 1 : index
    %c0_85 = arith.constant 0 : index
    %151 = vector.load %arg10[%c0_83, %c1_84, %c0_85] : memref<2x14x14xf32, #tpu.memory_space<vmem>>, vector<1x8x8xf32>
    %152 = vector.shape_cast %151 : vector<1x8x8xf32> to vector<8x8xf32>
    %153 = vector.broadcast %149 : f32 to vector<8x8xf32>
    %154 = arith.mulf %153, %152 : vector<8x8xf32>
    %155 = arith.addf %148, %154 : vector<8x8xf32>
    %c1_86 = arith.constant 1 : index
    %c1_87 = arith.constant 1 : index
    %c0_88 = arith.constant 0 : index
    %156 = vector.load %arg10[%c1_86, %c1_87, %c0_88] : memref<2x14x14xf32, #tpu.memory_space<vmem>>, vector<1x8x8xf32>
    %157 = vector.shape_cast %156 : vector<1x8x8xf32> to vector<8x8xf32>
    %158 = vector.broadcast %150 : f32 to vector<8x8xf32>
    %159 = arith.mulf %158, %157 : vector<8x8xf32>
    %160 = arith.addf %155, %159 : vector<8x8xf32>
    %c16 = arith.constant 16 : index
    %161 = memref.load %arg7[%c16] : memref<98xf32, #tpu.memory_space<smem>>
    %c17 = arith.constant 17 : index
    %162 = memref.load %arg7[%c17] : memref<98xf32, #tpu.memory_space<smem>>
    %c0_89 = arith.constant 0 : index
    %c1_90 = arith.constant 1 : index
    %c1_91 = arith.constant 1 : index
    %163 = vector.load %arg10[%c0_89, %c1_90, %c1_91] : memref<2x14x14xf32, #tpu.memory_space<vmem>>, vector<1x8x8xf32>
    %164 = vector.shape_cast %163 : vector<1x8x8xf32> to vector<8x8xf32>
    %165 = vector.broadcast %161 : f32 to vector<8x8xf32>
    %166 = arith.mulf %165, %164 : vector<8x8xf32>
    %167 = arith.addf %160, %166 : vector<8x8xf32>
    %c1_92 = arith.constant 1 : index
    %c1_93 = arith.constant 1 : index
    %c1_94 = arith.constant 1 : index
    %168 = vector.load %arg10[%c1_92, %c1_93, %c1_94] : memref<2x14x14xf32, #tpu.memory_space<vmem>>, vector<1x8x8xf32>
    %169 = vector.shape_cast %168 : vector<1x8x8xf32> to vector<8x8xf32>
    %170 = vector.broadcast %162 : f32 to vector<8x8xf32>
    %171 = arith.mulf %170, %169 : vector<8x8xf32>
    %172 = arith.addf %167, %171 : vector<8x8xf32>
    %c18 = arith.constant 18 : index
    %173 = memref.load %arg7[%c18] : memref<98xf32, #tpu.memory_space<smem>>
    %c19 = arith.constant 19 : index
    %174 = memref.load %arg7[%c19] : memref<98xf32, #tpu.memory_space<smem>>
    %c0_95 = arith.constant 0 : index
    %c1_96 = arith.constant 1 : index
    %c2_97 = arith.constant 2 : index
    %175 = vector.load %arg10[%c0_95, %c1_96, %c2_97] : memref<2x14x14xf32, #tpu.memory_space<vmem>>, vector<1x8x8xf32>
    %176 = vector.shape_cast %175 : vector<1x8x8xf32> to vector<8x8xf32>
    %177 = vector.broadcast %173 : f32 to vector<8x8xf32>
    %178 = arith.mulf %177, %176 : vector<8x8xf32>
    %179 = arith.addf %172, %178 : vector<8x8xf32>
    %c1_98 = arith.constant 1 : index
    %c1_99 = arith.constant 1 : index
    %c2_100 = arith.constant 2 : index
    %180 = vector.load %arg10[%c1_98, %c1_99, %c2_100] : memref<2x14x14xf32, #tpu.memory_space<vmem>>, vector<1x8x8xf32>
    %181 = vector.shape_cast %180 : vector<1x8x8xf32> to vector<8x8xf32>
    %182 = vector.broadcast %174 : f32 to vector<8x8xf32>
    %183 = arith.mulf %182, %181 : vector<8x8xf32>
    %184 = arith.addf %179, %183 : vector<8x8xf32>
    %c20 = arith.constant 20 : index
    %185 = memref.load %arg7[%c20] : memref<98xf32, #tpu.memory_space<smem>>
    %c21 = arith.constant 21 : index
    %186 = memref.load %arg7[%c21] : memref<98xf32, #tpu.memory_space<smem>>
    %c0_101 = arith.constant 0 : index
    %c1_102 = arith.constant 1 : index
    %c3_103 = arith.constant 3 : index
    %187 = vector.load %arg10[%c0_101, %c1_102, %c3_103] : memref<2x14x14xf32, #tpu.memory_space<vmem>>, vector<1x8x8xf32>
    %188 = vector.shape_cast %187 : vector<1x8x8xf32> to vector<8x8xf32>
    %189 = vector.broadcast %185 : f32 to vector<8x8xf32>
    %190 = arith.mulf %189, %188 : vector<8x8xf32>
    %191 = arith.addf %184, %190 : vector<8x8xf32>
    %c1_104 = arith.constant 1 : index
    %c1_105 = arith.constant 1 : index
    %c3_106 = arith.constant 3 : index
    %192 = vector.load %arg10[%c1_104, %c1_105, %c3_106] : memref<2x14x14xf32, #tpu.memory_space<vmem>>, vector<1x8x8xf32>
    %193 = vector.shape_cast %192 : vector<1x8x8xf32> to vector<8x8xf32>
    %194 = vector.broadcast %186 : f32 to vector<8x8xf32>
    %195 = arith.mulf %194, %193 : vector<8x8xf32>
    %196 = arith.addf %191, %195 : vector<8x8xf32>
    %c22 = arith.constant 22 : index
    %197 = memref.load %arg7[%c22] : memref<98xf32, #tpu.memory_space<smem>>
    %c23 = arith.constant 23 : index
    %198 = memref.load %arg7[%c23] : memref<98xf32, #tpu.memory_space<smem>>
    %c0_107 = arith.constant 0 : index
    %c1_108 = arith.constant 1 : index
    %c4_109 = arith.constant 4 : index
    %199 = vector.load %arg10[%c0_107, %c1_108, %c4_109] : memref<2x14x14xf32, #tpu.memory_space<vmem>>, vector<1x8x8xf32>
    %200 = vector.shape_cast %199 : vector<1x8x8xf32> to vector<8x8xf32>
    %201 = vector.broadcast %197 : f32 to vector<8x8xf32>
    %202 = arith.mulf %201, %200 : vector<8x8xf32>
    %203 = arith.addf %196, %202 : vector<8x8xf32>
    %c1_110 = arith.constant 1 : index
    %c1_111 = arith.constant 1 : index
    %c4_112 = arith.constant 4 : index
    %204 = vector.load %arg10[%c1_110, %c1_111, %c4_112] : memref<2x14x14xf32, #tpu.memory_space<vmem>>, vector<1x8x8xf32>
    %205 = vector.shape_cast %204 : vector<1x8x8xf32> to vector<8x8xf32>
    %206 = vector.broadcast %198 : f32 to vector<8x8xf32>
    %207 = arith.mulf %206, %205 : vector<8x8xf32>
    %208 = arith.addf %203, %207 : vector<8x8xf32>
    %c24 = arith.constant 24 : index
    %209 = memref.load %arg7[%c24] : memref<98xf32, #tpu.memory_space<smem>>
    %c25 = arith.constant 25 : index
    %210 = memref.load %arg7[%c25] : memref<98xf32, #tpu.memory_space<smem>>
    %c0_113 = arith.constant 0 : index
    %c1_114 = arith.constant 1 : index
    %c5_115 = arith.constant 5 : index
    %211 = vector.load %arg10[%c0_113, %c1_114, %c5_115] : memref<2x14x14xf32, #tpu.memory_space<vmem>>, vector<1x8x8xf32>
    %212 = vector.shape_cast %211 : vector<1x8x8xf32> to vector<8x8xf32>
    %213 = vector.broadcast %209 : f32 to vector<8x8xf32>
    %214 = arith.mulf %213, %212 : vector<8x8xf32>
    %215 = arith.addf %208, %214 : vector<8x8xf32>
    %c1_116 = arith.constant 1 : index
    %c1_117 = arith.constant 1 : index
    %c5_118 = arith.constant 5 : index
    %216 = vector.load %arg10[%c1_116, %c1_117, %c5_118] : memref<2x14x14xf32, #tpu.memory_space<vmem>>, vector<1x8x8xf32>
    %217 = vector.shape_cast %216 : vector<1x8x8xf32> to vector<8x8xf32>
    %218 = vector.broadcast %210 : f32 to vector<8x8xf32>
    %219 = arith.mulf %218, %217 : vector<8x8xf32>
    %220 = arith.addf %215, %219 : vector<8x8xf32>
    %c26 = arith.constant 26 : index
    %221 = memref.load %arg7[%c26] : memref<98xf32, #tpu.memory_space<smem>>
    %c27 = arith.constant 27 : index
    %222 = memref.load %arg7[%c27] : memref<98xf32, #tpu.memory_space<smem>>
    %c0_119 = arith.constant 0 : index
    %c1_120 = arith.constant 1 : index
    %c6_121 = arith.constant 6 : index
    %223 = vector.load %arg10[%c0_119, %c1_120, %c6_121] : memref<2x14x14xf32, #tpu.memory_space<vmem>>, vector<1x8x8xf32>
    %224 = vector.shape_cast %223 : vector<1x8x8xf32> to vector<8x8xf32>
    %225 = vector.broadcast %221 : f32 to vector<8x8xf32>
    %226 = arith.mulf %225, %224 : vector<8x8xf32>
    %227 = arith.addf %220, %226 : vector<8x8xf32>
    %c1_122 = arith.constant 1 : index
    %c1_123 = arith.constant 1 : index
    %c6_124 = arith.constant 6 : index
    %228 = vector.load %arg10[%c1_122, %c1_123, %c6_124] : memref<2x14x14xf32, #tpu.memory_space<vmem>>, vector<1x8x8xf32>
    %229 = vector.shape_cast %228 : vector<1x8x8xf32> to vector<8x8xf32>
    %230 = vector.broadcast %222 : f32 to vector<8x8xf32>
    %231 = arith.mulf %230, %229 : vector<8x8xf32>
    %232 = arith.addf %227, %231 : vector<8x8xf32>
    %c28 = arith.constant 28 : index
    %233 = memref.load %arg7[%c28] : memref<98xf32, #tpu.memory_space<smem>>
    %c29 = arith.constant 29 : index
    %234 = memref.load %arg7[%c29] : memref<98xf32, #tpu.memory_space<smem>>
    %c0_125 = arith.constant 0 : index
    %c2_126 = arith.constant 2 : index
    %c0_127 = arith.constant 0 : index
    %235 = vector.load %arg10[%c0_125, %c2_126, %c0_127] : memref<2x14x14xf32, #tpu.memory_space<vmem>>, vector<1x8x8xf32>
    %236 = vector.shape_cast %235 : vector<1x8x8xf32> to vector<8x8xf32>
    %237 = vector.broadcast %233 : f32 to vector<8x8xf32>
    %238 = arith.mulf %237, %236 : vector<8x8xf32>
    %239 = arith.addf %232, %238 : vector<8x8xf32>
    %c1_128 = arith.constant 1 : index
    %c2_129 = arith.constant 2 : index
    %c0_130 = arith.constant 0 : index
    %240 = vector.load %arg10[%c1_128, %c2_129, %c0_130] : memref<2x14x14xf32, #tpu.memory_space<vmem>>, vector<1x8x8xf32>
    %241 = vector.shape_cast %240 : vector<1x8x8xf32> to vector<8x8xf32>
    %242 = vector.broadcast %234 : f32 to vector<8x8xf32>
    %243 = arith.mulf %242, %241 : vector<8x8xf32>
    %244 = arith.addf %239, %243 : vector<8x8xf32>
    %c30 = arith.constant 30 : index
    %245 = memref.load %arg7[%c30] : memref<98xf32, #tpu.memory_space<smem>>
    %c31 = arith.constant 31 : index
    %246 = memref.load %arg7[%c31] : memref<98xf32, #tpu.memory_space<smem>>
    %c0_131 = arith.constant 0 : index
    %c2_132 = arith.constant 2 : index
    %c1_133 = arith.constant 1 : index
    %247 = vector.load %arg10[%c0_131, %c2_132, %c1_133] : memref<2x14x14xf32, #tpu.memory_space<vmem>>, vector<1x8x8xf32>
    %248 = vector.shape_cast %247 : vector<1x8x8xf32> to vector<8x8xf32>
    %249 = vector.broadcast %245 : f32 to vector<8x8xf32>
    %250 = arith.mulf %249, %248 : vector<8x8xf32>
    %251 = arith.addf %244, %250 : vector<8x8xf32>
    %c1_134 = arith.constant 1 : index
    %c2_135 = arith.constant 2 : index
    %c1_136 = arith.constant 1 : index
    %252 = vector.load %arg10[%c1_134, %c2_135, %c1_136] : memref<2x14x14xf32, #tpu.memory_space<vmem>>, vector<1x8x8xf32>
    %253 = vector.shape_cast %252 : vector<1x8x8xf32> to vector<8x8xf32>
    %254 = vector.broadcast %246 : f32 to vector<8x8xf32>
    %255 = arith.mulf %254, %253 : vector<8x8xf32>
    %256 = arith.addf %251, %255 : vector<8x8xf32>
    %c32 = arith.constant 32 : index
    %257 = memref.load %arg7[%c32] : memref<98xf32, #tpu.memory_space<smem>>
    %c33 = arith.constant 33 : index
    %258 = memref.load %arg7[%c33] : memref<98xf32, #tpu.memory_space<smem>>
    %c0_137 = arith.constant 0 : index
    %c2_138 = arith.constant 2 : index
    %c2_139 = arith.constant 2 : index
    %259 = vector.load %arg10[%c0_137, %c2_138, %c2_139] : memref<2x14x14xf32, #tpu.memory_space<vmem>>, vector<1x8x8xf32>
    %260 = vector.shape_cast %259 : vector<1x8x8xf32> to vector<8x8xf32>
    %261 = vector.broadcast %257 : f32 to vector<8x8xf32>
    %262 = arith.mulf %261, %260 : vector<8x8xf32>
    %263 = arith.addf %256, %262 : vector<8x8xf32>
    %c1_140 = arith.constant 1 : index
    %c2_141 = arith.constant 2 : index
    %c2_142 = arith.constant 2 : index
    %264 = vector.load %arg10[%c1_140, %c2_141, %c2_142] : memref<2x14x14xf32, #tpu.memory_space<vmem>>, vector<1x8x8xf32>
    %265 = vector.shape_cast %264 : vector<1x8x8xf32> to vector<8x8xf32>
    %266 = vector.broadcast %258 : f32 to vector<8x8xf32>
    %267 = arith.mulf %266, %265 : vector<8x8xf32>
    %268 = arith.addf %263, %267 : vector<8x8xf32>
    %c34 = arith.constant 34 : index
    %269 = memref.load %arg7[%c34] : memref<98xf32, #tpu.memory_space<smem>>
    %c35 = arith.constant 35 : index
    %270 = memref.load %arg7[%c35] : memref<98xf32, #tpu.memory_space<smem>>
    %c0_143 = arith.constant 0 : index
    %c2_144 = arith.constant 2 : index
    %c3_145 = arith.constant 3 : index
    %271 = vector.load %arg10[%c0_143, %c2_144, %c3_145] : memref<2x14x14xf32, #tpu.memory_space<vmem>>, vector<1x8x8xf32>
    %272 = vector.shape_cast %271 : vector<1x8x8xf32> to vector<8x8xf32>
    %273 = vector.broadcast %269 : f32 to vector<8x8xf32>
    %274 = arith.mulf %273, %272 : vector<8x8xf32>
    %275 = arith.addf %268, %274 : vector<8x8xf32>
    %c1_146 = arith.constant 1 : index
    %c2_147 = arith.constant 2 : index
    %c3_148 = arith.constant 3 : index
    %276 = vector.load %arg10[%c1_146, %c2_147, %c3_148] : memref<2x14x14xf32, #tpu.memory_space<vmem>>, vector<1x8x8xf32>
    %277 = vector.shape_cast %276 : vector<1x8x8xf32> to vector<8x8xf32>
    %278 = vector.broadcast %270 : f32 to vector<8x8xf32>
    %279 = arith.mulf %278, %277 : vector<8x8xf32>
    %280 = arith.addf %275, %279 : vector<8x8xf32>
    %c36 = arith.constant 36 : index
    %281 = memref.load %arg7[%c36] : memref<98xf32, #tpu.memory_space<smem>>
    %c37 = arith.constant 37 : index
    %282 = memref.load %arg7[%c37] : memref<98xf32, #tpu.memory_space<smem>>
    %c0_149 = arith.constant 0 : index
    %c2_150 = arith.constant 2 : index
    %c4_151 = arith.constant 4 : index
    %283 = vector.load %arg10[%c0_149, %c2_150, %c4_151] : memref<2x14x14xf32, #tpu.memory_space<vmem>>, vector<1x8x8xf32>
    %284 = vector.shape_cast %283 : vector<1x8x8xf32> to vector<8x8xf32>
    %285 = vector.broadcast %281 : f32 to vector<8x8xf32>
    %286 = arith.mulf %285, %284 : vector<8x8xf32>
    %287 = arith.addf %280, %286 : vector<8x8xf32>
    %c1_152 = arith.constant 1 : index
    %c2_153 = arith.constant 2 : index
    %c4_154 = arith.constant 4 : index
    %288 = vector.load %arg10[%c1_152, %c2_153, %c4_154] : memref<2x14x14xf32, #tpu.memory_space<vmem>>, vector<1x8x8xf32>
    %289 = vector.shape_cast %288 : vector<1x8x8xf32> to vector<8x8xf32>
    %290 = vector.broadcast %282 : f32 to vector<8x8xf32>
    %291 = arith.mulf %290, %289 : vector<8x8xf32>
    %292 = arith.addf %287, %291 : vector<8x8xf32>
    %c38 = arith.constant 38 : index
    %293 = memref.load %arg7[%c38] : memref<98xf32, #tpu.memory_space<smem>>
    %c39 = arith.constant 39 : index
    %294 = memref.load %arg7[%c39] : memref<98xf32, #tpu.memory_space<smem>>
    %c0_155 = arith.constant 0 : index
    %c2_156 = arith.constant 2 : index
    %c5_157 = arith.constant 5 : index
    %295 = vector.load %arg10[%c0_155, %c2_156, %c5_157] : memref<2x14x14xf32, #tpu.memory_space<vmem>>, vector<1x8x8xf32>
    %296 = vector.shape_cast %295 : vector<1x8x8xf32> to vector<8x8xf32>
    %297 = vector.broadcast %293 : f32 to vector<8x8xf32>
    %298 = arith.mulf %297, %296 : vector<8x8xf32>
    %299 = arith.addf %292, %298 : vector<8x8xf32>
    %c1_158 = arith.constant 1 : index
    %c2_159 = arith.constant 2 : index
    %c5_160 = arith.constant 5 : index
    %300 = vector.load %arg10[%c1_158, %c2_159, %c5_160] : memref<2x14x14xf32, #tpu.memory_space<vmem>>, vector<1x8x8xf32>
    %301 = vector.shape_cast %300 : vector<1x8x8xf32> to vector<8x8xf32>
    %302 = vector.broadcast %294 : f32 to vector<8x8xf32>
    %303 = arith.mulf %302, %301 : vector<8x8xf32>
    %304 = arith.addf %299, %303 : vector<8x8xf32>
    %c40 = arith.constant 40 : index
    %305 = memref.load %arg7[%c40] : memref<98xf32, #tpu.memory_space<smem>>
    %c41 = arith.constant 41 : index
    %306 = memref.load %arg7[%c41] : memref<98xf32, #tpu.memory_space<smem>>
    %c0_161 = arith.constant 0 : index
    %c2_162 = arith.constant 2 : index
    %c6_163 = arith.constant 6 : index
    %307 = vector.load %arg10[%c0_161, %c2_162, %c6_163] : memref<2x14x14xf32, #tpu.memory_space<vmem>>, vector<1x8x8xf32>
    %308 = vector.shape_cast %307 : vector<1x8x8xf32> to vector<8x8xf32>
    %309 = vector.broadcast %305 : f32 to vector<8x8xf32>
    %310 = arith.mulf %309, %308 : vector<8x8xf32>
    %311 = arith.addf %304, %310 : vector<8x8xf32>
    %c1_164 = arith.constant 1 : index
    %c2_165 = arith.constant 2 : index
    %c6_166 = arith.constant 6 : index
    %312 = vector.load %arg10[%c1_164, %c2_165, %c6_166] : memref<2x14x14xf32, #tpu.memory_space<vmem>>, vector<1x8x8xf32>
    %313 = vector.shape_cast %312 : vector<1x8x8xf32> to vector<8x8xf32>
    %314 = vector.broadcast %306 : f32 to vector<8x8xf32>
    %315 = arith.mulf %314, %313 : vector<8x8xf32>
    %316 = arith.addf %311, %315 : vector<8x8xf32>
    %c42 = arith.constant 42 : index
    %317 = memref.load %arg7[%c42] : memref<98xf32, #tpu.memory_space<smem>>
    %c43 = arith.constant 43 : index
    %318 = memref.load %arg7[%c43] : memref<98xf32, #tpu.memory_space<smem>>
    %c0_167 = arith.constant 0 : index
    %c3_168 = arith.constant 3 : index
    %c0_169 = arith.constant 0 : index
    %319 = vector.load %arg10[%c0_167, %c3_168, %c0_169] : memref<2x14x14xf32, #tpu.memory_space<vmem>>, vector<1x8x8xf32>
    %320 = vector.shape_cast %319 : vector<1x8x8xf32> to vector<8x8xf32>
    %321 = vector.broadcast %317 : f32 to vector<8x8xf32>
    %322 = arith.mulf %321, %320 : vector<8x8xf32>
    %323 = arith.addf %316, %322 : vector<8x8xf32>
    %c1_170 = arith.constant 1 : index
    %c3_171 = arith.constant 3 : index
    %c0_172 = arith.constant 0 : index
    %324 = vector.load %arg10[%c1_170, %c3_171, %c0_172] : memref<2x14x14xf32, #tpu.memory_space<vmem>>, vector<1x8x8xf32>
    %325 = vector.shape_cast %324 : vector<1x8x8xf32> to vector<8x8xf32>
    %326 = vector.broadcast %318 : f32 to vector<8x8xf32>
    %327 = arith.mulf %326, %325 : vector<8x8xf32>
    %328 = arith.addf %323, %327 : vector<8x8xf32>
    %c44 = arith.constant 44 : index
    %329 = memref.load %arg7[%c44] : memref<98xf32, #tpu.memory_space<smem>>
    %c45 = arith.constant 45 : index
    %330 = memref.load %arg7[%c45] : memref<98xf32, #tpu.memory_space<smem>>
    %c0_173 = arith.constant 0 : index
    %c3_174 = arith.constant 3 : index
    %c1_175 = arith.constant 1 : index
    %331 = vector.load %arg10[%c0_173, %c3_174, %c1_175] : memref<2x14x14xf32, #tpu.memory_space<vmem>>, vector<1x8x8xf32>
    %332 = vector.shape_cast %331 : vector<1x8x8xf32> to vector<8x8xf32>
    %333 = vector.broadcast %329 : f32 to vector<8x8xf32>
    %334 = arith.mulf %333, %332 : vector<8x8xf32>
    %335 = arith.addf %328, %334 : vector<8x8xf32>
    %c1_176 = arith.constant 1 : index
    %c3_177 = arith.constant 3 : index
    %c1_178 = arith.constant 1 : index
    %336 = vector.load %arg10[%c1_176, %c3_177, %c1_178] : memref<2x14x14xf32, #tpu.memory_space<vmem>>, vector<1x8x8xf32>
    %337 = vector.shape_cast %336 : vector<1x8x8xf32> to vector<8x8xf32>
    %338 = vector.broadcast %330 : f32 to vector<8x8xf32>
    %339 = arith.mulf %338, %337 : vector<8x8xf32>
    %340 = arith.addf %335, %339 : vector<8x8xf32>
    %c46 = arith.constant 46 : index
    %341 = memref.load %arg7[%c46] : memref<98xf32, #tpu.memory_space<smem>>
    %c47 = arith.constant 47 : index
    %342 = memref.load %arg7[%c47] : memref<98xf32, #tpu.memory_space<smem>>
    %c0_179 = arith.constant 0 : index
    %c3_180 = arith.constant 3 : index
    %c2_181 = arith.constant 2 : index
    %343 = vector.load %arg10[%c0_179, %c3_180, %c2_181] : memref<2x14x14xf32, #tpu.memory_space<vmem>>, vector<1x8x8xf32>
    %344 = vector.shape_cast %343 : vector<1x8x8xf32> to vector<8x8xf32>
    %345 = vector.broadcast %341 : f32 to vector<8x8xf32>
    %346 = arith.mulf %345, %344 : vector<8x8xf32>
    %347 = arith.addf %340, %346 : vector<8x8xf32>
    %c1_182 = arith.constant 1 : index
    %c3_183 = arith.constant 3 : index
    %c2_184 = arith.constant 2 : index
    %348 = vector.load %arg10[%c1_182, %c3_183, %c2_184] : memref<2x14x14xf32, #tpu.memory_space<vmem>>, vector<1x8x8xf32>
    %349 = vector.shape_cast %348 : vector<1x8x8xf32> to vector<8x8xf32>
    %350 = vector.broadcast %342 : f32 to vector<8x8xf32>
    %351 = arith.mulf %350, %349 : vector<8x8xf32>
    %352 = arith.addf %347, %351 : vector<8x8xf32>
    %c48 = arith.constant 48 : index
    %353 = memref.load %arg7[%c48] : memref<98xf32, #tpu.memory_space<smem>>
    %c49 = arith.constant 49 : index
    %354 = memref.load %arg7[%c49] : memref<98xf32, #tpu.memory_space<smem>>
    %c0_185 = arith.constant 0 : index
    %c3_186 = arith.constant 3 : index
    %c3_187 = arith.constant 3 : index
    %355 = vector.load %arg10[%c0_185, %c3_186, %c3_187] : memref<2x14x14xf32, #tpu.memory_space<vmem>>, vector<1x8x8xf32>
    %356 = vector.shape_cast %355 : vector<1x8x8xf32> to vector<8x8xf32>
    %357 = vector.broadcast %353 : f32 to vector<8x8xf32>
    %358 = arith.mulf %357, %356 : vector<8x8xf32>
    %359 = arith.addf %352, %358 : vector<8x8xf32>
    %c1_188 = arith.constant 1 : index
    %c3_189 = arith.constant 3 : index
    %c3_190 = arith.constant 3 : index
    %360 = vector.load %arg10[%c1_188, %c3_189, %c3_190] : memref<2x14x14xf32, #tpu.memory_space<vmem>>, vector<1x8x8xf32>
    %361 = vector.shape_cast %360 : vector<1x8x8xf32> to vector<8x8xf32>
    %362 = vector.broadcast %354 : f32 to vector<8x8xf32>
    %363 = arith.mulf %362, %361 : vector<8x8xf32>
    %364 = arith.addf %359, %363 : vector<8x8xf32>
    %c50 = arith.constant 50 : index
    %365 = memref.load %arg7[%c50] : memref<98xf32, #tpu.memory_space<smem>>
    %c51 = arith.constant 51 : index
    %366 = memref.load %arg7[%c51] : memref<98xf32, #tpu.memory_space<smem>>
    %c0_191 = arith.constant 0 : index
    %c3_192 = arith.constant 3 : index
    %c4_193 = arith.constant 4 : index
    %367 = vector.load %arg10[%c0_191, %c3_192, %c4_193] : memref<2x14x14xf32, #tpu.memory_space<vmem>>, vector<1x8x8xf32>
    %368 = vector.shape_cast %367 : vector<1x8x8xf32> to vector<8x8xf32>
    %369 = vector.broadcast %365 : f32 to vector<8x8xf32>
    %370 = arith.mulf %369, %368 : vector<8x8xf32>
    %371 = arith.addf %364, %370 : vector<8x8xf32>
    %c1_194 = arith.constant 1 : index
    %c3_195 = arith.constant 3 : index
    %c4_196 = arith.constant 4 : index
    %372 = vector.load %arg10[%c1_194, %c3_195, %c4_196] : memref<2x14x14xf32, #tpu.memory_space<vmem>>, vector<1x8x8xf32>
    %373 = vector.shape_cast %372 : vector<1x8x8xf32> to vector<8x8xf32>
    %374 = vector.broadcast %366 : f32 to vector<8x8xf32>
    %375 = arith.mulf %374, %373 : vector<8x8xf32>
    %376 = arith.addf %371, %375 : vector<8x8xf32>
    %c52 = arith.constant 52 : index
    %377 = memref.load %arg7[%c52] : memref<98xf32, #tpu.memory_space<smem>>
    %c53 = arith.constant 53 : index
    %378 = memref.load %arg7[%c53] : memref<98xf32, #tpu.memory_space<smem>>
    %c0_197 = arith.constant 0 : index
    %c3_198 = arith.constant 3 : index
    %c5_199 = arith.constant 5 : index
    %379 = vector.load %arg10[%c0_197, %c3_198, %c5_199] : memref<2x14x14xf32, #tpu.memory_space<vmem>>, vector<1x8x8xf32>
    %380 = vector.shape_cast %379 : vector<1x8x8xf32> to vector<8x8xf32>
    %381 = vector.broadcast %377 : f32 to vector<8x8xf32>
    %382 = arith.mulf %381, %380 : vector<8x8xf32>
    %383 = arith.addf %376, %382 : vector<8x8xf32>
    %c1_200 = arith.constant 1 : index
    %c3_201 = arith.constant 3 : index
    %c5_202 = arith.constant 5 : index
    %384 = vector.load %arg10[%c1_200, %c3_201, %c5_202] : memref<2x14x14xf32, #tpu.memory_space<vmem>>, vector<1x8x8xf32>
    %385 = vector.shape_cast %384 : vector<1x8x8xf32> to vector<8x8xf32>
    %386 = vector.broadcast %378 : f32 to vector<8x8xf32>
    %387 = arith.mulf %386, %385 : vector<8x8xf32>
    %388 = arith.addf %383, %387 : vector<8x8xf32>
    %c54 = arith.constant 54 : index
    %389 = memref.load %arg7[%c54] : memref<98xf32, #tpu.memory_space<smem>>
    %c55 = arith.constant 55 : index
    %390 = memref.load %arg7[%c55] : memref<98xf32, #tpu.memory_space<smem>>
    %c0_203 = arith.constant 0 : index
    %c3_204 = arith.constant 3 : index
    %c6_205 = arith.constant 6 : index
    %391 = vector.load %arg10[%c0_203, %c3_204, %c6_205] : memref<2x14x14xf32, #tpu.memory_space<vmem>>, vector<1x8x8xf32>
    %392 = vector.shape_cast %391 : vector<1x8x8xf32> to vector<8x8xf32>
    %393 = vector.broadcast %389 : f32 to vector<8x8xf32>
    %394 = arith.mulf %393, %392 : vector<8x8xf32>
    %395 = arith.addf %388, %394 : vector<8x8xf32>
    %c1_206 = arith.constant 1 : index
    %c3_207 = arith.constant 3 : index
    %c6_208 = arith.constant 6 : index
    %396 = vector.load %arg10[%c1_206, %c3_207, %c6_208] : memref<2x14x14xf32, #tpu.memory_space<vmem>>, vector<1x8x8xf32>
    %397 = vector.shape_cast %396 : vector<1x8x8xf32> to vector<8x8xf32>
    %398 = vector.broadcast %390 : f32 to vector<8x8xf32>
    %399 = arith.mulf %398, %397 : vector<8x8xf32>
    %400 = arith.addf %395, %399 : vector<8x8xf32>
    %c56 = arith.constant 56 : index
    %401 = memref.load %arg7[%c56] : memref<98xf32, #tpu.memory_space<smem>>
    %c57 = arith.constant 57 : index
    %402 = memref.load %arg7[%c57] : memref<98xf32, #tpu.memory_space<smem>>
    %c0_209 = arith.constant 0 : index
    %c4_210 = arith.constant 4 : index
    %c0_211 = arith.constant 0 : index
    %403 = vector.load %arg10[%c0_209, %c4_210, %c0_211] : memref<2x14x14xf32, #tpu.memory_space<vmem>>, vector<1x8x8xf32>
    %404 = vector.shape_cast %403 : vector<1x8x8xf32> to vector<8x8xf32>
    %405 = vector.broadcast %401 : f32 to vector<8x8xf32>
    %406 = arith.mulf %405, %404 : vector<8x8xf32>
    %407 = arith.addf %400, %406 : vector<8x8xf32>
    %c1_212 = arith.constant 1 : index
    %c4_213 = arith.constant 4 : index
    %c0_214 = arith.constant 0 : index
    %408 = vector.load %arg10[%c1_212, %c4_213, %c0_214] : memref<2x14x14xf32, #tpu.memory_space<vmem>>, vector<1x8x8xf32>
    %409 = vector.shape_cast %408 : vector<1x8x8xf32> to vector<8x8xf32>
    %410 = vector.broadcast %402 : f32 to vector<8x8xf32>
    %411 = arith.mulf %410, %409 : vector<8x8xf32>
    %412 = arith.addf %407, %411 : vector<8x8xf32>
    %c58 = arith.constant 58 : index
    %413 = memref.load %arg7[%c58] : memref<98xf32, #tpu.memory_space<smem>>
    %c59 = arith.constant 59 : index
    %414 = memref.load %arg7[%c59] : memref<98xf32, #tpu.memory_space<smem>>
    %c0_215 = arith.constant 0 : index
    %c4_216 = arith.constant 4 : index
    %c1_217 = arith.constant 1 : index
    %415 = vector.load %arg10[%c0_215, %c4_216, %c1_217] : memref<2x14x14xf32, #tpu.memory_space<vmem>>, vector<1x8x8xf32>
    %416 = vector.shape_cast %415 : vector<1x8x8xf32> to vector<8x8xf32>
    %417 = vector.broadcast %413 : f32 to vector<8x8xf32>
    %418 = arith.mulf %417, %416 : vector<8x8xf32>
    %419 = arith.addf %412, %418 : vector<8x8xf32>
    %c1_218 = arith.constant 1 : index
    %c4_219 = arith.constant 4 : index
    %c1_220 = arith.constant 1 : index
    %420 = vector.load %arg10[%c1_218, %c4_219, %c1_220] : memref<2x14x14xf32, #tpu.memory_space<vmem>>, vector<1x8x8xf32>
    %421 = vector.shape_cast %420 : vector<1x8x8xf32> to vector<8x8xf32>
    %422 = vector.broadcast %414 : f32 to vector<8x8xf32>
    %423 = arith.mulf %422, %421 : vector<8x8xf32>
    %424 = arith.addf %419, %423 : vector<8x8xf32>
    %c60 = arith.constant 60 : index
    %425 = memref.load %arg7[%c60] : memref<98xf32, #tpu.memory_space<smem>>
    %c61 = arith.constant 61 : index
    %426 = memref.load %arg7[%c61] : memref<98xf32, #tpu.memory_space<smem>>
    %c0_221 = arith.constant 0 : index
    %c4_222 = arith.constant 4 : index
    %c2_223 = arith.constant 2 : index
    %427 = vector.load %arg10[%c0_221, %c4_222, %c2_223] : memref<2x14x14xf32, #tpu.memory_space<vmem>>, vector<1x8x8xf32>
    %428 = vector.shape_cast %427 : vector<1x8x8xf32> to vector<8x8xf32>
    %429 = vector.broadcast %425 : f32 to vector<8x8xf32>
    %430 = arith.mulf %429, %428 : vector<8x8xf32>
    %431 = arith.addf %424, %430 : vector<8x8xf32>
    %c1_224 = arith.constant 1 : index
    %c4_225 = arith.constant 4 : index
    %c2_226 = arith.constant 2 : index
    %432 = vector.load %arg10[%c1_224, %c4_225, %c2_226] : memref<2x14x14xf32, #tpu.memory_space<vmem>>, vector<1x8x8xf32>
    %433 = vector.shape_cast %432 : vector<1x8x8xf32> to vector<8x8xf32>
    %434 = vector.broadcast %426 : f32 to vector<8x8xf32>
    %435 = arith.mulf %434, %433 : vector<8x8xf32>
    %436 = arith.addf %431, %435 : vector<8x8xf32>
    %c62 = arith.constant 62 : index
    %437 = memref.load %arg7[%c62] : memref<98xf32, #tpu.memory_space<smem>>
    %c63 = arith.constant 63 : index
    %438 = memref.load %arg7[%c63] : memref<98xf32, #tpu.memory_space<smem>>
    %c0_227 = arith.constant 0 : index
    %c4_228 = arith.constant 4 : index
    %c3_229 = arith.constant 3 : index
    %439 = vector.load %arg10[%c0_227, %c4_228, %c3_229] : memref<2x14x14xf32, #tpu.memory_space<vmem>>, vector<1x8x8xf32>
    %440 = vector.shape_cast %439 : vector<1x8x8xf32> to vector<8x8xf32>
    %441 = vector.broadcast %437 : f32 to vector<8x8xf32>
    %442 = arith.mulf %441, %440 : vector<8x8xf32>
    %443 = arith.addf %436, %442 : vector<8x8xf32>
    %c1_230 = arith.constant 1 : index
    %c4_231 = arith.constant 4 : index
    %c3_232 = arith.constant 3 : index
    %444 = vector.load %arg10[%c1_230, %c4_231, %c3_232] : memref<2x14x14xf32, #tpu.memory_space<vmem>>, vector<1x8x8xf32>
    %445 = vector.shape_cast %444 : vector<1x8x8xf32> to vector<8x8xf32>
    %446 = vector.broadcast %438 : f32 to vector<8x8xf32>
    %447 = arith.mulf %446, %445 : vector<8x8xf32>
    %448 = arith.addf %443, %447 : vector<8x8xf32>
    %c64 = arith.constant 64 : index
    %449 = memref.load %arg7[%c64] : memref<98xf32, #tpu.memory_space<smem>>
    %c65 = arith.constant 65 : index
    %450 = memref.load %arg7[%c65] : memref<98xf32, #tpu.memory_space<smem>>
    %c0_233 = arith.constant 0 : index
    %c4_234 = arith.constant 4 : index
    %c4_235 = arith.constant 4 : index
    %451 = vector.load %arg10[%c0_233, %c4_234, %c4_235] : memref<2x14x14xf32, #tpu.memory_space<vmem>>, vector<1x8x8xf32>
    %452 = vector.shape_cast %451 : vector<1x8x8xf32> to vector<8x8xf32>
    %453 = vector.broadcast %449 : f32 to vector<8x8xf32>
    %454 = arith.mulf %453, %452 : vector<8x8xf32>
    %455 = arith.addf %448, %454 : vector<8x8xf32>
    %c1_236 = arith.constant 1 : index
    %c4_237 = arith.constant 4 : index
    %c4_238 = arith.constant 4 : index
    %456 = vector.load %arg10[%c1_236, %c4_237, %c4_238] : memref<2x14x14xf32, #tpu.memory_space<vmem>>, vector<1x8x8xf32>
    %457 = vector.shape_cast %456 : vector<1x8x8xf32> to vector<8x8xf32>
    %458 = vector.broadcast %450 : f32 to vector<8x8xf32>
    %459 = arith.mulf %458, %457 : vector<8x8xf32>
    %460 = arith.addf %455, %459 : vector<8x8xf32>
    %c66 = arith.constant 66 : index
    %461 = memref.load %arg7[%c66] : memref<98xf32, #tpu.memory_space<smem>>
    %c67 = arith.constant 67 : index
    %462 = memref.load %arg7[%c67] : memref<98xf32, #tpu.memory_space<smem>>
    %c0_239 = arith.constant 0 : index
    %c4_240 = arith.constant 4 : index
    %c5_241 = arith.constant 5 : index
    %463 = vector.load %arg10[%c0_239, %c4_240, %c5_241] : memref<2x14x14xf32, #tpu.memory_space<vmem>>, vector<1x8x8xf32>
    %464 = vector.shape_cast %463 : vector<1x8x8xf32> to vector<8x8xf32>
    %465 = vector.broadcast %461 : f32 to vector<8x8xf32>
    %466 = arith.mulf %465, %464 : vector<8x8xf32>
    %467 = arith.addf %460, %466 : vector<8x8xf32>
    %c1_242 = arith.constant 1 : index
    %c4_243 = arith.constant 4 : index
    %c5_244 = arith.constant 5 : index
    %468 = vector.load %arg10[%c1_242, %c4_243, %c5_244] : memref<2x14x14xf32, #tpu.memory_space<vmem>>, vector<1x8x8xf32>
    %469 = vector.shape_cast %468 : vector<1x8x8xf32> to vector<8x8xf32>
    %470 = vector.broadcast %462 : f32 to vector<8x8xf32>
    %471 = arith.mulf %470, %469 : vector<8x8xf32>
    %472 = arith.addf %467, %471 : vector<8x8xf32>
    %c68 = arith.constant 68 : index
    %473 = memref.load %arg7[%c68] : memref<98xf32, #tpu.memory_space<smem>>
    %c69 = arith.constant 69 : index
    %474 = memref.load %arg7[%c69] : memref<98xf32, #tpu.memory_space<smem>>
    %c0_245 = arith.constant 0 : index
    %c4_246 = arith.constant 4 : index
    %c6_247 = arith.constant 6 : index
    %475 = vector.load %arg10[%c0_245, %c4_246, %c6_247] : memref<2x14x14xf32, #tpu.memory_space<vmem>>, vector<1x8x8xf32>
    %476 = vector.shape_cast %475 : vector<1x8x8xf32> to vector<8x8xf32>
    %477 = vector.broadcast %473 : f32 to vector<8x8xf32>
    %478 = arith.mulf %477, %476 : vector<8x8xf32>
    %479 = arith.addf %472, %478 : vector<8x8xf32>
    %c1_248 = arith.constant 1 : index
    %c4_249 = arith.constant 4 : index
    %c6_250 = arith.constant 6 : index
    %480 = vector.load %arg10[%c1_248, %c4_249, %c6_250] : memref<2x14x14xf32, #tpu.memory_space<vmem>>, vector<1x8x8xf32>
    %481 = vector.shape_cast %480 : vector<1x8x8xf32> to vector<8x8xf32>
    %482 = vector.broadcast %474 : f32 to vector<8x8xf32>
    %483 = arith.mulf %482, %481 : vector<8x8xf32>
    %484 = arith.addf %479, %483 : vector<8x8xf32>
    %c70 = arith.constant 70 : index
    %485 = memref.load %arg7[%c70] : memref<98xf32, #tpu.memory_space<smem>>
    %c71 = arith.constant 71 : index
    %486 = memref.load %arg7[%c71] : memref<98xf32, #tpu.memory_space<smem>>
    %c0_251 = arith.constant 0 : index
    %c5_252 = arith.constant 5 : index
    %c0_253 = arith.constant 0 : index
    %487 = vector.load %arg10[%c0_251, %c5_252, %c0_253] : memref<2x14x14xf32, #tpu.memory_space<vmem>>, vector<1x8x8xf32>
    %488 = vector.shape_cast %487 : vector<1x8x8xf32> to vector<8x8xf32>
    %489 = vector.broadcast %485 : f32 to vector<8x8xf32>
    %490 = arith.mulf %489, %488 : vector<8x8xf32>
    %491 = arith.addf %484, %490 : vector<8x8xf32>
    %c1_254 = arith.constant 1 : index
    %c5_255 = arith.constant 5 : index
    %c0_256 = arith.constant 0 : index
    %492 = vector.load %arg10[%c1_254, %c5_255, %c0_256] : memref<2x14x14xf32, #tpu.memory_space<vmem>>, vector<1x8x8xf32>
    %493 = vector.shape_cast %492 : vector<1x8x8xf32> to vector<8x8xf32>
    %494 = vector.broadcast %486 : f32 to vector<8x8xf32>
    %495 = arith.mulf %494, %493 : vector<8x8xf32>
    %496 = arith.addf %491, %495 : vector<8x8xf32>
    %c72 = arith.constant 72 : index
    %497 = memref.load %arg7[%c72] : memref<98xf32, #tpu.memory_space<smem>>
    %c73 = arith.constant 73 : index
    %498 = memref.load %arg7[%c73] : memref<98xf32, #tpu.memory_space<smem>>
    %c0_257 = arith.constant 0 : index
    %c5_258 = arith.constant 5 : index
    %c1_259 = arith.constant 1 : index
    %499 = vector.load %arg10[%c0_257, %c5_258, %c1_259] : memref<2x14x14xf32, #tpu.memory_space<vmem>>, vector<1x8x8xf32>
    %500 = vector.shape_cast %499 : vector<1x8x8xf32> to vector<8x8xf32>
    %501 = vector.broadcast %497 : f32 to vector<8x8xf32>
    %502 = arith.mulf %501, %500 : vector<8x8xf32>
    %503 = arith.addf %496, %502 : vector<8x8xf32>
    %c1_260 = arith.constant 1 : index
    %c5_261 = arith.constant 5 : index
    %c1_262 = arith.constant 1 : index
    %504 = vector.load %arg10[%c1_260, %c5_261, %c1_262] : memref<2x14x14xf32, #tpu.memory_space<vmem>>, vector<1x8x8xf32>
    %505 = vector.shape_cast %504 : vector<1x8x8xf32> to vector<8x8xf32>
    %506 = vector.broadcast %498 : f32 to vector<8x8xf32>
    %507 = arith.mulf %506, %505 : vector<8x8xf32>
    %508 = arith.addf %503, %507 : vector<8x8xf32>
    %c74 = arith.constant 74 : index
    %509 = memref.load %arg7[%c74] : memref<98xf32, #tpu.memory_space<smem>>
    %c75 = arith.constant 75 : index
    %510 = memref.load %arg7[%c75] : memref<98xf32, #tpu.memory_space<smem>>
    %c0_263 = arith.constant 0 : index
    %c5_264 = arith.constant 5 : index
    %c2_265 = arith.constant 2 : index
    %511 = vector.load %arg10[%c0_263, %c5_264, %c2_265] : memref<2x14x14xf32, #tpu.memory_space<vmem>>, vector<1x8x8xf32>
    %512 = vector.shape_cast %511 : vector<1x8x8xf32> to vector<8x8xf32>
    %513 = vector.broadcast %509 : f32 to vector<8x8xf32>
    %514 = arith.mulf %513, %512 : vector<8x8xf32>
    %515 = arith.addf %508, %514 : vector<8x8xf32>
    %c1_266 = arith.constant 1 : index
    %c5_267 = arith.constant 5 : index
    %c2_268 = arith.constant 2 : index
    %516 = vector.load %arg10[%c1_266, %c5_267, %c2_268] : memref<2x14x14xf32, #tpu.memory_space<vmem>>, vector<1x8x8xf32>
    %517 = vector.shape_cast %516 : vector<1x8x8xf32> to vector<8x8xf32>
    %518 = vector.broadcast %510 : f32 to vector<8x8xf32>
    %519 = arith.mulf %518, %517 : vector<8x8xf32>
    %520 = arith.addf %515, %519 : vector<8x8xf32>
    %c76 = arith.constant 76 : index
    %521 = memref.load %arg7[%c76] : memref<98xf32, #tpu.memory_space<smem>>
    %c77 = arith.constant 77 : index
    %522 = memref.load %arg7[%c77] : memref<98xf32, #tpu.memory_space<smem>>
    %c0_269 = arith.constant 0 : index
    %c5_270 = arith.constant 5 : index
    %c3_271 = arith.constant 3 : index
    %523 = vector.load %arg10[%c0_269, %c5_270, %c3_271] : memref<2x14x14xf32, #tpu.memory_space<vmem>>, vector<1x8x8xf32>
    %524 = vector.shape_cast %523 : vector<1x8x8xf32> to vector<8x8xf32>
    %525 = vector.broadcast %521 : f32 to vector<8x8xf32>
    %526 = arith.mulf %525, %524 : vector<8x8xf32>
    %527 = arith.addf %520, %526 : vector<8x8xf32>
    %c1_272 = arith.constant 1 : index
    %c5_273 = arith.constant 5 : index
    %c3_274 = arith.constant 3 : index
    %528 = vector.load %arg10[%c1_272, %c5_273, %c3_274] : memref<2x14x14xf32, #tpu.memory_space<vmem>>, vector<1x8x8xf32>
    %529 = vector.shape_cast %528 : vector<1x8x8xf32> to vector<8x8xf32>
    %530 = vector.broadcast %522 : f32 to vector<8x8xf32>
    %531 = arith.mulf %530, %529 : vector<8x8xf32>
    %532 = arith.addf %527, %531 : vector<8x8xf32>
    %c78 = arith.constant 78 : index
    %533 = memref.load %arg7[%c78] : memref<98xf32, #tpu.memory_space<smem>>
    %c79 = arith.constant 79 : index
    %534 = memref.load %arg7[%c79] : memref<98xf32, #tpu.memory_space<smem>>
    %c0_275 = arith.constant 0 : index
    %c5_276 = arith.constant 5 : index
    %c4_277 = arith.constant 4 : index
    %535 = vector.load %arg10[%c0_275, %c5_276, %c4_277] : memref<2x14x14xf32, #tpu.memory_space<vmem>>, vector<1x8x8xf32>
    %536 = vector.shape_cast %535 : vector<1x8x8xf32> to vector<8x8xf32>
    %537 = vector.broadcast %533 : f32 to vector<8x8xf32>
    %538 = arith.mulf %537, %536 : vector<8x8xf32>
    %539 = arith.addf %532, %538 : vector<8x8xf32>
    %c1_278 = arith.constant 1 : index
    %c5_279 = arith.constant 5 : index
    %c4_280 = arith.constant 4 : index
    %540 = vector.load %arg10[%c1_278, %c5_279, %c4_280] : memref<2x14x14xf32, #tpu.memory_space<vmem>>, vector<1x8x8xf32>
    %541 = vector.shape_cast %540 : vector<1x8x8xf32> to vector<8x8xf32>
    %542 = vector.broadcast %534 : f32 to vector<8x8xf32>
    %543 = arith.mulf %542, %541 : vector<8x8xf32>
    %544 = arith.addf %539, %543 : vector<8x8xf32>
    %c80 = arith.constant 80 : index
    %545 = memref.load %arg7[%c80] : memref<98xf32, #tpu.memory_space<smem>>
    %c81 = arith.constant 81 : index
    %546 = memref.load %arg7[%c81] : memref<98xf32, #tpu.memory_space<smem>>
    %c0_281 = arith.constant 0 : index
    %c5_282 = arith.constant 5 : index
    %c5_283 = arith.constant 5 : index
    %547 = vector.load %arg10[%c0_281, %c5_282, %c5_283] : memref<2x14x14xf32, #tpu.memory_space<vmem>>, vector<1x8x8xf32>
    %548 = vector.shape_cast %547 : vector<1x8x8xf32> to vector<8x8xf32>
    %549 = vector.broadcast %545 : f32 to vector<8x8xf32>
    %550 = arith.mulf %549, %548 : vector<8x8xf32>
    %551 = arith.addf %544, %550 : vector<8x8xf32>
    %c1_284 = arith.constant 1 : index
    %c5_285 = arith.constant 5 : index
    %c5_286 = arith.constant 5 : index
    %552 = vector.load %arg10[%c1_284, %c5_285, %c5_286] : memref<2x14x14xf32, #tpu.memory_space<vmem>>, vector<1x8x8xf32>
    %553 = vector.shape_cast %552 : vector<1x8x8xf32> to vector<8x8xf32>
    %554 = vector.broadcast %546 : f32 to vector<8x8xf32>
    %555 = arith.mulf %554, %553 : vector<8x8xf32>
    %556 = arith.addf %551, %555 : vector<8x8xf32>
    %c82 = arith.constant 82 : index
    %557 = memref.load %arg7[%c82] : memref<98xf32, #tpu.memory_space<smem>>
    %c83 = arith.constant 83 : index
    %558 = memref.load %arg7[%c83] : memref<98xf32, #tpu.memory_space<smem>>
    %c0_287 = arith.constant 0 : index
    %c5_288 = arith.constant 5 : index
    %c6_289 = arith.constant 6 : index
    %559 = vector.load %arg10[%c0_287, %c5_288, %c6_289] : memref<2x14x14xf32, #tpu.memory_space<vmem>>, vector<1x8x8xf32>
    %560 = vector.shape_cast %559 : vector<1x8x8xf32> to vector<8x8xf32>
    %561 = vector.broadcast %557 : f32 to vector<8x8xf32>
    %562 = arith.mulf %561, %560 : vector<8x8xf32>
    %563 = arith.addf %556, %562 : vector<8x8xf32>
    %c1_290 = arith.constant 1 : index
    %c5_291 = arith.constant 5 : index
    %c6_292 = arith.constant 6 : index
    %564 = vector.load %arg10[%c1_290, %c5_291, %c6_292] : memref<2x14x14xf32, #tpu.memory_space<vmem>>, vector<1x8x8xf32>
    %565 = vector.shape_cast %564 : vector<1x8x8xf32> to vector<8x8xf32>
    %566 = vector.broadcast %558 : f32 to vector<8x8xf32>
    %567 = arith.mulf %566, %565 : vector<8x8xf32>
    %568 = arith.addf %563, %567 : vector<8x8xf32>
    %c84 = arith.constant 84 : index
    %569 = memref.load %arg7[%c84] : memref<98xf32, #tpu.memory_space<smem>>
    %c85 = arith.constant 85 : index
    %570 = memref.load %arg7[%c85] : memref<98xf32, #tpu.memory_space<smem>>
    %c0_293 = arith.constant 0 : index
    %c6_294 = arith.constant 6 : index
    %c0_295 = arith.constant 0 : index
    %571 = vector.load %arg10[%c0_293, %c6_294, %c0_295] : memref<2x14x14xf32, #tpu.memory_space<vmem>>, vector<1x8x8xf32>
    %572 = vector.shape_cast %571 : vector<1x8x8xf32> to vector<8x8xf32>
    %573 = vector.broadcast %569 : f32 to vector<8x8xf32>
    %574 = arith.mulf %573, %572 : vector<8x8xf32>
    %575 = arith.addf %568, %574 : vector<8x8xf32>
    %c1_296 = arith.constant 1 : index
    %c6_297 = arith.constant 6 : index
    %c0_298 = arith.constant 0 : index
    %576 = vector.load %arg10[%c1_296, %c6_297, %c0_298] : memref<2x14x14xf32, #tpu.memory_space<vmem>>, vector<1x8x8xf32>
    %577 = vector.shape_cast %576 : vector<1x8x8xf32> to vector<8x8xf32>
    %578 = vector.broadcast %570 : f32 to vector<8x8xf32>
    %579 = arith.mulf %578, %577 : vector<8x8xf32>
    %580 = arith.addf %575, %579 : vector<8x8xf32>
    %c86 = arith.constant 86 : index
    %581 = memref.load %arg7[%c86] : memref<98xf32, #tpu.memory_space<smem>>
    %c87 = arith.constant 87 : index
    %582 = memref.load %arg7[%c87] : memref<98xf32, #tpu.memory_space<smem>>
    %c0_299 = arith.constant 0 : index
    %c6_300 = arith.constant 6 : index
    %c1_301 = arith.constant 1 : index
    %583 = vector.load %arg10[%c0_299, %c6_300, %c1_301] : memref<2x14x14xf32, #tpu.memory_space<vmem>>, vector<1x8x8xf32>
    %584 = vector.shape_cast %583 : vector<1x8x8xf32> to vector<8x8xf32>
    %585 = vector.broadcast %581 : f32 to vector<8x8xf32>
    %586 = arith.mulf %585, %584 : vector<8x8xf32>
    %587 = arith.addf %580, %586 : vector<8x8xf32>
    %c1_302 = arith.constant 1 : index
    %c6_303 = arith.constant 6 : index
    %c1_304 = arith.constant 1 : index
    %588 = vector.load %arg10[%c1_302, %c6_303, %c1_304] : memref<2x14x14xf32, #tpu.memory_space<vmem>>, vector<1x8x8xf32>
    %589 = vector.shape_cast %588 : vector<1x8x8xf32> to vector<8x8xf32>
    %590 = vector.broadcast %582 : f32 to vector<8x8xf32>
    %591 = arith.mulf %590, %589 : vector<8x8xf32>
    %592 = arith.addf %587, %591 : vector<8x8xf32>
    %c88 = arith.constant 88 : index
    %593 = memref.load %arg7[%c88] : memref<98xf32, #tpu.memory_space<smem>>
    %c89 = arith.constant 89 : index
    %594 = memref.load %arg7[%c89] : memref<98xf32, #tpu.memory_space<smem>>
    %c0_305 = arith.constant 0 : index
    %c6_306 = arith.constant 6 : index
    %c2_307 = arith.constant 2 : index
    %595 = vector.load %arg10[%c0_305, %c6_306, %c2_307] : memref<2x14x14xf32, #tpu.memory_space<vmem>>, vector<1x8x8xf32>
    %596 = vector.shape_cast %595 : vector<1x8x8xf32> to vector<8x8xf32>
    %597 = vector.broadcast %593 : f32 to vector<8x8xf32>
    %598 = arith.mulf %597, %596 : vector<8x8xf32>
    %599 = arith.addf %592, %598 : vector<8x8xf32>
    %c1_308 = arith.constant 1 : index
    %c6_309 = arith.constant 6 : index
    %c2_310 = arith.constant 2 : index
    %600 = vector.load %arg10[%c1_308, %c6_309, %c2_310] : memref<2x14x14xf32, #tpu.memory_space<vmem>>, vector<1x8x8xf32>
    %601 = vector.shape_cast %600 : vector<1x8x8xf32> to vector<8x8xf32>
    %602 = vector.broadcast %594 : f32 to vector<8x8xf32>
    %603 = arith.mulf %602, %601 : vector<8x8xf32>
    %604 = arith.addf %599, %603 : vector<8x8xf32>
    %c90 = arith.constant 90 : index
    %605 = memref.load %arg7[%c90] : memref<98xf32, #tpu.memory_space<smem>>
    %c91 = arith.constant 91 : index
    %606 = memref.load %arg7[%c91] : memref<98xf32, #tpu.memory_space<smem>>
    %c0_311 = arith.constant 0 : index
    %c6_312 = arith.constant 6 : index
    %c3_313 = arith.constant 3 : index
    %607 = vector.load %arg10[%c0_311, %c6_312, %c3_313] : memref<2x14x14xf32, #tpu.memory_space<vmem>>, vector<1x8x8xf32>
    %608 = vector.shape_cast %607 : vector<1x8x8xf32> to vector<8x8xf32>
    %609 = vector.broadcast %605 : f32 to vector<8x8xf32>
    %610 = arith.mulf %609, %608 : vector<8x8xf32>
    %611 = arith.addf %604, %610 : vector<8x8xf32>
    %c1_314 = arith.constant 1 : index
    %c6_315 = arith.constant 6 : index
    %c3_316 = arith.constant 3 : index
    %612 = vector.load %arg10[%c1_314, %c6_315, %c3_316] : memref<2x14x14xf32, #tpu.memory_space<vmem>>, vector<1x8x8xf32>
    %613 = vector.shape_cast %612 : vector<1x8x8xf32> to vector<8x8xf32>
    %614 = vector.broadcast %606 : f32 to vector<8x8xf32>
    %615 = arith.mulf %614, %613 : vector<8x8xf32>
    %616 = arith.addf %611, %615 : vector<8x8xf32>
    %c92 = arith.constant 92 : index
    %617 = memref.load %arg7[%c92] : memref<98xf32, #tpu.memory_space<smem>>
    %c93 = arith.constant 93 : index
    %618 = memref.load %arg7[%c93] : memref<98xf32, #tpu.memory_space<smem>>
    %c0_317 = arith.constant 0 : index
    %c6_318 = arith.constant 6 : index
    %c4_319 = arith.constant 4 : index
    %619 = vector.load %arg10[%c0_317, %c6_318, %c4_319] : memref<2x14x14xf32, #tpu.memory_space<vmem>>, vector<1x8x8xf32>
    %620 = vector.shape_cast %619 : vector<1x8x8xf32> to vector<8x8xf32>
    %621 = vector.broadcast %617 : f32 to vector<8x8xf32>
    %622 = arith.mulf %621, %620 : vector<8x8xf32>
    %623 = arith.addf %616, %622 : vector<8x8xf32>
    %c1_320 = arith.constant 1 : index
    %c6_321 = arith.constant 6 : index
    %c4_322 = arith.constant 4 : index
    %624 = vector.load %arg10[%c1_320, %c6_321, %c4_322] : memref<2x14x14xf32, #tpu.memory_space<vmem>>, vector<1x8x8xf32>
    %625 = vector.shape_cast %624 : vector<1x8x8xf32> to vector<8x8xf32>
    %626 = vector.broadcast %618 : f32 to vector<8x8xf32>
    %627 = arith.mulf %626, %625 : vector<8x8xf32>
    %628 = arith.addf %623, %627 : vector<8x8xf32>
    %c94 = arith.constant 94 : index
    %629 = memref.load %arg7[%c94] : memref<98xf32, #tpu.memory_space<smem>>
    %c95 = arith.constant 95 : index
    %630 = memref.load %arg7[%c95] : memref<98xf32, #tpu.memory_space<smem>>
    %c0_323 = arith.constant 0 : index
    %c6_324 = arith.constant 6 : index
    %c5_325 = arith.constant 5 : index
    %631 = vector.load %arg10[%c0_323, %c6_324, %c5_325] : memref<2x14x14xf32, #tpu.memory_space<vmem>>, vector<1x8x8xf32>
    %632 = vector.shape_cast %631 : vector<1x8x8xf32> to vector<8x8xf32>
    %633 = vector.broadcast %629 : f32 to vector<8x8xf32>
    %634 = arith.mulf %633, %632 : vector<8x8xf32>
    %635 = arith.addf %628, %634 : vector<8x8xf32>
    %c1_326 = arith.constant 1 : index
    %c6_327 = arith.constant 6 : index
    %c5_328 = arith.constant 5 : index
    %636 = vector.load %arg10[%c1_326, %c6_327, %c5_328] : memref<2x14x14xf32, #tpu.memory_space<vmem>>, vector<1x8x8xf32>
    %637 = vector.shape_cast %636 : vector<1x8x8xf32> to vector<8x8xf32>
    %638 = vector.broadcast %630 : f32 to vector<8x8xf32>
    %639 = arith.mulf %638, %637 : vector<8x8xf32>
    %640 = arith.addf %635, %639 : vector<8x8xf32>
    %c96 = arith.constant 96 : index
    %641 = memref.load %arg7[%c96] : memref<98xf32, #tpu.memory_space<smem>>
    %c97 = arith.constant 97 : index
    %642 = memref.load %arg7[%c97] : memref<98xf32, #tpu.memory_space<smem>>
    %c0_329 = arith.constant 0 : index
    %c6_330 = arith.constant 6 : index
    %c6_331 = arith.constant 6 : index
    %643 = vector.load %arg10[%c0_329, %c6_330, %c6_331] : memref<2x14x14xf32, #tpu.memory_space<vmem>>, vector<1x8x8xf32>
    %644 = vector.shape_cast %643 : vector<1x8x8xf32> to vector<8x8xf32>
    %645 = vector.broadcast %641 : f32 to vector<8x8xf32>
    %646 = arith.mulf %645, %644 : vector<8x8xf32>
    %647 = arith.addf %640, %646 : vector<8x8xf32>
    %c1_332 = arith.constant 1 : index
    %c6_333 = arith.constant 6 : index
    %c6_334 = arith.constant 6 : index
    %648 = vector.load %arg10[%c1_332, %c6_333, %c6_334] : memref<2x14x14xf32, #tpu.memory_space<vmem>>, vector<1x8x8xf32>
    %649 = vector.shape_cast %648 : vector<1x8x8xf32> to vector<8x8xf32>
    %650 = vector.broadcast %642 : f32 to vector<8x8xf32>
    %651 = arith.mulf %650, %649 : vector<8x8xf32>
    %652 = arith.addf %647, %651 : vector<8x8xf32>
    %653 = arith.negf %652 : vector<8x8xf32>
    %654 = math.exp %653 : vector<8x8xf32>
    %cst_335 = arith.constant 1.000000e+00 : f32
    %655 = vector.broadcast %cst_335 : f32 to vector<8x8xf32>
    %656 = arith.addf %655, %654 : vector<8x8xf32>
    %657 = arith.divf %655, %656 : vector<8x8xf32>
    %658 = vector.shape_cast %657 : vector<8x8xf32> to vector<8x8x1xf32>
    %659 = vector.broadcast %658 : vector<8x8x1xf32> to vector<8x8x32xf32>
    %660 = arith.mulf %50, %659 : vector<8x8x32xf32>
    %c0_336 = arith.constant 0 : index
    %c0_337 = arith.constant 0 : index
    %c0_338 = arith.constant 0 : index
    %c0_339 = arith.constant 0 : index
    %661 = vector.load %arg8[%c0_336, %c0_337, %c0_338, %c0_339] : memref<1x8x8x32xf32, #tpu.memory_space<vmem>>, vector<1x8x8x32xf32>
    %662 = vector.shape_cast %661 : vector<1x8x8x32xf32> to vector<8x8x32xf32>
    %663 = arith.addf %660, %662 : vector<8x8x32xf32>
    %cst_340 = arith.constant 0.000000e+00 : f32
    %664 = vector.broadcast %cst_340 : f32 to vector<8x8x32xf32>
    %665 = arith.maximumf %663, %664 : vector<8x8x32xf32>
    %c0_341 = arith.constant 0 : index
    %c0_342 = arith.constant 0 : index
    %c0_343 = arith.constant 0 : index
    %c0_344 = arith.constant 0 : index
    %666 = vector.load %arg9[%c0_341, %c0_342, %c0_343, %c0_344] : memref<1x8x8x32xf32, #tpu.memory_space<vmem>>, vector<1x8x8x32xf32>
    %667 = vector.shape_cast %666 : vector<1x8x8x32xf32> to vector<8x8x32xf32>
    %668 = vector.shape_cast %665 : vector<8x8x32xf32> to vector<1x8x8x32xf32>
    tpu.vector_store %arg9[%c0_341, %c0_342, %c0_343, %c0_344], %668 {strides = array<i32>} : memref<1x8x8x32xf32, #tpu.memory_space<vmem>>, vector<1x8x8x32xf32>,
    return
  }
  func.func @transform_0(%arg0: i32) -> (i32, i32, i32, i32) {
    %c0_i32 = arith.constant 0 : i32
    %c0_i32_0 = arith.constant 0 : i32
    %c0_i32_1 = arith.constant 0 : i32
    %c0_i32_2 = arith.constant 0 : i32
    return %arg0, %c0_i32, %c0_i32_0, %c0_i32_1 : i32, i32, i32, i32
  }
  func.func @transform_1(%arg0: i32) -> (i32, i32, i32) {
    %c0_i32 = arith.constant 0 : i32
    %c0_i32_0 = arith.constant 0 : i32
    %c0_i32_1 = arith.constant 0 : i32
    %c0_i32_2 = arith.constant 0 : i32
    return %c0_i32, %c0_i32_0, %c0_i32_1 : i32, i32, i32
  }
  func.func @transform_2(%arg0: i32) -> (i32, i32) {
    %c0_i32 = arith.constant 0 : i32
    %c0_i32_0 = arith.constant 0 : i32
    %c0_i32_1 = arith.constant 0 : i32
    return %c0_i32, %c0_i32_0 : i32, i32
  }
  func.func @transform_3(%arg0: i32) -> (i32, i32) {
    %c0_i32 = arith.constant 0 : i32
    %c0_i32_0 = arith.constant 0 : i32
    %c0_i32_1 = arith.constant 0 : i32
    return %c0_i32, %c0_i32_0 : i32, i32
  }
  func.func @transform_4(%arg0: i32) -> (i32, i32) {
    %c0_i32 = arith.constant 0 : i32
    %c0_i32_0 = arith.constant 0 : i32
    %c0_i32_1 = arith.constant 0 : i32
    return %c0_i32, %c0_i32_0 : i32, i32
  }
  func.func @transform_5(%arg0: i32) -> (i32, i32) {
    %c0_i32 = arith.constant 0 : i32
    %c0_i32_0 = arith.constant 0 : i32
    %c0_i32_1 = arith.constant 0 : i32
    return %c0_i32, %c0_i32_0 : i32, i32
  }
  func.func @transform_6(%arg0: i32) -> i32 {
    %c0_i32 = arith.constant 0 : i32
    %c0_i32_0 = arith.constant 0 : i32
    return %c0_i32 : i32
  }
  func.func @transform_7(%arg0: i32) -> (i32, i32, i32, i32) {
    %c0_i32 = arith.constant 0 : i32
    %c0_i32_0 = arith.constant 0 : i32
    %c0_i32_1 = arith.constant 0 : i32
    %c0_i32_2 = arith.constant 0 : i32
    return %arg0, %c0_i32, %c0_i32_0, %c0_i32_1 : i32, i32, i32, i32
  }
  func.func @transform_8(%arg0: i32) -> (i32, i32, i32, i32) {
    %c0_i32 = arith.constant 0 : i32
    %c0_i32_0 = arith.constant 0 : i32
    %c0_i32_1 = arith.constant 0 : i32
    %c0_i32_2 = arith.constant 0 : i32
    return %arg0, %c0_i32, %c0_i32_0, %c0_i32_1 : i32, i32, i32, i32
  }
}

</mosaic_0001>

<llo_original>
// kernel: basic_block_forward.3
$region0: #{basic_block_forward.3}
  #allocation0 [shape = 'u32[]', space=smem, size = 0x4, offset = 0x4, fixed_abs, tag = 'smem constant byte address 0x4 - core index']
  #allocation1 [shape = 'u32[144,128]{1,0:T(1,128)}', space=vmem, size = 0x12000, scoped, tag = 'internal scratch']
  #allocation2 [shape = 'bf16[10,10,32]{2,1,0:T(8,128)(2,1)}', space=vmem, size = 0xa000, scoped, tag = 'scratch operand']
  %s0 = inlined_call_operand.hbm [shape: f32[2,8,8,32], index: 0, kind: input, shape index: {}]
  %s1 = inlined_call_operand.hbm [shape: bf16[9,32,32], index: 1, kind: input, shape index: {}]
  %s2 = inlined_call_operand.hbm [shape: f32[2,8,8,32], index: 2, kind: output, shape index: {0}]
  %s3 = inlined_call_operand.hbm [shape: f32[2,2,32], index: 3, kind: output, shape index: {1}]
  %4 = xla_tuple %s2, %s3
  %s5 = sld [smem:[#allocation0]]
  $region57: #{basic_block_forward.3} parent=0
    _
  %s7 = ssub.s32 1, %s5
  %s8 = scalar_select 0, %s7, %s5
  $region1: #{basic_block_forward.3} parent=0
    #allocation3 [shape = 'u8[65536]{0}', space=vmem, size = 0x10000, scoped, tag = 'input window, operand 0']
    #allocation4 [shape = 's32[2]{0}', space=sflag, size = 0x8, scoped, tag = 'scoped memory for basic_block_forward.3']
    #allocation5 [shape = 's32[2]{0}', space=sflag, size = 0x8, scoped, tag = 'scoped memory for basic_block_forward.3']
    #allocation6 [shape = 'u8[73728]{0}', space=vmem, size = 0x12000, scoped, tag = 'input window, operand 1, single buffered']
    #allocation7 [shape = 's32[1]{0}', space=sflag, size = 0x4, scoped, tag = 'scoped memory for basic_block_forward.3']
    #allocation8 [shape = 'u8[65536]{0}', space=vmem, size = 0x10000, scoped, tag = 'output window, operand 0']
    #allocation9 [shape = 'u8[2048]{0}', space=vmem, size = 0x800, scoped, tag = 'output window, operand 1']
    #allocation10 [shape = 's32[2]{0}', space=sflag, size = 0x8, scoped, tag = 'scoped memory for basic_block_forward.3']
    %9 = vsyncpa [#allocation4], 0
    %s10 = scalar_lea.sflag [#allocation4], 1
    %11 = vsyncpa %s10, 0
    %12 = vsyncpa [#allocation7], 0
    %13 = vsyncpa [#allocation5], 0
    %s14 = scalar_lea.sflag [#allocation5], 1
    %15 = vsyncpa %s14, 0
    %16 = vsyncpa [#allocation10], 0
    %s17 = scalar_lea.sflag [#allocation10], 1
    %18 = vsyncpa %s17, 0
    loop: start=0, step=1, limit=4
    $region2: #{basic_block_forward.3} parent=1 // loop_pre_header
      _
    $region3: #{basic_block_forward.3} parent=1 // loop_header
      %s20 = sphi 0, %s24
      %p21 = scmp.ge.s32.totalorder %s20, 4
      %s30 = sphi 0, %s32
      %s33 = sphi 0, %s30
      %s34 = sphi 0, %s33
      %s50 = sphi 0, %s34
      %s54 = sphi 0, %s54
      %s56 = sphi 0, %s54
      %s57 = sphi 0, %s56
      %s71 = sphi 0, %s57
      %s77 = sphi 0, %s79
      %s80 = sphi 0, %s77
      %s81 = sphi 0, %s80
      %s97 = sphi 0, %s81
      %s103 = sphi 0, %s105
      %s106 = sphi 0, %s103
      %s107 = sphi 0, %s106
      %s123 = sphi 0, %s107
    $region4: #{basic_block_forward.3} parent=1 // loop_header_branch
      %23 = sbr.rel (%p21) target = $region8
    $region5: #{basic_block_forward.3} parent=1 // loop_body
      %s25 = ssub.s32 %s20, 1
      %s26 = ssub.s32 %s20, 2
      %s27 = sadd.s32 %s20, 1
      %s28 = ssub.s32 %s20, %s27
      %p29 = scmp.eq.s32.totalorder %s28, 0
      %s31 = sadd.s32 %s30, 1
      %s32 = scalar_select %p29, %s30, %s31
      %p35 = pneg %p29
      %p36 = scmp.eq.s32.totalorder %s20, 1
      %p37 = por %p35, %p36
      %p38 = scmp.ne.s32.totalorder %s30, %s33
      %p39 = scmp.eq.s32.totalorder %s20, 0
      %p40 = por %p38, %p39
      %p41 = scmp.ne.s32.totalorder %s30, %s33
      %p42 = scmp.eq.s32.totalorder %s25, 1
      %p43 = por %p41, %p42
      %p44 = scmp.ne.s32.totalorder %s33, %s34
      %p45 = scmp.eq.s32.totalorder %s25, 0
      %p46 = por %p44, %p45
      %p47 = scmp.ne.s32.totalorder %s33, %s34
      %p48 = scmp.eq.s32.totalorder %s26, 1
      %p49 = por %p47, %p48
      %p51 = scmp.ne.s32.totalorder %s34, %s50
      %p52 = scmp.eq.s32.totalorder %s26, 0
      %p53 = por %p51, %p52
      %s55 = sadd.s32 %s54, 1
      %p58 = scmp.eq.s32.totalorder %s20, 1
      %p59 = scmp.ne.s32.totalorder %s54, %s56
      %p60 = scmp.eq.s32.totalorder %s20, 0
      %p61 = por %p59, %p60
      %p62 = scmp.ne.s32.totalorder %s54, %s56
      %p63 = scmp.eq.s32.totalorder %s25, 1
      %p64 = por %p62, %p63
      %p65 = scmp.ne.s32.totalorder %s56, %s57
      %p66 = scmp.eq.s32.totalorder %s25, 0
      %p67 = por %p65, %p66
      %p68 = scmp.ne.s32.totalorder %s56, %s57
      %p69 = scmp.eq.s32.totalorder %s26, 1
      %p70 = por %p68, %p69
      %p72 = scmp.ne.s32.totalorder %s57, %s71
      %p73 = scmp.eq.s32.totalorder %s26, 0
      %p74 = por %p72, %p73
      %s75 = ssub.s32 %s20, %s27
      %p76 = scmp.eq.s32.totalorder %s75, 0
      %s78 = sadd.s32 %s77, 1
      %s79 = scalar_select %p76, %s77, %s78
      %p82 = pneg %p76
      %p83 = scmp.eq.s32.totalorder %s20, 1
      %p84 = por %p82, %p83
      %p85 = scmp.ne.s32.totalorder %s77, %s80
      %p86 = scmp.eq.s32.totalorder %s20, 0
      %p87 = por %p85, %p86
      %p88 = scmp.ne.s32.totalorder %s77, %s80
      %p89 = scmp.eq.s32.totalorder %s25, 1
      %p90 = por %p88, %p89
      %p91 = scmp.ne.s32.totalorder %s80, %s81
      %p92 = scmp.eq.s32.totalorder %s25, 0
      %p93 = por %p91, %p92
      %p94 = scmp.ne.s32.totalorder %s80, %s81
      %p95 = scmp.eq.s32.totalorder %s26, 1
      %p96 = por %p94, %p95
      %p98 = scmp.ne.s32.totalorder %s81, %s97
      %p99 = scmp.eq.s32.totalorder %s26, 0
      %p100 = por %p98, %p99
      %s101 = ssub.s32 %s20, %s27
      %p102 = scmp.eq.s32.totalorder %s101, 0
      %s104 = sadd.s32 %s103, 1
      %s105 = scalar_select %p102, %s103, %s104
      %p108 = pneg %p102
      %p109 = scmp.eq.s32.totalorder %s20, 1
      %p110 = por %p108, %p109
      %p111 = scmp.ne.s32.totalorder %s103, %s106
      %p112 = scmp.eq.s32.totalorder %s20, 0
      %p113 = por %p111, %p112
      %p114 = scmp.ne.s32.totalorder %s103, %s106
      %p115 = scmp.eq.s32.totalorder %s25, 1
      %p116 = por %p114, %p115
      %p117 = scmp.ne.s32.totalorder %s106, %s107
      %p118 = scmp.eq.s32.totalorder %s25, 0
      %p119 = por %p117, %p118
      %p120 = scmp.ne.s32.totalorder %s106, %s107
      %p121 = scmp.eq.s32.totalorder %s26, 1
      %p122 = por %p120, %p121
      %p124 = scmp.ne.s32.totalorder %s107, %s123
      %p125 = scmp.eq.s32.totalorder %s26, 0
      %p126 = por %p124, %p125
      %p127 = scmp.le.s32.totalorder 1, %s20
      %p128 = scmp.lt.s32.totalorder %s20, 3
      %p129 = pnand %p127, %p128
      %p130 = pneg %p129
      // Predicated region
      $region9: #{basic_block_forward.3} parent=5 // pred_check
        _
      $region10: #{basic_block_forward.3} parent=5 // pred_check_branch
        %132 = sbr.rel (%p129) target = $region12
      $region11: #{basic_block_forward.3} parent=5 // pred_region
        %s133 = ssub.s32 %s20, 1
        // Predicated region
        $region13: #{basic_block_forward.3} parent=11 // pred_check
          %p134 = pneg %p67
        $region14: #{basic_block_forward.3} parent=11 // pred_check_branch
          %136 = sbr.rel (%p134) target = $region16
        $region15: #{basic_block_forward.3} parent=11 // pred_region
          %s138 = ssub.s32 2304, 2304
          %139 = vsyncadd [#allocation7], %s138
          %s140 = sshll.u32 [#allocation6], 4
          %s141 = int_to_ptr.vmem [resolvable:$true] %s140
          %146 = dma.hbm_to_vmem [thread:$0]  %s1, 2304, %s141, [#allocation7], 64, 64, 4
        $region16: #{basic_block_forward.3} parent=11 // pred_fallthru
          _
      $region12: #{basic_block_forward.3} parent=5 // pred_fallthru
        _
      %p147 = scmp.lt.s32.totalorder %s20, 2
      // Predicated region
      $region17: #{basic_block_forward.3} parent=5 // pred_check
        %p148 = pneg %p147
      $region18: #{basic_block_forward.3} parent=5 // pred_check_branch
        %150 = sbr.rel (%p148) target = $region20
      $region19: #{basic_block_forward.3} parent=5 // pred_region
        // Predicated region
        $region21: #{basic_block_forward.3} parent=19 // pred_check
          %p151 = pneg %p40
        $region22: #{basic_block_forward.3} parent=19 // pred_check_branch
          %153 = sbr.rel (%p151) target = $region24
        $region23: #{basic_block_forward.3} parent=19 // pred_region
          %s154 = sand.u32 %s30, 1
          %s155 = scalar_lea.sflag [#allocation4], %s154
          %s156 = sand.u32 %s30, 1
          %s157 = smul.addr %s156, 64
          %s158 = scalar_lea.vmem [#allocation3], %s157
          %s160 = ssub.s32 1024, 1024
          %161 = vsyncadd %s155, %s160
          %s162 = smul.addr %s20, 8
          %s163 = smul.addr %s162, 128
          %s164 = scalar_lea.hbm %s0, %s163
          %s165 = sshll.u32 %s158, 4
          %s166 = int_to_ptr.vmem [resolvable:$true] %s165
          %171 = dma.hbm_to_vmem [thread:$0]  %s164, 1024, %s166, %s155, 128, 128, 8
        $region24: #{basic_block_forward.3} parent=19 // pred_fallthru
          _
      $region20: #{basic_block_forward.3} parent=5 // pred_fallthru
        _
      %p172 = scmp.le.s32.totalorder 1, %s20
      %p173 = scmp.lt.s32.totalorder %s20, 3
      %p174 = pnand %p172, %p173
      %p175 = pneg %p174
      // Predicated region
      $region25: #{basic_block_forward.3} parent=5 // pred_check
        _
      $region26: #{basic_block_forward.3} parent=5 // pred_check_branch
        %177 = sbr.rel (%p174) target = $region28
      $region27: #{basic_block_forward.3} parent=5 // pred_region
        %s178 = ssub.s32 %s20, 1
        %s179 = sand.u32 %s33, 1
        %s180 = scalar_lea.sflag [#allocation4], %s179
        %s181 = sand.u32 %s33, 1
        %s182 = smul.addr %s181, 64
        %s183 = scalar_lea.vmem [#allocation3], %s182
        // Predicated region
        $region29: #{basic_block_forward.3} parent=27 // pred_check
          %p184 = pneg %p46
        $region30: #{basic_block_forward.3} parent=27 // pred_check_branch
          %186 = sbr.rel (%p184) target = $region32
        $region31: #{basic_block_forward.3} parent=27 // pred_region
          %187 = dma.done %s180, 1024
        $region32: #{basic_block_forward.3} parent=27 // pred_fallthru
          _
        // Predicated region
        $region33: #{basic_block_forward.3} parent=27 // pred_check
          %p188 = pneg %p67
        $region34: #{basic_block_forward.3} parent=27 // pred_check_branch
          %190 = sbr.rel (%p188) target = $region36
        $region35: #{basic_block_forward.3} parent=27 // pred_region
          %191 = dma.done [#allocation7], 2304
        $region36: #{basic_block_forward.3} parent=27 // pred_fallthru
          _
        %s192 = sand.u32 %s33, 1
        %s193 = scalar_lea.sflag [#allocation4], %s192
        %s194 = sand.u32 %s33, 1
        %s195 = smul.addr %s194, 64
        %s196 = scalar_lea.vmem [#allocation3], %s195
        %p197 = pneg %p46
        %p198 = pneg %p43
        %p199 = pneg %p67
        %p200 = pneg %p64
        %p201 = pneg %p93
        %p202 = pneg %p90
        %s203 = sand.u32 %s80, 1
        %s204 = scalar_lea.sflag [#allocation5], %s203
        %s205 = sand.u32 %s80, 1
        %s206 = smul.addr %s205, 64
        %s207 = scalar_lea.vmem [#allocation8], %s206
        %p208 = pneg %p119
        %p209 = pneg %p116
        %s210 = sand.u32 %s106, 1
        %s211 = scalar_lea.sflag [#allocation10], %s210
        %s212 = sand.u32 %s106, 1
        %s213 = smul.addr %s212, 2
        %s214 = scalar_lea.vmem [#allocation9], %s213
        %v216 = vld [vmem:[%s183] sm:$0xff]
        %v217 = vld [vmem:[%s183 + $0x8] sm:$0xff]
        %v218 = vld [vmem:[%s183 + $0x10] sm:$0xff]
        %v219 = vld [vmem:[%s183 + $0x18] sm:$0xff]
        %v220 = vld [vmem:[%s183 + $0x20] sm:$0xff]
        %v221 = vld [vmem:[%s183 + $0x28] sm:$0xff]
        %v222 = vld [vmem:[%s183 + $0x30] sm:$0xff]
        %v223 = vld [vmem:[%s183 + $0x38] sm:$0xff]
        %v232 = vrot.slane %v216, 7
        %v233 = vrot.slane %v217, 7
        %v234 = vrot.slane %v218, 7
        %v235 = vrot.slane %v219, 7
        %v236 = vrot.slane %v220, 7
        %v237 = vrot.slane %v221, 7
        %v238 = vrot.slane %v222, 7
        %v239 = vrot.slane %v223, 7
        %vm248 = vcmask 1040384
        %v249 = vsel %vm248, 0.0, %v232
        %v250 = vsel %vm248, 0.0, %v233
        %v251 = vsel %vm248, 0.0, %v234
        %v252 = vsel %vm248, 0.0, %v235
        %v253 = vsel %vm248, 0.0, %v236
        %v254 = vsel %vm248, 0.0, %v237
        %v255 = vsel %vm248, 0.0, %v238
        %v256 = vsel %vm248, 0.0, %v239
        %v257 = vsel %vm248, %v232, 0.0
        %v258 = vsel %vm248, %v233, 0.0
        %v259 = vsel %vm248, %v234, 0.0
        %v260 = vsel %vm248, %v235, 0.0
        %v261 = vsel %vm248, %v236, 0.0
        %v262 = vsel %vm248, %v237, 0.0
        %v263 = vsel %vm248, %v238, 0.0
        %v264 = vsel %vm248, %v239, 0.0
        %v265 = vpack.c.bf16 %v257, %v249
        %v266 = vpack.c.bf16 %v258, %v250
        %v267 = vpack.c.bf16 %v259, %v251
        %v268 = vpack.c.bf16 %v260, %v252
        %v269 = vpack.c.bf16 %v261, %v253
        %v270 = vpack.c.bf16 %v262, %v254
        %v271 = vpack.c.bf16 %v263, %v255
        %v272 = vpack.c.bf16 %v264, %v256
        %v281 = vunpack.c.l.b16 %v265
        %v282 = vunpack.c.h.b16 %v265
        %v283 = vunpack.c.l.b16 %v266
        %v284 = vunpack.c.h.b16 %v266
        %v285 = vunpack.c.l.b16 %v267
        %v286 = vunpack.c.h.b16 %v267
        %v287 = vunpack.c.l.b16 %v268
        %v288 = vunpack.c.h.b16 %v268
        %v289 = vunpack.c.l.b16 %v269
        %v290 = vunpack.c.h.b16 %v269
        %v291 = vunpack.c.l.b16 %v270
        %v292 = vunpack.c.h.b16 %v270
        %v293 = vunpack.c.l.b16 %v271
        %v294 = vunpack.c.h.b16 %v271
        %v295 = vunpack.c.l.b16 %v272
        %v296 = vunpack.c.h.b16 %v272
        %v297 = vpack.c.b16 %v281, %v281
        %v298 = vpack.c.b16 %v282, %v282
        %v299 = vpack.c.b16 %v283, %v283
        %v300 = vpack.c.b16 %v284, %v284
        %v301 = vpack.c.b16 %v285, %v285
        %v302 = vpack.c.b16 %v286, %v286
        %v303 = vpack.c.b16 %v287, %v287
        %v304 = vpack.c.b16 %v288, %v288
        %v305 = vpack.c.b16 %v289, %v289
        %v306 = vpack.c.b16 %v290, %v290
        %v307 = vpack.c.b16 %v291, %v291
        %v308 = vpack.c.b16 %v292, %v292
        %v309 = vpack.c.b16 %v293, %v293
        %v310 = vpack.c.b16 %v294, %v294
        %v311 = vpack.c.b16 %v295, %v295
        %v312 = vpack.c.b16 %v296, %v296
        %s329 = scalar_lea.vmem [#allocation2], 8
        %vm330 = vcmask 257024
        %331 = vst.msk [vmem:[%s329] sm:$0xf] %vm330, %v297
        %vm332 = vcmask 253952
        %333 = vst.msk [vmem:[%s329 + $0x4] sm:$0x1] %vm332, %v298
        %334 = vst.msk [vmem:[%s329 + $0x8] sm:$0xf] %vm330, %v299
        %335 = vst.msk [vmem:[%s329 + $0xc] sm:$0x1] %vm332, %v300
        %336 = vst.msk [vmem:[%s329 + $0x10] sm:$0xf] %vm330, %v301
        %337 = vst.msk [vmem:[%s329 + $0x14] sm:$0x1] %vm332, %v302
        %338 = vst.msk [vmem:[%s329 + $0x18] sm:$0xf] %vm330, %v303
        %339 = vst.msk [vmem:[%s329 + $0x1c] sm:$0x1] %vm332, %v304
        %340 = vst.msk [vmem:[%s329 + $0x20] sm:$0xf] %vm330, %v305
        %341 = vst.msk [vmem:[%s329 + $0x24] sm:$0x1] %vm332, %v306
        %342 = vst.msk [vmem:[%s329 + $0x28] sm:$0xf] %vm330, %v307
        %343 = vst.msk [vmem:[%s329 + $0x2c] sm:$0x1] %vm332, %v308
        %344 = vst.msk [vmem:[%s329 + $0x30] sm:$0xf] %vm330, %v309
        %345 = vst.msk [vmem:[%s329 + $0x34] sm:$0x1] %vm332, %v310
        %346 = vst.msk [vmem:[%s329 + $0x38] sm:$0xf] %vm330, %v311
        %347 = vst.msk [vmem:[%s329 + $0x3c] sm:$0x1] %vm332, %v312
        %348 = vst.msk [vmem:[#allocation2] sm:$0xf] %vm330, 0
        %349 = vst.msk [vmem:[#allocation2 + $0x4] sm:$0x1] %vm332, 0
        %s350 = scalar_lea.vmem [#allocation2], 72
        %351 = vst.msk [vmem:[%s350] sm:$0xf] %vm330, 0
        %352 = vst.msk [vmem:[%s350 + $0x4] sm:$0x1] %vm332, 0
        %v353 = vld [vmem:[#allocation2] sm:$0xf]
        %v354 = vld [vmem:[#allocation2 + $0x8] sm:$0xf]
        %v355 = vld [vmem:[#allocation2 + $0x10] sm:$0xf]
        %v356 = vld [vmem:[#allocation2 + $0x18] sm:$0xf]
        %v357 = vld [vmem:[#allocation2 + $0x20] sm:$0xf]
        %v358 = vld [vmem:[#allocation2 + $0x28] sm:$0xf]
        %v359 = vld [vmem:[#allocation2 + $0x30] sm:$0xf]
        %v360 = vld [vmem:[#allocation2 + $0x38] sm:$0xf]
        %v361 = vld [vmem:[#allocation6] sm:$0xf]
        %v362 = vld [vmem:[#allocation6 + $0x4] sm:$0xf]
        %v363 = vld [vmem:[#allocation6 + $0x8] sm:$0xf]
        %v364 = vld [vmem:[#allocation6 + $0xc] sm:$0xf]
        %v365 = vld [vmem:[#allocation2 + $0x4] sm:$0x1]
        %v366 = vld [vmem:[#allocation2 + $0xc] sm:$0x1]
        %v367 = vld [vmem:[#allocation2 + $0x14] sm:$0x1]
        %v368 = vld [vmem:[#allocation2 + $0x1c] sm:$0x1]
        %v369 = vld [vmem:[#allocation2 + $0x24] sm:$0x1]
        %v370 = vld [vmem:[#allocation2 + $0x2c] sm:$0x1]
        %v371 = vld [vmem:[#allocation2 + $0x34] sm:$0x1]
        %v372 = vld [vmem:[#allocation2 + $0x3c] sm:$0x1]
        %vm373 = vsmask.f32 3328
        %vm374 = vsmask.f32 7440
        %vm375 = vmor %vm373, %vm374
        %v377 = vshrl.u32 %v353, 16
        %v379 = vrot.slane %v377, 4
        %v380 = vshll.u32 %v353, 16
        %v382 = vrot.slane %v380, 5
        %v383 = vor.u32 %v379, %v382
        %v384 = vrot.slane %v383, 4
        %v386 = vshll.u32 %v365, 16
        %v388 = vrot.slane %v386, 5
        %v389 = vsel %vm375, %v384, %v388
        %v391 = vshrl.u32 %v354, 16
        %v393 = vrot.slane %v391, 4
        %v394 = vshll.u32 %v354, 16
        %v396 = vrot.slane %v394, 5
        %v397 = vor.u32 %v393, %v396
        %v398 = vrot.slane %v397, 4
        %v400 = vshll.u32 %v366, 16
        %v402 = vrot.slane %v400, 5
        %v403 = vsel %vm375, %v398, %v402
        %v405 = vshrl.u32 %v355, 16
        %v407 = vrot.slane %v405, 4
        %v408 = vshll.u32 %v355, 16
        %v410 = vrot.slane %v408, 5
        %v411 = vor.u32 %v407, %v410
        %v412 = vrot.slane %v411, 4
        %v414 = vshll.u32 %v367, 16
        %v416 = vrot.slane %v414, 5
        %v417 = vsel %vm375, %v412, %v416
        %v419 = vshrl.u32 %v356, 16
        %v421 = vrot.slane %v419, 4
        %v422 = vshll.u32 %v356, 16
        %v424 = vrot.slane %v422, 5
        %v425 = vor.u32 %v421, %v424
        %v426 = vrot.slane %v425, 4
        %v428 = vshll.u32 %v368, 16
        %v430 = vrot.slane %v428, 5
        %v431 = vsel %vm375, %v426, %v430
        %v433 = vshrl.u32 %v357, 16
        %v435 = vrot.slane %v433, 4
        %v436 = vshll.u32 %v357, 16
        %v438 = vrot.slane %v436, 5
        %v439 = vor.u32 %v435, %v438
        %v440 = vrot.slane %v439, 4
        %v442 = vshll.u32 %v369, 16
        %v444 = vrot.slane %v442, 5
        %v445 = vsel %vm375, %v440, %v444
        %v447 = vshrl.u32 %v358, 16
        %v449 = vrot.slane %v447, 4
        %v450 = vshll.u32 %v358, 16
        %v452 = vrot.slane %v450, 5
        %v453 = vor.u32 %v449, %v452
        %v454 = vrot.slane %v453, 4
        %v456 = vshll.u32 %v370, 16
        %v458 = vrot.slane %v456, 5
        %v459 = vsel %vm375, %v454, %v458
        %v461 = vshrl.u32 %v359, 16
        %v463 = vrot.slane %v461, 4
        %v464 = vshll.u32 %v359, 16
        %v466 = vrot.slane %v464, 5
        %v467 = vor.u32 %v463, %v466
        %v468 = vrot.slane %v467, 4
        %v470 = vshll.u32 %v371, 16
        %v472 = vrot.slane %v470, 5
        %v473 = vsel %vm375, %v468, %v472
        %v475 = vshrl.u32 %v360, 16
        %v477 = vrot.slane %v475, 4
        %v478 = vshll.u32 %v360, 16
        %v480 = vrot.slane %v478, 5
        %v481 = vor.u32 %v477, %v480
        %v482 = vrot.slane %v481, 4
        %v484 = vshll.u32 %v372, 16
        %v486 = vrot.slane %v484, 5
        %v487 = vsel %vm375, %v482, %v486
        %s488 = scalar_lea.vmem [#allocation6], 16
        %v489 = vld [vmem:[%s488] sm:$0xf]
        %v490 = vld [vmem:[%s488 + $0x4] sm:$0xf]
        %v491 = vld [vmem:[%s488 + $0x8] sm:$0xf]
        %v492 = vld [vmem:[%s488 + $0xc] sm:$0xf]
        %v493 = vunpack.c.l.b16 %v389
        %v494 = vunpack.c.l.b16 %v403
        %v495 = vunpack.c.l.b16 %v417
        %v496 = vunpack.c.l.b16 %v431
        %v497 = vunpack.c.l.b16 %v445
        %v498 = vunpack.c.l.b16 %v459
        %v499 = vunpack.c.l.b16 %v473
        %v500 = vunpack.c.l.b16 %v487
        %v501 = vpack.c.b16 %v494, %v493
        %v502 = vpack.c.b16 %v496, %v495
        %v503 = vpack.c.b16 %v498, %v497
        %v504 = vpack.c.b16 %v500, %v499
        %v509 = vunpack.c.l.b16 %v489
        %v510 = vunpack.c.l.b16 %v490
        %v511 = vunpack.c.l.b16 %v491
        %v512 = vunpack.c.l.b16 %v492
        %v513 = vpack.c.b16 %v510, %v509
        %v514 = vpack.c.b16 %v512, %v511
        %vm517 = vcmask 261120
        %v519 = vsel %vm517, %v501, 0
        %v522 = vsel %vm517, %v502, 0
        %v525 = vsel %vm517, %v503, 0
        %v528 = vsel %vm517, %v504, 0
        %530 = vmatprep.subr.bf16.mxu0 0
        %531 = vmatpush1.bf16.msra.mxu0 %v513
        %532 = vmatprep.subr.bf16.mxu0 0
        %533 = vmatpush1.bf16.msra.mxu0 %v514
        %534 = vmatprep.subr.bf16.mxu0 0
        %535 = vmatpush1.bf16.msra.mxu0 0
        %536 = vmatprep.subr.bf16.mxu0 0
        %537 = vmatpush1.bf16.msra.mxu0 0
        %538 = vmatprep.subr.bf16.mxu0 0
        %539 = vmatpush1.bf16.msra.mxu0 0
        %540 = vmatprep.subr.bf16.mxu0 0
        %541 = vmatpush1.bf16.msra.mxu0 0
        %542 = vmatprep.subr.bf16.mxu0 0
        %543 = vmatpush1.bf16.msra.mxu0 0
        %544 = vmatprep.subr.bf16.mxu0 0
        %545 = vmatpush1.bf16.msra.mxu0 0
        %546 = vmatprep.subr.bf16.mxu0 0
        %547 = vmatpush1.bf16.msra.mxu0 0
        %548 = vmatprep.subr.bf16.mxu0 0
        %549 = vmatpush1.bf16.msra.mxu0 0
        %550 = vmatprep.subr.bf16.mxu0 0
        %551 = vmatpush1.bf16.msra.mxu0 0
        %552 = vmatprep.subr.bf16.mxu0 0
        %553 = vmatpush1.bf16.msra.mxu0 0
        %554 = vmatprep.subr.bf16.mxu0 0
        %555 = vmatpush1.bf16.msra.mxu0 0
        %556 = vmatprep.subr.bf16.mxu0 0
        %557 = vmatpush1.bf16.msra.mxu0 0
        %558 = vmatprep.subr.bf16.mxu0 0
        %559 = vmatpush1.bf16.msra.mxu0 0
        %560 = vmatprep.subr.bf16.mxu0 0
        %561 = vmatpush1.bf16.msra.mxu0 0
        %562 = vmatprep.mubr.bf16.mxu0 0
        %563 = vmatmul.mubr.bf16.gmra.mrb[0].mxu0 %v519
        %v564 = vpop.f32.mrb[0].mxu0
        %v565 = vadd.f32 0.0, %v564
        %v566 = vpop.f32.mrb[0].mxu0
        %v567 = vpop.f32.mrb[0].mxu0
        %v568 = vadd.f32 0.0, %v567
        %v569 = vpop.f32.mrb[0].mxu0
        %570 = vmatprep.mubr.bf16.mxu0 0
        %571 = vmatmul.mubr.bf16.gmra.mrb[0].mxu0 %v522
        %v572 = vpop.f32.mrb[0].mxu0
        %v573 = vadd.f32 0.0, %v572
        %v574 = vpop.f32.mrb[0].mxu0
        %v575 = vpop.f32.mrb[0].mxu0
        %v576 = vadd.f32 0.0, %v575
        %v577 = vpop.f32.mrb[0].mxu0
        %578 = vmatprep.mubr.bf16.mxu0 0
        %579 = vmatmul.mubr.bf16.gmra.mrb[0].mxu0 %v525
        %v580 = vpop.f32.mrb[0].mxu0
        %v581 = vadd.f32 0.0, %v580
        %v582 = vpop.f32.mrb[0].mxu0
        %v583 = vpop.f32.mrb[0].mxu0
        %v584 = vadd.f32 0.0, %v583
        %v585 = vpop.f32.mrb[0].mxu0
        %586 = vmatprep.mubr.bf16.mxu0 0
        %587 = vmatmul.mubr.bf16.gmra.mrb[0].mxu0 %v528
        %v588 = vpop.f32.mrb[0].mxu0
        %v589 = vadd.f32 0.0, %v588
        %v590 = vpop.f32.mrb[0].mxu0
        %v591 = vpop.f32.mrb[0].mxu0
        %v592 = vadd.f32 0.0, %v591
        %v593 = vpop.f32.mrb[0].mxu0
        %594 = vdwg.mxu0
        %v603 = vunpack.c.l.b16 %v353
        %v604 = vunpack.c.l.b16 %v354
        %v605 = vunpack.c.l.b16 %v355
        %v606 = vunpack.c.l.b16 %v356
        %v607 = vunpack.c.l.b16 %v357
        %v608 = vunpack.c.l.b16 %v358
        %v609 = vunpack.c.l.b16 %v359
        %v610 = vunpack.c.l.b16 %v360
        %v611 = vpack.c.b16 %v604, %v603
        %v612 = vpack.c.b16 %v606, %v605
        %v613 = vpack.c.b16 %v608, %v607
        %v614 = vpack.c.b16 %v610, %v609
        %v619 = vunpack.c.l.b16 %v361
        %v620 = vunpack.c.l.b16 %v362
        %v621 = vunpack.c.l.b16 %v363
        %v622 = vunpack.c.l.b16 %v364
        %v623 = vpack.c.b16 %v620, %v619
        %v624 = vpack.c.b16 %v622, %v621
        %v628 = vsel %vm517, %v611, 0
        %v631 = vsel %vm517, %v612, 0
        %v634 = vsel %vm517, %v613, 0
        %v637 = vsel %vm517, %v614, 0
        %639 = vmatprep.subr.bf16.mxu0 0
        %640 = vmatpush1.bf16.msra.mxu0 %v623
        %641 = vmatprep.subr.bf16.mxu0 0
        %642 = vmatpush1.bf16.msra.mxu0 %v624
        %643 = vmatprep.subr.bf16.mxu0 0
        %644 = vmatpush1.bf16.msra.mxu0 0
        %645 = vmatprep.subr.bf16.mxu0 0
        %646 = vmatpush1.bf16.msra.mxu0 0
        %647 = vmatprep.subr.bf16.mxu0 0
        %648 = vmatpush1.bf16.msra.mxu0 0
        %649 = vmatprep.subr.bf16.mxu0 0
        %650 = vmatpush1.bf16.msra.mxu0 0
        %651 = vmatprep.subr.bf16.mxu0 0
        %652 = vmatpush1.bf16.msra.mxu0 0
        %653 = vmatprep.subr.bf16.mxu0 0
        %654 = vmatpush1.bf16.msra.mxu0 0
        %655 = vmatprep.subr.bf16.mxu0 0
        %656 = vmatpush1.bf16.msra.mxu0 0
        %657 = vmatprep.subr.bf16.mxu0 0
        %658 = vmatpush1.bf16.msra.mxu0 0
        %659 = vmatprep.subr.bf16.mxu0 0
        %660 = vmatpush1.bf16.msra.mxu0 0
        %661 = vmatprep.subr.bf16.mxu0 0
        %662 = vmatpush1.bf16.msra.mxu0 0
        %663 = vmatprep.subr.bf16.mxu0 0
        %664 = vmatpush1.bf16.msra.mxu0 0
        %665 = vmatprep.subr.bf16.mxu0 0
        %666 = vmatpush1.bf16.msra.mxu0 0
        %667 = vmatprep.subr.bf16.mxu0 0
        %668 = vmatpush1.bf16.msra.mxu0 0
        %669 = vmatprep.subr.bf16.mxu0 0
        %670 = vmatpush1.bf16.msra.mxu0 0
        %671 = vmatprep.mubr.bf16.mxu0 0
        %672 = vmatmul.mubr.bf16.gmra.mrb[0].mxu0 %v628
        %v673 = vpop.f32.mrb[0].mxu0
        %v674 = vadd.f32 %v565, %v673
        %v675 = vpop.f32.mrb[0].mxu0
        %v676 = vpop.f32.mrb[0].mxu0
        %v677 = vadd.f32 %v568, %v676
        %v678 = vpop.f32.mrb[0].mxu0
        %679 = vmatprep.mubr.bf16.mxu0 0
        %680 = vmatmul.mubr.bf16.gmra.mrb[0].mxu0 %v631
        %v681 = vpop.f32.mrb[0].mxu0
        %v682 = vadd.f32 %v573, %v681
        %v683 = vpop.f32.mrb[0].mxu0
        %v684 = vpop.f32.mrb[0].mxu0
        %v685 = vadd.f32 %v576, %v684
        %v686 = vpop.f32.mrb[0].mxu0
        %687 = vmatprep.mubr.bf16.mxu0 0
        %688 = vmatmul.mubr.bf16.gmra.mrb[0].mxu0 %v634
        %v689 = vpop.f32.mrb[0].mxu0
        %v690 = vadd.f32 %v581, %v689
        %v691 = vpop.f32.mrb[0].mxu0
        %v692 = vpop.f32.mrb[0].mxu0
        %v693 = vadd.f32 %v584, %v692
        %v694 = vpop.f32.mrb[0].mxu0
        %695 = vmatprep.mubr.bf16.mxu0 0
        %696 = vmatmul.mubr.bf16.gmra.mrb[0].mxu0 %v637
        %v697 = vpop.f32.mrb[0].mxu0
        %v698 = vadd.f32 %v589, %v697
        %v699 = vpop.f32.mrb[0].mxu0
        %v700 = vpop.f32.mrb[0].mxu0
        %v701 = vadd.f32 %v592, %v700
        %v702 = vpop.f32.mrb[0].mxu0
        %703 = vdwg.mxu0
        %v704 = vld [vmem:[#allocation2] sm:$0xe]
        %v705 = vld [vmem:[#allocation2 + $0x8] sm:$0xe]
        %v706 = vld [vmem:[#allocation2 + $0x10] sm:$0xe]
        %v707 = vld [vmem:[#allocation2 + $0x18] sm:$0xe]
        %v708 = vld [vmem:[#allocation2 + $0x20] sm:$0xe]
        %v709 = vld [vmem:[#allocation2 + $0x28] sm:$0xe]
        %v710 = vld [vmem:[#allocation2 + $0x30] sm:$0xe]
        %v711 = vld [vmem:[#allocation2 + $0x38] sm:$0xe]
        %vm728 = vcmask 1042432
        %vm729 = vcmask 1046532
        %vm730 = vmor %vm728, %vm729
        %v731 = vrot.slane %v704, 5
        %v732 = vrot.slane %v731, 4
        %v733 = vrot.slane %v365, 5
        %v734 = vsel %vm730, %v732, %v733
        %v735 = vrot.slane %v705, 5
        %v736 = vrot.slane %v735, 4
        %v737 = vrot.slane %v366, 5
        %v738 = vsel %vm730, %v736, %v737
        %v739 = vrot.slane %v706, 5
        %v740 = vrot.slane %v739, 4
        %v741 = vrot.slane %v367, 5
        %v742 = vsel %vm730, %v740, %v741
        %v743 = vrot.slane %v707, 5
        %v744 = vrot.slane %v743, 4
        %v745 = vrot.slane %v368, 5
        %v746 = vsel %vm730, %v744, %v745
        %v747 = vrot.slane %v708, 5
        %v748 = vrot.slane %v747, 4
        %v749 = vrot.slane %v369, 5
        %v750 = vsel %vm730, %v748, %v749
        %v751 = vrot.slane %v709, 5
        %v752 = vrot.slane %v751, 4
        %v753 = vrot.slane %v370, 5
        %v754 = vsel %vm730, %v752, %v753
        %v755 = vrot.slane %v710, 5
        %v756 = vrot.slane %v755, 4
        %v757 = vrot.slane %v371, 5
        %v758 = vsel %vm730, %v756, %v757
        %v759 = vrot.slane %v711, 5
        %v760 = vrot.slane %v759, 4
        %v761 = vrot.slane %v372, 5
        %v762 = vsel %vm730, %v760, %v761
        %s763 = scalar_lea.vmem [#allocation6], 32
        %v764 = vld [vmem:[%s763] sm:$0xf]
        %v765 = vld [vmem:[%s763 + $0x4] sm:$0xf]
        %v766 = vld [vmem:[%s763 + $0x8] sm:$0xf]
        %v767 = vld [vmem:[%s763 + $0xc] sm:$0xf]
        %v768 = vunpack.c.l.b16 %v734
        %v769 = vunpack.c.l.b16 %v738
        %v770 = vunpack.c.l.b16 %v742
        %v771 = vunpack.c.l.b16 %v746
        %v772 = vunpack.c.l.b16 %v750
        %v773 = vunpack.c.l.b16 %v754
        %v774 = vunpack.c.l.b16 %v758
        %v775 = vunpack.c.l.b16 %v762
        %v776 = vpack.c.b16 %v769, %v768
        %v777 = vpack.c.b16 %v771, %v770
        %v778 = vpack.c.b16 %v773, %v772
        %v779 = vpack.c.b16 %v775, %v774
        %v784 = vunpack.c.l.b16 %v764
        %v785 = vunpack.c.l.b16 %v765
        %v786 = vunpack.c.l.b16 %v766
        %v787 = vunpack.c.l.b16 %v767
        %v788 = vpack.c.b16 %v785, %v784
        %v789 = vpack.c.b16 %v787, %v786
        %v793 = vsel %vm517, %v776, 0
        %v796 = vsel %vm517, %v777, 0
        %v799 = vsel %vm517, %v778, 0
        %v802 = vsel %vm517, %v779, 0
        %804 = vmatprep.subr.bf16.mxu0 0
        %805 = vmatpush1.bf16.msra.mxu0 %v788
        %806 = vmatprep.subr.bf16.mxu0 0
        %807 = vmatpush1.bf16.msra.mxu0 %v789
        %808 = vmatprep.subr.bf16.mxu0 0
        %809 = vmatpush1.bf16.msra.mxu0 0
        %810 = vmatprep.subr.bf16.mxu0 0
        %811 = vmatpush1.bf16.msra.mxu0 0
        %812 = vmatprep.subr.bf16.mxu0 0
        %813 = vmatpush1.bf16.msra.mxu0 0
        %814 = vmatprep.subr.bf16.mxu0 0
        %815 = vmatpush1.bf16.msra.mxu0 0
        %816 = vmatprep.subr.bf16.mxu0 0
        %817 = vmatpush1.bf16.msra.mxu0 0
        %818 = vmatprep.subr.bf16.mxu0 0
        %819 = vmatpush1.bf16.msra.mxu0 0
        %820 = vmatprep.subr.bf16.mxu0 0
        %821 = vmatpush1.bf16.msra.mxu0 0
        %822 = vmatprep.subr.bf16.mxu0 0
        %823 = vmatpush1.bf16.msra.mxu0 0
        %824 = vmatprep.subr.bf16.mxu0 0
        %825 = vmatpush1.bf16.msra.mxu0 0
        %826 = vmatprep.subr.bf16.mxu0 0
        %827 = vmatpush1.bf16.msra.mxu0 0
        %828 = vmatprep.subr.bf16.mxu0 0
        %829 = vmatpush1.bf16.msra.mxu0 0
        %830 = vmatprep.subr.bf16.mxu0 0
        %831 = vmatpush1.bf16.msra.mxu0 0
        %832 = vmatprep.subr.bf16.mxu0 0
        %833 = vmatpush1.bf16.msra.mxu0 0
        %834 = vmatprep.subr.bf16.mxu0 0
        %835 = vmatpush1.bf16.msra.mxu0 0
        %836 = vmatprep.mubr.bf16.mxu0 0
        %837 = vmatmul.mubr.bf16.gmra.mrb[0].mxu0 %v793
        %v838 = vpop.f32.mrb[0].mxu0
        %v839 = vadd.f32 0.0, %v838
        %v840 = vpop.f32.mrb[0].mxu0
        %v841 = vpop.f32.mrb[0].mxu0
        %v842 = vadd.f32 0.0, %v841
        %v843 = vpop.f32.mrb[0].mxu0
        %844 = vmatprep.mubr.bf16.mxu0 0
        %845 = vmatmul.mubr.bf16.gmra.mrb[0].mxu0 %v796
        %v846 = vpop.f32.mrb[0].mxu0
        %v847 = vadd.f32 0.0, %v846
        %v848 = vpop.f32.mrb[0].mxu0
        %v849 = vpop.f32.mrb[0].mxu0
        %v850 = vadd.f32 0.0, %v849
        %v851 = vpop.f32.mrb[0].mxu0
        %852 = vmatprep.mubr.bf16.mxu0 0
        %853 = vmatmul.mubr.bf16.gmra.mrb[0].mxu0 %v799
        %v854 = vpop.f32.mrb[0].mxu0
        %v855 = vadd.f32 0.0, %v854
        %v856 = vpop.f32.mrb[0].mxu0
        %v857 = vpop.f32.mrb[0].mxu0
        %v858 = vadd.f32 0.0, %v857
        %v859 = vpop.f32.mrb[0].mxu0
        %860 = vmatprep.mubr.bf16.mxu0 0
        %861 = vmatmul.mubr.bf16.gmra.mrb[0].mxu0 %v802
        %v862 = vpop.f32.mrb[0].mxu0
        %v863 = vadd.f32 0.0, %v862
        %v864 = vpop.f32.mrb[0].mxu0
        %v865 = vpop.f32.mrb[0].mxu0
        %v866 = vadd.f32 0.0, %v865
        %v867 = vpop.f32.mrb[0].mxu0
        %868 = vdwg.mxu0
        %v869 = vadd.f32 %v674, %v839
        %v870 = vadd.f32 %v677, %v842
        %v871 = vadd.f32 %v682, %v847
        %v872 = vadd.f32 %v685, %v850
        %v873 = vadd.f32 %v690, %v855
        %v874 = vadd.f32 %v693, %v858
        %v875 = vadd.f32 %v698, %v863
        %v876 = vadd.f32 %v701, %v866
        %v877 = vld [vmem:[%s329] sm:$0xf]
        %v878 = vld [vmem:[%s329 + $0x8] sm:$0xf]
        %v879 = vld [vmem:[%s329 + $0x10] sm:$0xf]
        %v880 = vld [vmem:[%s329 + $0x18] sm:$0xf]
        %v881 = vld [vmem:[%s329 + $0x20] sm:$0xf]
        %v882 = vld [vmem:[%s329 + $0x28] sm:$0xf]
        %v883 = vld [vmem:[%s329 + $0x30] sm:$0xf]
        %v884 = vld [vmem:[%s329 + $0x38] sm:$0xf]
        %s885 = scalar_lea.vmem [#allocation6], 48
        %v886 = vld [vmem:[%s885] sm:$0xf]
        %v887 = vld [vmem:[%s885 + $0x4] sm:$0xf]
        %v888 = vld [vmem:[%s885 + $0x8] sm:$0xf]
        %v889 = vld [vmem:[%s885 + $0xc] sm:$0xf]
        %v898 = vunpack.c.l.b16 %v877
        %v899 = vunpack.c.l.b16 %v878
        %v900 = vunpack.c.l.b16 %v879
        %v901 = vunpack.c.l.b16 %v880
        %v902 = vunpack.c.l.b16 %v881
        %v903 = vunpack.c.l.b16 %v882
        %v904 = vunpack.c.l.b16 %v883
        %v905 = vunpack.c.l.b16 %v884
        %v906 = vpack.c.b16 %v899, %v898
        %v907 = vpack.c.b16 %v901, %v900
        %v908 = vpack.c.b16 %v903, %v902
        %v909 = vpack.c.b16 %v905, %v904
        %v914 = vunpack.c.l.b16 %v886
        %v915 = vunpack.c.l.b16 %v887
        %v916 = vunpack.c.l.b16 %v888
        %v917 = vunpack.c.l.b16 %v889
        %v918 = vpack.c.b16 %v915, %v914
        %v919 = vpack.c.b16 %v917, %v916
        %v923 = vsel %vm517, %v906, 0
        %v926 = vsel %vm517, %v907, 0
        %v929 = vsel %vm517, %v908, 0
        %v932 = vsel %vm517, %v909, 0
        %934 = vmatprep.subr.bf16.mxu0 0
        %935 = vmatpush1.bf16.msra.mxu0 %v918
        %936 = vmatprep.subr.bf16.mxu0 0
        %937 = vmatpush1.bf16.msra.mxu0 %v919
        %938 = vmatprep.subr.bf16.mxu0 0
        %939 = vmatpush1.bf16.msra.mxu0 0
        %940 = vmatprep.subr.bf16.mxu0 0
        %941 = vmatpush1.bf16.msra.mxu0 0
        %942 = vmatprep.subr.bf16.mxu0 0
        %943 = vmatpush1.bf16.msra.mxu0 0
        %944 = vmatprep.subr.bf16.mxu0 0
        %945 = vmatpush1.bf16.msra.mxu0 0
        %946 = vmatprep.subr.bf16.mxu0 0
        %947 = vmatpush1.bf16.msra.mxu0 0
        %948 = vmatprep.subr.bf16.mxu0 0
        %949 = vmatpush1.bf16.msra.mxu0 0
        %950 = vmatprep.subr.bf16.mxu0 0
        %951 = vmatpush1.bf16.msra.mxu0 0
        %952 = vmatprep.subr.bf16.mxu0 0
        %953 = vmatpush1.bf16.msra.mxu0 0
        %954 = vmatprep.subr.bf16.mxu0 0
        %955 = vmatpush1.bf16.msra.mxu0 0
        %956 = vmatprep.subr.bf16.mxu0 0
        %957 = vmatpush1.bf16.msra.mxu0 0
        %958 = vmatprep.subr.bf16.mxu0 0
        %959 = vmatpush1.bf16.msra.mxu0 0
        %960 = vmatprep.subr.bf16.mxu0 0
        %961 = vmatpush1.bf16.msra.mxu0 0
        %962 = vmatprep.subr.bf16.mxu0 0
        %963 = vmatpush1.bf16.msra.mxu0 0
        %964 = vmatprep.subr.bf16.mxu0 0
        %965 = vmatpush1.bf16.msra.mxu0 0
        %966 = vmatprep.mubr.bf16.mxu0 0
        %967 = vmatmul.mubr.bf16.gmra.mrb[0].mxu0 %v923
        %v968 = vpop.f32.mrb[0].mxu0
        %v969 = vadd.f32 0.0, %v968
        %v970 = vpop.f32.mrb[0].mxu0
        %v971 = vpop.f32.mrb[0].mxu0
        %v972 = vadd.f32 0.0, %v971
        %v973 = vpop.f32.mrb[0].mxu0
        %974 = vmatprep.mubr.bf16.mxu0 0
        %975 = vmatmul.mubr.bf16.gmra.mrb[0].mxu0 %v926
        %v976 = vpop.f32.mrb[0].mxu0
        %v977 = vadd.f32 0.0, %v976
        %v978 = vpop.f32.mrb[0].mxu0
        %v979 = vpop.f32.mrb[0].mxu0
        %v980 = vadd.f32 0.0, %v979
        %v981 = vpop.f32.mrb[0].mxu0
        %982 = vmatprep.mubr.bf16.mxu0 0
        %983 = vmatmul.mubr.bf16.gmra.mrb[0].mxu0 %v929
        %v984 = vpop.f32.mrb[0].mxu0
        %v985 = vadd.f32 0.0, %v984
        %v986 = vpop.f32.mrb[0].mxu0
        %v987 = vpop.f32.mrb[0].mxu0
        %v988 = vadd.f32 0.0, %v987
        %v989 = vpop.f32.mrb[0].mxu0
        %990 = vmatprep.mubr.bf16.mxu0 0
        %991 = vmatmul.mubr.bf16.gmra.mrb[0].mxu0 %v932
        %v992 = vpop.f32.mrb[0].mxu0
        %v993 = vadd.f32 0.0, %v992
        %v994 = vpop.f32.mrb[0].mxu0
        %v995 = vpop.f32.mrb[0].mxu0
        %v996 = vadd.f32 0.0, %v995
        %v997 = vpop.f32.mrb[0].mxu0
        %998 = vdwg.mxu0
        %v999 = vadd.f32 %v869, %v969
        %v1000 = vadd.f32 %v870, %v972
        %v1001 = vadd.f32 %v871, %v977
        %v1002 = vadd.f32 %v872, %v980
        %v1003 = vadd.f32 %v873, %v985
        %v1004 = vadd.f32 %v874, %v988
        %v1005 = vadd.f32 %v875, %v993
        %v1006 = vadd.f32 %v876, %v996
        %v1007 = vld [vmem:[%s329] sm:$0xf]
        %v1008 = vld [vmem:[%s329 + $0x4] sm:$0x1]
        %v1009 = vld [vmem:[%s329 + $0x8] sm:$0xf]
        %v1010 = vld [vmem:[%s329 + $0xc] sm:$0x1]
        %v1011 = vld [vmem:[%s329 + $0x10] sm:$0xf]
        %v1012 = vld [vmem:[%s329 + $0x14] sm:$0x1]
        %v1013 = vld [vmem:[%s329 + $0x18] sm:$0xf]
        %v1014 = vld [vmem:[%s329 + $0x1c] sm:$0x1]
        %v1015 = vld [vmem:[%s329 + $0x20] sm:$0xf]
        %v1016 = vld [vmem:[%s329 + $0x24] sm:$0x1]
        %v1017 = vld [vmem:[%s329 + $0x28] sm:$0xf]
        %v1018 = vld [vmem:[%s329 + $0x2c] sm:$0x1]
        %v1019 = vld [vmem:[%s329 + $0x30] sm:$0xf]
        %v1020 = vld [vmem:[%s329 + $0x34] sm:$0x1]
        %v1021 = vld [vmem:[%s329 + $0x38] sm:$0xf]
        %v1022 = vld [vmem:[%s329 + $0x3c] sm:$0x1]
        %v1024 = vshrl.u32 %v1007, 16
        %v1026 = vrot.slane %v1024, 4
        %v1027 = vshll.u32 %v1007, 16
        %v1029 = vrot.slane %v1027, 5
        %v1030 = vor.u32 %v1026, %v1029
        %v1031 = vrot.slane %v1030, 4
        %v1033 = vshll.u32 %v1008, 16
        %v1035 = vrot.slane %v1033, 5
        %v1036 = vsel %vm375, %v1031, %v1035
        %v1038 = vshrl.u32 %v1009, 16
        %v1040 = vrot.slane %v1038, 4
        %v1041 = vshll.u32 %v1009, 16
        %v1043 = vrot.slane %v1041, 5
        %v1044 = vor.u32 %v1040, %v1043
        %v1045 = vrot.slane %v1044, 4
        %v1047 = vshll.u32 %v1010, 16
        %v1049 = vrot.slane %v1047, 5
        %v1050 = vsel %vm375, %v1045, %v1049
        %v1052 = vshrl.u32 %v1011, 16
        %v1054 = vrot.slane %v1052, 4
        %v1055 = vshll.u32 %v1011, 16
        %v1057 = vrot.slane %v1055, 5
        %v1058 = vor.u32 %v1054, %v1057
        %v1059 = vrot.slane %v1058, 4
        %v1061 = vshll.u32 %v1012, 16
        %v1063 = vrot.slane %v1061, 5
        %v1064 = vsel %vm375, %v1059, %v1063
        %v1066 = vshrl.u32 %v1013, 16
        %v1068 = vrot.slane %v1066, 4
        %v1069 = vshll.u32 %v1013, 16
        %v1071 = vrot.slane %v1069, 5
        %v1072 = vor.u32 %v1068, %v1071
        %v1073 = vrot.slane %v1072, 4
        %v1075 = vshll.u32 %v1014, 16
        %v1077 = vrot.slane %v1075, 5
        %v1078 = vsel %vm375, %v1073, %v1077
        %v1080 = vshrl.u32 %v1015, 16
        %v1082 = vrot.slane %v1080, 4
        %v1083 = vshll.u32 %v1015, 16
        %v1085 = vrot.slane %v1083, 5
        %v1086 = vor.u32 %v1082, %v1085
        %v1087 = vrot.slane %v1086, 4
        %v1089 = vshll.u32 %v1016, 16
        %v1091 = vrot.slane %v1089, 5
        %v1092 = vsel %vm375, %v1087, %v1091
        %v1094 = vshrl.u32 %v1017, 16
        %v1096 = vrot.slane %v1094, 4
        %v1097 = vshll.u32 %v1017, 16
        %v1099 = vrot.slane %v1097, 5
        %v1100 = vor.u32 %v1096, %v1099
        %v1101 = vrot.slane %v1100, 4
        %v1103 = vshll.u32 %v1018, 16
        %v1105 = vrot.slane %v1103, 5
        %v1106 = vsel %vm375, %v1101, %v1105
        %v1108 = vshrl.u32 %v1019, 16
        %v1110 = vrot.slane %v1108, 4
        %v1111 = vshll.u32 %v1019, 16
        %v1113 = vrot.slane %v1111, 5
        %v1114 = vor.u32 %v1110, %v1113
        %v1115 = vrot.slane %v1114, 4
        %v1117 = vshll.u32 %v1020, 16
        %v1119 = vrot.slane %v1117, 5
        %v1120 = vsel %vm375, %v1115, %v1119
        %v1122 = vshrl.u32 %v1021, 16
        %v1124 = vrot.slane %v1122, 4
        %v1125 = vshll.u32 %v1021, 16
        %v1127 = vrot.slane %v1125, 5
        %v1128 = vor.u32 %v1124, %v1127
        %v1129 = vrot.slane %v1128, 4
        %v1131 = vshll.u32 %v1022, 16
        %v1133 = vrot.slane %v1131, 5
        %v1134 = vsel %vm375, %v1129, %v1133
        %s1135 = scalar_lea.vmem [#allocation6], 64
        %v1136 = vld [vmem:[%s1135] sm:$0xf]
        %v1137 = vld [vmem:[%s1135 + $0x4] sm:$0xf]
        %v1138 = vld [vmem:[%s1135 + $0x8] sm:$0xf]
        %v1139 = vld [vmem:[%s1135 + $0xc] sm:$0xf]
        %v1140 = vunpack.c.l.b16 %v1036
        %v1141 = vunpack.c.l.b16 %v1050
        %v1142 = vunpack.c.l.b16 %v1064
        %v1143 = vunpack.c.l.b16 %v1078
        %v1144 = vunpack.c.l.b16 %v1092
        %v1145 = vunpack.c.l.b16 %v1106
        %v1146 = vunpack.c.l.b16 %v1120
        %v1147 = vunpack.c.l.b16 %v1134
        %v1148 = vpack.c.b16 %v1141, %v1140
        %v1149 = vpack.c.b16 %v1143, %v1142
        %v1150 = vpack.c.b16 %v1145, %v1144
        %v1151 = vpack.c.b16 %v1147, %v1146
        %v1156 = vunpack.c.l.b16 %v1136
        %v1157 = vunpack.c.l.b16 %v1137
        %v1158 = vunpack.c.l.b16 %v1138
        %v1159 = vunpack.c.l.b16 %v1139
        %v1160 = vpack.c.b16 %v1157, %v1156
        %v1161 = vpack.c.b16 %v1159, %v1158
        %v1165 = vsel %vm517, %v1148, 0
        %v1168 = vsel %vm517, %v1149, 0
        %v1171 = vsel %vm517, %v1150, 0
        %v1174 = vsel %vm517, %v1151, 0
        %1176 = vmatprep.subr.bf16.mxu0 0
        %1177 = vmatpush1.bf16.msra.mxu0 %v1160
        %1178 = vmatprep.subr.bf16.mxu0 0
        %1179 = vmatpush1.bf16.msra.mxu0 %v1161
        %1180 = vmatprep.subr.bf16.mxu0 0
        %1181 = vmatpush1.bf16.msra.mxu0 0
        %1182 = vmatprep.subr.bf16.mxu0 0
        %1183 = vmatpush1.bf16.msra.mxu0 0
        %1184 = vmatprep.subr.bf16.mxu0 0
        %1185 = vmatpush1.bf16.msra.mxu0 0
        %1186 = vmatprep.subr.bf16.mxu0 0
        %1187 = vmatpush1.bf16.msra.mxu0 0
        %1188 = vmatprep.subr.bf16.mxu0 0
        %1189 = vmatpush1.bf16.msra.mxu0 0
        %1190 = vmatprep.subr.bf16.mxu0 0
        %1191 = vmatpush1.bf16.msra.mxu0 0
        %1192 = vmatprep.subr.bf16.mxu0 0
        %1193 = vmatpush1.bf16.msra.mxu0 0
        %1194 = vmatprep.subr.bf16.mxu0 0
        %1195 = vmatpush1.bf16.msra.mxu0 0
        %1196 = vmatprep.subr.bf16.mxu0 0
        %1197 = vmatpush1.bf16.msra.mxu0 0
        %1198 = vmatprep.subr.bf16.mxu0 0
        %1199 = vmatpush1.bf16.msra.mxu0 0
        %1200 = vmatprep.subr.bf16.mxu0 0
        %1201 = vmatpush1.bf16.msra.mxu0 0
        %1202 = vmatprep.subr.bf16.mxu0 0
        %1203 = vmatpush1.bf16.msra.mxu0 0
        %1204 = vmatprep.subr.bf16.mxu0 0
        %1205 = vmatpush1.bf16.msra.mxu0 0
        %1206 = vmatprep.subr.bf16.mxu0 0
        %1207 = vmatpush1.bf16.msra.mxu0 0
        %1208 = vmatprep.mubr.bf16.mxu0 0
        %1209 = vmatmul.mubr.bf16.gmra.mrb[0].mxu0 %v1165
        %v1210 = vpop.f32.mrb[0].mxu0
        %v1211 = vadd.f32 0.0, %v1210
        %v1212 = vpop.f32.mrb[0].mxu0
        %v1213 = vpop.f32.mrb[0].mxu0
        %v1214 = vadd.f32 0.0, %v1213
        %v1215 = vpop.f32.mrb[0].mxu0
        %1216 = vmatprep.mubr.bf16.mxu0 0
        %1217 = vmatmul.mubr.bf16.gmra.mrb[0].mxu0 %v1168
        %v1218 = vpop.f32.mrb[0].mxu0
        %v1219 = vadd.f32 0.0, %v1218
        %v1220 = vpop.f32.mrb[0].mxu0
        %v1221 = vpop.f32.mrb[0].mxu0
        %v1222 = vadd.f32 0.0, %v1221
        %v1223 = vpop.f32.mrb[0].mxu0
        %1224 = vmatprep.mubr.bf16.mxu0 0
        %1225 = vmatmul.mubr.bf16.gmra.mrb[0].mxu0 %v1171
        %v1226 = vpop.f32.mrb[0].mxu0
        %v1227 = vadd.f32 0.0, %v1226
        %v1228 = vpop.f32.mrb[0].mxu0
        %v1229 = vpop.f32.mrb[0].mxu0
        %v1230 = vadd.f32 0.0, %v1229
        %v1231 = vpop.f32.mrb[0].mxu0
        %1232 = vmatprep.mubr.bf16.mxu0 0
        %1233 = vmatmul.mubr.bf16.gmra.mrb[0].mxu0 %v1174
        %v1234 = vpop.f32.mrb[0].mxu0
        %v1235 = vadd.f32 0.0, %v1234
        %v1236 = vpop.f32.mrb[0].mxu0
        %v1237 = vpop.f32.mrb[0].mxu0
        %v1238 = vadd.f32 0.0, %v1237
        %v1239 = vpop.f32.mrb[0].mxu0
        %1240 = vdwg.mxu0
        %v1241 = vadd.f32 %v999, %v1211
        %v1242 = vadd.f32 %v1000, %v1214
        %v1243 = vadd.f32 %v1001, %v1219
        %v1244 = vadd.f32 %v1002, %v1222
        %v1245 = vadd.f32 %v1003, %v1227
        %v1246 = vadd.f32 %v1004, %v1230
        %v1247 = vadd.f32 %v1005, %v1235
        %v1248 = vadd.f32 %v1006, %v1238
        %v1249 = vld [vmem:[%s329] sm:$0xe]
        %v1250 = vld [vmem:[%s329 + $0x8] sm:$0xe]
        %v1251 = vld [vmem:[%s329 + $0x10] sm:$0xe]
        %v1252 = vld [vmem:[%s329 + $0x18] sm:$0xe]
        %v1253 = vld [vmem:[%s329 + $0x20] sm:$0xe]
        %v1254 = vld [vmem:[%s329 + $0x28] sm:$0xe]
        %v1255 = vld [vmem:[%s329 + $0x30] sm:$0xe]
        %v1256 = vld [vmem:[%s329 + $0x38] sm:$0xe]
        %v1273 = vrot.slane %v1249, 5
        %v1274 = vrot.slane %v1273, 4
        %v1275 = vrot.slane %v1008, 5
        %v1276 = vsel %vm730, %v1274, %v1275
        %v1277 = vrot.slane %v1250, 5
        %v1278 = vrot.slane %v1277, 4
        %v1279 = vrot.slane %v1010, 5
        %v1280 = vsel %vm730, %v1278, %v1279
        %v1281 = vrot.slane %v1251, 5
        %v1282 = vrot.slane %v1281, 4
        %v1283 = vrot.slane %v1012, 5
        %v1284 = vsel %vm730, %v1282, %v1283
        %v1285 = vrot.slane %v1252, 5
        %v1286 = vrot.slane %v1285, 4
        %v1287 = vrot.slane %v1014, 5
        %v1288 = vsel %vm730, %v1286, %v1287
        %v1289 = vrot.slane %v1253, 5
        %v1290 = vrot.slane %v1289, 4
        %v1291 = vrot.slane %v1016, 5
        %v1292 = vsel %vm730, %v1290, %v1291
        %v1293 = vrot.slane %v1254, 5
        %v1294 = vrot.slane %v1293, 4
        %v1295 = vrot.slane %v1018, 5
        %v1296 = vsel %vm730, %v1294, %v1295
        %v1297 = vrot.slane %v1255, 5
        %v1298 = vrot.slane %v1297, 4
        %v1299 = vrot.slane %v1020, 5
        %v1300 = vsel %vm730, %v1298, %v1299
        %v1301 = vrot.slane %v1256, 5
        %v1302 = vrot.slane %v1301, 4
        %v1303 = vrot.slane %v1022, 5
        %v1304 = vsel %vm730, %v1302, %v1303
        %s1305 = scalar_lea.vmem [#allocation6], 80
        %v1306 = vld [vmem:[%s1305] sm:$0xf]
        %v1307 = vld [vmem:[%s1305 + $0x4] sm:$0xf]
        %v1308 = vld [vmem:[%s1305 + $0x8] sm:$0xf]
        %v1309 = vld [vmem:[%s1305 + $0xc] sm:$0xf]
        %v1310 = vunpack.c.l.b16 %v1276
        %v1311 = vunpack.c.l.b16 %v1280
        %v1312 = vunpack.c.l.b16 %v1284
        %v1313 = vunpack.c.l.b16 %v1288
        %v1314 = vunpack.c.l.b16 %v1292
        %v1315 = vunpack.c.l.b16 %v1296
        %v1316 = vunpack.c.l.b16 %v1300
        %v1317 = vunpack.c.l.b16 %v1304
        %v1318 = vpack.c.b16 %v1311, %v1310
        %v1319 = vpack.c.b16 %v1313, %v1312
        %v1320 = vpack.c.b16 %v1315, %v1314
        %v1321 = vpack.c.b16 %v1317, %v1316
        %v1326 = vunpack.c.l.b16 %v1306
        %v1327 = vunpack.c.l.b16 %v1307
        %v1328 = vunpack.c.l.b16 %v1308
        %v1329 = vunpack.c.l.b16 %v1309
        %v1330 = vpack.c.b16 %v1327, %v1326
        %v1331 = vpack.c.b16 %v1329, %v1328
        %v1335 = vsel %vm517, %v1318, 0
        %v1338 = vsel %vm517, %v1319, 0
        %v1341 = vsel %vm517, %v1320, 0
        %v1344 = vsel %vm517, %v1321, 0
        %1346 = vmatprep.subr.bf16.mxu0 0
        %1347 = vmatpush1.bf16.msra.mxu0 %v1330
        %1348 = vmatprep.subr.bf16.mxu0 0
        %1349 = vmatpush1.bf16.msra.mxu0 %v1331
        %1350 = vmatprep.subr.bf16.mxu0 0
        %1351 = vmatpush1.bf16.msra.mxu0 0
        %1352 = vmatprep.subr.bf16.mxu0 0
        %1353 = vmatpush1.bf16.msra.mxu0 0
        %1354 = vmatprep.subr.bf16.mxu0 0
        %1355 = vmatpush1.bf16.msra.mxu0 0
        %1356 = vmatprep.subr.bf16.mxu0 0
        %1357 = vmatpush1.bf16.msra.mxu0 0
        %1358 = vmatprep.subr.bf16.mxu0 0
        %1359 = vmatpush1.bf16.msra.mxu0 0
        %1360 = vmatprep.subr.bf16.mxu0 0
        %1361 = vmatpush1.bf16.msra.mxu0 0
        %1362 = vmatprep.subr.bf16.mxu0 0
        %1363 = vmatpush1.bf16.msra.mxu0 0
        %1364 = vmatprep.subr.bf16.mxu0 0
        %1365 = vmatpush1.bf16.msra.mxu0 0
        %1366 = vmatprep.subr.bf16.mxu0 0
        %1367 = vmatpush1.bf16.msra.mxu0 0
        %1368 = vmatprep.subr.bf16.mxu0 0
        %1369 = vmatpush1.bf16.msra.mxu0 0
        %1370 = vmatprep.subr.bf16.mxu0 0
        %1371 = vmatpush1.bf16.msra.mxu0 0
        %1372 = vmatprep.subr.bf16.mxu0 0
        %1373 = vmatpush1.bf16.msra.mxu0 0
        %1374 = vmatprep.subr.bf16.mxu0 0
        %1375 = vmatpush1.bf16.msra.mxu0 0
        %1376 = vmatprep.subr.bf16.mxu0 0
        %1377 = vmatpush1.bf16.msra.mxu0 0
        %1378 = vmatprep.mubr.bf16.mxu0 0
        %1379 = vmatmul.mubr.bf16.gmra.mrb[0].mxu0 %v1335
        %v1380 = vpop.f32.mrb[0].mxu0
        %v1381 = vadd.f32 0.0, %v1380
        %v1382 = vpop.f32.mrb[0].mxu0
        %v1383 = vpop.f32.mrb[0].mxu0
        %v1384 = vadd.f32 0.0, %v1383
        %v1385 = vpop.f32.mrb[0].mxu0
        %1386 = vmatprep.mubr.bf16.mxu0 0
        %1387 = vmatmul.mubr.bf16.gmra.mrb[0].mxu0 %v1338
        %v1388 = vpop.f32.mrb[0].mxu0
        %v1389 = vadd.f32 0.0, %v1388
        %v1390 = vpop.f32.mrb[0].mxu0
        %v1391 = vpop.f32.mrb[0].mxu0
        %v1392 = vadd.f32 0.0, %v1391
        %v1393 = vpop.f32.mrb[0].mxu0
        %1394 = vmatprep.mubr.bf16.mxu0 0
        %1395 = vmatmul.mubr.bf16.gmra.mrb[0].mxu0 %v1341
        %v1396 = vpop.f32.mrb[0].mxu0
        %v1397 = vadd.f32 0.0, %v1396
        %v1398 = vpop.f32.mrb[0].mxu0
        %v1399 = vpop.f32.mrb[0].mxu0
        %v1400 = vadd.f32 0.0, %v1399
        %v1401 = vpop.f32.mrb[0].mxu0
        %1402 = vmatprep.mubr.bf16.mxu0 0
        %1403 = vmatmul.mubr.bf16.gmra.mrb[0].mxu0 %v1344
        %v1404 = vpop.f32.mrb[0].mxu0
        %v1405 = vadd.f32 0.0, %v1404
        %v1406 = vpop.f32.mrb[0].mxu0
        %v1407 = vpop.f32.mrb[0].mxu0
        %v1408 = vadd.f32 0.0, %v1407
        %v1409 = vpop.f32.mrb[0].mxu0
        %1410 = vdwg.mxu0
        %v1411 = vadd.f32 %v1241, %v1381
        %v1412 = vadd.f32 %v1242, %v1384
        %v1413 = vadd.f32 %v1243, %v1389
        %v1414 = vadd.f32 %v1244, %v1392
        %v1415 = vadd.f32 %v1245, %v1397
        %v1416 = vadd.f32 %v1246, %v1400
        %v1417 = vadd.f32 %v1247, %v1405
        %v1418 = vadd.f32 %v1248, %v1408
        %s1419 = scalar_lea.vmem [#allocation2], 16
        %v1420 = vld [vmem:[%s1419] sm:$0xf]
        %v1421 = vld [vmem:[%s1419 + $0x8] sm:$0xf]
        %v1422 = vld [vmem:[%s1419 + $0x10] sm:$0xf]
        %v1423 = vld [vmem:[%s1419 + $0x18] sm:$0xf]
        %v1424 = vld [vmem:[%s1419 + $0x20] sm:$0xf]
        %v1425 = vld [vmem:[%s1419 + $0x28] sm:$0xf]
        %v1426 = vld [vmem:[%s1419 + $0x30] sm:$0xf]
        %v1427 = vld [vmem:[%s1419 + $0x38] sm:$0xf]
        %s1428 = scalar_lea.vmem [#allocation6], 96
        %v1429 = vld [vmem:[%s1428] sm:$0xf]
        %v1430 = vld [vmem:[%s1428 + $0x4] sm:$0xf]
        %v1431 = vld [vmem:[%s1428 + $0x8] sm:$0xf]
        %v1432 = vld [vmem:[%s1428 + $0xc] sm:$0xf]
        %v1441 = vunpack.c.l.b16 %v1420
        %v1442 = vunpack.c.l.b16 %v1421
        %v1443 = vunpack.c.l.b16 %v1422
        %v1444 = vunpack.c.l.b16 %v1423
        %v1445 = vunpack.c.l.b16 %v1424
        %v1446 = vunpack.c.l.b16 %v1425
        %v1447 = vunpack.c.l.b16 %v1426
        %v1448 = vunpack.c.l.b16 %v1427
        %v1449 = vpack.c.b16 %v1442, %v1441
        %v1450 = vpack.c.b16 %v1444, %v1443
        %v1451 = vpack.c.b16 %v1446, %v1445
        %v1452 = vpack.c.b16 %v1448, %v1447
        %v1457 = vunpack.c.l.b16 %v1429
        %v1458 = vunpack.c.l.b16 %v1430
        %v1459 = vunpack.c.l.b16 %v1431
        %v1460 = vunpack.c.l.b16 %v1432
        %v1461 = vpack.c.b16 %v1458, %v1457
        %v1462 = vpack.c.b16 %v1460, %v1459
        %v1466 = vsel %vm517, %v1449, 0
        %v1469 = vsel %vm517, %v1450, 0
        %v1472 = vsel %vm517, %v1451, 0
        %v1475 = vsel %vm517, %v1452, 0
        %1477 = vmatprep.subr.bf16.mxu0 0
        %1478 = vmatpush1.bf16.msra.mxu0 %v1461
        %1479 = vmatprep.subr.bf16.mxu0 0
        %1480 = vmatpush1.bf16.msra.mxu0 %v1462
        %1481 = vmatprep.subr.bf16.mxu0 0
        %1482 = vmatpush1.bf16.msra.mxu0 0
        %1483 = vmatprep.subr.bf16.mxu0 0
        %1484 = vmatpush1.bf16.msra.mxu0 0
        %1485 = vmatprep.subr.bf16.mxu0 0
        %1486 = vmatpush1.bf16.msra.mxu0 0
        %1487 = vmatprep.subr.bf16.mxu0 0
        %1488 = vmatpush1.bf16.msra.mxu0 0
        %1489 = vmatprep.subr.bf16.mxu0 0
        %1490 = vmatpush1.bf16.msra.mxu0 0
        %1491 = vmatprep.subr.bf16.mxu0 0
        %1492 = vmatpush1.bf16.msra.mxu0 0
        %1493 = vmatprep.subr.bf16.mxu0 0
        %1494 = vmatpush1.bf16.msra.mxu0 0
        %1495 = vmatprep.subr.bf16.mxu0 0
        %1496 = vmatpush1.bf16.msra.mxu0 0
        %1497 = vmatprep.subr.bf16.mxu0 0
        %1498 = vmatpush1.bf16.msra.mxu0 0
        %1499 = vmatprep.subr.bf16.mxu0 0
        %1500 = vmatpush1.bf16.msra.mxu0 0
        %1501 = vmatprep.subr.bf16.mxu0 0
        %1502 = vmatpush1.bf16.msra.mxu0 0
        %1503 = vmatprep.subr.bf16.mxu0 0
        %1504 = vmatpush1.bf16.msra.mxu0 0
        %1505 = vmatprep.subr.bf16.mxu0 0
        %1506 = vmatpush1.bf16.msra.mxu0 0
        %1507 = vmatprep.subr.bf16.mxu0 0
        %1508 = vmatpush1.bf16.msra.mxu0 0
        %1509 = vmatprep.mubr.bf16.mxu0 0
        %1510 = vmatmul.mubr.bf16.gmra.mrb[0].mxu0 %v1466
        %v1511 = vpop.f32.mrb[0].mxu0
        %v1512 = vadd.f32 0.0, %v1511
        %v1513 = vpop.f32.mrb[0].mxu0
        %v1514 = vpop.f32.mrb[0].mxu0
        %v1515 = vadd.f32 0.0, %v1514
        %v1516 = vpop.f32.mrb[0].mxu0
        %1517 = vmatprep.mubr.bf16.mxu0 0
        %1518 = vmatmul.mubr.bf16.gmra.mrb[0].mxu0 %v1469
        %v1519 = vpop.f32.mrb[0].mxu0
        %v1520 = vadd.f32 0.0, %v1519
        %v1521 = vpop.f32.mrb[0].mxu0
        %v1522 = vpop.f32.mrb[0].mxu0
        %v1523 = vadd.f32 0.0, %v1522
        %v1524 = vpop.f32.mrb[0].mxu0
        %1525 = vmatprep.mubr.bf16.mxu0 0
        %1526 = vmatmul.mubr.bf16.gmra.mrb[0].mxu0 %v1472
        %v1527 = vpop.f32.mrb[0].mxu0
        %v1528 = vadd.f32 0.0, %v1527
        %v1529 = vpop.f32.mrb[0].mxu0
        %v1530 = vpop.f32.mrb[0].mxu0
        %v1531 = vadd.f32 0.0, %v1530
        %v1532 = vpop.f32.mrb[0].mxu0
        %1533 = vmatprep.mubr.bf16.mxu0 0
        %1534 = vmatmul.mubr.bf16.gmra.mrb[0].mxu0 %v1475
        %v1535 = vpop.f32.mrb[0].mxu0
        %v1536 = vadd.f32 0.0, %v1535
        %v1537 = vpop.f32.mrb[0].mxu0
        %v1538 = vpop.f32.mrb[0].mxu0
        %v1539 = vadd.f32 0.0, %v1538
        %v1540 = vpop.f32.mrb[0].mxu0
        %1541 = vdwg.mxu0
        %v1542 = vadd.f32 %v1411, %v1512
        %v1543 = vadd.f32 %v1412, %v1515
        %v1544 = vadd.f32 %v1413, %v1520
        %v1545 = vadd.f32 %v1414, %v1523
        %v1546 = vadd.f32 %v1415, %v1528
        %v1547 = vadd.f32 %v1416, %v1531
        %v1548 = vadd.f32 %v1417, %v1536
        %v1549 = vadd.f32 %v1418, %v1539
        %v1550 = vld [vmem:[%s1419] sm:$0xf]
        %v1551 = vld [vmem:[%s1419 + $0x4] sm:$0x1]
        %v1552 = vld [vmem:[%s1419 + $0x8] sm:$0xf]
        %v1553 = vld [vmem:[%s1419 + $0xc] sm:$0x1]
        %v1554 = vld [vmem:[%s1419 + $0x10] sm:$0xf]
        %v1555 = vld [vmem:[%s1419 + $0x14] sm:$0x1]
        %v1556 = vld [vmem:[%s1419 + $0x18] sm:$0xf]
        %v1557 = vld [vmem:[%s1419 + $0x1c] sm:$0x1]
        %v1558 = vld [vmem:[%s1419 + $0x20] sm:$0xf]
        %v1559 = vld [vmem:[%s1419 + $0x24] sm:$0x1]
        %v1560 = vld [vmem:[%s1419 + $0x28] sm:$0xf]
        %v1561 = vld [vmem:[%s1419 + $0x2c] sm:$0x1]
        %v1562 = vld [vmem:[%s1419 + $0x30] sm:$0xf]
        %v1563 = vld [vmem:[%s1419 + $0x34] sm:$0x1]
        %v1564 = vld [vmem:[%s1419 + $0x38] sm:$0xf]
        %v1565 = vld [vmem:[%s1419 + $0x3c] sm:$0x1]
        %v1567 = vshrl.u32 %v1550, 16
        %v1569 = vrot.slane %v1567, 4
        %v1570 = vshll.u32 %v1550, 16
        %v1572 = vrot.slane %v1570, 5
        %v1573 = vor.u32 %v1569, %v1572
        %v1574 = vrot.slane %v1573, 4
        %v1576 = vshll.u32 %v1551, 16
        %v1578 = vrot.slane %v1576, 5
        %v1579 = vsel %vm375, %v1574, %v1578
        %v1581 = vshrl.u32 %v1552, 16
        %v1583 = vrot.slane %v1581, 4
        %v1584 = vshll.u32 %v1552, 16
        %v1586 = vrot.slane %v1584, 5
        %v1587 = vor.u32 %v1583, %v1586
        %v1588 = vrot.slane %v1587, 4
        %v1590 = vshll.u32 %v1553, 16
        %v1592 = vrot.slane %v1590, 5
        %v1593 = vsel %vm375, %v1588, %v1592
        %v1595 = vshrl.u32 %v1554, 16
        %v1597 = vrot.slane %v1595, 4
        %v1598 = vshll.u32 %v1554, 16
        %v1600 = vrot.slane %v1598, 5
        %v1601 = vor.u32 %v1597, %v1600
        %v1602 = vrot.slane %v1601, 4
        %v1604 = vshll.u32 %v1555, 16
        %v1606 = vrot.slane %v1604, 5
        %v1607 = vsel %vm375, %v1602, %v1606
        %v1609 = vshrl.u32 %v1556, 16
        %v1611 = vrot.slane %v1609, 4
        %v1612 = vshll.u32 %v1556, 16
        %v1614 = vrot.slane %v1612, 5
        %v1615 = vor.u32 %v1611, %v1614
        %v1616 = vrot.slane %v1615, 4
        %v1618 = vshll.u32 %v1557, 16
        %v1620 = vrot.slane %v1618, 5
        %v1621 = vsel %vm375, %v1616, %v1620
        %v1623 = vshrl.u32 %v1558, 16
        %v1625 = vrot.slane %v1623, 4
        %v1626 = vshll.u32 %v1558, 16
        %v1628 = vrot.slane %v1626, 5
        %v1629 = vor.u32 %v1625, %v1628
        %v1630 = vrot.slane %v1629, 4
        %v1632 = vshll.u32 %v1559, 16
        %v1634 = vrot.slane %v1632, 5
        %v1635 = vsel %vm375, %v1630, %v1634
        %v1637 = vshrl.u32 %v1560, 16
        %v1639 = vrot.slane %v1637, 4
        %v1640 = vshll.u32 %v1560, 16
        %v1642 = vrot.slane %v1640, 5
        %v1643 = vor.u32 %v1639, %v1642
        %v1644 = vrot.slane %v1643, 4
        %v1646 = vshll.u32 %v1561, 16
        %v1648 = vrot.slane %v1646, 5
        %v1649 = vsel %vm375, %v1644, %v1648
        %v1651 = vshrl.u32 %v1562, 16
        %v1653 = vrot.slane %v1651, 4
        %v1654 = vshll.u32 %v1562, 16
        %v1656 = vrot.slane %v1654, 5
        %v1657 = vor.u32 %v1653, %v1656
        %v1658 = vrot.slane %v1657, 4
        %v1660 = vshll.u32 %v1563, 16
        %v1662 = vrot.slane %v1660, 5
        %v1663 = vsel %vm375, %v1658, %v1662
        %v1665 = vshrl.u32 %v1564, 16
        %v1667 = vrot.slane %v1665, 4
        %v1668 = vshll.u32 %v1564, 16
        %v1670 = vrot.slane %v1668, 5
        %v1671 = vor.u32 %v1667, %v1670
        %v1672 = vrot.slane %v1671, 4
        %v1674 = vshll.u32 %v1565, 16
        %v1676 = vrot.slane %v1674, 5
        %v1677 = vsel %vm375, %v1672, %v1676
        %s1678 = scalar_lea.vmem [#allocation6], 112
        %v1679 = vld [vmem:[%s1678] sm:$0xf]
        %v1680 = vld [vmem:[%s1678 + $0x4] sm:$0xf]
        %v1681 = vld [vmem:[%s1678 + $0x8] sm:$0xf]
        %v1682 = vld [vmem:[%s1678 + $0xc] sm:$0xf]
        %v1683 = vunpack.c.l.b16 %v1579
        %v1684 = vunpack.c.l.b16 %v1593
        %v1685 = vunpack.c.l.b16 %v1607
        %v1686 = vunpack.c.l.b16 %v1621
        %v1687 = vunpack.c.l.b16 %v1635
        %v1688 = vunpack.c.l.b16 %v1649
        %v1689 = vunpack.c.l.b16 %v1663
        %v1690 = vunpack.c.l.b16 %v1677
        %v1691 = vpack.c.b16 %v1684, %v1683
        %v1692 = vpack.c.b16 %v1686, %v1685
        %v1693 = vpack.c.b16 %v1688, %v1687
        %v1694 = vpack.c.b16 %v1690, %v1689
        %v1699 = vunpack.c.l.b16 %v1679
        %v1700 = vunpack.c.l.b16 %v1680
        %v1701 = vunpack.c.l.b16 %v1681
        %v1702 = vunpack.c.l.b16 %v1682
        %v1703 = vpack.c.b16 %v1700, %v1699
        %v1704 = vpack.c.b16 %v1702, %v1701
        %v1708 = vsel %vm517, %v1691, 0
        %v1711 = vsel %vm517, %v1692, 0
        %v1714 = vsel %vm517, %v1693, 0
        %v1717 = vsel %vm517, %v1694, 0
        %1719 = vmatprep.subr.bf16.mxu0 0
        %1720 = vmatpush1.bf16.msra.mxu0 %v1703
        %1721 = vmatprep.subr.bf16.mxu0 0
        %1722 = vmatpush1.bf16.msra.mxu0 %v1704
        %1723 = vmatprep.subr.bf16.mxu0 0
        %1724 = vmatpush1.bf16.msra.mxu0 0
        %1725 = vmatprep.subr.bf16.mxu0 0
        %1726 = vmatpush1.bf16.msra.mxu0 0
        %1727 = vmatprep.subr.bf16.mxu0 0
        %1728 = vmatpush1.bf16.msra.mxu0 0
        %1729 = vmatprep.subr.bf16.mxu0 0
        %1730 = vmatpush1.bf16.msra.mxu0 0
        %1731 = vmatprep.subr.bf16.mxu0 0
        %1732 = vmatpush1.bf16.msra.mxu0 0
        %1733 = vmatprep.subr.bf16.mxu0 0
        %1734 = vmatpush1.bf16.msra.mxu0 0
        %1735 = vmatprep.subr.bf16.mxu0 0
        %1736 = vmatpush1.bf16.msra.mxu0 0
        %1737 = vmatprep.subr.bf16.mxu0 0
        %1738 = vmatpush1.bf16.msra.mxu0 0
        %1739 = vmatprep.subr.bf16.mxu0 0
        %1740 = vmatpush1.bf16.msra.mxu0 0
        %1741 = vmatprep.subr.bf16.mxu0 0
        %1742 = vmatpush1.bf16.msra.mxu0 0
        %1743 = vmatprep.subr.bf16.mxu0 0
        %1744 = vmatpush1.bf16.msra.mxu0 0
        %1745 = vmatprep.subr.bf16.mxu0 0
        %1746 = vmatpush1.bf16.msra.mxu0 0
        %1747 = vmatprep.subr.bf16.mxu0 0
        %1748 = vmatpush1.bf16.msra.mxu0 0
        %1749 = vmatprep.subr.bf16.mxu0 0
        %1750 = vmatpush1.bf16.msra.mxu0 0
        %1751 = vmatprep.mubr.bf16.mxu0 0
        %1752 = vmatmul.mubr.bf16.gmra.mrb[0].mxu0 %v1708
        %v1753 = vpop.f32.mrb[0].mxu0
        %v1754 = vadd.f32 0.0, %v1753
        %v1755 = vpop.f32.mrb[0].mxu0
        %v1756 = vpop.f32.mrb[0].mxu0
        %v1757 = vadd.f32 0.0, %v1756
        %v1758 = vpop.f32.mrb[0].mxu0
        %1759 = vmatprep.mubr.bf16.mxu0 0
        %1760 = vmatmul.mubr.bf16.gmra.mrb[0].mxu0 %v1711
        %v1761 = vpop.f32.mrb[0].mxu0
        %v1762 = vadd.f32 0.0, %v1761
        %v1763 = vpop.f32.mrb[0].mxu0
        %v1764 = vpop.f32.mrb[0].mxu0
        %v1765 = vadd.f32 0.0, %v1764
        %v1766 = vpop.f32.mrb[0].mxu0
        %1767 = vmatprep.mubr.bf16.mxu0 0
        %1768 = vmatmul.mubr.bf16.gmra.mrb[0].mxu0 %v1714
        %v1769 = vpop.f32.mrb[0].mxu0
        %v1770 = vadd.f32 0.0, %v1769
        %v1771 = vpop.f32.mrb[0].mxu0
        %v1772 = vpop.f32.mrb[0].mxu0
        %v1773 = vadd.f32 0.0, %v1772
        %v1774 = vpop.f32.mrb[0].mxu0
        %1775 = vmatprep.mubr.bf16.mxu0 0
        %1776 = vmatmul.mubr.bf16.gmra.mrb[0].mxu0 %v1717
        %v1777 = vpop.f32.mrb[0].mxu0
        %v1778 = vadd.f32 0.0, %v1777
        %v1779 = vpop.f32.mrb[0].mxu0
        %v1780 = vpop.f32.mrb[0].mxu0
        %v1781 = vadd.f32 0.0, %v1780
        %v1782 = vpop.f32.mrb[0].mxu0
        %1783 = vdwg.mxu0
        %v1784 = vadd.f32 %v1542, %v1754
        %v1785 = vadd.f32 %v1543, %v1757
        %v1786 = vadd.f32 %v1544, %v1762
        %v1787 = vadd.f32 %v1545, %v1765
        %v1788 = vadd.f32 %v1546, %v1770
        %v1789 = vadd.f32 %v1547, %v1773
        %v1790 = vadd.f32 %v1548, %v1778
        %v1791 = vadd.f32 %v1549, %v1781
        %v1792 = vld [vmem:[%s1419] sm:$0xe]
        %v1793 = vld [vmem:[%s1419 + $0x8] sm:$0xe]
        %v1794 = vld [vmem:[%s1419 + $0x10] sm:$0xe]
        %v1795 = vld [vmem:[%s1419 + $0x18] sm:$0xe]
        %v1796 = vld [vmem:[%s1419 + $0x20] sm:$0xe]
        %v1797 = vld [vmem:[%s1419 + $0x28] sm:$0xe]
        %v1798 = vld [vmem:[%s1419 + $0x30] sm:$0xe]
        %v1799 = vld [vmem:[%s1419 + $0x38] sm:$0xe]
        %v1816 = vrot.slane %v1792, 5
        %v1817 = vrot.slane %v1816, 4
        %v1818 = vrot.slane %v1551, 5
        %v1819 = vsel %vm730, %v1817, %v1818
        %v1820 = vrot.slane %v1793, 5
        %v1821 = vrot.slane %v1820, 4
        %v1822 = vrot.slane %v1553, 5
        %v1823 = vsel %vm730, %v1821, %v1822
        %v1824 = vrot.slane %v1794, 5
        %v1825 = vrot.slane %v1824, 4
        %v1826 = vrot.slane %v1555, 5
        %v1827 = vsel %vm730, %v1825, %v1826
        %v1828 = vrot.slane %v1795, 5
        %v1829 = vrot.slane %v1828, 4
        %v1830 = vrot.slane %v1557, 5
        %v1831 = vsel %vm730, %v1829, %v1830
        %v1832 = vrot.slane %v1796, 5
        %v1833 = vrot.slane %v1832, 4
        %v1834 = vrot.slane %v1559, 5
        %v1835 = vsel %vm730, %v1833, %v1834
        %v1836 = vrot.slane %v1797, 5
        %v1837 = vrot.slane %v1836, 4
        %v1838 = vrot.slane %v1561, 5
        %v1839 = vsel %vm730, %v1837, %v1838
        %v1840 = vrot.slane %v1798, 5
        %v1841 = vrot.slane %v1840, 4
        %v1842 = vrot.slane %v1563, 5
        %v1843 = vsel %vm730, %v1841, %v1842
        %v1844 = vrot.slane %v1799, 5
        %v1845 = vrot.slane %v1844, 4
        %v1846 = vrot.slane %v1565, 5
        %v1847 = vsel %vm730, %v1845, %v1846
        %s1848 = scalar_lea.vmem [#allocation6], 128
        %v1849 = vld [vmem:[%s1848] sm:$0xf]
        %v1850 = vld [vmem:[%s1848 + $0x4] sm:$0xf]
        %v1851 = vld [vmem:[%s1848 + $0x8] sm:$0xf]
        %v1852 = vld [vmem:[%s1848 + $0xc] sm:$0xf]
        %v1853 = vunpack.c.l.b16 %v1819
        %v1854 = vunpack.c.l.b16 %v1823
        %v1855 = vunpack.c.l.b16 %v1827
        %v1856 = vunpack.c.l.b16 %v1831
        %v1857 = vunpack.c.l.b16 %v1835
        %v1858 = vunpack.c.l.b16 %v1839
        %v1859 = vunpack.c.l.b16 %v1843
        %v1860 = vunpack.c.l.b16 %v1847
        %v1861 = vpack.c.b16 %v1854, %v1853
        %v1862 = vpack.c.b16 %v1856, %v1855
        %v1863 = vpack.c.b16 %v1858, %v1857
        %v1864 = vpack.c.b16 %v1860, %v1859
        %v1869 = vunpack.c.l.b16 %v1849
        %v1870 = vunpack.c.l.b16 %v1850
        %v1871 = vunpack.c.l.b16 %v1851
        %v1872 = vunpack.c.l.b16 %v1852
        %v1873 = vpack.c.b16 %v1870, %v1869
        %v1874 = vpack.c.b16 %v1872, %v1871
        %v1878 = vsel %vm517, %v1861, 0
        %v1881 = vsel %vm517, %v1862, 0
        %v1884 = vsel %vm517, %v1863, 0
        %v1887 = vsel %vm517, %v1864, 0
        %1889 = vmatprep.subr.bf16.mxu0 0
        %1890 = vmatpush1.bf16.msra.mxu0 %v1873
        %1891 = vmatprep.subr.bf16.mxu0 0
        %1892 = vmatpush1.bf16.msra.mxu0 %v1874
        %1893 = vmatprep.subr.bf16.mxu0 0
        %1894 = vmatpush1.bf16.msra.mxu0 0
        %1895 = vmatprep.subr.bf16.mxu0 0
        %1896 = vmatpush1.bf16.msra.mxu0 0
        %1897 = vmatprep.subr.bf16.mxu0 0
        %1898 = vmatpush1.bf16.msra.mxu0 0
        %1899 = vmatprep.subr.bf16.mxu0 0
        %1900 = vmatpush1.bf16.msra.mxu0 0
        %1901 = vmatprep.subr.bf16.mxu0 0
        %1902 = vmatpush1.bf16.msra.mxu0 0
        %1903 = vmatprep.subr.bf16.mxu0 0
        %1904 = vmatpush1.bf16.msra.mxu0 0
        %1905 = vmatprep.subr.bf16.mxu0 0
        %1906 = vmatpush1.bf16.msra.mxu0 0
        %1907 = vmatprep.subr.bf16.mxu0 0
        %1908 = vmatpush1.bf16.msra.mxu0 0
        %1909 = vmatprep.subr.bf16.mxu0 0
        %1910 = vmatpush1.bf16.msra.mxu0 0
        %1911 = vmatprep.subr.bf16.mxu0 0
        %1912 = vmatpush1.bf16.msra.mxu0 0
        %1913 = vmatprep.subr.bf16.mxu0 0
        %1914 = vmatpush1.bf16.msra.mxu0 0
        %1915 = vmatprep.subr.bf16.mxu0 0
        %1916 = vmatpush1.bf16.msra.mxu0 0
        %1917 = vmatprep.subr.bf16.mxu0 0
        %1918 = vmatpush1.bf16.msra.mxu0 0
        %1919 = vmatprep.subr.bf16.mxu0 0
        %1920 = vmatpush1.bf16.msra.mxu0 0
        %1921 = vmatprep.mubr.bf16.mxu0 0
        %1922 = vmatmul.mubr.bf16.gmra.mrb[0].mxu0 %v1878
        %v1923 = vpop.f32.mrb[0].mxu0
        %v1924 = vadd.f32 0.0, %v1923
        %v1925 = vpop.f32.mrb[0].mxu0
        %v1926 = vpop.f32.mrb[0].mxu0
        %v1927 = vadd.f32 0.0, %v1926
        %v1928 = vpop.f32.mrb[0].mxu0
        %1929 = vmatprep.mubr.bf16.mxu0 0
        %1930 = vmatmul.mubr.bf16.gmra.mrb[0].mxu0 %v1881
        %v1931 = vpop.f32.mrb[0].mxu0
        %v1932 = vadd.f32 0.0, %v1931
        %v1933 = vpop.f32.mrb[0].mxu0
        %v1934 = vpop.f32.mrb[0].mxu0
        %v1935 = vadd.f32 0.0, %v1934
        %v1936 = vpop.f32.mrb[0].mxu0
        %1937 = vmatprep.mubr.bf16.mxu0 0
        %1938 = vmatmul.mubr.bf16.gmra.mrb[0].mxu0 %v1884
        %v1939 = vpop.f32.mrb[0].mxu0
        %v1940 = vadd.f32 0.0, %v1939
        %v1941 = vpop.f32.mrb[0].mxu0
        %v1942 = vpop.f32.mrb[0].mxu0
        %v1943 = vadd.f32 0.0, %v1942
        %v1944 = vpop.f32.mrb[0].mxu0
        %1945 = vmatprep.mubr.bf16.mxu0 0
        %1946 = vmatmul.mubr.bf16.gmra.mrb[0].mxu0 %v1887
        %v1947 = vpop.f32.mrb[0].mxu0
        %v1948 = vadd.f32 0.0, %v1947
        %v1949 = vpop.f32.mrb[0].mxu0
        %v1950 = vpop.f32.mrb[0].mxu0
        %v1951 = vadd.f32 0.0, %v1950
        %v1952 = vpop.f32.mrb[0].mxu0
        %1953 = vdwg.mxu0
        %v1954 = vadd.f32 %v1784, %v1924
        %v1955 = vadd.f32 %v1785, %v1927
        %v1956 = vadd.f32 %v1786, %v1932
        %v1957 = vadd.f32 %v1787, %v1935
        %v1958 = vadd.f32 %v1788, %v1940
        %v1959 = vadd.f32 %v1789, %v1943
        %v1960 = vadd.f32 %v1790, %v1948
        %v1961 = vadd.f32 %v1791, %v1951
        %1962 = vst.msk [vmem:[%s207] sm:$0xff] %vm517, %v1954
        %1963 = vst.msk [vmem:[%s207 + $0x8] sm:$0xff] %vm517, %v1955
        %1964 = vst.msk [vmem:[%s207 + $0x10] sm:$0xff] %vm517, %v1956
        %1965 = vst.msk [vmem:[%s207 + $0x18] sm:$0xff] %vm517, %v1957
        %1966 = vst.msk [vmem:[%s207 + $0x20] sm:$0xff] %vm517, %v1958
        %1967 = vst.msk [vmem:[%s207 + $0x28] sm:$0xff] %vm517, %v1959
        %1968 = vst.msk [vmem:[%s207 + $0x30] sm:$0xff] %vm517, %v1960
        %1969 = vst.msk [vmem:[%s207 + $0x38] sm:$0xff] %vm517, %v1961
        %v1970 = vsel %vm517, %v1954, 0.0
        %v1971 = vsel %vm517, %v1955, 0.0
        %v1972 = vadd.f32 %v1970, %v1971
        %v1973 = vsel %vm517, %v1956, 0.0
        %v1974 = vadd.f32 %v1972, %v1973
        %v1975 = vsel %vm517, %v1957, 0.0
        %v1976 = vadd.f32 %v1974, %v1975
        %v1977 = vsel %vm517, %v1958, 0.0
        %v1978 = vadd.f32 %v1976, %v1977
        %v1979 = vsel %vm517, %v1959, 0.0
        %v1980 = vadd.f32 %v1978, %v1979
        %v1981 = vsel %vm517, %v1960, 0.0
        %v1982 = vadd.f32 %v1980, %v1981
        %v1983 = vsel %vm517, %v1961, 0.0
        %v1984 = vadd.f32 %v1982, %v1983
        %v1985 = vrot.slane %v1984, 4
        %v1986 = vadd.f32 %v1984, %v1985
        %v1987 = vrot.slane %v1986, 2
        %v1988 = vadd.f32 %v1986, %v1987
        %v1989 = vrot.slane %v1988, 1
        %v1990 = vadd.f32 %v1988, %v1989
        %v1991 = vmul.f32 %v1954, %v1954
        %v1992 = vmul.f32 %v1955, %v1955
        %v1993 = vmul.f32 %v1956, %v1956
        %v1994 = vmul.f32 %v1957, %v1957
        %v1995 = vmul.f32 %v1958, %v1958
        %v1996 = vmul.f32 %v1959, %v1959
        %v1997 = vmul.f32 %v1960, %v1960
        %v1998 = vmul.f32 %v1961, %v1961
        %v1999 = vsel %vm517, %v1991, 0.0
        %v2000 = vsel %vm517, %v1992, 0.0
        %v2001 = vadd.f32 %v1999, %v2000
        %v2002 = vsel %vm517, %v1993, 0.0
        %v2003 = vadd.f32 %v2001, %v2002
        %v2004 = vsel %vm517, %v1994, 0.0
        %v2005 = vadd.f32 %v2003, %v2004
        %v2006 = vsel %vm517, %v1995, 0.0
        %v2007 = vadd.f32 %v2005, %v2006
        %v2008 = vsel %vm517, %v1996, 0.0
        %v2009 = vadd.f32 %v2007, %v2008
        %v2010 = vsel %vm517, %v1997, 0.0
        %v2011 = vadd.f32 %v2009, %v2010
        %v2012 = vsel %vm517, %v1998, 0.0
        %v2013 = vadd.f32 %v2011, %v2012
        %v2014 = vrot.slane %v2013, 4
        %v2015 = vadd.f32 %v2013, %v2014
        %v2016 = vrot.slane %v2015, 2
        %v2017 = vadd.f32 %v2015, %v2016
        %v2018 = vrot.slane %v2017, 1
        %v2019 = vadd.f32 %v2017, %v2018
        %v2020 = vsel %vm248, %v1990, %v2019
        %vm2021 = vcmask 254976
        %2022 = vst.msk [vmem:[%s214] sm:$0x3] %vm2021, %v2020
        %s2023 = sand.u32 %s80, 1
        %s2024 = scalar_lea.sflag [#allocation5], %s2023
        %s2025 = sand.u32 %s80, 1
        %s2026 = smul.addr %s2025, 64
        %s2027 = scalar_lea.vmem [#allocation8], %s2026
        %s2028 = sand.u32 %s106, 1
        %s2029 = scalar_lea.sflag [#allocation10], %s2028
        %s2030 = sand.u32 %s106, 1
        %s2031 = smul.addr %s2030, 2
        %s2032 = scalar_lea.vmem [#allocation9], %s2031
        // Predicated region
        $region37: #{basic_block_forward.3} parent=27 // pred_check
          %p2033 = pneg %p90
        $region38: #{basic_block_forward.3} parent=27 // pred_check_branch
          %2035 = sbr.rel (%p2033) target = $region40
        $region39: #{basic_block_forward.3} parent=27 // pred_region
          %s2037 = ssub.s32 1024, 1024
          %2038 = vsyncadd %s2024, %s2037
          %s2039 = smul.addr %s25, 8
          %s2040 = smul.addr %s2039, 128
          %s2041 = scalar_lea.hbm %s2, %s2040
          %s2042 = sshll.u32 %s2027, 4
          %s2043 = int_to_ptr.vmem [resolvable:$true] %s2042
          %2048 = dma.vmem_to_hbm [thread:$0]  %s2043, 1024, %s2041, %s2024, 128, 128, 8
        $region40: #{basic_block_forward.3} parent=27 // pred_fallthru
          _
        // Predicated region
        $region41: #{basic_block_forward.3} parent=27 // pred_check
          %p2049 = pneg %p116
        $region42: #{basic_block_forward.3} parent=27 // pred_check_branch
          %2051 = sbr.rel (%p2049) target = $region44
        $region43: #{basic_block_forward.3} parent=27 // pred_region
          %s2053 = ssub.s32 32, 32
          %2054 = vsyncadd %s2029, %s2053
          %s2055 = smul.addr %s25, 32
          %s2056 = scalar_lea.hbm %s3, %s2055
          %s2058 = sshll.u32 %s2032, 4
          %s2059 = int_to_ptr.vmem [resolvable:$true] %s2058
          %2061 = dma.vmem_to_hbm [thread:$0]  %s2059, 32, %s2056, %s2029
        $region44: #{basic_block_forward.3} parent=27 // pred_fallthru
          _
      $region28: #{basic_block_forward.3} parent=5 // pred_fallthru
        _
      %p2062 = scmp.le.s32.totalorder 2, %s20
      // Predicated region
      $region45: #{basic_block_forward.3} parent=5 // pred_check
        %p2063 = pneg %p2062
      $region46: #{basic_block_forward.3} parent=5 // pred_check_branch
        %2065 = sbr.rel (%p2063) target = $region48
      $region47: #{basic_block_forward.3} parent=5 // pred_region
        %s2066 = ssub.s32 %s20, 2
        // Predicated region
        $region49: #{basic_block_forward.3} parent=47 // pred_check
          %p2067 = pneg %p96
        $region50: #{basic_block_forward.3} parent=47 // pred_check_branch
          %2069 = sbr.rel (%p2067) target = $region52
        $region51: #{basic_block_forward.3} parent=47 // pred_region
          %s2070 = sand.u32 %s81, 1
          %s2071 = scalar_lea.sflag [#allocation5], %s2070
          %s2072 = sand.u32 %s81, 1
          %s2073 = smul.addr %s2072, 64
          %s2074 = scalar_lea.vmem [#allocation8], %s2073
          %2075 = dma.done %s2071, 1024
        $region52: #{basic_block_forward.3} parent=47 // pred_fallthru
          _
        // Predicated region
        $region53: #{basic_block_forward.3} parent=47 // pred_check
          %p2076 = pneg %p122
        $region54: #{basic_block_forward.3} parent=47 // pred_check_branch
          %2078 = sbr.rel (%p2076) target = $region56
        $region55: #{basic_block_forward.3} parent=47 // pred_region
          %s2079 = sand.u32 %s107, 1
          %s2080 = scalar_lea.sflag [#allocation10], %s2079
          %s2081 = sand.u32 %s107, 1
          %s2082 = smul.addr %s2081, 2
          %s2083 = scalar_lea.vmem [#allocation9], %s2082
          %2084 = dma.done %s2080, 32
        $region56: #{basic_block_forward.3} parent=47 // pred_fallthru
          _
      $region48: #{basic_block_forward.3} parent=5 // pred_fallthru
        _
    $region6: #{basic_block_forward.3} parent=1 // loop_footer
      %s24 = sadd.s32 1, %s20
    $region7: #{basic_block_forward.3} parent=1 // loop_footer_branch
      %19 = sbr.rel target = $region3
    $region8: #{basic_block_forward.3} parent=1 // loop_exit
      _
    %2085 = vsyncpa [#allocation4], 1
    %s2086 = scalar_lea.sflag [#allocation4], 1
    %2087 = vsyncpa %s2086, 1
    %2088 = vsyncpa [#allocation7], 1
    %2089 = vsyncpa [#allocation5], 1
    %s2090 = scalar_lea.sflag [#allocation5], 1
    %2091 = vsyncpa %s2090, 1
    %2092 = vsyncpa [#allocation10], 1
    %s2093 = scalar_lea.sflag [#allocation10], 1
    %2094 = vsyncpa %s2093, 1

// kernel: basic_block_forward.4
$region0: #{basic_block_forward.4}
  #allocation0 [shape = 'u32[]', space=smem, size = 0x4, offset = 0x4, fixed_abs, tag = 'smem constant byte address 0x4 - core index']
  #allocation1 [shape = 'u32[144,128]{1,0:T(1,128)}', space=vmem, size = 0x12000, scoped, tag = 'internal scratch']
  #allocation2 [shape = 'bf16[10,10,32]{2,1,0:T(8,128)(2,1)}', space=vmem, size = 0xa000, scoped, tag = 'scratch operand']
  %s0 = inlined_call_operand.hbm [shape: f32[2,8,8,32], index: 0, kind: input, shape index: {}]
  %s1 = inlined_call_operand.hbm [shape: f32[2,2,32], index: 1, kind: input, shape index: {}]
  %s2 = inlined_call_operand.hbm [shape: f32[1,32], index: 2, kind: input, shape index: {}]
  %s3 = inlined_call_operand.hbm [shape: f32[1,32], index: 3, kind: input, shape index: {}]
  %s4 = inlined_call_operand.hbm [shape: bf16[9,32,32], index: 4, kind: input, shape index: {}]
  %s5 = inlined_call_operand.hbm [shape: f32[2,8,8,32], index: 5, kind: output, shape index: {0}]
  %s6 = inlined_call_operand.hbm [shape: f32[2,2,32], index: 6, kind: output, shape index: {1}]
  %7 = xla_tuple %s5, %s6
  %s8 = sld [smem:[#allocation0]]
  $region81: #{basic_block_forward.4} parent=0
    _
  %s10 = ssub.s32 1, %s8
  %s11 = scalar_select 0, %s10, %s8
  $region1: #{basic_block_forward.4} parent=0
    #allocation3 [shape = 'u8[65536]{0}', space=vmem, size = 0x10000, scoped, tag = 'input window, operand 0']
    #allocation4 [shape = 's32[2]{0}', space=sflag, size = 0x8, scoped, tag = 'scoped memory for basic_block_forward.4']
    #allocation5 [shape = 's32[2]{0}', space=sflag, size = 0x8, scoped, tag = 'scoped memory for basic_block_forward.4']
    #allocation6 [shape = 'u8[2048]{0}', space=vmem, size = 0x800, scoped, tag = 'input window, operand 1, single buffered']
    #allocation7 [shape = 's32[1]{0}', space=sflag, size = 0x4, scoped, tag = 'scoped memory for basic_block_forward.4']
    #allocation8 [shape = 'u8[512]{0}', space=vmem, size = 0x400, scoped, tag = 'input window, operand 2, single buffered']
    #allocation9 [shape = 'u8[512]{0}', space=vmem, size = 0x400, scoped, tag = 'input window, operand 3, single buffered']
    #allocation10 [shape = 's32[1]{0}', space=sflag, size = 0x4, scoped, tag = 'scoped memory for basic_block_forward.4']
    #allocation11 [shape = 'u8[73728]{0}', space=vmem, size = 0x12000, scoped, tag = 'input window, operand 4, single buffered']
    #allocation12 [shape = 'u8[65536]{0}', space=vmem, size = 0x10000, scoped, tag = 'output window, operand 0']
    #allocation13 [shape = 'u8[2048]{0}', space=vmem, size = 0x800, scoped, tag = 'output window, operand 1']
    #allocation14 [shape = 's32[2]{0}', space=sflag, size = 0x8, scoped, tag = 'scoped memory for basic_block_forward.4']
    %12 = vsyncpa [#allocation4], 0
    %s13 = scalar_lea.sflag [#allocation4], 1
    %14 = vsyncpa %s13, 0
    %15 = vsyncpa [#allocation7], 0
    %16 = vsyncpa [#allocation10], 0
    %17 = vsyncpa [#allocation5], 0
    %s18 = scalar_lea.sflag [#allocation5], 1
    %19 = vsyncpa %s18, 0
    %20 = vsyncpa [#allocation14], 0
    %s21 = scalar_lea.sflag [#allocation14], 1
    %22 = vsyncpa %s21, 0
    loop: start=0, step=1, limit=4
    $region2: #{basic_block_forward.4} parent=1 // loop_pre_header
      _
    $region3: #{basic_block_forward.4} parent=1 // loop_header
      %s24 = sphi 0, %s28
      %p25 = scmp.ge.s32.totalorder %s24, 4
      %s34 = sphi 0, %s36
      %s37 = sphi 0, %s34
      %s38 = sphi 0, %s37
      %s54 = sphi 0, %s38
      %s58 = sphi 0, %s58
      %s60 = sphi 0, %s58
      %s61 = sphi 0, %s60
      %s75 = sphi 0, %s61
      %s79 = sphi 0, %s79
      %s81 = sphi 0, %s79
      %s82 = sphi 0, %s81
      %s96 = sphi 0, %s82
      %s100 = sphi 0, %s100
      %s102 = sphi 0, %s100
      %s103 = sphi 0, %s102
      %s117 = sphi 0, %s103
      %s121 = sphi 0, %s121
      %s123 = sphi 0, %s121
      %s124 = sphi 0, %s123
      %s138 = sphi 0, %s124
      %s144 = sphi 0, %s146
      %s147 = sphi 0, %s144
      %s148 = sphi 0, %s147
      %s164 = sphi 0, %s148
      %s170 = sphi 0, %s172
      %s173 = sphi 0, %s170
      %s174 = sphi 0, %s173
      %s190 = sphi 0, %s174
    $region4: #{basic_block_forward.4} parent=1 // loop_header_branch
      %27 = sbr.rel (%p25) target = $region8
    $region5: #{basic_block_forward.4} parent=1 // loop_body
      %s29 = ssub.s32 %s24, 1
      %s30 = ssub.s32 %s24, 2
      %s31 = sadd.s32 %s24, 1
      %s32 = ssub.s32 %s24, %s31
      %p33 = scmp.eq.s32.totalorder %s32, 0
      %s35 = sadd.s32 %s34, 1
      %s36 = scalar_select %p33, %s34, %s35
      %p39 = pneg %p33
      %p40 = scmp.eq.s32.totalorder %s24, 1
      %p41 = por %p39, %p40
      %p42 = scmp.ne.s32.totalorder %s34, %s37
      %p43 = scmp.eq.s32.totalorder %s24, 0
      %p44 = por %p42, %p43
      %p45 = scmp.ne.s32.totalorder %s34, %s37
      %p46 = scmp.eq.s32.totalorder %s29, 1
      %p47 = por %p45, %p46
      %p48 = scmp.ne.s32.totalorder %s37, %s38
      %p49 = scmp.eq.s32.totalorder %s29, 0
      %p50 = por %p48, %p49
      %p51 = scmp.ne.s32.totalorder %s37, %s38
      %p52 = scmp.eq.s32.totalorder %s30, 1
      %p53 = por %p51, %p52
      %p55 = scmp.ne.s32.totalorder %s38, %s54
      %p56 = scmp.eq.s32.totalorder %s30, 0
      %p57 = por %p55, %p56
      %s59 = sadd.s32 %s58, 1
      %p62 = scmp.eq.s32.totalorder %s24, 1
      %p63 = scmp.ne.s32.totalorder %s58, %s60
      %p64 = scmp.eq.s32.totalorder %s24, 0
      %p65 = por %p63, %p64
      %p66 = scmp.ne.s32.totalorder %s58, %s60
      %p67 = scmp.eq.s32.totalorder %s29, 1
      %p68 = por %p66, %p67
      %p69 = scmp.ne.s32.totalorder %s60, %s61
      %p70 = scmp.eq.s32.totalorder %s29, 0
      %p71 = por %p69, %p70
      %p72 = scmp.ne.s32.totalorder %s60, %s61
      %p73 = scmp.eq.s32.totalorder %s30, 1
      %p74 = por %p72, %p73
      %p76 = scmp.ne.s32.totalorder %s61, %s75
      %p77 = scmp.eq.s32.totalorder %s30, 0
      %p78 = por %p76, %p77
      %s80 = sadd.s32 %s79, 1
      %p83 = scmp.eq.s32.totalorder %s24, 1
      %p84 = scmp.ne.s32.totalorder %s79, %s81
      %p85 = scmp.eq.s32.totalorder %s24, 0
      %p86 = por %p84, %p85
      %p87 = scmp.ne.s32.totalorder %s79, %s81
      %p88 = scmp.eq.s32.totalorder %s29, 1
      %p89 = por %p87, %p88
      %p90 = scmp.ne.s32.totalorder %s81, %s82
      %p91 = scmp.eq.s32.totalorder %s29, 0
      %p92 = por %p90, %p91
      %p93 = scmp.ne.s32.totalorder %s81, %s82
      %p94 = scmp.eq.s32.totalorder %s30, 1
      %p95 = por %p93, %p94
      %p97 = scmp.ne.s32.totalorder %s82, %s96
      %p98 = scmp.eq.s32.totalorder %s30, 0
      %p99 = por %p97, %p98
      %s101 = sadd.s32 %s100, 1
      %p104 = scmp.eq.s32.totalorder %s24, 1
      %p105 = scmp.ne.s32.totalorder %s100, %s102
      %p106 = scmp.eq.s32.totalorder %s24, 0
      %p107 = por %p105, %p106
      %p108 = scmp.ne.s32.totalorder %s100, %s102
      %p109 = scmp.eq.s32.totalorder %s29, 1
      %p110 = por %p108, %p109
      %p111 = scmp.ne.s32.totalorder %s102, %s103
      %p112 = scmp.eq.s32.totalorder %s29, 0
      %p113 = por %p111, %p112
      %p114 = scmp.ne.s32.totalorder %s102, %s103
      %p115 = scmp.eq.s32.totalorder %s30, 1
      %p116 = por %p114, %p115
      %p118 = scmp.ne.s32.totalorder %s103, %s117
      %p119 = scmp.eq.s32.totalorder %s30, 0
      %p120 = por %p118, %p119
      %s122 = sadd.s32 %s121, 1
      %p125 = scmp.eq.s32.totalorder %s24, 1
      %p126 = scmp.ne.s32.totalorder %s121, %s123
      %p127 = scmp.eq.s32.totalorder %s24, 0
      %p128 = por %p126, %p127
      %p129 = scmp.ne.s32.totalorder %s121, %s123
      %p130 = scmp.eq.s32.totalorder %s29, 1
      %p131 = por %p129, %p130
      %p132 = scmp.ne.s32.totalorder %s123, %s124
      %p133 = scmp.eq.s32.totalorder %s29, 0
      %p134 = por %p132, %p133
      %p135 = scmp.ne.s32.totalorder %s123, %s124
      %p136 = scmp.eq.s32.totalorder %s30, 1
      %p137 = por %p135, %p136
      %p139 = scmp.ne.s32.totalorder %s124, %s138
      %p140 = scmp.eq.s32.totalorder %s30, 0
      %p141 = por %p139, %p140
      %s142 = ssub.s32 %s24, %s31
      %p143 = scmp.eq.s32.totalorder %s142, 0
      %s145 = sadd.s32 %s144, 1
      %s146 = scalar_select %p143, %s144, %s145
      %p149 = pneg %p143
      %p150 = scmp.eq.s32.totalorder %s24, 1
      %p151 = por %p149, %p150
      %p152 = scmp.ne.s32.totalorder %s144, %s147
      %p153 = scmp.eq.s32.totalorder %s24, 0
      %p154 = por %p152, %p153
      %p155 = scmp.ne.s32.totalorder %s144, %s147
      %p156 = scmp.eq.s32.totalorder %s29, 1
      %p157 = por %p155, %p156
      %p158 = scmp.ne.s32.totalorder %s147, %s148
      %p159 = scmp.eq.s32.totalorder %s29, 0
      %p160 = por %p158, %p159
      %p161 = scmp.ne.s32.totalorder %s147, %s148
      %p162 = scmp.eq.s32.totalorder %s30, 1
      %p163 = por %p161, %p162
      %p165 = scmp.ne.s32.totalorder %s148, %s164
      %p166 = scmp.eq.s32.totalorder %s30, 0
      %p167 = por %p165, %p166
      %s168 = ssub.s32 %s24, %s31
      %p169 = scmp.eq.s32.totalorder %s168, 0
      %s171 = sadd.s32 %s170, 1
      %s172 = scalar_select %p169, %s170, %s171
      %p175 = pneg %p169
      %p176 = scmp.eq.s32.totalorder %s24, 1
      %p177 = por %p175, %p176
      %p178 = scmp.ne.s32.totalorder %s170, %s173
      %p179 = scmp.eq.s32.totalorder %s24, 0
      %p180 = por %p178, %p179
      %p181 = scmp.ne.s32.totalorder %s170, %s173
      %p182 = scmp.eq.s32.totalorder %s29, 1
      %p183 = por %p181, %p182
      %p184 = scmp.ne.s32.totalorder %s173, %s174
      %p185 = scmp.eq.s32.totalorder %s29, 0
      %p186 = por %p184, %p185
      %p187 = scmp.ne.s32.totalorder %s173, %s174
      %p188 = scmp.eq.s32.totalorder %s30, 1
      %p189 = por %p187, %p188
      %p191 = scmp.ne.s32.totalorder %s174, %s190
      %p192 = scmp.eq.s32.totalorder %s30, 0
      %p193 = por %p191, %p192
      %p194 = scmp.le.s32.totalorder 1, %s24
      %p195 = scmp.lt.s32.totalorder %s24, 3
      %p196 = pnand %p194, %p195
      %p197 = pneg %p196
      // Predicated region
      $region9: #{basic_block_forward.4} parent=5 // pred_check
        _
      $region10: #{basic_block_forward.4} parent=5 // pred_check_branch
        %199 = sbr.rel (%p196) target = $region12
      $region11: #{basic_block_forward.4} parent=5 // pred_region
        %s200 = ssub.s32 %s24, 1
        // Predicated region
        $region13: #{basic_block_forward.4} parent=11 // pred_check
          %p201 = pneg %p71
        $region14: #{basic_block_forward.4} parent=11 // pred_check_branch
          %203 = sbr.rel (%p201) target = $region16
        $region15: #{basic_block_forward.4} parent=11 // pred_region
          %s205 = ssub.s32 64, 64
          %206 = vsyncadd [#allocation7], %s205
          %s207 = sshll.u32 [#allocation6], 4
          %s208 = int_to_ptr.vmem [resolvable:$true] %s207
          %213 = dma.hbm_to_vmem [thread:$0]  %s1, 64, %s208, [#allocation7], 32, 32, 2
        $region16: #{basic_block_forward.4} parent=11 // pred_fallthru
          _
        // Predicated region
        $region17: #{basic_block_forward.4} parent=11 // pred_check
          %p214 = pneg %p92
        $region18: #{basic_block_forward.4} parent=11 // pred_check_branch
          %216 = sbr.rel (%p214) target = $region20
        $region19: #{basic_block_forward.4} parent=11 // pred_region
          %s218 = ssub.s32 16, 16
          %219 = vsyncadd [#allocation7], %s218
          %s221 = sshll.u32 [#allocation8], 4
          %s222 = int_to_ptr.vmem [resolvable:$true] %s221
          %224 = dma.hbm_to_vmem [thread:$0]  %s2, 16, %s222, [#allocation7]
        $region20: #{basic_block_forward.4} parent=11 // pred_fallthru
          _
        // Predicated region
        $region21: #{basic_block_forward.4} parent=11 // pred_check
          %p225 = pneg %p113
        $region22: #{basic_block_forward.4} parent=11 // pred_check_branch
          %227 = sbr.rel (%p225) target = $region24
        $region23: #{basic_block_forward.4} parent=11 // pred_region
          %s229 = ssub.s32 16, 16
          %230 = vsyncadd [#allocation10], %s229
          %s232 = sshll.u32 [#allocation9], 4
          %s233 = int_to_ptr.vmem [resolvable:$true] %s232
          %235 = dma.hbm_to_vmem [thread:$0]  %s3, 16, %s233, [#allocation10]
        $region24: #{basic_block_forward.4} parent=11 // pred_fallthru
          _
        // Predicated region
        $region25: #{basic_block_forward.4} parent=11 // pred_check
          %p236 = pneg %p134
        $region26: #{basic_block_forward.4} parent=11 // pred_check_branch
          %238 = sbr.rel (%p236) target = $region28
        $region27: #{basic_block_forward.4} parent=11 // pred_region
          %s240 = ssub.s32 2304, 2304
          %241 = vsyncadd [#allocation10], %s240
          %s242 = sshll.u32 [#allocation11], 4
          %s243 = int_to_ptr.vmem [resolvable:$true] %s242
          %248 = dma.hbm_to_vmem [thread:$0]  %s4, 2304, %s243, [#allocation10], 64, 64, 4
        $region28: #{basic_block_forward.4} parent=11 // pred_fallthru
          _
      $region12: #{basic_block_forward.4} parent=5 // pred_fallthru
        _
      %p249 = scmp.lt.s32.totalorder %s24, 2
      // Predicated region
      $region29: #{basic_block_forward.4} parent=5 // pred_check
        %p250 = pneg %p249
      $region30: #{basic_block_forward.4} parent=5 // pred_check_branch
        %252 = sbr.rel (%p250) target = $region32
      $region31: #{basic_block_forward.4} parent=5 // pred_region
        // Predicated region
        $region33: #{basic_block_forward.4} parent=31 // pred_check
          %p253 = pneg %p44
        $region34: #{basic_block_forward.4} parent=31 // pred_check_branch
          %255 = sbr.rel (%p253) target = $region36
        $region35: #{basic_block_forward.4} parent=31 // pred_region
          %s256 = sand.u32 %s34, 1
          %s257 = scalar_lea.sflag [#allocation4], %s256
          %s258 = sand.u32 %s34, 1
          %s259 = smul.addr %s258, 64
          %s260 = scalar_lea.vmem [#allocation3], %s259
          %s262 = ssub.s32 1024, 1024
          %263 = vsyncadd %s257, %s262
          %s264 = smul.addr %s24, 8
          %s265 = smul.addr %s264, 128
          %s266 = scalar_lea.hbm %s0, %s265
          %s267 = sshll.u32 %s260, 4
          %s268 = int_to_ptr.vmem [resolvable:$true] %s267
          %273 = dma.hbm_to_vmem [thread:$0]  %s266, 1024, %s268, %s257, 128, 128, 8
        $region36: #{basic_block_forward.4} parent=31 // pred_fallthru
          _
      $region32: #{basic_block_forward.4} parent=5 // pred_fallthru
        _
      %p274 = scmp.le.s32.totalorder 1, %s24
      %p275 = scmp.lt.s32.totalorder %s24, 3
      %p276 = pnand %p274, %p275
      %p277 = pneg %p276
      // Predicated region
      $region37: #{basic_block_forward.4} parent=5 // pred_check
        _
      $region38: #{basic_block_forward.4} parent=5 // pred_check_branch
        %279 = sbr.rel (%p276) target = $region40
      $region39: #{basic_block_forward.4} parent=5 // pred_region
        %s280 = ssub.s32 %s24, 1
        %s281 = sand.u32 %s37, 1
        %s282 = scalar_lea.sflag [#allocation4], %s281
        %s283 = sand.u32 %s37, 1
        %s284 = smul.addr %s283, 64
        %s285 = scalar_lea.vmem [#allocation3], %s284
        // Predicated region
        $region41: #{basic_block_forward.4} parent=39 // pred_check
          %p286 = pneg %p50
        $region42: #{basic_block_forward.4} parent=39 // pred_check_branch
          %288 = sbr.rel (%p286) target = $region44
        $region43: #{basic_block_forward.4} parent=39 // pred_region
          %289 = dma.done %s282, 1024
        $region44: #{basic_block_forward.4} parent=39 // pred_fallthru
          _
        // Predicated region
        $region45: #{basic_block_forward.4} parent=39 // pred_check
          %p290 = pneg %p71
        $region46: #{basic_block_forward.4} parent=39 // pred_check_branch
          %292 = sbr.rel (%p290) target = $region48
        $region47: #{basic_block_forward.4} parent=39 // pred_region
          %293 = dma.done [#allocation7], 64
        $region48: #{basic_block_forward.4} parent=39 // pred_fallthru
          _
        // Predicated region
        $region49: #{basic_block_forward.4} parent=39 // pred_check
          %p294 = pneg %p92
        $region50: #{basic_block_forward.4} parent=39 // pred_check_branch
          %296 = sbr.rel (%p294) target = $region52
        $region51: #{basic_block_forward.4} parent=39 // pred_region
          %297 = dma.done [#allocation7], 16
        $region52: #{basic_block_forward.4} parent=39 // pred_fallthru
          _
        // Predicated region
        $region53: #{basic_block_forward.4} parent=39 // pred_check
          %p298 = pneg %p113
        $region54: #{basic_block_forward.4} parent=39 // pred_check_branch
          %300 = sbr.rel (%p298) target = $region56
        $region55: #{basic_block_forward.4} parent=39 // pred_region
          %301 = dma.done [#allocation10], 16
        $region56: #{basic_block_forward.4} parent=39 // pred_fallthru
          _
        // Predicated region
        $region57: #{basic_block_forward.4} parent=39 // pred_check
          %p302 = pneg %p134
        $region58: #{basic_block_forward.4} parent=39 // pred_check_branch
          %304 = sbr.rel (%p302) target = $region60
        $region59: #{basic_block_forward.4} parent=39 // pred_region
          %305 = dma.done [#allocation10], 2304
        $region60: #{basic_block_forward.4} parent=39 // pred_fallthru
          _
        %s306 = sand.u32 %s37, 1
        %s307 = scalar_lea.sflag [#allocation4], %s306
        %s308 = sand.u32 %s37, 1
        %s309 = smul.addr %s308, 64
        %s310 = scalar_lea.vmem [#allocation3], %s309
        %p311 = pneg %p50
        %p312 = pneg %p47
        %p313 = pneg %p71
        %p314 = pneg %p68
        %p315 = pneg %p92
        %p316 = pneg %p89
        %p317 = pneg %p113
        %p318 = pneg %p110
        %p319 = pneg %p134
        %p320 = pneg %p131
        %p321 = pneg %p160
        %p322 = pneg %p157
        %s323 = sand.u32 %s147, 1
        %s324 = scalar_lea.sflag [#allocation5], %s323
        %s325 = sand.u32 %s147, 1
        %s326 = smul.addr %s325, 64
        %s327 = scalar_lea.vmem [#allocation12], %s326
        %p328 = pneg %p186
        %p329 = pneg %p183
        %s330 = sand.u32 %s173, 1
        %s331 = scalar_lea.sflag [#allocation14], %s330
        %s332 = sand.u32 %s173, 1
        %s333 = smul.addr %s332, 2
        %s334 = scalar_lea.vmem [#allocation13], %s333
        %v336 = vld [vmem:[#allocation6] sm:$0x3]
        %v337 = vld [vmem:[#allocation6 + $0x2] sm:$0x3]
        %vm338 = vcmask 254976
        %v339 = vsel %vm338, %v336, 0.0
        %v340 = vsel %vm338, %v337, 0.0
        %v341 = vadd.f32 %v339, %v340
        %v342 = vmul.f32 %v341, 0.0078125
        %v343 = vmul.f32 %v342, %v342
        %v345 = vrot.slane %v343, 7
        %v347 = vsub.f32 %v342, %v345
        %v348 = vmax.f32 %v347, 0.0
        %v349 = vadd.f32 %v348, 1e-05
        %v350 = vrsqrt.pop %v349
        %v351 = vld [vmem:[#allocation8] sm:$0x1]
        %v353 = vlaneseq
        %v354 = vshrl.u32 %v353, 7
        %v355 = vsub.s32 0, %v354
        %v356 = vrot.slane %v351, %v355
        %v358 = vmul.f32 %v350, %v356
        %v359 = vld [vmem:[#allocation9] sm:$0x1]
        %v361 = vrot.slane %v358, 1
        %v363 = vmul.f32 %v342, %v361
        %v364 = vsub.f32 %v359, %v363
        %v365 = vld [vmem:[%s285] sm:$0xff]
        %v366 = vld [vmem:[%s285 + $0x8] sm:$0xff]
        %v367 = vld [vmem:[%s285 + $0x10] sm:$0xff]
        %v368 = vld [vmem:[%s285 + $0x18] sm:$0xff]
        %v369 = vld [vmem:[%s285 + $0x20] sm:$0xff]
        %v370 = vld [vmem:[%s285 + $0x28] sm:$0xff]
        %v371 = vld [vmem:[%s285 + $0x30] sm:$0xff]
        %v372 = vld [vmem:[%s285 + $0x38] sm:$0xff]
        %v373 = vlaneseq
        %v374 = vshrl.u32 %v373, 7
        %v375 = vsub.s32 1, %v374
        %v376 = vrot.slane %v358, %v375
        %v377 = vmul.f32 %v365, %v376
        %v378 = vmul.f32 %v366, %v376
        %v379 = vmul.f32 %v367, %v376
        %v380 = vmul.f32 %v368, %v376
        %v381 = vmul.f32 %v369, %v376
        %v382 = vmul.f32 %v370, %v376
        %v383 = vmul.f32 %v371, %v376
        %v384 = vmul.f32 %v372, %v376
        %v386 = vlaneseq
        %v387 = vshrl.u32 %v386, 7
        %v388 = vsub.s32 0, %v387
        %v389 = vrot.slane %v364, %v388
        %v391 = vadd.f32 %v377, %v389
        %v392 = vadd.f32 %v378, %v389
        %v393 = vadd.f32 %v379, %v389
        %v394 = vadd.f32 %v380, %v389
        %v395 = vadd.f32 %v381, %v389
        %v396 = vadd.f32 %v382, %v389
        %v397 = vadd.f32 %v383, %v389
        %v398 = vadd.f32 %v384, %v389
        %v399 = vmax.f32 %v391, 0.0
        %v400 = vmax.f32 %v392, 0.0
        %v401 = vmax.f32 %v393, 0.0
        %v402 = vmax.f32 %v394, 0.0
        %v403 = vmax.f32 %v395, 0.0
        %v404 = vmax.f32 %v396, 0.0
        %v405 = vmax.f32 %v397, 0.0
        %v406 = vmax.f32 %v398, 0.0
        %v415 = vrot.slane %v399, 7
        %v416 = vrot.slane %v400, 7
        %v417 = vrot.slane %v401, 7
        %v418 = vrot.slane %v402, 7
        %v419 = vrot.slane %v403, 7
        %v420 = vrot.slane %v404, 7
        %v421 = vrot.slane %v405, 7
        %v422 = vrot.slane %v406, 7
        %vm431 = vcmask 1040384
        %v432 = vsel %vm431, 0.0, %v415
        %v433 = vsel %vm431, 0.0, %v416
        %v434 = vsel %vm431, 0.0, %v417
        %v435 = vsel %vm431, 0.0, %v418
        %v436 = vsel %vm431, 0.0, %v419
        %v437 = vsel %vm431, 0.0, %v420
        %v438 = vsel %vm431, 0.0, %v421
        %v439 = vsel %vm431, 0.0, %v422
        %v440 = vsel %vm431, %v415, 0.0
        %v441 = vsel %vm431, %v416, 0.0
        %v442 = vsel %vm431, %v417, 0.0
        %v443 = vsel %vm431, %v418, 0.0
        %v444 = vsel %vm431, %v419, 0.0
        %v445 = vsel %vm431, %v420, 0.0
        %v446 = vsel %vm431, %v421, 0.0
        %v447 = vsel %vm431, %v422, 0.0
        %v448 = vpack.c.bf16 %v440, %v432
        %v449 = vpack.c.bf16 %v441, %v433
        %v450 = vpack.c.bf16 %v442, %v434
        %v451 = vpack.c.bf16 %v443, %v435
        %v452 = vpack.c.bf16 %v444, %v436
        %v453 = vpack.c.bf16 %v445, %v437
        %v454 = vpack.c.bf16 %v446, %v438
        %v455 = vpack.c.bf16 %v447, %v439
        %v464 = vunpack.c.l.b16 %v448
        %v465 = vunpack.c.h.b16 %v448
        %v466 = vunpack.c.l.b16 %v449
        %v467 = vunpack.c.h.b16 %v449
        %v468 = vunpack.c.l.b16 %v450
        %v469 = vunpack.c.h.b16 %v450
        %v470 = vunpack.c.l.b16 %v451
        %v471 = vunpack.c.h.b16 %v451
        %v472 = vunpack.c.l.b16 %v452
        %v473 = vunpack.c.h.b16 %v452
        %v474 = vunpack.c.l.b16 %v453
        %v475 = vunpack.c.h.b16 %v453
        %v476 = vunpack.c.l.b16 %v454
        %v477 = vunpack.c.h.b16 %v454
        %v478 = vunpack.c.l.b16 %v455
        %v479 = vunpack.c.h.b16 %v455
        %v480 = vpack.c.b16 %v464, %v464
        %v481 = vpack.c.b16 %v465, %v465
        %v482 = vpack.c.b16 %v466, %v466
        %v483 = vpack.c.b16 %v467, %v467
        %v484 = vpack.c.b16 %v468, %v468
        %v485 = vpack.c.b16 %v469, %v469
        %v486 = vpack.c.b16 %v470, %v470
        %v487 = vpack.c.b16 %v471, %v471
        %v488 = vpack.c.b16 %v472, %v472
        %v489 = vpack.c.b16 %v473, %v473
        %v490 = vpack.c.b16 %v474, %v474
        %v491 = vpack.c.b16 %v475, %v475
        %v492 = vpack.c.b16 %v476, %v476
        %v493 = vpack.c.b16 %v477, %v477
        %v494 = vpack.c.b16 %v478, %v478
        %v495 = vpack.c.b16 %v479, %v479
        %s512 = scalar_lea.vmem [#allocation2], 8
        %vm513 = vcmask 257024
        %514 = vst.msk [vmem:[%s512] sm:$0xf] %vm513, %v480
        %vm515 = vcmask 253952
        %516 = vst.msk [vmem:[%s512 + $0x4] sm:$0x1] %vm515, %v481
        %517 = vst.msk [vmem:[%s512 + $0x8] sm:$0xf] %vm513, %v482
        %518 = vst.msk [vmem:[%s512 + $0xc] sm:$0x1] %vm515, %v483
        %519 = vst.msk [vmem:[%s512 + $0x10] sm:$0xf] %vm513, %v484
        %520 = vst.msk [vmem:[%s512 + $0x14] sm:$0x1] %vm515, %v485
        %521 = vst.msk [vmem:[%s512 + $0x18] sm:$0xf] %vm513, %v486
        %522 = vst.msk [vmem:[%s512 + $0x1c] sm:$0x1] %vm515, %v487
        %523 = vst.msk [vmem:[%s512 + $0x20] sm:$0xf] %vm513, %v488
        %524 = vst.msk [vmem:[%s512 + $0x24] sm:$0x1] %vm515, %v489
        %525 = vst.msk [vmem:[%s512 + $0x28] sm:$0xf] %vm513, %v490
        %526 = vst.msk [vmem:[%s512 + $0x2c] sm:$0x1] %vm515, %v491
        %527 = vst.msk [vmem:[%s512 + $0x30] sm:$0xf] %vm513, %v492
        %528 = vst.msk [vmem:[%s512 + $0x34] sm:$0x1] %vm515, %v493
        %529 = vst.msk [vmem:[%s512 + $0x38] sm:$0xf] %vm513, %v494
        %530 = vst.msk [vmem:[%s512 + $0x3c] sm:$0x1] %vm515, %v495
        %531 = vst.msk [vmem:[#allocation2] sm:$0xf] %vm513, 0
        %532 = vst.msk [vmem:[#allocation2 + $0x4] sm:$0x1] %vm515, 0
        %s533 = scalar_lea.vmem [#allocation2], 72
        %534 = vst.msk [vmem:[%s533] sm:$0xf] %vm513, 0
        %535 = vst.msk [vmem:[%s533 + $0x4] sm:$0x1] %vm515, 0
        %v536 = vld [vmem:[#allocation2] sm:$0xf]
        %v537 = vld [vmem:[#allocation2 + $0x8] sm:$0xf]
        %v538 = vld [vmem:[#allocation2 + $0x10] sm:$0xf]
        %v539 = vld [vmem:[#allocation2 + $0x18] sm:$0xf]
        %v540 = vld [vmem:[#allocation2 + $0x20] sm:$0xf]
        %v541 = vld [vmem:[#allocation2 + $0x28] sm:$0xf]
        %v542 = vld [vmem:[#allocation2 + $0x30] sm:$0xf]
        %v543 = vld [vmem:[#allocation2 + $0x38] sm:$0xf]
        %v544 = vld [vmem:[#allocation11] sm:$0xf]
        %v545 = vld [vmem:[#allocation11 + $0x4] sm:$0xf]
        %v546 = vld [vmem:[#allocation11 + $0x8] sm:$0xf]
        %v547 = vld [vmem:[#allocation11 + $0xc] sm:$0xf]
        %v548 = vld [vmem:[#allocation2 + $0x4] sm:$0x1]
        %v549 = vld [vmem:[#allocation2 + $0xc] sm:$0x1]
        %v550 = vld [vmem:[#allocation2 + $0x14] sm:$0x1]
        %v551 = vld [vmem:[#allocation2 + $0x1c] sm:$0x1]
        %v552 = vld [vmem:[#allocation2 + $0x24] sm:$0x1]
        %v553 = vld [vmem:[#allocation2 + $0x2c] sm:$0x1]
        %v554 = vld [vmem:[#allocation2 + $0x34] sm:$0x1]
        %v555 = vld [vmem:[#allocation2 + $0x3c] sm:$0x1]
        %vm556 = vsmask.f32 3328
        %vm557 = vsmask.f32 7440
        %vm558 = vmor %vm556, %vm557
        %v560 = vshrl.u32 %v536, 16
        %v562 = vrot.slane %v560, 4
        %v563 = vshll.u32 %v536, 16
        %v565 = vrot.slane %v563, 5
        %v566 = vor.u32 %v562, %v565
        %v567 = vrot.slane %v566, 4
        %v569 = vshll.u32 %v548, 16
        %v571 = vrot.slane %v569, 5
        %v572 = vsel %vm558, %v567, %v571
        %v574 = vshrl.u32 %v537, 16
        %v576 = vrot.slane %v574, 4
        %v577 = vshll.u32 %v537, 16
        %v579 = vrot.slane %v577, 5
        %v580 = vor.u32 %v576, %v579
        %v581 = vrot.slane %v580, 4
        %v583 = vshll.u32 %v549, 16
        %v585 = vrot.slane %v583, 5
        %v586 = vsel %vm558, %v581, %v585
        %v588 = vshrl.u32 %v538, 16
        %v590 = vrot.slane %v588, 4
        %v591 = vshll.u32 %v538, 16
        %v593 = vrot.slane %v591, 5
        %v594 = vor.u32 %v590, %v593
        %v595 = vrot.slane %v594, 4
        %v597 = vshll.u32 %v550, 16
        %v599 = vrot.slane %v597, 5
        %v600 = vsel %vm558, %v595, %v599
        %v602 = vshrl.u32 %v539, 16
        %v604 = vrot.slane %v602, 4
        %v605 = vshll.u32 %v539, 16
        %v607 = vrot.slane %v605, 5
        %v608 = vor.u32 %v604, %v607
        %v609 = vrot.slane %v608, 4
        %v611 = vshll.u32 %v551, 16
        %v613 = vrot.slane %v611, 5
        %v614 = vsel %vm558, %v609, %v613
        %v616 = vshrl.u32 %v540, 16
        %v618 = vrot.slane %v616, 4
        %v619 = vshll.u32 %v540, 16
        %v621 = vrot.slane %v619, 5
        %v622 = vor.u32 %v618, %v621
        %v623 = vrot.slane %v622, 4
        %v625 = vshll.u32 %v552, 16
        %v627 = vrot.slane %v625, 5
        %v628 = vsel %vm558, %v623, %v627
        %v630 = vshrl.u32 %v541, 16
        %v632 = vrot.slane %v630, 4
        %v633 = vshll.u32 %v541, 16
        %v635 = vrot.slane %v633, 5
        %v636 = vor.u32 %v632, %v635
        %v637 = vrot.slane %v636, 4
        %v639 = vshll.u32 %v553, 16
        %v641 = vrot.slane %v639, 5
        %v642 = vsel %vm558, %v637, %v641
        %v644 = vshrl.u32 %v542, 16
        %v646 = vrot.slane %v644, 4
        %v647 = vshll.u32 %v542, 16
        %v649 = vrot.slane %v647, 5
        %v650 = vor.u32 %v646, %v649
        %v651 = vrot.slane %v650, 4
        %v653 = vshll.u32 %v554, 16
        %v655 = vrot.slane %v653, 5
        %v656 = vsel %vm558, %v651, %v655
        %v658 = vshrl.u32 %v543, 16
        %v660 = vrot.slane %v658, 4
        %v661 = vshll.u32 %v543, 16
        %v663 = vrot.slane %v661, 5
        %v664 = vor.u32 %v660, %v663
        %v665 = vrot.slane %v664, 4
        %v667 = vshll.u32 %v555, 16
        %v669 = vrot.slane %v667, 5
        %v670 = vsel %vm558, %v665, %v669
        %s671 = scalar_lea.vmem [#allocation11], 16
        %v672 = vld [vmem:[%s671] sm:$0xf]
        %v673 = vld [vmem:[%s671 + $0x4] sm:$0xf]
        %v674 = vld [vmem:[%s671 + $0x8] sm:$0xf]
        %v675 = vld [vmem:[%s671 + $0xc] sm:$0xf]
        %v676 = vunpack.c.l.b16 %v572
        %v677 = vunpack.c.l.b16 %v586
        %v678 = vunpack.c.l.b16 %v600
        %v679 = vunpack.c.l.b16 %v614
        %v680 = vunpack.c.l.b16 %v628
        %v681 = vunpack.c.l.b16 %v642
        %v682 = vunpack.c.l.b16 %v656
        %v683 = vunpack.c.l.b16 %v670
        %v684 = vpack.c.b16 %v677, %v676
        %v685 = vpack.c.b16 %v679, %v678
        %v686 = vpack.c.b16 %v681, %v680
        %v687 = vpack.c.b16 %v683, %v682
        %v692 = vunpack.c.l.b16 %v672
        %v693 = vunpack.c.l.b16 %v673
        %v694 = vunpack.c.l.b16 %v674
        %v695 = vunpack.c.l.b16 %v675
        %v696 = vpack.c.b16 %v693, %v692
        %v697 = vpack.c.b16 %v695, %v694
        %vm700 = vcmask 261120
        %v702 = vsel %vm700, %v684, 0
        %v705 = vsel %vm700, %v685, 0
        %v708 = vsel %vm700, %v686, 0
        %v711 = vsel %vm700, %v687, 0
        %713 = vmatprep.subr.bf16.mxu0 0
        %714 = vmatpush1.bf16.msra.mxu0 %v696
        %715 = vmatprep.subr.bf16.mxu0 0
        %716 = vmatpush1.bf16.msra.mxu0 %v697
        %717 = vmatprep.subr.bf16.mxu0 0
        %718 = vmatpush1.bf16.msra.mxu0 0
        %719 = vmatprep.subr.bf16.mxu0 0
        %720 = vmatpush1.bf16.msra.mxu0 0
        %721 = vmatprep.subr.bf16.mxu0 0
        %722 = vmatpush1.bf16.msra.mxu0 0
        %723 = vmatprep.subr.bf16.mxu0 0
        %724 = vmatpush1.bf16.msra.mxu0 0
        %725 = vmatprep.subr.bf16.mxu0 0
        %726 = vmatpush1.bf16.msra.mxu0 0
        %727 = vmatprep.subr.bf16.mxu0 0
        %728 = vmatpush1.bf16.msra.mxu0 0
        %729 = vmatprep.subr.bf16.mxu0 0
        %730 = vmatpush1.bf16.msra.mxu0 0
        %731 = vmatprep.subr.bf16.mxu0 0
        %732 = vmatpush1.bf16.msra.mxu0 0
        %733 = vmatprep.subr.bf16.mxu0 0
        %734 = vmatpush1.bf16.msra.mxu0 0
        %735 = vmatprep.subr.bf16.mxu0 0
        %736 = vmatpush1.bf16.msra.mxu0 0
        %737 = vmatprep.subr.bf16.mxu0 0
        %738 = vmatpush1.bf16.msra.mxu0 0
        %739 = vmatprep.subr.bf16.mxu0 0
        %740 = vmatpush1.bf16.msra.mxu0 0
        %741 = vmatprep.subr.bf16.mxu0 0
        %742 = vmatpush1.bf16.msra.mxu0 0
        %743 = vmatprep.subr.bf16.mxu0 0
        %744 = vmatpush1.bf16.msra.mxu0 0
        %745 = vmatprep.mubr.bf16.mxu0 0
        %746 = vmatmul.mubr.bf16.gmra.mrb[0].mxu0 %v702
        %v747 = vpop.f32.mrb[0].mxu0
        %v748 = vadd.f32 0.0, %v747
        %v749 = vpop.f32.mrb[0].mxu0
        %v750 = vpop.f32.mrb[0].mxu0
        %v751 = vadd.f32 0.0, %v750
        %v752 = vpop.f32.mrb[0].mxu0
        %753 = vmatprep.mubr.bf16.mxu0 0
        %754 = vmatmul.mubr.bf16.gmra.mrb[0].mxu0 %v705
        %v755 = vpop.f32.mrb[0].mxu0
        %v756 = vadd.f32 0.0, %v755
        %v757 = vpop.f32.mrb[0].mxu0
        %v758 = vpop.f32.mrb[0].mxu0
        %v759 = vadd.f32 0.0, %v758
        %v760 = vpop.f32.mrb[0].mxu0
        %761 = vmatprep.mubr.bf16.mxu0 0
        %762 = vmatmul.mubr.bf16.gmra.mrb[0].mxu0 %v708
        %v763 = vpop.f32.mrb[0].mxu0
        %v764 = vadd.f32 0.0, %v763
        %v765 = vpop.f32.mrb[0].mxu0
        %v766 = vpop.f32.mrb[0].mxu0
        %v767 = vadd.f32 0.0, %v766
        %v768 = vpop.f32.mrb[0].mxu0
        %769 = vmatprep.mubr.bf16.mxu0 0
        %770 = vmatmul.mubr.bf16.gmra.mrb[0].mxu0 %v711
        %v771 = vpop.f32.mrb[0].mxu0
        %v772 = vadd.f32 0.0, %v771
        %v773 = vpop.f32.mrb[0].mxu0
        %v774 = vpop.f32.mrb[0].mxu0
        %v775 = vadd.f32 0.0, %v774
        %v776 = vpop.f32.mrb[0].mxu0
        %777 = vdwg.mxu0
        %v786 = vunpack.c.l.b16 %v536
        %v787 = vunpack.c.l.b16 %v537
        %v788 = vunpack.c.l.b16 %v538
        %v789 = vunpack.c.l.b16 %v539
        %v790 = vunpack.c.l.b16 %v540
        %v791 = vunpack.c.l.b16 %v541
        %v792 = vunpack.c.l.b16 %v542
        %v793 = vunpack.c.l.b16 %v543
        %v794 = vpack.c.b16 %v787, %v786
        %v795 = vpack.c.b16 %v789, %v788
        %v796 = vpack.c.b16 %v791, %v790
        %v797 = vpack.c.b16 %v793, %v792
        %v802 = vunpack.c.l.b16 %v544
        %v803 = vunpack.c.l.b16 %v545
        %v804 = vunpack.c.l.b16 %v546
        %v805 = vunpack.c.l.b16 %v547
        %v806 = vpack.c.b16 %v803, %v802
        %v807 = vpack.c.b16 %v805, %v804
        %v811 = vsel %vm700, %v794, 0
        %v814 = vsel %vm700, %v795, 0
        %v817 = vsel %vm700, %v796, 0
        %v820 = vsel %vm700, %v797, 0
        %822 = vmatprep.subr.bf16.mxu0 0
        %823 = vmatpush1.bf16.msra.mxu0 %v806
        %824 = vmatprep.subr.bf16.mxu0 0
        %825 = vmatpush1.bf16.msra.mxu0 %v807
        %826 = vmatprep.subr.bf16.mxu0 0
        %827 = vmatpush1.bf16.msra.mxu0 0
        %828 = vmatprep.subr.bf16.mxu0 0
        %829 = vmatpush1.bf16.msra.mxu0 0
        %830 = vmatprep.subr.bf16.mxu0 0
        %831 = vmatpush1.bf16.msra.mxu0 0
        %832 = vmatprep.subr.bf16.mxu0 0
        %833 = vmatpush1.bf16.msra.mxu0 0
        %834 = vmatprep.subr.bf16.mxu0 0
        %835 = vmatpush1.bf16.msra.mxu0 0
        %836 = vmatprep.subr.bf16.mxu0 0
        %837 = vmatpush1.bf16.msra.mxu0 0
        %838 = vmatprep.subr.bf16.mxu0 0
        %839 = vmatpush1.bf16.msra.mxu0 0
        %840 = vmatprep.subr.bf16.mxu0 0
        %841 = vmatpush1.bf16.msra.mxu0 0
        %842 = vmatprep.subr.bf16.mxu0 0
        %843 = vmatpush1.bf16.msra.mxu0 0
        %844 = vmatprep.subr.bf16.mxu0 0
        %845 = vmatpush1.bf16.msra.mxu0 0
        %846 = vmatprep.subr.bf16.mxu0 0
        %847 = vmatpush1.bf16.msra.mxu0 0
        %848 = vmatprep.subr.bf16.mxu0 0
        %849 = vmatpush1.bf16.msra.mxu0 0
        %850 = vmatprep.subr.bf16.mxu0 0
        %851 = vmatpush1.bf16.msra.mxu0 0
        %852 = vmatprep.subr.bf16.mxu0 0
        %853 = vmatpush1.bf16.msra.mxu0 0
        %854 = vmatprep.mubr.bf16.mxu0 0
        %855 = vmatmul.mubr.bf16.gmra.mrb[0].mxu0 %v811
        %v856 = vpop.f32.mrb[0].mxu0
        %v857 = vadd.f32 %v748, %v856
        %v858 = vpop.f32.mrb[0].mxu0
        %v859 = vpop.f32.mrb[0].mxu0
        %v860 = vadd.f32 %v751, %v859
        %v861 = vpop.f32.mrb[0].mxu0
        %862 = vmatprep.mubr.bf16.mxu0 0
        %863 = vmatmul.mubr.bf16.gmra.mrb[0].mxu0 %v814
        %v864 = vpop.f32.mrb[0].mxu0
        %v865 = vadd.f32 %v756, %v864
        %v866 = vpop.f32.mrb[0].mxu0
        %v867 = vpop.f32.mrb[0].mxu0
        %v868 = vadd.f32 %v759, %v867
        %v869 = vpop.f32.mrb[0].mxu0
        %870 = vmatprep.mubr.bf16.mxu0 0
        %871 = vmatmul.mubr.bf16.gmra.mrb[0].mxu0 %v817
        %v872 = vpop.f32.mrb[0].mxu0
        %v873 = vadd.f32 %v764, %v872
        %v874 = vpop.f32.mrb[0].mxu0
        %v875 = vpop.f32.mrb[0].mxu0
        %v876 = vadd.f32 %v767, %v875
        %v877 = vpop.f32.mrb[0].mxu0
        %878 = vmatprep.mubr.bf16.mxu0 0
        %879 = vmatmul.mubr.bf16.gmra.mrb[0].mxu0 %v820
        %v880 = vpop.f32.mrb[0].mxu0
        %v881 = vadd.f32 %v772, %v880
        %v882 = vpop.f32.mrb[0].mxu0
        %v883 = vpop.f32.mrb[0].mxu0
        %v884 = vadd.f32 %v775, %v883
        %v885 = vpop.f32.mrb[0].mxu0
        %886 = vdwg.mxu0
        %v887 = vld [vmem:[#allocation2] sm:$0xe]
        %v888 = vld [vmem:[#allocation2 + $0x8] sm:$0xe]
        %v889 = vld [vmem:[#allocation2 + $0x10] sm:$0xe]
        %v890 = vld [vmem:[#allocation2 + $0x18] sm:$0xe]
        %v891 = vld [vmem:[#allocation2 + $0x20] sm:$0xe]
        %v892 = vld [vmem:[#allocation2 + $0x28] sm:$0xe]
        %v893 = vld [vmem:[#allocation2 + $0x30] sm:$0xe]
        %v894 = vld [vmem:[#allocation2 + $0x38] sm:$0xe]
        %vm911 = vcmask 1042432
        %vm912 = vcmask 1046532
        %vm913 = vmor %vm911, %vm912
        %v914 = vrot.slane %v887, 5
        %v915 = vrot.slane %v914, 4
        %v916 = vrot.slane %v548, 5
        %v917 = vsel %vm913, %v915, %v916
        %v918 = vrot.slane %v888, 5
        %v919 = vrot.slane %v918, 4
        %v920 = vrot.slane %v549, 5
        %v921 = vsel %vm913, %v919, %v920
        %v922 = vrot.slane %v889, 5
        %v923 = vrot.slane %v922, 4
        %v924 = vrot.slane %v550, 5
        %v925 = vsel %vm913, %v923, %v924
        %v926 = vrot.slane %v890, 5
        %v927 = vrot.slane %v926, 4
        %v928 = vrot.slane %v551, 5
        %v929 = vsel %vm913, %v927, %v928
        %v930 = vrot.slane %v891, 5
        %v931 = vrot.slane %v930, 4
        %v932 = vrot.slane %v552, 5
        %v933 = vsel %vm913, %v931, %v932
        %v934 = vrot.slane %v892, 5
        %v935 = vrot.slane %v934, 4
        %v936 = vrot.slane %v553, 5
        %v937 = vsel %vm913, %v935, %v936
        %v938 = vrot.slane %v893, 5
        %v939 = vrot.slane %v938, 4
        %v940 = vrot.slane %v554, 5
        %v941 = vsel %vm913, %v939, %v940
        %v942 = vrot.slane %v894, 5
        %v943 = vrot.slane %v942, 4
        %v944 = vrot.slane %v555, 5
        %v945 = vsel %vm913, %v943, %v944
        %s946 = scalar_lea.vmem [#allocation11], 32
        %v947 = vld [vmem:[%s946] sm:$0xf]
        %v948 = vld [vmem:[%s946 + $0x4] sm:$0xf]
        %v949 = vld [vmem:[%s946 + $0x8] sm:$0xf]
        %v950 = vld [vmem:[%s946 + $0xc] sm:$0xf]
        %v951 = vunpack.c.l.b16 %v917
        %v952 = vunpack.c.l.b16 %v921
        %v953 = vunpack.c.l.b16 %v925
        %v954 = vunpack.c.l.b16 %v929
        %v955 = vunpack.c.l.b16 %v933
        %v956 = vunpack.c.l.b16 %v937
        %v957 = vunpack.c.l.b16 %v941
        %v958 = vunpack.c.l.b16 %v945
        %v959 = vpack.c.b16 %v952, %v951
        %v960 = vpack.c.b16 %v954, %v953
        %v961 = vpack.c.b16 %v956, %v955
        %v962 = vpack.c.b16 %v958, %v957
        %v967 = vunpack.c.l.b16 %v947
        %v968 = vunpack.c.l.b16 %v948
        %v969 = vunpack.c.l.b16 %v949
        %v970 = vunpack.c.l.b16 %v950
        %v971 = vpack.c.b16 %v968, %v967
        %v972 = vpack.c.b16 %v970, %v969
        %v976 = vsel %vm700, %v959, 0
        %v979 = vsel %vm700, %v960, 0
        %v982 = vsel %vm700, %v961, 0
        %v985 = vsel %vm700, %v962, 0
        %987 = vmatprep.subr.bf16.mxu0 0
        %988 = vmatpush1.bf16.msra.mxu0 %v971
        %989 = vmatprep.subr.bf16.mxu0 0
        %990 = vmatpush1.bf16.msra.mxu0 %v972
        %991 = vmatprep.subr.bf16.mxu0 0
        %992 = vmatpush1.bf16.msra.mxu0 0
        %993 = vmatprep.subr.bf16.mxu0 0
        %994 = vmatpush1.bf16.msra.mxu0 0
        %995 = vmatprep.subr.bf16.mxu0 0
        %996 = vmatpush1.bf16.msra.mxu0 0
        %997 = vmatprep.subr.bf16.mxu0 0
        %998 = vmatpush1.bf16.msra.mxu0 0
        %999 = vmatprep.subr.bf16.mxu0 0
        %1000 = vmatpush1.bf16.msra.mxu0 0
        %1001 = vmatprep.subr.bf16.mxu0 0
        %1002 = vmatpush1.bf16.msra.mxu0 0
        %1003 = vmatprep.subr.bf16.mxu0 0
        %1004 = vmatpush1.bf16.msra.mxu0 0
        %1005 = vmatprep.subr.bf16.mxu0 0
        %1006 = vmatpush1.bf16.msra.mxu0 0
        %1007 = vmatprep.subr.bf16.mxu0 0
        %1008 = vmatpush1.bf16.msra.mxu0 0
        %1009 = vmatprep.subr.bf16.mxu0 0
        %1010 = vmatpush1.bf16.msra.mxu0 0
        %1011 = vmatprep.subr.bf16.mxu0 0
        %1012 = vmatpush1.bf16.msra.mxu0 0
        %1013 = vmatprep.subr.bf16.mxu0 0
        %1014 = vmatpush1.bf16.msra.mxu0 0
        %1015 = vmatprep.subr.bf16.mxu0 0
        %1016 = vmatpush1.bf16.msra.mxu0 0
        %1017 = vmatprep.subr.bf16.mxu0 0
        %1018 = vmatpush1.bf16.msra.mxu0 0
        %1019 = vmatprep.mubr.bf16.mxu0 0
        %1020 = vmatmul.mubr.bf16.gmra.mrb[0].mxu0 %v976
        %v1021 = vpop.f32.mrb[0].mxu0
        %v1022 = vadd.f32 0.0, %v1021
        %v1023 = vpop.f32.mrb[0].mxu0
        %v1024 = vpop.f32.mrb[0].mxu0
        %v1025 = vadd.f32 0.0, %v1024
        %v1026 = vpop.f32.mrb[0].mxu0
        %1027 = vmatprep.mubr.bf16.mxu0 0
        %1028 = vmatmul.mubr.bf16.gmra.mrb[0].mxu0 %v979
        %v1029 = vpop.f32.mrb[0].mxu0
        %v1030 = vadd.f32 0.0, %v1029
        %v1031 = vpop.f32.mrb[0].mxu0
        %v1032 = vpop.f32.mrb[0].mxu0
        %v1033 = vadd.f32 0.0, %v1032
        %v1034 = vpop.f32.mrb[0].mxu0
        %1035 = vmatprep.mubr.bf16.mxu0 0
        %1036 = vmatmul.mubr.bf16.gmra.mrb[0].mxu0 %v982
        %v1037 = vpop.f32.mrb[0].mxu0
        %v1038 = vadd.f32 0.0, %v1037
        %v1039 = vpop.f32.mrb[0].mxu0
        %v1040 = vpop.f32.mrb[0].mxu0
        %v1041 = vadd.f32 0.0, %v1040
        %v1042 = vpop.f32.mrb[0].mxu0
        %1043 = vmatprep.mubr.bf16.mxu0 0
        %1044 = vmatmul.mubr.bf16.gmra.mrb[0].mxu0 %v985
        %v1045 = vpop.f32.mrb[0].mxu0
        %v1046 = vadd.f32 0.0, %v1045
        %v1047 = vpop.f32.mrb[0].mxu0
        %v1048 = vpop.f32.mrb[0].mxu0
        %v1049 = vadd.f32 0.0, %v1048
        %v1050 = vpop.f32.mrb[0].mxu0
        %1051 = vdwg.mxu0
        %v1052 = vadd.f32 %v857, %v1022
        %v1053 = vadd.f32 %v860, %v1025
        %v1054 = vadd.f32 %v865, %v1030
        %v1055 = vadd.f32 %v868, %v1033
        %v1056 = vadd.f32 %v873, %v1038
        %v1057 = vadd.f32 %v876, %v1041
        %v1058 = vadd.f32 %v881, %v1046
        %v1059 = vadd.f32 %v884, %v1049
        %v1060 = vld [vmem:[%s512] sm:$0xf]
        %v1061 = vld [vmem:[%s512 + $0x8] sm:$0xf]
        %v1062 = vld [vmem:[%s512 + $0x10] sm:$0xf]
        %v1063 = vld [vmem:[%s512 + $0x18] sm:$0xf]
        %v1064 = vld [vmem:[%s512 + $0x20] sm:$0xf]
        %v1065 = vld [vmem:[%s512 + $0x28] sm:$0xf]
        %v1066 = vld [vmem:[%s512 + $0x30] sm:$0xf]
        %v1067 = vld [vmem:[%s512 + $0x38] sm:$0xf]
        %s1068 = scalar_lea.vmem [#allocation11], 48
        %v1069 = vld [vmem:[%s1068] sm:$0xf]
        %v1070 = vld [vmem:[%s1068 + $0x4] sm:$0xf]
        %v1071 = vld [vmem:[%s1068 + $0x8] sm:$0xf]
        %v1072 = vld [vmem:[%s1068 + $0xc] sm:$0xf]
        %v1081 = vunpack.c.l.b16 %v1060
        %v1082 = vunpack.c.l.b16 %v1061
        %v1083 = vunpack.c.l.b16 %v1062
        %v1084 = vunpack.c.l.b16 %v1063
        %v1085 = vunpack.c.l.b16 %v1064
        %v1086 = vunpack.c.l.b16 %v1065
        %v1087 = vunpack.c.l.b16 %v1066
        %v1088 = vunpack.c.l.b16 %v1067
        %v1089 = vpack.c.b16 %v1082, %v1081
        %v1090 = vpack.c.b16 %v1084, %v1083
        %v1091 = vpack.c.b16 %v1086, %v1085
        %v1092 = vpack.c.b16 %v1088, %v1087
        %v1097 = vunpack.c.l.b16 %v1069
        %v1098 = vunpack.c.l.b16 %v1070
        %v1099 = vunpack.c.l.b16 %v1071
        %v1100 = vunpack.c.l.b16 %v1072
        %v1101 = vpack.c.b16 %v1098, %v1097
        %v1102 = vpack.c.b16 %v1100, %v1099
        %v1106 = vsel %vm700, %v1089, 0
        %v1109 = vsel %vm700, %v1090, 0
        %v1112 = vsel %vm700, %v1091, 0
        %v1115 = vsel %vm700, %v1092, 0
        %1117 = vmatprep.subr.bf16.mxu0 0
        %1118 = vmatpush1.bf16.msra.mxu0 %v1101
        %1119 = vmatprep.subr.bf16.mxu0 0
        %1120 = vmatpush1.bf16.msra.mxu0 %v1102
        %1121 = vmatprep.subr.bf16.mxu0 0
        %1122 = vmatpush1.bf16.msra.mxu0 0
        %1123 = vmatprep.subr.bf16.mxu0 0
        %1124 = vmatpush1.bf16.msra.mxu0 0
        %1125 = vmatprep.subr.bf16.mxu0 0
        %1126 = vmatpush1.bf16.msra.mxu0 0
        %1127 = vmatprep.subr.bf16.mxu0 0
        %1128 = vmatpush1.bf16.msra.mxu0 0
        %1129 = vmatprep.subr.bf16.mxu0 0
        %1130 = vmatpush1.bf16.msra.mxu0 0
        %1131 = vmatprep.subr.bf16.mxu0 0
        %1132 = vmatpush1.bf16.msra.mxu0 0
        %1133 = vmatprep.subr.bf16.mxu0 0
        %1134 = vmatpush1.bf16.msra.mxu0 0
        %1135 = vmatprep.subr.bf16.mxu0 0
        %1136 = vmatpush1.bf16.msra.mxu0 0
        %1137 = vmatprep.subr.bf16.mxu0 0
        %1138 = vmatpush1.bf16.msra.mxu0 0
        %1139 = vmatprep.subr.bf16.mxu0 0
        %1140 = vmatpush1.bf16.msra.mxu0 0
        %1141 = vmatprep.subr.bf16.mxu0 0
        %1142 = vmatpush1.bf16.msra.mxu0 0
        %1143 = vmatprep.subr.bf16.mxu0 0
        %1144 = vmatpush1.bf16.msra.mxu0 0
        %1145 = vmatprep.subr.bf16.mxu0 0
        %1146 = vmatpush1.bf16.msra.mxu0 0
        %1147 = vmatprep.subr.bf16.mxu0 0
        %1148 = vmatpush1.bf16.msra.mxu0 0
        %1149 = vmatprep.mubr.bf16.mxu0 0
        %1150 = vmatmul.mubr.bf16.gmra.mrb[0].mxu0 %v1106
        %v1151 = vpop.f32.mrb[0].mxu0
        %v1152 = vadd.f32 0.0, %v1151
        %v1153 = vpop.f32.mrb[0].mxu0
        %v1154 = vpop.f32.mrb[0].mxu0
        %v1155 = vadd.f32 0.0, %v1154
        %v1156 = vpop.f32.mrb[0].mxu0
        %1157 = vmatprep.mubr.bf16.mxu0 0
        %1158 = vmatmul.mubr.bf16.gmra.mrb[0].mxu0 %v1109
        %v1159 = vpop.f32.mrb[0].mxu0
        %v1160 = vadd.f32 0.0, %v1159
        %v1161 = vpop.f32.mrb[0].mxu0
        %v1162 = vpop.f32.mrb[0].mxu0
        %v1163 = vadd.f32 0.0, %v1162
        %v1164 = vpop.f32.mrb[0].mxu0
        %1165 = vmatprep.mubr.bf16.mxu0 0
        %1166 = vmatmul.mubr.bf16.gmra.mrb[0].mxu0 %v1112
        %v1167 = vpop.f32.mrb[0].mxu0
        %v1168 = vadd.f32 0.0, %v1167
        %v1169 = vpop.f32.mrb[0].mxu0
        %v1170 = vpop.f32.mrb[0].mxu0
        %v1171 = vadd.f32 0.0, %v1170
        %v1172 = vpop.f32.mrb[0].mxu0
        %1173 = vmatprep.mubr.bf16.mxu0 0
        %1174 = vmatmul.mubr.bf16.gmra.mrb[0].mxu0 %v1115
        %v1175 = vpop.f32.mrb[0].mxu0
        %v1176 = vadd.f32 0.0, %v1175
        %v1177 = vpop.f32.mrb[0].mxu0
        %v1178 = vpop.f32.mrb[0].mxu0
        %v1179 = vadd.f32 0.0, %v1178
        %v1180 = vpop.f32.mrb[0].mxu0
        %1181 = vdwg.mxu0
        %v1182 = vadd.f32 %v1052, %v1152
        %v1183 = vadd.f32 %v1053, %v1155
        %v1184 = vadd.f32 %v1054, %v1160
        %v1185 = vadd.f32 %v1055, %v1163
        %v1186 = vadd.f32 %v1056, %v1168
        %v1187 = vadd.f32 %v1057, %v1171
        %v1188 = vadd.f32 %v1058, %v1176
        %v1189 = vadd.f32 %v1059, %v1179
        %v1190 = vld [vmem:[%s512] sm:$0xf]
        %v1191 = vld [vmem:[%s512 + $0x4] sm:$0x1]
        %v1192 = vld [vmem:[%s512 + $0x8] sm:$0xf]
        %v1193 = vld [vmem:[%s512 + $0xc] sm:$0x1]
        %v1194 = vld [vmem:[%s512 + $0x10] sm:$0xf]
        %v1195 = vld [vmem:[%s512 + $0x14] sm:$0x1]
        %v1196 = vld [vmem:[%s512 + $0x18] sm:$0xf]
        %v1197 = vld [vmem:[%s512 + $0x1c] sm:$0x1]
        %v1198 = vld [vmem:[%s512 + $0x20] sm:$0xf]
        %v1199 = vld [vmem:[%s512 + $0x24] sm:$0x1]
        %v1200 = vld [vmem:[%s512 + $0x28] sm:$0xf]
        %v1201 = vld [vmem:[%s512 + $0x2c] sm:$0x1]
        %v1202 = vld [vmem:[%s512 + $0x30] sm:$0xf]
        %v1203 = vld [vmem:[%s512 + $0x34] sm:$0x1]
        %v1204 = vld [vmem:[%s512 + $0x38] sm:$0xf]
        %v1205 = vld [vmem:[%s512 + $0x3c] sm:$0x1]
        %v1207 = vshrl.u32 %v1190, 16
        %v1209 = vrot.slane %v1207, 4
        %v1210 = vshll.u32 %v1190, 16
        %v1212 = vrot.slane %v1210, 5
        %v1213 = vor.u32 %v1209, %v1212
        %v1214 = vrot.slane %v1213, 4
        %v1216 = vshll.u32 %v1191, 16
        %v1218 = vrot.slane %v1216, 5
        %v1219 = vsel %vm558, %v1214, %v1218
        %v1221 = vshrl.u32 %v1192, 16
        %v1223 = vrot.slane %v1221, 4
        %v1224 = vshll.u32 %v1192, 16
        %v1226 = vrot.slane %v1224, 5
        %v1227 = vor.u32 %v1223, %v1226
        %v1228 = vrot.slane %v1227, 4
        %v1230 = vshll.u32 %v1193, 16
        %v1232 = vrot.slane %v1230, 5
        %v1233 = vsel %vm558, %v1228, %v1232
        %v1235 = vshrl.u32 %v1194, 16
        %v1237 = vrot.slane %v1235, 4
        %v1238 = vshll.u32 %v1194, 16
        %v1240 = vrot.slane %v1238, 5
        %v1241 = vor.u32 %v1237, %v1240
        %v1242 = vrot.slane %v1241, 4
        %v1244 = vshll.u32 %v1195, 16
        %v1246 = vrot.slane %v1244, 5
        %v1247 = vsel %vm558, %v1242, %v1246
        %v1249 = vshrl.u32 %v1196, 16
        %v1251 = vrot.slane %v1249, 4
        %v1252 = vshll.u32 %v1196, 16
        %v1254 = vrot.slane %v1252, 5
        %v1255 = vor.u32 %v1251, %v1254
        %v1256 = vrot.slane %v1255, 4
        %v1258 = vshll.u32 %v1197, 16
        %v1260 = vrot.slane %v1258, 5
        %v1261 = vsel %vm558, %v1256, %v1260
        %v1263 = vshrl.u32 %v1198, 16
        %v1265 = vrot.slane %v1263, 4
        %v1266 = vshll.u32 %v1198, 16
        %v1268 = vrot.slane %v1266, 5
        %v1269 = vor.u32 %v1265, %v1268
        %v1270 = vrot.slane %v1269, 4
        %v1272 = vshll.u32 %v1199, 16
        %v1274 = vrot.slane %v1272, 5
        %v1275 = vsel %vm558, %v1270, %v1274
        %v1277 = vshrl.u32 %v1200, 16
        %v1279 = vrot.slane %v1277, 4
        %v1280 = vshll.u32 %v1200, 16
        %v1282 = vrot.slane %v1280, 5
        %v1283 = vor.u32 %v1279, %v1282
        %v1284 = vrot.slane %v1283, 4
        %v1286 = vshll.u32 %v1201, 16
        %v1288 = vrot.slane %v1286, 5
        %v1289 = vsel %vm558, %v1284, %v1288
        %v1291 = vshrl.u32 %v1202, 16
        %v1293 = vrot.slane %v1291, 4
        %v1294 = vshll.u32 %v1202, 16
        %v1296 = vrot.slane %v1294, 5
        %v1297 = vor.u32 %v1293, %v1296
        %v1298 = vrot.slane %v1297, 4
        %v1300 = vshll.u32 %v1203, 16
        %v1302 = vrot.slane %v1300, 5
        %v1303 = vsel %vm558, %v1298, %v1302
        %v1305 = vshrl.u32 %v1204, 16
        %v1307 = vrot.slane %v1305, 4
        %v1308 = vshll.u32 %v1204, 16
        %v1310 = vrot.slane %v1308, 5
        %v1311 = vor.u32 %v1307, %v1310
        %v1312 = vrot.slane %v1311, 4
        %v1314 = vshll.u32 %v1205, 16
        %v1316 = vrot.slane %v1314, 5
        %v1317 = vsel %vm558, %v1312, %v1316
        %s1318 = scalar_lea.vmem [#allocation11], 64
        %v1319 = vld [vmem:[%s1318] sm:$0xf]
        %v1320 = vld [vmem:[%s1318 + $0x4] sm:$0xf]
        %v1321 = vld [vmem:[%s1318 + $0x8] sm:$0xf]
        %v1322 = vld [vmem:[%s1318 + $0xc] sm:$0xf]
        %v1323 = vunpack.c.l.b16 %v1219
        %v1324 = vunpack.c.l.b16 %v1233
        %v1325 = vunpack.c.l.b16 %v1247
        %v1326 = vunpack.c.l.b16 %v1261
        %v1327 = vunpack.c.l.b16 %v1275
        %v1328 = vunpack.c.l.b16 %v1289
        %v1329 = vunpack.c.l.b16 %v1303
        %v1330 = vunpack.c.l.b16 %v1317
        %v1331 = vpack.c.b16 %v1324, %v1323
        %v1332 = vpack.c.b16 %v1326, %v1325
        %v1333 = vpack.c.b16 %v1328, %v1327
        %v1334 = vpack.c.b16 %v1330, %v1329
        %v1339 = vunpack.c.l.b16 %v1319
        %v1340 = vunpack.c.l.b16 %v1320
        %v1341 = vunpack.c.l.b16 %v1321
        %v1342 = vunpack.c.l.b16 %v1322
        %v1343 = vpack.c.b16 %v1340, %v1339
        %v1344 = vpack.c.b16 %v1342, %v1341
        %v1348 = vsel %vm700, %v1331, 0
        %v1351 = vsel %vm700, %v1332, 0
        %v1354 = vsel %vm700, %v1333, 0
        %v1357 = vsel %vm700, %v1334, 0
        %1359 = vmatprep.subr.bf16.mxu0 0
        %1360 = vmatpush1.bf16.msra.mxu0 %v1343
        %1361 = vmatprep.subr.bf16.mxu0 0
        %1362 = vmatpush1.bf16.msra.mxu0 %v1344
        %1363 = vmatprep.subr.bf16.mxu0 0
        %1364 = vmatpush1.bf16.msra.mxu0 0
        %1365 = vmatprep.subr.bf16.mxu0 0
        %1366 = vmatpush1.bf16.msra.mxu0 0
        %1367 = vmatprep.subr.bf16.mxu0 0
        %1368 = vmatpush1.bf16.msra.mxu0 0
        %1369 = vmatprep.subr.bf16.mxu0 0
        %1370 = vmatpush1.bf16.msra.mxu0 0
        %1371 = vmatprep.subr.bf16.mxu0 0
        %1372 = vmatpush1.bf16.msra.mxu0 0
        %1373 = vmatprep.subr.bf16.mxu0 0
        %1374 = vmatpush1.bf16.msra.mxu0 0
        %1375 = vmatprep.subr.bf16.mxu0 0
        %1376 = vmatpush1.bf16.msra.mxu0 0
        %1377 = vmatprep.subr.bf16.mxu0 0
        %1378 = vmatpush1.bf16.msra.mxu0 0
        %1379 = vmatprep.subr.bf16.mxu0 0
        %1380 = vmatpush1.bf16.msra.mxu0 0
        %1381 = vmatprep.subr.bf16.mxu0 0
        %1382 = vmatpush1.bf16.msra.mxu0 0
        %1383 = vmatprep.subr.bf16.mxu0 0
        %1384 = vmatpush1.bf16.msra.mxu0 0
        %1385 = vmatprep.subr.bf16.mxu0 0
        %1386 = vmatpush1.bf16.msra.mxu0 0
        %1387 = vmatprep.subr.bf16.mxu0 0
        %1388 = vmatpush1.bf16.msra.mxu0 0
        %1389 = vmatprep.subr.bf16.mxu0 0
        %1390 = vmatpush1.bf16.msra.mxu0 0
        %1391 = vmatprep.mubr.bf16.mxu0 0
        %1392 = vmatmul.mubr.bf16.gmra.mrb[0].mxu0 %v1348
        %v1393 = vpop.f32.mrb[0].mxu0
        %v1394 = vadd.f32 0.0, %v1393
        %v1395 = vpop.f32.mrb[0].mxu0
        %v1396 = vpop.f32.mrb[0].mxu0
        %v1397 = vadd.f32 0.0, %v1396
        %v1398 = vpop.f32.mrb[0].mxu0
        %1399 = vmatprep.mubr.bf16.mxu0 0
        %1400 = vmatmul.mubr.bf16.gmra.mrb[0].mxu0 %v1351
        %v1401 = vpop.f32.mrb[0].mxu0
        %v1402 = vadd.f32 0.0, %v1401
        %v1403 = vpop.f32.mrb[0].mxu0
        %v1404 = vpop.f32.mrb[0].mxu0
        %v1405 = vadd.f32 0.0, %v1404
        %v1406 = vpop.f32.mrb[0].mxu0
        %1407 = vmatprep.mubr.bf16.mxu0 0
        %1408 = vmatmul.mubr.bf16.gmra.mrb[0].mxu0 %v1354
        %v1409 = vpop.f32.mrb[0].mxu0
        %v1410 = vadd.f32 0.0, %v1409
        %v1411 = vpop.f32.mrb[0].mxu0
        %v1412 = vpop.f32.mrb[0].mxu0
        %v1413 = vadd.f32 0.0, %v1412
        %v1414 = vpop.f32.mrb[0].mxu0
        %1415 = vmatprep.mubr.bf16.mxu0 0
        %1416 = vmatmul.mubr.bf16.gmra.mrb[0].mxu0 %v1357
        %v1417 = vpop.f32.mrb[0].mxu0
        %v1418 = vadd.f32 0.0, %v1417
        %v1419 = vpop.f32.mrb[0].mxu0
        %v1420 = vpop.f32.mrb[0].mxu0
        %v1421 = vadd.f32 0.0, %v1420
        %v1422 = vpop.f32.mrb[0].mxu0
        %1423 = vdwg.mxu0
        %v1424 = vadd.f32 %v1182, %v1394
        %v1425 = vadd.f32 %v1183, %v1397
        %v1426 = vadd.f32 %v1184, %v1402
        %v1427 = vadd.f32 %v1185, %v1405
        %v1428 = vadd.f32 %v1186, %v1410
        %v1429 = vadd.f32 %v1187, %v1413
        %v1430 = vadd.f32 %v1188, %v1418
        %v1431 = vadd.f32 %v1189, %v1421
        %v1432 = vld [vmem:[%s512] sm:$0xe]
        %v1433 = vld [vmem:[%s512 + $0x8] sm:$0xe]
        %v1434 = vld [vmem:[%s512 + $0x10] sm:$0xe]
        %v1435 = vld [vmem:[%s512 + $0x18] sm:$0xe]
        %v1436 = vld [vmem:[%s512 + $0x20] sm:$0xe]
        %v1437 = vld [vmem:[%s512 + $0x28] sm:$0xe]
        %v1438 = vld [vmem:[%s512 + $0x30] sm:$0xe]
        %v1439 = vld [vmem:[%s512 + $0x38] sm:$0xe]
        %v1456 = vrot.slane %v1432, 5
        %v1457 = vrot.slane %v1456, 4
        %v1458 = vrot.slane %v1191, 5
        %v1459 = vsel %vm913, %v1457, %v1458
        %v1460 = vrot.slane %v1433, 5
        %v1461 = vrot.slane %v1460, 4
        %v1462 = vrot.slane %v1193, 5
        %v1463 = vsel %vm913, %v1461, %v1462
        %v1464 = vrot.slane %v1434, 5
        %v1465 = vrot.slane %v1464, 4
        %v1466 = vrot.slane %v1195, 5
        %v1467 = vsel %vm913, %v1465, %v1466
        %v1468 = vrot.slane %v1435, 5
        %v1469 = vrot.slane %v1468, 4
        %v1470 = vrot.slane %v1197, 5
        %v1471 = vsel %vm913, %v1469, %v1470
        %v1472 = vrot.slane %v1436, 5
        %v1473 = vrot.slane %v1472, 4
        %v1474 = vrot.slane %v1199, 5
        %v1475 = vsel %vm913, %v1473, %v1474
        %v1476 = vrot.slane %v1437, 5
        %v1477 = vrot.slane %v1476, 4
        %v1478 = vrot.slane %v1201, 5
        %v1479 = vsel %vm913, %v1477, %v1478
        %v1480 = vrot.slane %v1438, 5
        %v1481 = vrot.slane %v1480, 4
        %v1482 = vrot.slane %v1203, 5
        %v1483 = vsel %vm913, %v1481, %v1482
        %v1484 = vrot.slane %v1439, 5
        %v1485 = vrot.slane %v1484, 4
        %v1486 = vrot.slane %v1205, 5
        %v1487 = vsel %vm913, %v1485, %v1486
        %s1488 = scalar_lea.vmem [#allocation11], 80
        %v1489 = vld [vmem:[%s1488] sm:$0xf]
        %v1490 = vld [vmem:[%s1488 + $0x4] sm:$0xf]
        %v1491 = vld [vmem:[%s1488 + $0x8] sm:$0xf]
        %v1492 = vld [vmem:[%s1488 + $0xc] sm:$0xf]
        %v1493 = vunpack.c.l.b16 %v1459
        %v1494 = vunpack.c.l.b16 %v1463
        %v1495 = vunpack.c.l.b16 %v1467
        %v1496 = vunpack.c.l.b16 %v1471
        %v1497 = vunpack.c.l.b16 %v1475
        %v1498 = vunpack.c.l.b16 %v1479
        %v1499 = vunpack.c.l.b16 %v1483
        %v1500 = vunpack.c.l.b16 %v1487
        %v1501 = vpack.c.b16 %v1494, %v1493
        %v1502 = vpack.c.b16 %v1496, %v1495
        %v1503 = vpack.c.b16 %v1498, %v1497
        %v1504 = vpack.c.b16 %v1500, %v1499
        %v1509 = vunpack.c.l.b16 %v1489
        %v1510 = vunpack.c.l.b16 %v1490
        %v1511 = vunpack.c.l.b16 %v1491
        %v1512 = vunpack.c.l.b16 %v1492
        %v1513 = vpack.c.b16 %v1510, %v1509
        %v1514 = vpack.c.b16 %v1512, %v1511
        %v1518 = vsel %vm700, %v1501, 0
        %v1521 = vsel %vm700, %v1502, 0
        %v1524 = vsel %vm700, %v1503, 0
        %v1527 = vsel %vm700, %v1504, 0
        %1529 = vmatprep.subr.bf16.mxu0 0
        %1530 = vmatpush1.bf16.msra.mxu0 %v1513
        %1531 = vmatprep.subr.bf16.mxu0 0
        %1532 = vmatpush1.bf16.msra.mxu0 %v1514
        %1533 = vmatprep.subr.bf16.mxu0 0
        %1534 = vmatpush1.bf16.msra.mxu0 0
        %1535 = vmatprep.subr.bf16.mxu0 0
        %1536 = vmatpush1.bf16.msra.mxu0 0
        %1537 = vmatprep.subr.bf16.mxu0 0
        %1538 = vmatpush1.bf16.msra.mxu0 0
        %1539 = vmatprep.subr.bf16.mxu0 0
        %1540 = vmatpush1.bf16.msra.mxu0 0
        %1541 = vmatprep.subr.bf16.mxu0 0
        %1542 = vmatpush1.bf16.msra.mxu0 0
        %1543 = vmatprep.subr.bf16.mxu0 0
        %1544 = vmatpush1.bf16.msra.mxu0 0
        %1545 = vmatprep.subr.bf16.mxu0 0
        %1546 = vmatpush1.bf16.msra.mxu0 0
        %1547 = vmatprep.subr.bf16.mxu0 0
        %1548 = vmatpush1.bf16.msra.mxu0 0
        %1549 = vmatprep.subr.bf16.mxu0 0
        %1550 = vmatpush1.bf16.msra.mxu0 0
        %1551 = vmatprep.subr.bf16.mxu0 0
        %1552 = vmatpush1.bf16.msra.mxu0 0
        %1553 = vmatprep.subr.bf16.mxu0 0
        %1554 = vmatpush1.bf16.msra.mxu0 0
        %1555 = vmatprep.subr.bf16.mxu0 0
        %1556 = vmatpush1.bf16.msra.mxu0 0
        %1557 = vmatprep.subr.bf16.mxu0 0
        %1558 = vmatpush1.bf16.msra.mxu0 0
        %1559 = vmatprep.subr.bf16.mxu0 0
        %1560 = vmatpush1.bf16.msra.mxu0 0
        %1561 = vmatprep.mubr.bf16.mxu0 0
        %1562 = vmatmul.mubr.bf16.gmra.mrb[0].mxu0 %v1518
        %v1563 = vpop.f32.mrb[0].mxu0
        %v1564 = vadd.f32 0.0, %v1563
        %v1565 = vpop.f32.mrb[0].mxu0
        %v1566 = vpop.f32.mrb[0].mxu0
        %v1567 = vadd.f32 0.0, %v1566
        %v1568 = vpop.f32.mrb[0].mxu0
        %1569 = vmatprep.mubr.bf16.mxu0 0
        %1570 = vmatmul.mubr.bf16.gmra.mrb[0].mxu0 %v1521
        %v1571 = vpop.f32.mrb[0].mxu0
        %v1572 = vadd.f32 0.0, %v1571
        %v1573 = vpop.f32.mrb[0].mxu0
        %v1574 = vpop.f32.mrb[0].mxu0
        %v1575 = vadd.f32 0.0, %v1574
        %v1576 = vpop.f32.mrb[0].mxu0
        %1577 = vmatprep.mubr.bf16.mxu0 0
        %1578 = vmatmul.mubr.bf16.gmra.mrb[0].mxu0 %v1524
        %v1579 = vpop.f32.mrb[0].mxu0
        %v1580 = vadd.f32 0.0, %v1579
        %v1581 = vpop.f32.mrb[0].mxu0
        %v1582 = vpop.f32.mrb[0].mxu0
        %v1583 = vadd.f32 0.0, %v1582
        %v1584 = vpop.f32.mrb[0].mxu0
        %1585 = vmatprep.mubr.bf16.mxu0 0
        %1586 = vmatmul.mubr.bf16.gmra.mrb[0].mxu0 %v1527
        %v1587 = vpop.f32.mrb[0].mxu0
        %v1588 = vadd.f32 0.0, %v1587
        %v1589 = vpop.f32.mrb[0].mxu0
        %v1590 = vpop.f32.mrb[0].mxu0
        %v1591 = vadd.f32 0.0, %v1590
        %v1592 = vpop.f32.mrb[0].mxu0
        %1593 = vdwg.mxu0
        %v1594 = vadd.f32 %v1424, %v1564
        %v1595 = vadd.f32 %v1425, %v1567
        %v1596 = vadd.f32 %v1426, %v1572
        %v1597 = vadd.f32 %v1427, %v1575
        %v1598 = vadd.f32 %v1428, %v1580
        %v1599 = vadd.f32 %v1429, %v1583
        %v1600 = vadd.f32 %v1430, %v1588
        %v1601 = vadd.f32 %v1431, %v1591
        %s1602 = scalar_lea.vmem [#allocation2], 16
        %v1603 = vld [vmem:[%s1602] sm:$0xf]
        %v1604 = vld [vmem:[%s1602 + $0x8] sm:$0xf]
        %v1605 = vld [vmem:[%s1602 + $0x10] sm:$0xf]
        %v1606 = vld [vmem:[%s1602 + $0x18] sm:$0xf]
        %v1607 = vld [vmem:[%s1602 + $0x20] sm:$0xf]
        %v1608 = vld [vmem:[%s1602 + $0x28] sm:$0xf]
        %v1609 = vld [vmem:[%s1602 + $0x30] sm:$0xf]
        %v1610 = vld [vmem:[%s1602 + $0x38] sm:$0xf]
        %s1611 = scalar_lea.vmem [#allocation11], 96
        %v1612 = vld [vmem:[%s1611] sm:$0xf]
        %v1613 = vld [vmem:[%s1611 + $0x4] sm:$0xf]
        %v1614 = vld [vmem:[%s1611 + $0x8] sm:$0xf]
        %v1615 = vld [vmem:[%s1611 + $0xc] sm:$0xf]
        %v1624 = vunpack.c.l.b16 %v1603
        %v1625 = vunpack.c.l.b16 %v1604
        %v1626 = vunpack.c.l.b16 %v1605
        %v1627 = vunpack.c.l.b16 %v1606
        %v1628 = vunpack.c.l.b16 %v1607
        %v1629 = vunpack.c.l.b16 %v1608
        %v1630 = vunpack.c.l.b16 %v1609
        %v1631 = vunpack.c.l.b16 %v1610
        %v1632 = vpack.c.b16 %v1625, %v1624
        %v1633 = vpack.c.b16 %v1627, %v1626
        %v1634 = vpack.c.b16 %v1629, %v1628
        %v1635 = vpack.c.b16 %v1631, %v1630
        %v1640 = vunpack.c.l.b16 %v1612
        %v1641 = vunpack.c.l.b16 %v1613
        %v1642 = vunpack.c.l.b16 %v1614
        %v1643 = vunpack.c.l.b16 %v1615
        %v1644 = vpack.c.b16 %v1641, %v1640
        %v1645 = vpack.c.b16 %v1643, %v1642
        %v1649 = vsel %vm700, %v1632, 0
        %v1652 = vsel %vm700, %v1633, 0
        %v1655 = vsel %vm700, %v1634, 0
        %v1658 = vsel %vm700, %v1635, 0
        %1660 = vmatprep.subr.bf16.mxu0 0
        %1661 = vmatpush1.bf16.msra.mxu0 %v1644
        %1662 = vmatprep.subr.bf16.mxu0 0
        %1663 = vmatpush1.bf16.msra.mxu0 %v1645
        %1664 = vmatprep.subr.bf16.mxu0 0
        %1665 = vmatpush1.bf16.msra.mxu0 0
        %1666 = vmatprep.subr.bf16.mxu0 0
        %1667 = vmatpush1.bf16.msra.mxu0 0
        %1668 = vmatprep.subr.bf16.mxu0 0
        %1669 = vmatpush1.bf16.msra.mxu0 0
        %1670 = vmatprep.subr.bf16.mxu0 0
        %1671 = vmatpush1.bf16.msra.mxu0 0
        %1672 = vmatprep.subr.bf16.mxu0 0
        %1673 = vmatpush1.bf16.msra.mxu0 0
        %1674 = vmatprep.subr.bf16.mxu0 0
        %1675 = vmatpush1.bf16.msra.mxu0 0
        %1676 = vmatprep.subr.bf16.mxu0 0
        %1677 = vmatpush1.bf16.msra.mxu0 0
        %1678 = vmatprep.subr.bf16.mxu0 0
        %1679 = vmatpush1.bf16.msra.mxu0 0
        %1680 = vmatprep.subr.bf16.mxu0 0
        %1681 = vmatpush1.bf16.msra.mxu0 0
        %1682 = vmatprep.subr.bf16.mxu0 0
        %1683 = vmatpush1.bf16.msra.mxu0 0
        %1684 = vmatprep.subr.bf16.mxu0 0
        %1685 = vmatpush1.bf16.msra.mxu0 0
        %1686 = vmatprep.subr.bf16.mxu0 0
        %1687 = vmatpush1.bf16.msra.mxu0 0
        %1688 = vmatprep.subr.bf16.mxu0 0
        %1689 = vmatpush1.bf16.msra.mxu0 0
        %1690 = vmatprep.subr.bf16.mxu0 0
        %1691 = vmatpush1.bf16.msra.mxu0 0
        %1692 = vmatprep.mubr.bf16.mxu0 0
        %1693 = vmatmul.mubr.bf16.gmra.mrb[0].mxu0 %v1649
        %v1694 = vpop.f32.mrb[0].mxu0
        %v1695 = vadd.f32 0.0, %v1694
        %v1696 = vpop.f32.mrb[0].mxu0
        %v1697 = vpop.f32.mrb[0].mxu0
        %v1698 = vadd.f32 0.0, %v1697
        %v1699 = vpop.f32.mrb[0].mxu0
        %1700 = vmatprep.mubr.bf16.mxu0 0
        %1701 = vmatmul.mubr.bf16.gmra.mrb[0].mxu0 %v1652
        %v1702 = vpop.f32.mrb[0].mxu0
        %v1703 = vadd.f32 0.0, %v1702
        %v1704 = vpop.f32.mrb[0].mxu0
        %v1705 = vpop.f32.mrb[0].mxu0
        %v1706 = vadd.f32 0.0, %v1705
        %v1707 = vpop.f32.mrb[0].mxu0
        %1708 = vmatprep.mubr.bf16.mxu0 0
        %1709 = vmatmul.mubr.bf16.gmra.mrb[0].mxu0 %v1655
        %v1710 = vpop.f32.mrb[0].mxu0
        %v1711 = vadd.f32 0.0, %v1710
        %v1712 = vpop.f32.mrb[0].mxu0
        %v1713 = vpop.f32.mrb[0].mxu0
        %v1714 = vadd.f32 0.0, %v1713
        %v1715 = vpop.f32.mrb[0].mxu0
        %1716 = vmatprep.mubr.bf16.mxu0 0
        %1717 = vmatmul.mubr.bf16.gmra.mrb[0].mxu0 %v1658
        %v1718 = vpop.f32.mrb[0].mxu0
        %v1719 = vadd.f32 0.0, %v1718
        %v1720 = vpop.f32.mrb[0].mxu0
        %v1721 = vpop.f32.mrb[0].mxu0
        %v1722 = vadd.f32 0.0, %v1721
        %v1723 = vpop.f32.mrb[0].mxu0
        %1724 = vdwg.mxu0
        %v1725 = vadd.f32 %v1594, %v1695
        %v1726 = vadd.f32 %v1595, %v1698
        %v1727 = vadd.f32 %v1596, %v1703
        %v1728 = vadd.f32 %v1597, %v1706
        %v1729 = vadd.f32 %v1598, %v1711
        %v1730 = vadd.f32 %v1599, %v1714
        %v1731 = vadd.f32 %v1600, %v1719
        %v1732 = vadd.f32 %v1601, %v1722
        %v1733 = vld [vmem:[%s1602] sm:$0xf]
        %v1734 = vld [vmem:[%s1602 + $0x4] sm:$0x1]
        %v1735 = vld [vmem:[%s1602 + $0x8] sm:$0xf]
        %v1736 = vld [vmem:[%s1602 + $0xc] sm:$0x1]
        %v1737 = vld [vmem:[%s1602 + $0x10] sm:$0xf]
        %v1738 = vld [vmem:[%s1602 + $0x14] sm:$0x1]
        %v1739 = vld [vmem:[%s1602 + $0x18] sm:$0xf]
        %v1740 = vld [vmem:[%s1602 + $0x1c] sm:$0x1]
        %v1741 = vld [vmem:[%s1602 + $0x20] sm:$0xf]
        %v1742 = vld [vmem:[%s1602 + $0x24] sm:$0x1]
        %v1743 = vld [vmem:[%s1602 + $0x28] sm:$0xf]
        %v1744 = vld [vmem:[%s1602 + $0x2c] sm:$0x1]
        %v1745 = vld [vmem:[%s1602 + $0x30] sm:$0xf]
        %v1746 = vld [vmem:[%s1602 + $0x34] sm:$0x1]
        %v1747 = vld [vmem:[%s1602 + $0x38] sm:$0xf]
        %v1748 = vld [vmem:[%s1602 + $0x3c] sm:$0x1]
        %v1750 = vshrl.u32 %v1733, 16
        %v1752 = vrot.slane %v1750, 4
        %v1753 = vshll.u32 %v1733, 16
        %v1755 = vrot.slane %v1753, 5
        %v1756 = vor.u32 %v1752, %v1755
        %v1757 = vrot.slane %v1756, 4
        %v1759 = vshll.u32 %v1734, 16
        %v1761 = vrot.slane %v1759, 5
        %v1762 = vsel %vm558, %v1757, %v1761
        %v1764 = vshrl.u32 %v1735, 16
        %v1766 = vrot.slane %v1764, 4
        %v1767 = vshll.u32 %v1735, 16
        %v1769 = vrot.slane %v1767, 5
        %v1770 = vor.u32 %v1766, %v1769
        %v1771 = vrot.slane %v1770, 4
        %v1773 = vshll.u32 %v1736, 16
        %v1775 = vrot.slane %v1773, 5
        %v1776 = vsel %vm558, %v1771, %v1775
        %v1778 = vshrl.u32 %v1737, 16
        %v1780 = vrot.slane %v1778, 4
        %v1781 = vshll.u32 %v1737, 16
        %v1783 = vrot.slane %v1781, 5
        %v1784 = vor.u32 %v1780, %v1783
        %v1785 = vrot.slane %v1784, 4
        %v1787 = vshll.u32 %v1738, 16
        %v1789 = vrot.slane %v1787, 5
        %v1790 = vsel %vm558, %v1785, %v1789
        %v1792 = vshrl.u32 %v1739, 16
        %v1794 = vrot.slane %v1792, 4
        %v1795 = vshll.u32 %v1739, 16
        %v1797 = vrot.slane %v1795, 5
        %v1798 = vor.u32 %v1794, %v1797
        %v1799 = vrot.slane %v1798, 4
        %v1801 = vshll.u32 %v1740, 16
        %v1803 = vrot.slane %v1801, 5
        %v1804 = vsel %vm558, %v1799, %v1803
        %v1806 = vshrl.u32 %v1741, 16
        %v1808 = vrot.slane %v1806, 4
        %v1809 = vshll.u32 %v1741, 16
        %v1811 = vrot.slane %v1809, 5
        %v1812 = vor.u32 %v1808, %v1811
        %v1813 = vrot.slane %v1812, 4
        %v1815 = vshll.u32 %v1742, 16
        %v1817 = vrot.slane %v1815, 5
        %v1818 = vsel %vm558, %v1813, %v1817
        %v1820 = vshrl.u32 %v1743, 16
        %v1822 = vrot.slane %v1820, 4
        %v1823 = vshll.u32 %v1743, 16
        %v1825 = vrot.slane %v1823, 5
        %v1826 = vor.u32 %v1822, %v1825
        %v1827 = vrot.slane %v1826, 4
        %v1829 = vshll.u32 %v1744, 16
        %v1831 = vrot.slane %v1829, 5
        %v1832 = vsel %vm558, %v1827, %v1831
        %v1834 = vshrl.u32 %v1745, 16
        %v1836 = vrot.slane %v1834, 4
        %v1837 = vshll.u32 %v1745, 16
        %v1839 = vrot.slane %v1837, 5
        %v1840 = vor.u32 %v1836, %v1839
        %v1841 = vrot.slane %v1840, 4
        %v1843 = vshll.u32 %v1746, 16
        %v1845 = vrot.slane %v1843, 5
        %v1846 = vsel %vm558, %v1841, %v1845
        %v1848 = vshrl.u32 %v1747, 16
        %v1850 = vrot.slane %v1848, 4
        %v1851 = vshll.u32 %v1747, 16
        %v1853 = vrot.slane %v1851, 5
        %v1854 = vor.u32 %v1850, %v1853
        %v1855 = vrot.slane %v1854, 4
        %v1857 = vshll.u32 %v1748, 16
        %v1859 = vrot.slane %v1857, 5
        %v1860 = vsel %vm558, %v1855, %v1859
        %s1861 = scalar_lea.vmem [#allocation11], 112
        %v1862 = vld [vmem:[%s1861] sm:$0xf]
        %v1863 = vld [vmem:[%s1861 + $0x4] sm:$0xf]
        %v1864 = vld [vmem:[%s1861 + $0x8] sm:$0xf]
        %v1865 = vld [vmem:[%s1861 + $0xc] sm:$0xf]
        %v1866 = vunpack.c.l.b16 %v1762
        %v1867 = vunpack.c.l.b16 %v1776
        %v1868 = vunpack.c.l.b16 %v1790
        %v1869 = vunpack.c.l.b16 %v1804
        %v1870 = vunpack.c.l.b16 %v1818
        %v1871 = vunpack.c.l.b16 %v1832
        %v1872 = vunpack.c.l.b16 %v1846
        %v1873 = vunpack.c.l.b16 %v1860
        %v1874 = vpack.c.b16 %v1867, %v1866
        %v1875 = vpack.c.b16 %v1869, %v1868
        %v1876 = vpack.c.b16 %v1871, %v1870
        %v1877 = vpack.c.b16 %v1873, %v1872
        %v1882 = vunpack.c.l.b16 %v1862
        %v1883 = vunpack.c.l.b16 %v1863
        %v1884 = vunpack.c.l.b16 %v1864
        %v1885 = vunpack.c.l.b16 %v1865
        %v1886 = vpack.c.b16 %v1883, %v1882
        %v1887 = vpack.c.b16 %v1885, %v1884
        %v1891 = vsel %vm700, %v1874, 0
        %v1894 = vsel %vm700, %v1875, 0
        %v1897 = vsel %vm700, %v1876, 0
        %v1900 = vsel %vm700, %v1877, 0
        %1902 = vmatprep.subr.bf16.mxu0 0
        %1903 = vmatpush1.bf16.msra.mxu0 %v1886
        %1904 = vmatprep.subr.bf16.mxu0 0
        %1905 = vmatpush1.bf16.msra.mxu0 %v1887
        %1906 = vmatprep.subr.bf16.mxu0 0
        %1907 = vmatpush1.bf16.msra.mxu0 0
        %1908 = vmatprep.subr.bf16.mxu0 0
        %1909 = vmatpush1.bf16.msra.mxu0 0
        %1910 = vmatprep.subr.bf16.mxu0 0
        %1911 = vmatpush1.bf16.msra.mxu0 0
        %1912 = vmatprep.subr.bf16.mxu0 0
        %1913 = vmatpush1.bf16.msra.mxu0 0
        %1914 = vmatprep.subr.bf16.mxu0 0
        %1915 = vmatpush1.bf16.msra.mxu0 0
        %1916 = vmatprep.subr.bf16.mxu0 0
        %1917 = vmatpush1.bf16.msra.mxu0 0
        %1918 = vmatprep.subr.bf16.mxu0 0
        %1919 = vmatpush1.bf16.msra.mxu0 0
        %1920 = vmatprep.subr.bf16.mxu0 0
        %1921 = vmatpush1.bf16.msra.mxu0 0
        %1922 = vmatprep.subr.bf16.mxu0 0
        %1923 = vmatpush1.bf16.msra.mxu0 0
        %1924 = vmatprep.subr.bf16.mxu0 0
        %1925 = vmatpush1.bf16.msra.mxu0 0
        %1926 = vmatprep.subr.bf16.mxu0 0
        %1927 = vmatpush1.bf16.msra.mxu0 0
        %1928 = vmatprep.subr.bf16.mxu0 0
        %1929 = vmatpush1.bf16.msra.mxu0 0
        %1930 = vmatprep.subr.bf16.mxu0 0
        %1931 = vmatpush1.bf16.msra.mxu0 0
        %1932 = vmatprep.subr.bf16.mxu0 0
        %1933 = vmatpush1.bf16.msra.mxu0 0
        %1934 = vmatprep.mubr.bf16.mxu0 0
        %1935 = vmatmul.mubr.bf16.gmra.mrb[0].mxu0 %v1891
        %v1936 = vpop.f32.mrb[0].mxu0
        %v1937 = vadd.f32 0.0, %v1936
        %v1938 = vpop.f32.mrb[0].mxu0
        %v1939 = vpop.f32.mrb[0].mxu0
        %v1940 = vadd.f32 0.0, %v1939
        %v1941 = vpop.f32.mrb[0].mxu0
        %1942 = vmatprep.mubr.bf16.mxu0 0
        %1943 = vmatmul.mubr.bf16.gmra.mrb[0].mxu0 %v1894
        %v1944 = vpop.f32.mrb[0].mxu0
        %v1945 = vadd.f32 0.0, %v1944
        %v1946 = vpop.f32.mrb[0].mxu0
        %v1947 = vpop.f32.mrb[0].mxu0
        %v1948 = vadd.f32 0.0, %v1947
        %v1949 = vpop.f32.mrb[0].mxu0
        %1950 = vmatprep.mubr.bf16.mxu0 0
        %1951 = vmatmul.mubr.bf16.gmra.mrb[0].mxu0 %v1897
        %v1952 = vpop.f32.mrb[0].mxu0
        %v1953 = vadd.f32 0.0, %v1952
        %v1954 = vpop.f32.mrb[0].mxu0
        %v1955 = vpop.f32.mrb[0].mxu0
        %v1956 = vadd.f32 0.0, %v1955
        %v1957 = vpop.f32.mrb[0].mxu0
        %1958 = vmatprep.mubr.bf16.mxu0 0
        %1959 = vmatmul.mubr.bf16.gmra.mrb[0].mxu0 %v1900
        %v1960 = vpop.f32.mrb[0].mxu0
        %v1961 = vadd.f32 0.0, %v1960
        %v1962 = vpop.f32.mrb[0].mxu0
        %v1963 = vpop.f32.mrb[0].mxu0
        %v1964 = vadd.f32 0.0, %v1963
        %v1965 = vpop.f32.mrb[0].mxu0
        %1966 = vdwg.mxu0
        %v1967 = vadd.f32 %v1725, %v1937
        %v1968 = vadd.f32 %v1726, %v1940
        %v1969 = vadd.f32 %v1727, %v1945
        %v1970 = vadd.f32 %v1728, %v1948
        %v1971 = vadd.f32 %v1729, %v1953
        %v1972 = vadd.f32 %v1730, %v1956
        %v1973 = vadd.f32 %v1731, %v1961
        %v1974 = vadd.f32 %v1732, %v1964
        %v1975 = vld [vmem:[%s1602] sm:$0xe]
        %v1976 = vld [vmem:[%s1602 + $0x8] sm:$0xe]
        %v1977 = vld [vmem:[%s1602 + $0x10] sm:$0xe]
        %v1978 = vld [vmem:[%s1602 + $0x18] sm:$0xe]
        %v1979 = vld [vmem:[%s1602 + $0x20] sm:$0xe]
        %v1980 = vld [vmem:[%s1602 + $0x28] sm:$0xe]
        %v1981 = vld [vmem:[%s1602 + $0x30] sm:$0xe]
        %v1982 = vld [vmem:[%s1602 + $0x38] sm:$0xe]
        %v1999 = vrot.slane %v1975, 5
        %v2000 = vrot.slane %v1999, 4
        %v2001 = vrot.slane %v1734, 5
        %v2002 = vsel %vm913, %v2000, %v2001
        %v2003 = vrot.slane %v1976, 5
        %v2004 = vrot.slane %v2003, 4
        %v2005 = vrot.slane %v1736, 5
        %v2006 = vsel %vm913, %v2004, %v2005
        %v2007 = vrot.slane %v1977, 5
        %v2008 = vrot.slane %v2007, 4
        %v2009 = vrot.slane %v1738, 5
        %v2010 = vsel %vm913, %v2008, %v2009
        %v2011 = vrot.slane %v1978, 5
        %v2012 = vrot.slane %v2011, 4
        %v2013 = vrot.slane %v1740, 5
        %v2014 = vsel %vm913, %v2012, %v2013
        %v2015 = vrot.slane %v1979, 5
        %v2016 = vrot.slane %v2015, 4
        %v2017 = vrot.slane %v1742, 5
        %v2018 = vsel %vm913, %v2016, %v2017
        %v2019 = vrot.slane %v1980, 5
        %v2020 = vrot.slane %v2019, 4
        %v2021 = vrot.slane %v1744, 5
        %v2022 = vsel %vm913, %v2020, %v2021
        %v2023 = vrot.slane %v1981, 5
        %v2024 = vrot.slane %v2023, 4
        %v2025 = vrot.slane %v1746, 5
        %v2026 = vsel %vm913, %v2024, %v2025
        %v2027 = vrot.slane %v1982, 5
        %v2028 = vrot.slane %v2027, 4
        %v2029 = vrot.slane %v1748, 5
        %v2030 = vsel %vm913, %v2028, %v2029
        %s2031 = scalar_lea.vmem [#allocation11], 128
        %v2032 = vld [vmem:[%s2031] sm:$0xf]
        %v2033 = vld [vmem:[%s2031 + $0x4] sm:$0xf]
        %v2034 = vld [vmem:[%s2031 + $0x8] sm:$0xf]
        %v2035 = vld [vmem:[%s2031 + $0xc] sm:$0xf]
        %v2036 = vunpack.c.l.b16 %v2002
        %v2037 = vunpack.c.l.b16 %v2006
        %v2038 = vunpack.c.l.b16 %v2010
        %v2039 = vunpack.c.l.b16 %v2014
        %v2040 = vunpack.c.l.b16 %v2018
        %v2041 = vunpack.c.l.b16 %v2022
        %v2042 = vunpack.c.l.b16 %v2026
        %v2043 = vunpack.c.l.b16 %v2030
        %v2044 = vpack.c.b16 %v2037, %v2036
        %v2045 = vpack.c.b16 %v2039, %v2038
        %v2046 = vpack.c.b16 %v2041, %v2040
        %v2047 = vpack.c.b16 %v2043, %v2042
        %v2052 = vunpack.c.l.b16 %v2032
        %v2053 = vunpack.c.l.b16 %v2033
        %v2054 = vunpack.c.l.b16 %v2034
        %v2055 = vunpack.c.l.b16 %v2035
        %v2056 = vpack.c.b16 %v2053, %v2052
        %v2057 = vpack.c.b16 %v2055, %v2054
        %v2061 = vsel %vm700, %v2044, 0
        %v2064 = vsel %vm700, %v2045, 0
        %v2067 = vsel %vm700, %v2046, 0
        %v2070 = vsel %vm700, %v2047, 0
        %2072 = vmatprep.subr.bf16.mxu0 0
        %2073 = vmatpush1.bf16.msra.mxu0 %v2056
        %2074 = vmatprep.subr.bf16.mxu0 0
        %2075 = vmatpush1.bf16.msra.mxu0 %v2057
        %2076 = vmatprep.subr.bf16.mxu0 0
        %2077 = vmatpush1.bf16.msra.mxu0 0
        %2078 = vmatprep.subr.bf16.mxu0 0
        %2079 = vmatpush1.bf16.msra.mxu0 0
        %2080 = vmatprep.subr.bf16.mxu0 0
        %2081 = vmatpush1.bf16.msra.mxu0 0
        %2082 = vmatprep.subr.bf16.mxu0 0
        %2083 = vmatpush1.bf16.msra.mxu0 0
        %2084 = vmatprep.subr.bf16.mxu0 0
        %2085 = vmatpush1.bf16.msra.mxu0 0
        %2086 = vmatprep.subr.bf16.mxu0 0
        %2087 = vmatpush1.bf16.msra.mxu0 0
        %2088 = vmatprep.subr.bf16.mxu0 0
        %2089 = vmatpush1.bf16.msra.mxu0 0
        %2090 = vmatprep.subr.bf16.mxu0 0
        %2091 = vmatpush1.bf16.msra.mxu0 0
        %2092 = vmatprep.subr.bf16.mxu0 0
        %2093 = vmatpush1.bf16.msra.mxu0 0
        %2094 = vmatprep.subr.bf16.mxu0 0
        %2095 = vmatpush1.bf16.msra.mxu0 0
        %2096 = vmatprep.subr.bf16.mxu0 0
        %2097 = vmatpush1.bf16.msra.mxu0 0
        %2098 = vmatprep.subr.bf16.mxu0 0
        %2099 = vmatpush1.bf16.msra.mxu0 0
        %2100 = vmatprep.subr.bf16.mxu0 0
        %2101 = vmatpush1.bf16.msra.mxu0 0
        %2102 = vmatprep.subr.bf16.mxu0 0
        %2103 = vmatpush1.bf16.msra.mxu0 0
        %2104 = vmatprep.mubr.bf16.mxu0 0
        %2105 = vmatmul.mubr.bf16.gmra.mrb[0].mxu0 %v2061
        %v2106 = vpop.f32.mrb[0].mxu0
        %v2107 = vadd.f32 0.0, %v2106
        %v2108 = vpop.f32.mrb[0].mxu0
        %v2109 = vpop.f32.mrb[0].mxu0
        %v2110 = vadd.f32 0.0, %v2109
        %v2111 = vpop.f32.mrb[0].mxu0
        %2112 = vmatprep.mubr.bf16.mxu0 0
        %2113 = vmatmul.mubr.bf16.gmra.mrb[0].mxu0 %v2064
        %v2114 = vpop.f32.mrb[0].mxu0
        %v2115 = vadd.f32 0.0, %v2114
        %v2116 = vpop.f32.mrb[0].mxu0
        %v2117 = vpop.f32.mrb[0].mxu0
        %v2118 = vadd.f32 0.0, %v2117
        %v2119 = vpop.f32.mrb[0].mxu0
        %2120 = vmatprep.mubr.bf16.mxu0 0
        %2121 = vmatmul.mubr.bf16.gmra.mrb[0].mxu0 %v2067
        %v2122 = vpop.f32.mrb[0].mxu0
        %v2123 = vadd.f32 0.0, %v2122
        %v2124 = vpop.f32.mrb[0].mxu0
        %v2125 = vpop.f32.mrb[0].mxu0
        %v2126 = vadd.f32 0.0, %v2125
        %v2127 = vpop.f32.mrb[0].mxu0
        %2128 = vmatprep.mubr.bf16.mxu0 0
        %2129 = vmatmul.mubr.bf16.gmra.mrb[0].mxu0 %v2070
        %v2130 = vpop.f32.mrb[0].mxu0
        %v2131 = vadd.f32 0.0, %v2130
        %v2132 = vpop.f32.mrb[0].mxu0
        %v2133 = vpop.f32.mrb[0].mxu0
        %v2134 = vadd.f32 0.0, %v2133
        %v2135 = vpop.f32.mrb[0].mxu0
        %2136 = vdwg.mxu0
        %v2137 = vadd.f32 %v1967, %v2107
        %v2138 = vadd.f32 %v1968, %v2110
        %v2139 = vadd.f32 %v1969, %v2115
        %v2140 = vadd.f32 %v1970, %v2118
        %v2141 = vadd.f32 %v1971, %v2123
        %v2142 = vadd.f32 %v1972, %v2126
        %v2143 = vadd.f32 %v1973, %v2131
        %v2144 = vadd.f32 %v1974, %v2134
        %2145 = vst.msk [vmem:[%s327] sm:$0xff] %vm700, %v2137
        %2146 = vst.msk [vmem:[%s327 + $0x8] sm:$0xff] %vm700, %v2138
        %2147 = vst.msk [vmem:[%s327 + $0x10] sm:$0xff] %vm700, %v2139
        %2148 = vst.msk [vmem:[%s327 + $0x18] sm:$0xff] %vm700, %v2140
        %2149 = vst.msk [vmem:[%s327 + $0x20] sm:$0xff] %vm700, %v2141
        %2150 = vst.msk [vmem:[%s327 + $0x28] sm:$0xff] %vm700, %v2142
        %2151 = vst.msk [vmem:[%s327 + $0x30] sm:$0xff] %vm700, %v2143
        %2152 = vst.msk [vmem:[%s327 + $0x38] sm:$0xff] %vm700, %v2144
        %v2153 = vsel %vm700, %v2137, 0.0
        %v2154 = vsel %vm700, %v2138, 0.0
        %v2155 = vadd.f32 %v2153, %v2154
        %v2156 = vsel %vm700, %v2139, 0.0
        %v2157 = vadd.f32 %v2155, %v2156
        %v2158 = vsel %vm700, %v2140, 0.0
        %v2159 = vadd.f32 %v2157, %v2158
        %v2160 = vsel %vm700, %v2141, 0.0
        %v2161 = vadd.f32 %v2159, %v2160
        %v2162 = vsel %vm700, %v2142, 0.0
        %v2163 = vadd.f32 %v2161, %v2162
        %v2164 = vsel %vm700, %v2143, 0.0
        %v2165 = vadd.f32 %v2163, %v2164
        %v2166 = vsel %vm700, %v2144, 0.0
        %v2167 = vadd.f32 %v2165, %v2166
        %v2168 = vrot.slane %v2167, 4
        %v2169 = vadd.f32 %v2167, %v2168
        %v2170 = vrot.slane %v2169, 2
        %v2171 = vadd.f32 %v2169, %v2170
        %v2172 = vrot.slane %v2171, 1
        %v2173 = vadd.f32 %v2171, %v2172
        %v2174 = vmul.f32 %v2137, %v2137
        %v2175 = vmul.f32 %v2138, %v2138
        %v2176 = vmul.f32 %v2139, %v2139
        %v2177 = vmul.f32 %v2140, %v2140
        %v2178 = vmul.f32 %v2141, %v2141
        %v2179 = vmul.f32 %v2142, %v2142
        %v2180 = vmul.f32 %v2143, %v2143
        %v2181 = vmul.f32 %v2144, %v2144
        %v2182 = vsel %vm700, %v2174, 0.0
        %v2183 = vsel %vm700, %v2175, 0.0
        %v2184 = vadd.f32 %v2182, %v2183
        %v2185 = vsel %vm700, %v2176, 0.0
        %v2186 = vadd.f32 %v2184, %v2185
        %v2187 = vsel %vm700, %v2177, 0.0
        %v2188 = vadd.f32 %v2186, %v2187
        %v2189 = vsel %vm700, %v2178, 0.0
        %v2190 = vadd.f32 %v2188, %v2189
        %v2191 = vsel %vm700, %v2179, 0.0
        %v2192 = vadd.f32 %v2190, %v2191
        %v2193 = vsel %vm700, %v2180, 0.0
        %v2194 = vadd.f32 %v2192, %v2193
        %v2195 = vsel %vm700, %v2181, 0.0
        %v2196 = vadd.f32 %v2194, %v2195
        %v2197 = vrot.slane %v2196, 4
        %v2198 = vadd.f32 %v2196, %v2197
        %v2199 = vrot.slane %v2198, 2
        %v2200 = vadd.f32 %v2198, %v2199
        %v2201 = vrot.slane %v2200, 1
        %v2202 = vadd.f32 %v2200, %v2201
        %v2203 = vsel %vm431, %v2173, %v2202
        %2204 = vst.msk [vmem:[%s334] sm:$0x3] %vm338, %v2203
        %s2205 = sand.u32 %s147, 1
        %s2206 = scalar_lea.sflag [#allocation5], %s2205
        %s2207 = sand.u32 %s147, 1
        %s2208 = smul.addr %s2207, 64
        %s2209 = scalar_lea.vmem [#allocation12], %s2208
        %s2210 = sand.u32 %s173, 1
        %s2211 = scalar_lea.sflag [#allocation14], %s2210
        %s2212 = sand.u32 %s173, 1
        %s2213 = smul.addr %s2212, 2
        %s2214 = scalar_lea.vmem [#allocation13], %s2213
        // Predicated region
        $region61: #{basic_block_forward.4} parent=39 // pred_check
          %p2215 = pneg %p157
        $region62: #{basic_block_forward.4} parent=39 // pred_check_branch
          %2217 = sbr.rel (%p2215) target = $region64
        $region63: #{basic_block_forward.4} parent=39 // pred_region
          %s2219 = ssub.s32 1024, 1024
          %2220 = vsyncadd %s2206, %s2219
          %s2221 = smul.addr %s29, 8
          %s2222 = smul.addr %s2221, 128
          %s2223 = scalar_lea.hbm %s5, %s2222
          %s2224 = sshll.u32 %s2209, 4
          %s2225 = int_to_ptr.vmem [resolvable:$true] %s2224
          %2230 = dma.vmem_to_hbm [thread:$0]  %s2225, 1024, %s2223, %s2206, 128, 128, 8
        $region64: #{basic_block_forward.4} parent=39 // pred_fallthru
          _
        // Predicated region
        $region65: #{basic_block_forward.4} parent=39 // pred_check
          %p2231 = pneg %p183
        $region66: #{basic_block_forward.4} parent=39 // pred_check_branch
          %2233 = sbr.rel (%p2231) target = $region68
        $region67: #{basic_block_forward.4} parent=39 // pred_region
          %s2235 = ssub.s32 32, 32
          %2236 = vsyncadd %s2211, %s2235
          %s2237 = smul.addr %s29, 32
          %s2238 = scalar_lea.hbm %s6, %s2237
          %s2240 = sshll.u32 %s2214, 4
          %s2241 = int_to_ptr.vmem [resolvable:$true] %s2240
          %2243 = dma.vmem_to_hbm [thread:$0]  %s2241, 32, %s2238, %s2211
        $region68: #{basic_block_forward.4} parent=39 // pred_fallthru
          _
      $region40: #{basic_block_forward.4} parent=5 // pred_fallthru
        _
      %p2244 = scmp.le.s32.totalorder 2, %s24
      // Predicated region
      $region69: #{basic_block_forward.4} parent=5 // pred_check
        %p2245 = pneg %p2244
      $region70: #{basic_block_forward.4} parent=5 // pred_check_branch
        %2247 = sbr.rel (%p2245) target = $region72
      $region71: #{basic_block_forward.4} parent=5 // pred_region
        %s2248 = ssub.s32 %s24, 2
        // Predicated region
        $region73: #{basic_block_forward.4} parent=71 // pred_check
          %p2249 = pneg %p163
        $region74: #{basic_block_forward.4} parent=71 // pred_check_branch
          %2251 = sbr.rel (%p2249) target = $region76
        $region75: #{basic_block_forward.4} parent=71 // pred_region
          %s2252 = sand.u32 %s148, 1
          %s2253 = scalar_lea.sflag [#allocation5], %s2252
          %s2254 = sand.u32 %s148, 1
          %s2255 = smul.addr %s2254, 64
          %s2256 = scalar_lea.vmem [#allocation12], %s2255
          %2257 = dma.done %s2253, 1024
        $region76: #{basic_block_forward.4} parent=71 // pred_fallthru
          _
        // Predicated region
        $region77: #{basic_block_forward.4} parent=71 // pred_check
          %p2258 = pneg %p189
        $region78: #{basic_block_forward.4} parent=71 // pred_check_branch
          %2260 = sbr.rel (%p2258) target = $region80
        $region79: #{basic_block_forward.4} parent=71 // pred_region
          %s2261 = sand.u32 %s174, 1
          %s2262 = scalar_lea.sflag [#allocation14], %s2261
          %s2263 = sand.u32 %s174, 1
          %s2264 = smul.addr %s2263, 2
          %s2265 = scalar_lea.vmem [#allocation13], %s2264
          %2266 = dma.done %s2262, 32
        $region80: #{basic_block_forward.4} parent=71 // pred_fallthru
          _
      $region72: #{basic_block_forward.4} parent=5 // pred_fallthru
        _
    $region6: #{basic_block_forward.4} parent=1 // loop_footer
      %s28 = sadd.s32 1, %s24
    $region7: #{basic_block_forward.4} parent=1 // loop_footer_branch
      %23 = sbr.rel target = $region3
    $region8: #{basic_block_forward.4} parent=1 // loop_exit
      _
    %2267 = vsyncpa [#allocation4], 1
    %s2268 = scalar_lea.sflag [#allocation4], 1
    %2269 = vsyncpa %s2268, 1
    %2270 = vsyncpa [#allocation7], 1
    %2271 = vsyncpa [#allocation10], 1
    %2272 = vsyncpa [#allocation5], 1
    %s2273 = scalar_lea.sflag [#allocation5], 1
    %2274 = vsyncpa %s2273, 1
    %2275 = vsyncpa [#allocation14], 1
    %s2276 = scalar_lea.sflag [#allocation14], 1
    %2277 = vsyncpa %s2276, 1

// kernel: basic_block_forward.5
$region0: #{basic_block_forward.5}
  #allocation0 [shape = 'u32[]', space=smem, size = 0x4, offset = 0x4, fixed_abs, tag = 'smem constant byte address 0x4 - core index']
  #allocation1 [shape = 'u32[144,128]{1,0:T(1,128)}', space=vmem, size = 0x12000, scoped, tag = 'internal scratch']
  #allocation2 [shape = 'f32[2,14,14]{2,1,0:T(8,128)}', space=vmem, size = 0x4000, scoped, tag = 'scratch operand']
  %s0 = inlined_call_operand.hbm [shape: f32[2,8,8,32], index: 0, kind: input, shape index: {}]
  %s1 = inlined_call_operand.hbm [shape: f32[2,2,32], index: 1, kind: input, shape index: {}]
  %s2 = inlined_call_operand.hbm [shape: f32[1,32], index: 2, kind: input, shape index: {}]
  %s3 = inlined_call_operand.hbm [shape: f32[1,32], index: 3, kind: input, shape index: {}]
  %s4 = inlined_call_operand.hbm [shape: f32[32,2], index: 4, kind: input, shape index: {}]
  %s5 = inlined_call_operand.hbm [shape: f32[2,32], index: 5, kind: input, shape index: {}]
  %s6 = inlined_call_operand.hbm [shape: f32[98], index: 6, kind: input, shape index: {}]
  %s7 = inlined_call_operand.hbm [shape: f32[2,8,8,32], index: 7, kind: input, shape index: {}]
  %s8 = inlined_call_operand.hbm [shape: f32[2,8,8,32], index: 8, kind: output, shape index: {}]
  %s9 = sld [smem:[#allocation0]]
  $region97: #{basic_block_forward.5} parent=0
    _
  %s11 = ssub.s32 1, %s9
  %s12 = scalar_select 0, %s11, %s9
  $region1: #{basic_block_forward.5} parent=0
    #allocation3 [shape = 'u8[65536]{0}', space=vmem, size = 0x10000, scoped, tag = 'input window, operand 0']
    #allocation4 [shape = 's32[2]{0}', space=sflag, size = 0x8, scoped, tag = 'scoped memory for basic_block_forward.5']
    #allocation5 [shape = 's32[2]{0}', space=sflag, size = 0x8, scoped, tag = 'scoped memory for basic_block_forward.5']
    #allocation6 [shape = 's32[2]{0}', space=sflag, size = 0x8, scoped, tag = 'scoped memory for basic_block_forward.5']
    #allocation7 [shape = 'u8[2048]{0}', space=vmem, size = 0x800, scoped, tag = 'input window, operand 1, single buffered']
    #allocation8 [shape = 's32[1]{0}', space=sflag, size = 0x4, scoped, tag = 'scoped memory for basic_block_forward.5']
    #allocation9 [shape = 'u8[512]{0}', space=vmem, size = 0x400, scoped, tag = 'input window, operand 2, single buffered']
    #allocation10 [shape = 'u8[512]{0}', space=vmem, size = 0x400, scoped, tag = 'input window, operand 3, single buffered']
    #allocation11 [shape = 's32[1]{0}', space=sflag, size = 0x4, scoped, tag = 'scoped memory for basic_block_forward.5']
    #allocation12 [shape = 'u8[16384]{0}', space=vmem, size = 0x4000, scoped, tag = 'input window, operand 4, single buffered']
    #allocation13 [shape = 'u8[1024]{0}', space=vmem, size = 0x400, scoped, tag = 'input window, operand 5, single buffered']
    #allocation14 [shape = 's32[1]{0}', space=sflag, size = 0x4, scoped, tag = 'scoped memory for basic_block_forward.5']
    #allocation15 [shape = 'u8[512]{0}', space=smem, size = 0x200, scoped, tag = 'input window, operand 6, single buffered']
    #allocation16 [shape = 'u8[65536]{0}', space=vmem, size = 0x10000, scoped, tag = 'input window, operand 7']
    #allocation17 [shape = 'u8[65536]{0}', space=vmem, size = 0x10000, scoped, tag = 'output window, operand 0']
    %13 = vsyncpa [#allocation4], 0
    %s14 = scalar_lea.sflag [#allocation4], 1
    %15 = vsyncpa %s14, 0
    %16 = vsyncpa [#allocation8], 0
    %17 = vsyncpa [#allocation11], 0
    %18 = vsyncpa [#allocation14], 0
    %19 = vsyncpa [#allocation6], 0
    %20 = vsyncpa [#allocation5], 0
    %s21 = scalar_lea.sflag [#allocation5], 1
    %22 = vsyncpa %s21, 0
    loop: start=0, step=1, limit=4
    $region2: #{basic_block_forward.5} parent=1 // loop_pre_header
      _
    $region3: #{basic_block_forward.5} parent=1 // loop_header
      %s24 = sphi 0, %s28
      %p25 = scmp.ge.s32.totalorder %s24, 4
      %s34 = sphi 0, %s36
      %s37 = sphi 0, %s34
      %s38 = sphi 0, %s37
      %s54 = sphi 0, %s38
      %s58 = sphi 0, %s58
      %s60 = sphi 0, %s58
      %s61 = sphi 0, %s60
      %s75 = sphi 0, %s61
      %s79 = sphi 0, %s79
      %s81 = sphi 0, %s79
      %s82 = sphi 0, %s81
      %s96 = sphi 0, %s82
      %s100 = sphi 0, %s100
      %s102 = sphi 0, %s100
      %s103 = sphi 0, %s102
      %s117 = sphi 0, %s103
      %s121 = sphi 0, %s121
      %s123 = sphi 0, %s121
      %s124 = sphi 0, %s123
      %s138 = sphi 0, %s124
      %s142 = sphi 0, %s142
      %s144 = sphi 0, %s142
      %s145 = sphi 0, %s144
      %s159 = sphi 0, %s145
      %s163 = sphi 0, %s163
      %s165 = sphi 0, %s163
      %s166 = sphi 0, %s165
      %s180 = sphi 0, %s166
      %s186 = sphi 0, %s188
      %s189 = sphi 0, %s186
      %s190 = sphi 0, %s189
      %s206 = sphi 0, %s190
      %s212 = sphi 0, %s214
      %s215 = sphi 0, %s212
      %s216 = sphi 0, %s215
      %s232 = sphi 0, %s216
    $region4: #{basic_block_forward.5} parent=1 // loop_header_branch
      %27 = sbr.rel (%p25) target = $region8
    $region5: #{basic_block_forward.5} parent=1 // loop_body
      %s29 = ssub.s32 %s24, 1
      %s30 = ssub.s32 %s24, 2
      %s31 = sadd.s32 %s24, 1
      %s32 = ssub.s32 %s24, %s31
      %p33 = scmp.eq.s32.totalorder %s32, 0
      %s35 = sadd.s32 %s34, 1
      %s36 = scalar_select %p33, %s34, %s35
      %p39 = pneg %p33
      %p40 = scmp.eq.s32.totalorder %s24, 1
      %p41 = por %p39, %p40
      %p42 = scmp.ne.s32.totalorder %s34, %s37
      %p43 = scmp.eq.s32.totalorder %s24, 0
      %p44 = por %p42, %p43
      %p45 = scmp.ne.s32.totalorder %s34, %s37
      %p46 = scmp.eq.s32.totalorder %s29, 1
      %p47 = por %p45, %p46
      %p48 = scmp.ne.s32.totalorder %s37, %s38
      %p49 = scmp.eq.s32.totalorder %s29, 0
      %p50 = por %p48, %p49
      %p51 = scmp.ne.s32.totalorder %s37, %s38
      %p52 = scmp.eq.s32.totalorder %s30, 1
      %p53 = por %p51, %p52
      %p55 = scmp.ne.s32.totalorder %s38, %s54
      %p56 = scmp.eq.s32.totalorder %s30, 0
      %p57 = por %p55, %p56
      %s59 = sadd.s32 %s58, 1
      %p62 = scmp.eq.s32.totalorder %s24, 1
      %p63 = scmp.ne.s32.totalorder %s58, %s60
      %p64 = scmp.eq.s32.totalorder %s24, 0
      %p65 = por %p63, %p64
      %p66 = scmp.ne.s32.totalorder %s58, %s60
      %p67 = scmp.eq.s32.totalorder %s29, 1
      %p68 = por %p66, %p67
      %p69 = scmp.ne.s32.totalorder %s60, %s61
      %p70 = scmp.eq.s32.totalorder %s29, 0
      %p71 = por %p69, %p70
      %p72 = scmp.ne.s32.totalorder %s60, %s61
      %p73 = scmp.eq.s32.totalorder %s30, 1
      %p74 = por %p72, %p73
      %p76 = scmp.ne.s32.totalorder %s61, %s75
      %p77 = scmp.eq.s32.totalorder %s30, 0
      %p78 = por %p76, %p77
      %s80 = sadd.s32 %s79, 1
      %p83 = scmp.eq.s32.totalorder %s24, 1
      %p84 = scmp.ne.s32.totalorder %s79, %s81
      %p85 = scmp.eq.s32.totalorder %s24, 0
      %p86 = por %p84, %p85
      %p87 = scmp.ne.s32.totalorder %s79, %s81
      %p88 = scmp.eq.s32.totalorder %s29, 1
      %p89 = por %p87, %p88
      %p90 = scmp.ne.s32.totalorder %s81, %s82
      %p91 = scmp.eq.s32.totalorder %s29, 0
      %p92 = por %p90, %p91
      %p93 = scmp.ne.s32.totalorder %s81, %s82
      %p94 = scmp.eq.s32.totalorder %s30, 1
      %p95 = por %p93, %p94
      %p97 = scmp.ne.s32.totalorder %s82, %s96
      %p98 = scmp.eq.s32.totalorder %s30, 0
      %p99 = por %p97, %p98
      %s101 = sadd.s32 %s100, 1
      %p104 = scmp.eq.s32.totalorder %s24, 1
      %p105 = scmp.ne.s32.totalorder %s100, %s102
      %p106 = scmp.eq.s32.totalorder %s24, 0
      %p107 = por %p105, %p106
      %p108 = scmp.ne.s32.totalorder %s100, %s102
      %p109 = scmp.eq.s32.totalorder %s29, 1
      %p110 = por %p108, %p109
      %p111 = scmp.ne.s32.totalorder %s102, %s103
      %p112 = scmp.eq.s32.totalorder %s29, 0
      %p113 = por %p111, %p112
      %p114 = scmp.ne.s32.totalorder %s102, %s103
      %p115 = scmp.eq.s32.totalorder %s30, 1
      %p116 = por %p114, %p115
      %p118 = scmp.ne.s32.totalorder %s103, %s117
      %p119 = scmp.eq.s32.totalorder %s30, 0
      %p120 = por %p118, %p119
      %s122 = sadd.s32 %s121, 1
      %p125 = scmp.eq.s32.totalorder %s24, 1
      %p126 = scmp.ne.s32.totalorder %s121, %s123
      %p127 = scmp.eq.s32.totalorder %s24, 0
      %p128 = por %p126, %p127
      %p129 = scmp.ne.s32.totalorder %s121, %s123
      %p130 = scmp.eq.s32.totalorder %s29, 1
      %p131 = por %p129, %p130
      %p132 = scmp.ne.s32.totalorder %s123, %s124
      %p133 = scmp.eq.s32.totalorder %s29, 0
      %p134 = por %p132, %p133
      %p135 = scmp.ne.s32.totalorder %s123, %s124
      %p136 = scmp.eq.s32.totalorder %s30, 1
      %p137 = por %p135, %p136
      %p139 = scmp.ne.s32.totalorder %s124, %s138
      %p140 = scmp.eq.s32.totalorder %s30, 0
      %p141 = por %p139, %p140
      %s143 = sadd.s32 %s142, 1
      %p146 = scmp.eq.s32.totalorder %s24, 1
      %p147 = scmp.ne.s32.totalorder %s142, %s144
      %p148 = scmp.eq.s32.totalorder %s24, 0
      %p149 = por %p147, %p148
      %p150 = scmp.ne.s32.totalorder %s142, %s144
      %p151 = scmp.eq.s32.totalorder %s29, 1
      %p152 = por %p150, %p151
      %p153 = scmp.ne.s32.totalorder %s144, %s145
      %p154 = scmp.eq.s32.totalorder %s29, 0
      %p155 = por %p153, %p154
      %p156 = scmp.ne.s32.totalorder %s144, %s145
      %p157 = scmp.eq.s32.totalorder %s30, 1
      %p158 = por %p156, %p157
      %p160 = scmp.ne.s32.totalorder %s145, %s159
      %p161 = scmp.eq.s32.totalorder %s30, 0
      %p162 = por %p160, %p161
      %s164 = sadd.s32 %s163, 1
      %p167 = scmp.eq.s32.totalorder %s24, 1
      %p168 = scmp.ne.s32.totalorder %s163, %s165
      %p169 = scmp.eq.s32.totalorder %s24, 0
      %p170 = por %p168, %p169
      %p171 = scmp.ne.s32.totalorder %s163, %s165
      %p172 = scmp.eq.s32.totalorder %s29, 1
      %p173 = por %p171, %p172
      %p174 = scmp.ne.s32.totalorder %s165, %s166
      %p175 = scmp.eq.s32.totalorder %s29, 0
      %p176 = por %p174, %p175
      %p177 = scmp.ne.s32.totalorder %s165, %s166
      %p178 = scmp.eq.s32.totalorder %s30, 1
      %p179 = por %p177, %p178
      %p181 = scmp.ne.s32.totalorder %s166, %s180
      %p182 = scmp.eq.s32.totalorder %s30, 0
      %p183 = por %p181, %p182
      %s184 = ssub.s32 %s24, %s31
      %p185 = scmp.eq.s32.totalorder %s184, 0
      %s187 = sadd.s32 %s186, 1
      %s188 = scalar_select %p185, %s186, %s187
      %p191 = pneg %p185
      %p192 = scmp.eq.s32.totalorder %s24, 1
      %p193 = por %p191, %p192
      %p194 = scmp.ne.s32.totalorder %s186, %s189
      %p195 = scmp.eq.s32.totalorder %s24, 0
      %p196 = por %p194, %p195
      %p197 = scmp.ne.s32.totalorder %s186, %s189
      %p198 = scmp.eq.s32.totalorder %s29, 1
      %p199 = por %p197, %p198
      %p200 = scmp.ne.s32.totalorder %s189, %s190
      %p201 = scmp.eq.s32.totalorder %s29, 0
      %p202 = por %p200, %p201
      %p203 = scmp.ne.s32.totalorder %s189, %s190
      %p204 = scmp.eq.s32.totalorder %s30, 1
      %p205 = por %p203, %p204
      %p207 = scmp.ne.s32.totalorder %s190, %s206
      %p208 = scmp.eq.s32.totalorder %s30, 0
      %p209 = por %p207, %p208
      %s210 = ssub.s32 %s24, %s31
      %p211 = scmp.eq.s32.totalorder %s210, 0
      %s213 = sadd.s32 %s212, 1
      %s214 = scalar_select %p211, %s212, %s213
      %p217 = pneg %p211
      %p218 = scmp.eq.s32.totalorder %s24, 1
      %p219 = por %p217, %p218
      %p220 = scmp.ne.s32.totalorder %s212, %s215
      %p221 = scmp.eq.s32.totalorder %s24, 0
      %p222 = por %p220, %p221
      %p223 = scmp.ne.s32.totalorder %s212, %s215
      %p224 = scmp.eq.s32.totalorder %s29, 1
      %p225 = por %p223, %p224
      %p226 = scmp.ne.s32.totalorder %s215, %s216
      %p227 = scmp.eq.s32.totalorder %s29, 0
      %p228 = por %p226, %p227
      %p229 = scmp.ne.s32.totalorder %s215, %s216
      %p230 = scmp.eq.s32.totalorder %s30, 1
      %p231 = por %p229, %p230
      %p233 = scmp.ne.s32.totalorder %s216, %s232
      %p234 = scmp.eq.s32.totalorder %s30, 0
      %p235 = por %p233, %p234
      %p236 = scmp.le.s32.totalorder 1, %s24
      %p237 = scmp.lt.s32.totalorder %s24, 3
      %p238 = pnand %p236, %p237
      %p239 = pneg %p238
      // Predicated region
      $region9: #{basic_block_forward.5} parent=5 // pred_check
        _
      $region10: #{basic_block_forward.5} parent=5 // pred_check_branch
        %241 = sbr.rel (%p238) target = $region12
      $region11: #{basic_block_forward.5} parent=5 // pred_region
        %s242 = ssub.s32 %s24, 1
        // Predicated region
        $region13: #{basic_block_forward.5} parent=11 // pred_check
          %p243 = pneg %p71
        $region14: #{basic_block_forward.5} parent=11 // pred_check_branch
          %245 = sbr.rel (%p243) target = $region16
        $region15: #{basic_block_forward.5} parent=11 // pred_region
          %s247 = ssub.s32 64, 64
          %248 = vsyncadd [#allocation8], %s247
          %s249 = sshll.u32 [#allocation7], 4
          %s250 = int_to_ptr.vmem [resolvable:$true] %s249
          %255 = dma.hbm_to_vmem [thread:$0]  %s1, 64, %s250, [#allocation8], 32, 32, 2
        $region16: #{basic_block_forward.5} parent=11 // pred_fallthru
          _
        // Predicated region
        $region17: #{basic_block_forward.5} parent=11 // pred_check
          %p256 = pneg %p92
        $region18: #{basic_block_forward.5} parent=11 // pred_check_branch
          %258 = sbr.rel (%p256) target = $region20
        $region19: #{basic_block_forward.5} parent=11 // pred_region
          %s260 = ssub.s32 16, 16
          %261 = vsyncadd [#allocation8], %s260
          %s263 = sshll.u32 [#allocation9], 4
          %s264 = int_to_ptr.vmem [resolvable:$true] %s263
          %266 = dma.hbm_to_vmem [thread:$0]  %s2, 16, %s264, [#allocation8]
        $region20: #{basic_block_forward.5} parent=11 // pred_fallthru
          _
        // Predicated region
        $region21: #{basic_block_forward.5} parent=11 // pred_check
          %p267 = pneg %p113
        $region22: #{basic_block_forward.5} parent=11 // pred_check_branch
          %269 = sbr.rel (%p267) target = $region24
        $region23: #{basic_block_forward.5} parent=11 // pred_region
          %s271 = ssub.s32 16, 16
          %272 = vsyncadd [#allocation11], %s271
          %s274 = sshll.u32 [#allocation10], 4
          %s275 = int_to_ptr.vmem [resolvable:$true] %s274
          %277 = dma.hbm_to_vmem [thread:$0]  %s3, 16, %s275, [#allocation11]
        $region24: #{basic_block_forward.5} parent=11 // pred_fallthru
          _
        // Predicated region
        $region25: #{basic_block_forward.5} parent=11 // pred_check
          %p278 = pneg %p134
        $region26: #{basic_block_forward.5} parent=11 // pred_check_branch
          %280 = sbr.rel (%p278) target = $region28
        $region27: #{basic_block_forward.5} parent=11 // pred_region
          %s282 = ssub.s32 512, 512
          %283 = vsyncadd [#allocation11], %s282
          %s284 = sshll.u32 [#allocation12], 4
          %s285 = int_to_ptr.vmem [resolvable:$true] %s284
          %290 = dma.hbm_to_vmem [thread:$0]  %s4, 512, %s285, [#allocation11], 128, 128, 8
        $region28: #{basic_block_forward.5} parent=11 // pred_fallthru
          _
        // Predicated region
        $region29: #{basic_block_forward.5} parent=11 // pred_check
          %p291 = pneg %p155
        $region30: #{basic_block_forward.5} parent=11 // pred_check_branch
          %293 = sbr.rel (%p291) target = $region32
        $region31: #{basic_block_forward.5} parent=11 // pred_region
          %s295 = ssub.s32 32, 32
          %296 = vsyncadd [#allocation14], %s295
          %s298 = sshll.u32 [#allocation13], 4
          %s299 = int_to_ptr.vmem [resolvable:$true] %s298
          %301 = dma.hbm_to_vmem [thread:$0]  %s5, 32, %s299, [#allocation14]
        $region32: #{basic_block_forward.5} parent=11 // pred_fallthru
          _
        // Predicated region
        $region33: #{basic_block_forward.5} parent=11 // pred_check
          %p302 = pneg %p176
        $region34: #{basic_block_forward.5} parent=11 // pred_check_branch
          %304 = sbr.rel (%p302) target = $region36
        $region35: #{basic_block_forward.5} parent=11 // pred_region
          %s306 = ssub.s32 16, 16
          %307 = vsyncadd [#allocation6], %s306
          %310 = dma.hbm_to_smem %s6, 16, [#allocation15], [#allocation6]
        $region36: #{basic_block_forward.5} parent=11 // pred_fallthru
          _
      $region12: #{basic_block_forward.5} parent=5 // pred_fallthru
        _
      %p311 = scmp.lt.s32.totalorder %s24, 2
      // Predicated region
      $region37: #{basic_block_forward.5} parent=5 // pred_check
        %p312 = pneg %p311
      $region38: #{basic_block_forward.5} parent=5 // pred_check_branch
        %314 = sbr.rel (%p312) target = $region40
      $region39: #{basic_block_forward.5} parent=5 // pred_region
        // Predicated region
        $region41: #{basic_block_forward.5} parent=39 // pred_check
          %p315 = pneg %p44
        $region42: #{basic_block_forward.5} parent=39 // pred_check_branch
          %317 = sbr.rel (%p315) target = $region44
        $region43: #{basic_block_forward.5} parent=39 // pred_region
          %s318 = sand.u32 %s24, 1
          %s319 = scalar_lea.sflag [#allocation4], %s318
          %s320 = sand.u32 %s34, 1
          %s321 = smul.addr %s320, 64
          %s322 = scalar_lea.vmem [#allocation3], %s321
          %s324 = ssub.s32 1024, 1024
          %325 = vsyncadd %s319, %s324
          %s326 = smul.addr %s24, 8
          %s327 = smul.addr %s326, 128
          %s328 = scalar_lea.hbm %s0, %s327
          %s329 = sshll.u32 %s322, 4
          %s330 = int_to_ptr.vmem [resolvable:$true] %s329
          %335 = dma.hbm_to_vmem [thread:$0]  %s328, 1024, %s330, %s319, 128, 128, 8
        $region44: #{basic_block_forward.5} parent=39 // pred_fallthru
          _
        // Predicated region
        $region45: #{basic_block_forward.5} parent=39 // pred_check
          %p336 = pneg %p196
        $region46: #{basic_block_forward.5} parent=39 // pred_check_branch
          %338 = sbr.rel (%p336) target = $region48
        $region47: #{basic_block_forward.5} parent=39 // pred_region
          %s339 = sand.u32 %s24, 1
          %s340 = scalar_lea.sflag [#allocation4], %s339
          %s341 = sand.u32 %s186, 1
          %s342 = smul.addr %s341, 64
          %s343 = scalar_lea.vmem [#allocation16], %s342
          %s345 = ssub.s32 1024, 1024
          %346 = vsyncadd %s340, %s345
          %s347 = smul.addr %s24, 8
          %s348 = smul.addr %s347, 128
          %s349 = scalar_lea.hbm %s7, %s348
          %s350 = sshll.u32 %s343, 4
          %s351 = int_to_ptr.vmem [resolvable:$true] %s350
          %356 = dma.hbm_to_vmem [thread:$0]  %s349, 1024, %s351, %s340, 128, 128, 8
        $region48: #{basic_block_forward.5} parent=39 // pred_fallthru
          _
      $region40: #{basic_block_forward.5} parent=5 // pred_fallthru
        _
      %p357 = scmp.le.s32.totalorder 1, %s24
      %p358 = scmp.lt.s32.totalorder %s24, 3
      %p359 = pnand %p357, %p358
      %p360 = pneg %p359
      // Predicated region
      $region49: #{basic_block_forward.5} parent=5 // pred_check
        _
      $region50: #{basic_block_forward.5} parent=5 // pred_check_branch
        %362 = sbr.rel (%p359) target = $region52
      $region51: #{basic_block_forward.5} parent=5 // pred_region
        %s363 = ssub.s32 %s24, 1
        %s364 = sand.u32 %s29, 1
        %s365 = scalar_lea.sflag [#allocation4], %s364
        %s366 = sand.u32 %s37, 1
        %s367 = smul.addr %s366, 64
        %s368 = scalar_lea.vmem [#allocation3], %s367
        // Predicated region
        $region53: #{basic_block_forward.5} parent=51 // pred_check
          %p369 = pneg %p50
        $region54: #{basic_block_forward.5} parent=51 // pred_check_branch
          %371 = sbr.rel (%p369) target = $region56
        $region55: #{basic_block_forward.5} parent=51 // pred_region
          %372 = dma.done %s365, 1024
        $region56: #{basic_block_forward.5} parent=51 // pred_fallthru
          _
        // Predicated region
        $region57: #{basic_block_forward.5} parent=51 // pred_check
          %p373 = pneg %p71
        $region58: #{basic_block_forward.5} parent=51 // pred_check_branch
          %375 = sbr.rel (%p373) target = $region60
        $region59: #{basic_block_forward.5} parent=51 // pred_region
          %376 = dma.done [#allocation8], 64
        $region60: #{basic_block_forward.5} parent=51 // pred_fallthru
          _
        // Predicated region
        $region61: #{basic_block_forward.5} parent=51 // pred_check
          %p377 = pneg %p92
        $region62: #{basic_block_forward.5} parent=51 // pred_check_branch
          %379 = sbr.rel (%p377) target = $region64
        $region63: #{basic_block_forward.5} parent=51 // pred_region
          %380 = dma.done [#allocation8], 16
        $region64: #{basic_block_forward.5} parent=51 // pred_fallthru
          _
        // Predicated region
        $region65: #{basic_block_forward.5} parent=51 // pred_check
          %p381 = pneg %p113
        $region66: #{basic_block_forward.5} parent=51 // pred_check_branch
          %383 = sbr.rel (%p381) target = $region68
        $region67: #{basic_block_forward.5} parent=51 // pred_region
          %384 = dma.done [#allocation11], 16
        $region68: #{basic_block_forward.5} parent=51 // pred_fallthru
          _
        // Predicated region
        $region69: #{basic_block_forward.5} parent=51 // pred_check
          %p385 = pneg %p134
        $region70: #{basic_block_forward.5} parent=51 // pred_check_branch
          %387 = sbr.rel (%p385) target = $region72
        $region71: #{basic_block_forward.5} parent=51 // pred_region
          %388 = dma.done [#allocation11], 512
        $region72: #{basic_block_forward.5} parent=51 // pred_fallthru
          _
        // Predicated region
        $region73: #{basic_block_forward.5} parent=51 // pred_check
          %p389 = pneg %p155
        $region74: #{basic_block_forward.5} parent=51 // pred_check_branch
          %391 = sbr.rel (%p389) target = $region76
        $region75: #{basic_block_forward.5} parent=51 // pred_region
          %392 = dma.done [#allocation14], 32
        $region76: #{basic_block_forward.5} parent=51 // pred_fallthru
          _
        // Predicated region
        $region77: #{basic_block_forward.5} parent=51 // pred_check
          %p393 = pneg %p176
        $region78: #{basic_block_forward.5} parent=51 // pred_check_branch
          %395 = sbr.rel (%p393) target = $region80
        $region79: #{basic_block_forward.5} parent=51 // pred_region
          %396 = dma.done [#allocation6], 16
        $region80: #{basic_block_forward.5} parent=51 // pred_fallthru
          _
        %s397 = sand.u32 %s29, 1
        %s398 = scalar_lea.sflag [#allocation4], %s397
        %s399 = sand.u32 %s189, 1
        %s400 = smul.addr %s399, 64
        %s401 = scalar_lea.vmem [#allocation16], %s400
        // Predicated region
        $region81: #{basic_block_forward.5} parent=51 // pred_check
          %p402 = pneg %p202
        $region82: #{basic_block_forward.5} parent=51 // pred_check_branch
          %404 = sbr.rel (%p402) target = $region84
        $region83: #{basic_block_forward.5} parent=51 // pred_region
          %405 = dma.done %s398, 1024
        $region84: #{basic_block_forward.5} parent=51 // pred_fallthru
          _
        %406 = sfence
        %s407 = sand.u32 %s29, 1
        %s408 = scalar_lea.sflag [#allocation4], %s407
        %s409 = sand.u32 %s37, 1
        %s410 = smul.addr %s409, 64
        %s411 = scalar_lea.vmem [#allocation3], %s410
        %p412 = pneg %p50
        %p413 = pneg %p47
        %p414 = pneg %p71
        %p415 = pneg %p68
        %p416 = pneg %p92
        %p417 = pneg %p89
        %p418 = pneg %p113
        %p419 = pneg %p110
        %p420 = pneg %p134
        %p421 = pneg %p131
        %p422 = pneg %p155
        %p423 = pneg %p152
        %p424 = pneg %p176
        %p425 = pneg %p173
        %s426 = sand.u32 %s29, 1
        %s427 = scalar_lea.sflag [#allocation4], %s426
        %s428 = sand.u32 %s189, 1
        %s429 = smul.addr %s428, 64
        %s430 = scalar_lea.vmem [#allocation16], %s429
        %p431 = pneg %p202
        %p432 = pneg %p199
        %p433 = pneg %p228
        %p434 = pneg %p225
        %s435 = sand.u32 %s215, 1
        %s436 = scalar_lea.sflag [#allocation5], %s435
        %s437 = sand.u32 %s215, 1
        %s438 = smul.addr %s437, 64
        %s439 = scalar_lea.vmem [#allocation17], %s438
        %v440 = vld [vmem:[#allocation7] sm:$0x3]
        %v441 = vld [vmem:[#allocation7 + $0x2] sm:$0x3]
        %vm442 = vcmask 254976
        %v443 = vsel %vm442, %v440, 0.0
        %v444 = vsel %vm442, %v441, 0.0
        %v445 = vadd.f32 %v443, %v444
        %v446 = vmul.f32 %v445, 0.0078125
        %v447 = vmul.f32 %v446, %v446
        %v449 = vrot.slane %v447, 7
        %v451 = vsub.f32 %v446, %v449
        %v452 = vmax.f32 %v451, 0.0
        %v453 = vadd.f32 %v452, 1e-05
        %v454 = vrsqrt.pop %v453
        %v455 = vld [vmem:[#allocation9] sm:$0x1]
        %v457 = vlaneseq
        %v458 = vshrl.u32 %v457, 7
        %v459 = vsub.s32 0, %v458
        %v460 = vrot.slane %v455, %v459
        %v462 = vmul.f32 %v454, %v460
        %v463 = vld [vmem:[#allocation10] sm:$0x1]
        %v465 = vrot.slane %v462, 1
        %v467 = vmul.f32 %v446, %v465
        %v468 = vsub.f32 %v463, %v467
        %v469 = vld [vmem:[%s368] sm:$0xff]
        %v470 = vld [vmem:[%s368 + $0x8] sm:$0xff]
        %v471 = vld [vmem:[%s368 + $0x10] sm:$0xff]
        %v472 = vld [vmem:[%s368 + $0x18] sm:$0xff]
        %v473 = vld [vmem:[%s368 + $0x20] sm:$0xff]
        %v474 = vld [vmem:[%s368 + $0x28] sm:$0xff]
        %v475 = vld [vmem:[%s368 + $0x30] sm:$0xff]
        %v476 = vld [vmem:[%s368 + $0x38] sm:$0xff]
        %v477 = vlaneseq
        %v478 = vshrl.u32 %v477, 7
        %v479 = vsub.s32 1, %v478
        %v480 = vrot.slane %v462, %v479
        %v481 = vmul.f32 %v469, %v480
        %v482 = vmul.f32 %v470, %v480
        %v483 = vmul.f32 %v471, %v480
        %v484 = vmul.f32 %v472, %v480
        %v485 = vmul.f32 %v473, %v480
        %v486 = vmul.f32 %v474, %v480
        %v487 = vmul.f32 %v475, %v480
        %v488 = vmul.f32 %v476, %v480
        %v490 = vlaneseq
        %v491 = vshrl.u32 %v490, 7
        %v492 = vsub.s32 0, %v491
        %v493 = vrot.slane %v468, %v492
        %v495 = vadd.f32 %v481, %v493
        %v496 = vadd.f32 %v482, %v493
        %v497 = vadd.f32 %v483, %v493
        %v498 = vadd.f32 %v484, %v493
        %v499 = vadd.f32 %v485, %v493
        %v500 = vadd.f32 %v486, %v493
        %v501 = vadd.f32 %v487, %v493
        %v502 = vadd.f32 %v488, %v493
        %vm503 = vcmask 261120
        %v504 = vsel %vm503, %v495, 0.0
        %v505 = vsel %vm503, %v496, 0.0
        %v506 = vadd.f32 %v504, %v505
        %v507 = vsel %vm503, %v497, 0.0
        %v508 = vadd.f32 %v506, %v507
        %v509 = vsel %vm503, %v498, 0.0
        %v510 = vadd.f32 %v508, %v509
        %v511 = vsel %vm503, %v499, 0.0
        %v512 = vadd.f32 %v510, %v511
        %v513 = vsel %vm503, %v500, 0.0
        %v514 = vadd.f32 %v512, %v513
        %v515 = vsel %vm503, %v501, 0.0
        %v516 = vadd.f32 %v514, %v515
        %v517 = vsel %vm503, %v502, 0.0
        %v518 = vadd.f32 %v516, %v517
        %v519 = vrot.slane %v518, 4
        %v520 = vadd.f32 %v518, %v519
        %v521 = vrot.slane %v520, 2
        %v522 = vadd.f32 %v520, %v521
        %v523 = vrot.slane %v522, 1
        %v524 = vadd.f32 %v522, %v523
        %v525 = vrcp.pop 64.0
        %v526 = vmul.f32 %v524, %v525
        %v527 = vsel %vm503, %v495, -inf
        %v528 = vsel %vm503, %v496, -inf
        %v529 = vsel %vm503, %v497, -inf
        %v530 = vsel %vm503, %v498, -inf
        %v531 = vsel %vm503, %v499, -inf
        %v532 = vmax.f32 %v527, %v531
        %v533 = vsel %vm503, %v500, -inf
        %v534 = vmax.f32 %v528, %v533
        %v535 = vsel %vm503, %v501, -inf
        %v536 = vmax.f32 %v529, %v535
        %v537 = vsel %vm503, %v502, -inf
        %v538 = vmax.f32 %v530, %v537
        %v539 = vmax.f32 %v532, %v534
        %v540 = vmax.f32 %v536, %v538
        %v541 = vmax.f32 %v539, %v540
        %v542 = vrot.slane %v541, 4
        %v543 = vmax.f32 %v541, %v542
        %v544 = vrot.slane %v543, 2
        %v545 = vmax.f32 %v543, %v544
        %v546 = vrot.slane %v545, 1
        %v547 = vmax.f32 %v545, %v546
        %vm548 = vcmask 1040384
        %v549 = vsel %vm548, %v526, %v547
        %v550 = vld [vmem:[#allocation12] sm:$0xff]
        %v551 = vld [vmem:[#allocation12 + $0x8] sm:$0xff]
        %v552 = vld [vmem:[#allocation12 + $0x10] sm:$0xff]
        %v553 = vld [vmem:[#allocation12 + $0x18] sm:$0xff]
        %v555 = vsel %vm503, %v549, 0
        %557 = vmatprep.subr.mxu0 0.0
        %558 = vmatpush1.msra.mxu0 %v550
        %559 = vmatprep.subr.mxu0 0.0
        %560 = vmatpush1.msra.mxu0 %v551
        %561 = vmatprep.subr.mxu0 0.0
        %562 = vmatpush1.msra.mxu0 %v552
        %563 = vmatprep.subr.mxu0 0.0
        %564 = vmatpush1.msra.mxu0 %v553
        %565 = vmatprep.subr.mxu0 0.0
        %566 = vmatpush1.msra.mxu0 0.0
        %567 = vmatprep.subr.mxu0 0.0
        %568 = vmatpush1.msra.mxu0 0.0
        %569 = vmatprep.subr.mxu0 0.0
        %570 = vmatpush1.msra.mxu0 0.0
        %571 = vmatprep.subr.mxu0 0.0
        %572 = vmatpush1.msra.mxu0 0.0
        %573 = vmatprep.subr.mxu0 0.0
        %574 = vmatpush1.msra.mxu0 0.0
        %575 = vmatprep.subr.mxu0 0.0
        %576 = vmatpush1.msra.mxu0 0.0
        %577 = vmatprep.subr.mxu0 0.0
        %578 = vmatpush1.msra.mxu0 0.0
        %579 = vmatprep.subr.mxu0 0.0
        %580 = vmatpush1.msra.mxu0 0.0
        %581 = vmatprep.subr.mxu0 0.0
        %582 = vmatpush1.msra.mxu0 0.0
        %583 = vmatprep.subr.mxu0 0.0
        %584 = vmatpush1.msra.mxu0 0.0
        %585 = vmatprep.subr.mxu0 0.0
        %586 = vmatpush1.msra.mxu0 0.0
        %587 = vmatprep.subr.mxu0 0.0
        %588 = vmatpush1.msra.mxu0 0.0
        %589 = vmatprep.subr.mxu0 0.0
        %590 = vmatpush1.msra.mxu0 0.0
        %591 = vmatprep.subr.mxu0 0.0
        %592 = vmatpush1.msra.mxu0 0.0
        %593 = vmatprep.subr.mxu0 0.0
        %594 = vmatpush1.msra.mxu0 0.0
        %595 = vmatprep.subr.mxu0 0.0
        %596 = vmatpush1.msra.mxu0 0.0
        %597 = vmatprep.subr.mxu0 0.0
        %598 = vmatpush1.msra.mxu0 0.0
        %599 = vmatprep.subr.mxu0 0.0
        %600 = vmatpush1.msra.mxu0 0.0
        %601 = vmatprep.subr.mxu0 0.0
        %602 = vmatpush1.msra.mxu0 0.0
        %603 = vmatprep.subr.mxu0 0.0
        %604 = vmatpush1.msra.mxu0 0.0
        %605 = vmatprep.subr.mxu0 0.0
        %606 = vmatpush1.msra.mxu0 0.0
        %607 = vmatprep.subr.mxu0 0.0
        %608 = vmatpush1.msra.mxu0 0.0
        %609 = vmatprep.subr.mxu0 0.0
        %610 = vmatpush1.msra.mxu0 0.0
        %611 = vmatprep.subr.mxu0 0.0
        %612 = vmatpush1.msra.mxu0 0.0
        %613 = vmatprep.subr.mxu0 0.0
        %614 = vmatpush1.msra.mxu0 0.0
        %615 = vmatprep.subr.mxu0 0.0
        %616 = vmatpush1.msra.mxu0 0.0
        %617 = vmatprep.subr.mxu0 0.0
        %618 = vmatpush1.msra.mxu0 0.0
        %619 = vmatprep.subr.mxu0 0.0
        %620 = vmatpush1.msra.mxu0 0.0
        %621 = vmatprep.mubr.f32.mxu0 0.0
        %622 = vmatmul.mubr.f32.gmra.mrb[0].mxu0 %v555
        %v623 = vpop.f32.mrb[0].mxu0
        %v624 = vadd.f32 0.0, %v623
        %v625 = vpop.f32.mrb[0].mxu0
        %626 = vdwg.mxu0
        %v627 = vmax.f32 %v624, 0.0
        %v628 = vld [vmem:[#allocation13] sm:$0x3]
        %vm629 = vcmask 15360
        %v631 = vsel %vm629, %v627, 0
        %vm633 = vcmask 1041408
        %v635 = vsel %vm633, %v628, 0
        %637 = vmatprep.subr.mxu0 0.0
        %638 = vmatpush1.msra.mxu0 %v635
        %639 = vmatprep.subr.mxu0 0.0
        %640 = vmatpush1.msra.mxu0 0.0
        %641 = vmatprep.subr.mxu0 0.0
        %642 = vmatpush1.msra.mxu0 0.0
        %643 = vmatprep.subr.mxu0 0.0
        %644 = vmatpush1.msra.mxu0 0.0
        %645 = vmatprep.subr.mxu0 0.0
        %646 = vmatpush1.msra.mxu0 0.0
        %647 = vmatprep.subr.mxu0 0.0
        %648 = vmatpush1.msra.mxu0 0.0
        %649 = vmatprep.subr.mxu0 0.0
        %650 = vmatpush1.msra.mxu0 0.0
        %651 = vmatprep.subr.mxu0 0.0
        %652 = vmatpush1.msra.mxu0 0.0
        %653 = vmatprep.subr.mxu0 0.0
        %654 = vmatpush1.msra.mxu0 0.0
        %655 = vmatprep.subr.mxu0 0.0
        %656 = vmatpush1.msra.mxu0 0.0
        %657 = vmatprep.subr.mxu0 0.0
        %658 = vmatpush1.msra.mxu0 0.0
        %659 = vmatprep.subr.mxu0 0.0
        %660 = vmatpush1.msra.mxu0 0.0
        %661 = vmatprep.subr.mxu0 0.0
        %662 = vmatpush1.msra.mxu0 0.0
        %663 = vmatprep.subr.mxu0 0.0
        %664 = vmatpush1.msra.mxu0 0.0
        %665 = vmatprep.subr.mxu0 0.0
        %666 = vmatpush1.msra.mxu0 0.0
        %667 = vmatprep.subr.mxu0 0.0
        %668 = vmatpush1.msra.mxu0 0.0
        %669 = vmatprep.subr.mxu0 0.0
        %670 = vmatpush1.msra.mxu0 0.0
        %671 = vmatprep.subr.mxu0 0.0
        %672 = vmatpush1.msra.mxu0 0.0
        %673 = vmatprep.subr.mxu0 0.0
        %674 = vmatpush1.msra.mxu0 0.0
        %675 = vmatprep.subr.mxu0 0.0
        %676 = vmatpush1.msra.mxu0 0.0
        %677 = vmatprep.subr.mxu0 0.0
        %678 = vmatpush1.msra.mxu0 0.0
        %679 = vmatprep.subr.mxu0 0.0
        %680 = vmatpush1.msra.mxu0 0.0
        %681 = vmatprep.subr.mxu0 0.0
        %682 = vmatpush1.msra.mxu0 0.0
        %683 = vmatprep.subr.mxu0 0.0
        %684 = vmatpush1.msra.mxu0 0.0
        %685 = vmatprep.subr.mxu0 0.0
        %686 = vmatpush1.msra.mxu0 0.0
        %687 = vmatprep.subr.mxu0 0.0
        %688 = vmatpush1.msra.mxu0 0.0
        %689 = vmatprep.subr.mxu0 0.0
        %690 = vmatpush1.msra.mxu0 0.0
        %691 = vmatprep.subr.mxu0 0.0
        %692 = vmatpush1.msra.mxu0 0.0
        %693 = vmatprep.subr.mxu0 0.0
        %694 = vmatpush1.msra.mxu0 0.0
        %695 = vmatprep.subr.mxu0 0.0
        %696 = vmatpush1.msra.mxu0 0.0
        %697 = vmatprep.subr.mxu0 0.0
        %698 = vmatpush1.msra.mxu0 0.0
        %699 = vmatprep.subr.mxu0 0.0
        %700 = vmatpush1.msra.mxu0 0.0
        %701 = vmatprep.mubr.f32.mxu0 0.0
        %702 = vmatmul.mubr.f32.gmra.mrb[0].mxu0 %v631
        %v703 = vpop.f32.mrb[0].mxu0
        %v704 = vadd.f32 0.0, %v703
        %v705 = vpop.f32.mrb[0].mxu0
        %706 = vdwg.mxu0
        %v708 = vrot.slane %v704, 1
        %v710 = vadd.f32 %v704, %v708
        %v711 = vxor.u32 %v710, 2147483648
        %v712 = vmul.f32 %v711, 1.442695
        %v713 = vpow.pop %v712
        %v714 = vadd.f32 %v713, 1.0
        %v715 = vrcp.pop %v714
        %v716 = vmul.f32 1.0, %v715
        %v717 = vlaneseq
        %v718 = vshrl.u32 %v717, 7
        %v719 = vsub.s32 0, %v718
        %v720 = vrot.slane %v716, %v719
        %v721 = vmul.f32 %v495, %v720
        %v722 = vmul.f32 %v496, %v720
        %v723 = vmul.f32 %v497, %v720
        %v724 = vmul.f32 %v498, %v720
        %v725 = vmul.f32 %v499, %v720
        %v726 = vmul.f32 %v500, %v720
        %v727 = vmul.f32 %v501, %v720
        %v728 = vmul.f32 %v502, %v720
        %v729 = vsel %vm503, %v721, 0.0
        %730 = vadd.xlane.f32.xlu0 %v729
        %v731 = vpop.xlane.xlu0 %730
        %v732 = vsel %vm503, %v722, 0.0
        %733 = vadd.xlane.f32.xlu0 %v732
        %v734 = vpop.xlane.xlu0 %733
        %v735 = vsel %vm503, %v723, 0.0
        %736 = vadd.xlane.f32.xlu0 %v735
        %v737 = vpop.xlane.xlu0 %736
        %v738 = vsel %vm503, %v724, 0.0
        %739 = vadd.xlane.f32.xlu0 %v738
        %v740 = vpop.xlane.xlu0 %739
        %v741 = vsel %vm503, %v725, 0.0
        %742 = vadd.xlane.f32.xlu0 %v741
        %v743 = vpop.xlane.xlu0 %742
        %v744 = vsel %vm503, %v726, 0.0
        %745 = vadd.xlane.f32.xlu0 %v744
        %v746 = vpop.xlane.xlu0 %745
        %v747 = vsel %vm503, %v727, 0.0
        %748 = vadd.xlane.f32.xlu0 %v747
        %v749 = vpop.xlane.xlu0 %748
        %v750 = vsel %vm503, %v728, 0.0
        %751 = vadd.xlane.f32.xlu0 %v750
        %v752 = vpop.xlane.xlu0 %751
        %v753 = vrcp.pop 32.0
        %v754 = vmul.f32 %v731, %v753
        %v755 = vmul.f32 %v734, %v753
        %v756 = vmul.f32 %v737, %v753
        %v757 = vmul.f32 %v740, %v753
        %v758 = vmul.f32 %v743, %v753
        %v759 = vmul.f32 %v746, %v753
        %v760 = vmul.f32 %v749, %v753
        %v761 = vmul.f32 %v752, %v753
        %v762 = vsel %vm503, %v721, -inf
        %763 = vmax.xlane.f32.xlu0 %v762
        %v764 = vpop.xlane.xlu0 %763
        %v765 = vsel %vm503, %v722, -inf
        %766 = vmax.xlane.f32.xlu0 %v765
        %v767 = vpop.xlane.xlu0 %766
        %v768 = vsel %vm503, %v723, -inf
        %769 = vmax.xlane.f32.xlu0 %v768
        %v770 = vpop.xlane.xlu0 %769
        %v771 = vsel %vm503, %v724, -inf
        %772 = vmax.xlane.f32.xlu0 %v771
        %v773 = vpop.xlane.xlu0 %772
        %v774 = vsel %vm503, %v725, -inf
        %775 = vmax.xlane.f32.xlu0 %v774
        %v776 = vpop.xlane.xlu0 %775
        %v777 = vsel %vm503, %v726, -inf
        %778 = vmax.xlane.f32.xlu0 %v777
        %v779 = vpop.xlane.xlu0 %778
        %v780 = vsel %vm503, %v727, -inf
        %781 = vmax.xlane.f32.xlu0 %v780
        %v782 = vpop.xlane.xlu0 %781
        %v783 = vsel %vm503, %v728, -inf
        %784 = vmax.xlane.f32.xlu0 %v783
        %v785 = vpop.xlane.xlu0 %784
        %802 = vset.pattern.permute.xlu0 0
        %803 = vperm.xlu0 %802, %v754
        %v804 = vpop.permute.xlu0 %803
        %805 = vset.pattern.permute.xlu0 0
        %806 = vperm.xlu0 %805, %v755
        %v807 = vpop.permute.xlu0 %806
        %808 = vset.pattern.permute.xlu0 0
        %809 = vperm.xlu0 %808, %v756
        %v810 = vpop.permute.xlu0 %809
        %811 = vset.pattern.permute.xlu0 0
        %812 = vperm.xlu0 %811, %v757
        %v813 = vpop.permute.xlu0 %812
        %814 = vset.pattern.permute.xlu0 0
        %815 = vperm.xlu0 %814, %v758
        %v816 = vpop.permute.xlu0 %815
        %817 = vset.pattern.permute.xlu0 0
        %818 = vperm.xlu0 %817, %v759
        %v819 = vpop.permute.xlu0 %818
        %820 = vset.pattern.permute.xlu0 0
        %821 = vperm.xlu0 %820, %v760
        %v822 = vpop.permute.xlu0 %821
        %823 = vset.pattern.permute.xlu0 0
        %824 = vperm.xlu0 %823, %v761
        %v825 = vpop.permute.xlu0 %824
        %826 = vset.pattern.permute.xlu0 0
        %827 = vperm.xlu0 %826, %v764
        %v828 = vpop.permute.xlu0 %827
        %829 = vset.pattern.permute.xlu0 0
        %830 = vperm.xlu0 %829, %v767
        %v831 = vpop.permute.xlu0 %830
        %832 = vset.pattern.permute.xlu0 0
        %833 = vperm.xlu0 %832, %v770
        %v834 = vpop.permute.xlu0 %833
        %835 = vset.pattern.permute.xlu0 0
        %836 = vperm.xlu0 %835, %v773
        %v837 = vpop.permute.xlu0 %836
        %838 = vset.pattern.permute.xlu0 0
        %839 = vperm.xlu0 %838, %v776
        %v840 = vpop.permute.xlu0 %839
        %841 = vset.pattern.permute.xlu0 0
        %842 = vperm.xlu0 %841, %v779
        %v843 = vpop.permute.xlu0 %842
        %844 = vset.pattern.permute.xlu0 0
        %845 = vperm.xlu0 %844, %v782
        %v846 = vpop.permute.xlu0 %845
        %847 = vset.pattern.permute.xlu0 0
        %848 = vperm.xlu0 %847, %v785
        %v849 = vpop.permute.xlu0 %848
        %v850 = vlaneseq
        %v851 = vand.u32 %v850, 127
        %v852 = vadd.s32 %v851, 4294967293
        %v853 = vlaneseq
        %v854 = vshrl.u32 %v853, 7
        %v855 = vsub.s32 %v852, %v854
        %v856 = vrot.slane %v804, %v855
        %v857 = vlaneseq
        %v858 = vshrl.u32 %v857, 7
        %v859 = vsub.s32 %v852, %v858
        %v860 = vrot.slane %v807, %v859
        %v861 = vlaneseq
        %v862 = vshrl.u32 %v861, 7
        %v863 = vsub.s32 %v852, %v862
        %v864 = vrot.slane %v810, %v863
        %v865 = vlaneseq
        %v866 = vshrl.u32 %v865, 7
        %v867 = vsub.s32 %v852, %v866
        %v868 = vrot.slane %v813, %v867
        %v869 = vlaneseq
        %v870 = vshrl.u32 %v869, 7
        %v871 = vsub.s32 %v852, %v870
        %v872 = vrot.slane %v816, %v871
        %v873 = vlaneseq
        %v874 = vshrl.u32 %v873, 7
        %v875 = vsub.s32 %v852, %v874
        %v876 = vrot.slane %v819, %v875
        %v877 = vlaneseq
        %v878 = vshrl.u32 %v877, 7
        %v879 = vsub.s32 %v852, %v878
        %v880 = vrot.slane %v822, %v879
        %v881 = vlaneseq
        %v882 = vshrl.u32 %v881, 7
        %v883 = vsub.s32 %v852, %v882
        %v884 = vrot.slane %v825, %v883
        %v885 = vlaneseq
        %v886 = vshrl.u32 %v885, 7
        %v887 = vsub.s32 %v852, %v886
        %v888 = vrot.slane %v828, %v887
        %v889 = vlaneseq
        %v890 = vshrl.u32 %v889, 7
        %v891 = vsub.s32 %v852, %v890
        %v892 = vrot.slane %v831, %v891
        %v893 = vlaneseq
        %v894 = vshrl.u32 %v893, 7
        %v895 = vsub.s32 %v852, %v894
        %v896 = vrot.slane %v834, %v895
        %v897 = vlaneseq
        %v898 = vshrl.u32 %v897, 7
        %v899 = vsub.s32 %v852, %v898
        %v900 = vrot.slane %v837, %v899
        %v901 = vlaneseq
        %v902 = vshrl.u32 %v901, 7
        %v903 = vsub.s32 %v852, %v902
        %v904 = vrot.slane %v840, %v903
        %v905 = vlaneseq
        %v906 = vshrl.u32 %v905, 7
        %v907 = vsub.s32 %v852, %v906
        %v908 = vrot.slane %v843, %v907
        %v909 = vlaneseq
        %v910 = vshrl.u32 %v909, 7
        %v911 = vsub.s32 %v852, %v910
        %v912 = vrot.slane %v846, %v911
        %v913 = vlaneseq
        %v914 = vshrl.u32 %v913, 7
        %v915 = vsub.s32 %v852, %v914
        %v916 = vrot.slane %v849, %v915
        %vm917 = vcmask 1041409
        %v918 = vsel %vm917, %v860, %v856
        %vm919 = vcmask 1042434
        %v920 = vsel %vm919, %v864, %v918
        %vm921 = vcmask 1043459
        %v922 = vsel %vm921, %v868, %v920
        %vm923 = vcmask 1044484
        %v924 = vsel %vm923, %v872, %v922
        %vm925 = vcmask 1045509
        %v926 = vsel %vm925, %v876, %v924
        %vm927 = vcmask 1046534
        %v928 = vsel %vm927, %v880, %v926
        %vm929 = vcmask 1047559
        %v930 = vsel %vm929, %v884, %v928
        %v931 = vsel %vm917, %v892, %v888
        %v932 = vsel %vm919, %v896, %v931
        %v933 = vsel %vm921, %v900, %v932
        %v934 = vsel %vm923, %v904, %v933
        %v935 = vsel %vm925, %v908, %v934
        %v936 = vsel %vm927, %v912, %v935
        %v937 = vsel %vm929, %v916, %v936
        %vm940 = vcmask 23552
        %v941 = vsel %vm940, 0.0, %v930
        %v942 = vsel %vm940, 0.0, %v937
        %vm943 = vcmask 89088
        %v944 = vsel %vm943, %v941, 0.0
        %v945 = vsel %vm943, %v942, 0.0
        %vm946 = vcmask 113664
        %947 = vst.msk [vmem:[#allocation2 + $0x3] sm:$0xff] %vm946, %v944
        %948 = vst.msk [vmem:[#allocation2 + $0x13] sm:$0xff] %vm946, %v945
        %vm949 = vcmask 108544
        %950 = vst.msk [vmem:[#allocation2] sm:$0x7] %vm949, 0.0
        %951 = vst.msk [vmem:[#allocation2 + $0x10] sm:$0x7] %vm949, 0.0
        %952 = vst.msk [vmem:[#allocation2 + $0xb] sm:$0x7] %vm949, 0.0
        %953 = vst.msk [vmem:[#allocation2 + $0x1b] sm:$0x7] %vm949, 0.0
        %s954 = sld [smem:[#allocation15]]
        %s955 = sld [smem:[#allocation15 + $0x1]]
        %v956 = vld [vmem:[#allocation2] sm:$0xff]
        %v957 = vstv %s954
        %v958 = vmul.f32 %v957, %v956
        %v959 = vadd.f32 %v958, 0.0
        %s960 = scalar_lea.vmem [#allocation2], 16
        %v961 = vld [vmem:[%s960] sm:$0xff]
        %v962 = vstv %s955
        %v963 = vmul.f32 %v962, %v961
        %v964 = vadd.f32 %v959, %v963
        %s965 = sld [smem:[#allocation15 + $0x2]]
        %s966 = sld [smem:[#allocation15 + $0x3]]
        %v967 = vstv %s965
        %v968 = vmul.f32 %v967, %v956
        %970 = vrot.lane.b32.xlu0 %v968, 127
        %v971 = vpop.permute.xlu0 %970
        %v973 = vadd.f32 %v964, %v971
        %v974 = vstv %s966
        %v975 = vmul.f32 %v974, %v961
        %977 = vrot.lane.b32.xlu0 %v975, 127
        %v978 = vpop.permute.xlu0 %977
        %v980 = vadd.f32 %v973, %v978
        %s981 = sld [smem:[#allocation15 + $0x4]]
        %s982 = sld [smem:[#allocation15 + $0x5]]
        %v983 = vstv %s981
        %v984 = vmul.f32 %v983, %v956
        %986 = vrot.lane.b32.xlu0 %v984, 126
        %v987 = vpop.permute.xlu0 %986
        %v989 = vadd.f32 %v980, %v987
        %v990 = vstv %s982
        %v991 = vmul.f32 %v990, %v961
        %993 = vrot.lane.b32.xlu0 %v991, 126
        %v994 = vpop.permute.xlu0 %993
        %v996 = vadd.f32 %v989, %v994
        %s997 = sld [smem:[#allocation15 + $0x6]]
        %s998 = sld [smem:[#allocation15 + $0x7]]
        %v999 = vstv %s997
        %v1000 = vmul.f32 %v999, %v956
        %1002 = vrot.lane.b32.xlu0 %v1000, 125
        %v1003 = vpop.permute.xlu0 %1002
        %v1005 = vadd.f32 %v996, %v1003
        %v1006 = vstv %s998
        %v1007 = vmul.f32 %v1006, %v961
        %1009 = vrot.lane.b32.xlu0 %v1007, 125
        %v1010 = vpop.permute.xlu0 %1009
        %v1012 = vadd.f32 %v1005, %v1010
        %s1013 = sld [smem:[#allocation15 + $0x8]]
        %s1014 = sld [smem:[#allocation15 + $0x9]]
        %v1015 = vstv %s1013
        %v1016 = vmul.f32 %v1015, %v956
        %1018 = vrot.lane.b32.xlu0 %v1016, 124
        %v1019 = vpop.permute.xlu0 %1018
        %v1021 = vadd.f32 %v1012, %v1019
        %v1022 = vstv %s1014
        %v1023 = vmul.f32 %v1022, %v961
        %1025 = vrot.lane.b32.xlu0 %v1023, 124
        %v1026 = vpop.permute.xlu0 %1025
        %v1028 = vadd.f32 %v1021, %v1026
        %s1029 = sld [smem:[#allocation15 + $0xa]]
        %s1030 = sld [smem:[#allocation15 + $0xb]]
        %v1031 = vstv %s1029
        %v1032 = vmul.f32 %v1031, %v956
        %1034 = vrot.lane.b32.xlu0 %v1032, 123
        %v1035 = vpop.permute.xlu0 %1034
        %v1037 = vadd.f32 %v1028, %v1035
        %v1038 = vstv %s1030
        %v1039 = vmul.f32 %v1038, %v961
        %1041 = vrot.lane.b32.xlu0 %v1039, 123
        %v1042 = vpop.permute.xlu0 %1041
        %v1044 = vadd.f32 %v1037, %v1042
        %s1045 = sld [smem:[#allocation15 + $0xc]]
        %s1046 = sld [smem:[#allocation15 + $0xd]]
        %v1047 = vstv %s1045
        %v1048 = vmul.f32 %v1047, %v956
        %1050 = vrot.lane.b32.xlu0 %v1048, 122
        %v1051 = vpop.permute.xlu0 %1050
        %v1053 = vadd.f32 %v1044, %v1051
        %v1054 = vstv %s1046
        %v1055 = vmul.f32 %v1054, %v961
        %1057 = vrot.lane.b32.xlu0 %v1055, 122
        %v1058 = vpop.permute.xlu0 %1057
        %v1060 = vadd.f32 %v1053, %v1058
        %s1061 = sld [smem:[#allocation15 + $0xe]]
        %s1062 = sld [smem:[#allocation15 + $0xf]]
        %v1063 = vld [vmem:[#allocation2 + $0x1] sm:$0xff]
        %v1064 = vstv %s1061
        %v1065 = vmul.f32 %v1064, %v1063
        %v1066 = vadd.f32 %v1060, %v1065
        %v1067 = vld [vmem:[%s960 + $0x1] sm:$0xff]
        %v1068 = vstv %s1062
        %v1069 = vmul.f32 %v1068, %v1067
        %v1070 = vadd.f32 %v1066, %v1069
        %s1071 = sld [smem:[#allocation15 + $0x10]]
        %s1072 = sld [smem:[#allocation15 + $0x11]]
        %v1073 = vstv %s1071
        %v1074 = vmul.f32 %v1073, %v1063
        %1076 = vrot.lane.b32.xlu0 %v1074, 127
        %v1077 = vpop.permute.xlu0 %1076
        %v1079 = vadd.f32 %v1070, %v1077
        %v1080 = vstv %s1072
        %v1081 = vmul.f32 %v1080, %v1067
        %1083 = vrot.lane.b32.xlu0 %v1081, 127
        %v1084 = vpop.permute.xlu0 %1083
        %v1086 = vadd.f32 %v1079, %v1084
        %s1087 = sld [smem:[#allocation15 + $0x12]]
        %s1088 = sld [smem:[#allocation15 + $0x13]]
        %v1089 = vstv %s1087
        %v1090 = vmul.f32 %v1089, %v1063
        %1092 = vrot.lane.b32.xlu0 %v1090, 126
        %v1093 = vpop.permute.xlu0 %1092
        %v1095 = vadd.f32 %v1086, %v1093
        %v1096 = vstv %s1088
        %v1097 = vmul.f32 %v1096, %v1067
        %1099 = vrot.lane.b32.xlu0 %v1097, 126
        %v1100 = vpop.permute.xlu0 %1099
        %v1102 = vadd.f32 %v1095, %v1100
        %s1103 = sld [smem:[#allocation15 + $0x14]]
        %s1104 = sld [smem:[#allocation15 + $0x15]]
        %v1105 = vstv %s1103
        %v1106 = vmul.f32 %v1105, %v1063
        %1108 = vrot.lane.b32.xlu0 %v1106, 125
        %v1109 = vpop.permute.xlu0 %1108
        %v1111 = vadd.f32 %v1102, %v1109
        %v1112 = vstv %s1104
        %v1113 = vmul.f32 %v1112, %v1067
        %1115 = vrot.lane.b32.xlu0 %v1113, 125
        %v1116 = vpop.permute.xlu0 %1115
        %v1118 = vadd.f32 %v1111, %v1116
        %s1119 = sld [smem:[#allocation15 + $0x16]]
        %s1120 = sld [smem:[#allocation15 + $0x17]]
        %v1121 = vstv %s1119
        %v1122 = vmul.f32 %v1121, %v1063
        %1124 = vrot.lane.b32.xlu0 %v1122, 124
        %v1125 = vpop.permute.xlu0 %1124
        %v1127 = vadd.f32 %v1118, %v1125
        %v1128 = vstv %s1120
        %v1129 = vmul.f32 %v1128, %v1067
        %1131 = vrot.lane.b32.xlu0 %v1129, 124
        %v1132 = vpop.permute.xlu0 %1131
        %v1134 = vadd.f32 %v1127, %v1132
        %s1135 = sld [smem:[#allocation15 + $0x18]]
        %s1136 = sld [smem:[#allocation15 + $0x19]]
        %v1137 = vstv %s1135
        %v1138 = vmul.f32 %v1137, %v1063
        %1140 = vrot.lane.b32.xlu0 %v1138, 123
        %v1141 = vpop.permute.xlu0 %1140
        %v1143 = vadd.f32 %v1134, %v1141
        %v1144 = vstv %s1136
        %v1145 = vmul.f32 %v1144, %v1067
        %1147 = vrot.lane.b32.xlu0 %v1145, 123
        %v1148 = vpop.permute.xlu0 %1147
        %v1150 = vadd.f32 %v1143, %v1148
        %s1151 = sld [smem:[#allocation15 + $0x1a]]
        %s1152 = sld [smem:[#allocation15 + $0x1b]]
        %v1153 = vstv %s1151
        %v1154 = vmul.f32 %v1153, %v1063
        %1156 = vrot.lane.b32.xlu0 %v1154, 122
        %v1157 = vpop.permute.xlu0 %1156
        %v1159 = vadd.f32 %v1150, %v1157
        %v1160 = vstv %s1152
        %v1161 = vmul.f32 %v1160, %v1067
        %1163 = vrot.lane.b32.xlu0 %v1161, 122
        %v1164 = vpop.permute.xlu0 %1163
        %v1166 = vadd.f32 %v1159, %v1164
        %s1167 = sld [smem:[#allocation15 + $0x1c]]
        %s1168 = sld [smem:[#allocation15 + $0x1d]]
        %v1169 = vld [vmem:[#allocation2 + $0x2] sm:$0xff]
        %v1170 = vstv %s1167
        %v1171 = vmul.f32 %v1170, %v1169
        %v1172 = vadd.f32 %v1166, %v1171
        %v1173 = vld [vmem:[%s960 + $0x2] sm:$0xff]
        %v1174 = vstv %s1168
        %v1175 = vmul.f32 %v1174, %v1173
        %v1176 = vadd.f32 %v1172, %v1175
        %s1177 = sld [smem:[#allocation15 + $0x1e]]
        %s1178 = sld [smem:[#allocation15 + $0x1f]]
        %v1179 = vstv %s1177
        %v1180 = vmul.f32 %v1179, %v1169
        %1182 = vrot.lane.b32.xlu0 %v1180, 127
        %v1183 = vpop.permute.xlu0 %1182
        %v1185 = vadd.f32 %v1176, %v1183
        %v1186 = vstv %s1178
        %v1187 = vmul.f32 %v1186, %v1173
        %1189 = vrot.lane.b32.xlu0 %v1187, 127
        %v1190 = vpop.permute.xlu0 %1189
        %v1192 = vadd.f32 %v1185, %v1190
        %s1193 = sld [smem:[#allocation15 + $0x20]]
        %s1194 = sld [smem:[#allocation15 + $0x21]]
        %v1195 = vstv %s1193
        %v1196 = vmul.f32 %v1195, %v1169
        %1198 = vrot.lane.b32.xlu0 %v1196, 126
        %v1199 = vpop.permute.xlu0 %1198
        %v1201 = vadd.f32 %v1192, %v1199
        %v1202 = vstv %s1194
        %v1203 = vmul.f32 %v1202, %v1173
        %1205 = vrot.lane.b32.xlu0 %v1203, 126
        %v1206 = vpop.permute.xlu0 %1205
        %v1208 = vadd.f32 %v1201, %v1206
        %s1209 = sld [smem:[#allocation15 + $0x22]]
        %s1210 = sld [smem:[#allocation15 + $0x23]]
        %v1211 = vstv %s1209
        %v1212 = vmul.f32 %v1211, %v1169
        %1214 = vrot.lane.b32.xlu0 %v1212, 125
        %v1215 = vpop.permute.xlu0 %1214
        %v1217 = vadd.f32 %v1208, %v1215
        %v1218 = vstv %s1210
        %v1219 = vmul.f32 %v1218, %v1173
        %1221 = vrot.lane.b32.xlu0 %v1219, 125
        %v1222 = vpop.permute.xlu0 %1221
        %v1224 = vadd.f32 %v1217, %v1222
        %s1225 = sld [smem:[#allocation15 + $0x24]]
        %s1226 = sld [smem:[#allocation15 + $0x25]]
        %v1227 = vstv %s1225
        %v1228 = vmul.f32 %v1227, %v1169
        %1230 = vrot.lane.b32.xlu0 %v1228, 124
        %v1231 = vpop.permute.xlu0 %1230
        %v1233 = vadd.f32 %v1224, %v1231
        %v1234 = vstv %s1226
        %v1235 = vmul.f32 %v1234, %v1173
        %1237 = vrot.lane.b32.xlu0 %v1235, 124
        %v1238 = vpop.permute.xlu0 %1237
        %v1240 = vadd.f32 %v1233, %v1238
        %s1241 = sld [smem:[#allocation15 + $0x26]]
        %s1242 = sld [smem:[#allocation15 + $0x27]]
        %v1243 = vstv %s1241
        %v1244 = vmul.f32 %v1243, %v1169
        %1246 = vrot.lane.b32.xlu0 %v1244, 123
        %v1247 = vpop.permute.xlu0 %1246
        %v1249 = vadd.f32 %v1240, %v1247
        %v1250 = vstv %s1242
        %v1251 = vmul.f32 %v1250, %v1173
        %1253 = vrot.lane.b32.xlu0 %v1251, 123
        %v1254 = vpop.permute.xlu0 %1253
        %v1256 = vadd.f32 %v1249, %v1254
        %s1257 = sld [smem:[#allocation15 + $0x28]]
        %s1258 = sld [smem:[#allocation15 + $0x29]]
        %v1259 = vstv %s1257
        %v1260 = vmul.f32 %v1259, %v1169
        %1262 = vrot.lane.b32.xlu0 %v1260, 122
        %v1263 = vpop.permute.xlu0 %1262
        %v1265 = vadd.f32 %v1256, %v1263
        %v1266 = vstv %s1258
        %v1267 = vmul.f32 %v1266, %v1173
        %1269 = vrot.lane.b32.xlu0 %v1267, 122
        %v1270 = vpop.permute.xlu0 %1269
        %v1272 = vadd.f32 %v1265, %v1270
        %s1273 = sld [smem:[#allocation15 + $0x2a]]
        %s1274 = sld [smem:[#allocation15 + $0x2b]]
        %v1275 = vld [vmem:[#allocation2 + $0x3] sm:$0xff]
        %v1276 = vstv %s1273
        %v1277 = vmul.f32 %v1276, %v1275
        %v1278 = vadd.f32 %v1272, %v1277
        %v1279 = vld [vmem:[%s960 + $0x3] sm:$0xff]
        %v1280 = vstv %s1274
        %v1281 = vmul.f32 %v1280, %v1279
        %v1282 = vadd.f32 %v1278, %v1281
        %s1283 = sld [smem:[#allocation15 + $0x2c]]
        %s1284 = sld [smem:[#allocation15 + $0x2d]]
        %v1285 = vstv %s1283
        %v1286 = vmul.f32 %v1285, %v1275
        %1288 = vrot.lane.b32.xlu0 %v1286, 127
        %v1289 = vpop.permute.xlu0 %1288
        %v1291 = vadd.f32 %v1282, %v1289
        %v1292 = vstv %s1284
        %v1293 = vmul.f32 %v1292, %v1279
        %1295 = vrot.lane.b32.xlu0 %v1293, 127
        %v1296 = vpop.permute.xlu0 %1295
        %v1298 = vadd.f32 %v1291, %v1296
        %s1299 = sld [smem:[#allocation15 + $0x2e]]
        %s1300 = sld [smem:[#allocation15 + $0x2f]]
        %v1301 = vstv %s1299
        %v1302 = vmul.f32 %v1301, %v1275
        %1304 = vrot.lane.b32.xlu0 %v1302, 126
        %v1305 = vpop.permute.xlu0 %1304
        %v1307 = vadd.f32 %v1298, %v1305
        %v1308 = vstv %s1300
        %v1309 = vmul.f32 %v1308, %v1279
        %1311 = vrot.lane.b32.xlu0 %v1309, 126
        %v1312 = vpop.permute.xlu0 %1311
        %v1314 = vadd.f32 %v1307, %v1312
        %s1315 = sld [smem:[#allocation15 + $0x30]]
        %s1316 = sld [smem:[#allocation15 + $0x31]]
        %v1317 = vstv %s1315
        %v1318 = vmul.f32 %v1317, %v1275
        %1320 = vrot.lane.b32.xlu0 %v1318, 125
        %v1321 = vpop.permute.xlu0 %1320
        %v1323 = vadd.f32 %v1314, %v1321
        %v1324 = vstv %s1316
        %v1325 = vmul.f32 %v1324, %v1279
        %1327 = vrot.lane.b32.xlu0 %v1325, 125
        %v1328 = vpop.permute.xlu0 %1327
        %v1330 = vadd.f32 %v1323, %v1328
        %s1331 = sld [smem:[#allocation15 + $0x32]]
        %s1332 = sld [smem:[#allocation15 + $0x33]]
        %v1333 = vstv %s1331
        %v1334 = vmul.f32 %v1333, %v1275
        %1336 = vrot.lane.b32.xlu0 %v1334, 124
        %v1337 = vpop.permute.xlu0 %1336
        %v1339 = vadd.f32 %v1330, %v1337
        %v1340 = vstv %s1332
        %v1341 = vmul.f32 %v1340, %v1279
        %1343 = vrot.lane.b32.xlu0 %v1341, 124
        %v1344 = vpop.permute.xlu0 %1343
        %v1346 = vadd.f32 %v1339, %v1344
        %s1347 = sld [smem:[#allocation15 + $0x34]]
        %s1348 = sld [smem:[#allocation15 + $0x35]]
        %v1349 = vstv %s1347
        %v1350 = vmul.f32 %v1349, %v1275
        %1352 = vrot.lane.b32.xlu0 %v1350, 123
        %v1353 = vpop.permute.xlu0 %1352
        %v1355 = vadd.f32 %v1346, %v1353
        %v1356 = vstv %s1348
        %v1357 = vmul.f32 %v1356, %v1279
        %1359 = vrot.lane.b32.xlu0 %v1357, 123
        %v1360 = vpop.permute.xlu0 %1359
        %v1362 = vadd.f32 %v1355, %v1360
        %s1363 = sld [smem:[#allocation15 + $0x36]]
        %s1364 = sld [smem:[#allocation15 + $0x37]]
        %v1365 = vstv %s1363
        %v1366 = vmul.f32 %v1365, %v1275
        %1368 = vrot.lane.b32.xlu0 %v1366, 122
        %v1369 = vpop.permute.xlu0 %1368
        %v1371 = vadd.f32 %v1362, %v1369
        %v1372 = vstv %s1364
        %v1373 = vmul.f32 %v1372, %v1279
        %1375 = vrot.lane.b32.xlu0 %v1373, 122
        %v1376 = vpop.permute.xlu0 %1375
        %v1378 = vadd.f32 %v1371, %v1376
        %s1379 = sld [smem:[#allocation15 + $0x38]]
        %s1380 = sld [smem:[#allocation15 + $0x39]]
        %v1381 = vld [vmem:[#allocation2 + $0x4] sm:$0xff]
        %v1382 = vstv %s1379
        %v1383 = vmul.f32 %v1382, %v1381
        %v1384 = vadd.f32 %v1378, %v1383
        %v1385 = vld [vmem:[%s960 + $0x4] sm:$0xff]
        %v1386 = vstv %s1380
        %v1387 = vmul.f32 %v1386, %v1385
        %v1388 = vadd.f32 %v1384, %v1387
        %s1389 = sld [smem:[#allocation15 + $0x3a]]
        %s1390 = sld [smem:[#allocation15 + $0x3b]]
        %v1391 = vstv %s1389
        %v1392 = vmul.f32 %v1391, %v1381
        %1394 = vrot.lane.b32.xlu0 %v1392, 127
        %v1395 = vpop.permute.xlu0 %1394
        %v1397 = vadd.f32 %v1388, %v1395
        %v1398 = vstv %s1390
        %v1399 = vmul.f32 %v1398, %v1385
        %1401 = vrot.lane.b32.xlu0 %v1399, 127
        %v1402 = vpop.permute.xlu0 %1401
        %v1404 = vadd.f32 %v1397, %v1402
        %s1405 = sld [smem:[#allocation15 + $0x3c]]
        %s1406 = sld [smem:[#allocation15 + $0x3d]]
        %v1407 = vstv %s1405
        %v1408 = vmul.f32 %v1407, %v1381
        %1410 = vrot.lane.b32.xlu0 %v1408, 126
        %v1411 = vpop.permute.xlu0 %1410
        %v1413 = vadd.f32 %v1404, %v1411
        %v1414 = vstv %s1406
        %v1415 = vmul.f32 %v1414, %v1385
        %1417 = vrot.lane.b32.xlu0 %v1415, 126
        %v1418 = vpop.permute.xlu0 %1417
        %v1420 = vadd.f32 %v1413, %v1418
        %s1421 = sld [smem:[#allocation15 + $0x3e]]
        %s1422 = sld [smem:[#allocation15 + $0x3f]]
        %v1423 = vstv %s1421
        %v1424 = vmul.f32 %v1423, %v1381
        %1426 = vrot.lane.b32.xlu0 %v1424, 125
        %v1427 = vpop.permute.xlu0 %1426
        %v1429 = vadd.f32 %v1420, %v1427
        %v1430 = vstv %s1422
        %v1431 = vmul.f32 %v1430, %v1385
        %1433 = vrot.lane.b32.xlu0 %v1431, 125
        %v1434 = vpop.permute.xlu0 %1433
        %v1436 = vadd.f32 %v1429, %v1434
        %s1437 = sld [smem:[#allocation15 + $0x40]]
        %s1438 = sld [smem:[#allocation15 + $0x41]]
        %v1439 = vstv %s1437
        %v1440 = vmul.f32 %v1439, %v1381
        %1442 = vrot.lane.b32.xlu0 %v1440, 124
        %v1443 = vpop.permute.xlu0 %1442
        %v1445 = vadd.f32 %v1436, %v1443
        %v1446 = vstv %s1438
        %v1447 = vmul.f32 %v1446, %v1385
        %1449 = vrot.lane.b32.xlu0 %v1447, 124
        %v1450 = vpop.permute.xlu0 %1449
        %v1452 = vadd.f32 %v1445, %v1450
        %s1453 = sld [smem:[#allocation15 + $0x42]]
        %s1454 = sld [smem:[#allocation15 + $0x43]]
        %v1455 = vstv %s1453
        %v1456 = vmul.f32 %v1455, %v1381
        %1458 = vrot.lane.b32.xlu0 %v1456, 123
        %v1459 = vpop.permute.xlu0 %1458
        %v1461 = vadd.f32 %v1452, %v1459
        %v1462 = vstv %s1454
        %v1463 = vmul.f32 %v1462, %v1385
        %1465 = vrot.lane.b32.xlu0 %v1463, 123
        %v1466 = vpop.permute.xlu0 %1465
        %v1468 = vadd.f32 %v1461, %v1466
        %s1469 = sld [smem:[#allocation15 + $0x44]]
        %s1470 = sld [smem:[#allocation15 + $0x45]]
        %v1471 = vstv %s1469
        %v1472 = vmul.f32 %v1471, %v1381
        %1474 = vrot.lane.b32.xlu0 %v1472, 122
        %v1475 = vpop.permute.xlu0 %1474
        %v1477 = vadd.f32 %v1468, %v1475
        %v1478 = vstv %s1470
        %v1479 = vmul.f32 %v1478, %v1385
        %1481 = vrot.lane.b32.xlu0 %v1479, 122
        %v1482 = vpop.permute.xlu0 %1481
        %v1484 = vadd.f32 %v1477, %v1482
        %s1485 = sld [smem:[#allocation15 + $0x46]]
        %s1486 = sld [smem:[#allocation15 + $0x47]]
        %v1487 = vld [vmem:[#allocation2 + $0x5] sm:$0xff]
        %v1488 = vstv %s1485
        %v1489 = vmul.f32 %v1488, %v1487
        %v1490 = vadd.f32 %v1484, %v1489
        %v1491 = vld [vmem:[%s960 + $0x5] sm:$0xff]
        %v1492 = vstv %s1486
        %v1493 = vmul.f32 %v1492, %v1491
        %v1494 = vadd.f32 %v1490, %v1493
        %s1495 = sld [smem:[#allocation15 + $0x48]]
        %s1496 = sld [smem:[#allocation15 + $0x49]]
        %v1497 = vstv %s1495
        %v1498 = vmul.f32 %v1497, %v1487
        %1500 = vrot.lane.b32.xlu0 %v1498, 127
        %v1501 = vpop.permute.xlu0 %1500
        %v1503 = vadd.f32 %v1494, %v1501
        %v1504 = vstv %s1496
        %v1505 = vmul.f32 %v1504, %v1491
        %1507 = vrot.lane.b32.xlu0 %v1505, 127
        %v1508 = vpop.permute.xlu0 %1507
        %v1510 = vadd.f32 %v1503, %v1508
        %s1511 = sld [smem:[#allocation15 + $0x4a]]
        %s1512 = sld [smem:[#allocation15 + $0x4b]]
        %v1513 = vstv %s1511
        %v1514 = vmul.f32 %v1513, %v1487
        %1516 = vrot.lane.b32.xlu0 %v1514, 126
        %v1517 = vpop.permute.xlu0 %1516
        %v1519 = vadd.f32 %v1510, %v1517
        %v1520 = vstv %s1512
        %v1521 = vmul.f32 %v1520, %v1491
        %1523 = vrot.lane.b32.xlu0 %v1521, 126
        %v1524 = vpop.permute.xlu0 %1523
        %v1526 = vadd.f32 %v1519, %v1524
        %s1527 = sld [smem:[#allocation15 + $0x4c]]
        %s1528 = sld [smem:[#allocation15 + $0x4d]]
        %v1529 = vstv %s1527
        %v1530 = vmul.f32 %v1529, %v1487
        %1532 = vrot.lane.b32.xlu0 %v1530, 125
        %v1533 = vpop.permute.xlu0 %1532
        %v1535 = vadd.f32 %v1526, %v1533
        %v1536 = vstv %s1528
        %v1537 = vmul.f32 %v1536, %v1491
        %1539 = vrot.lane.b32.xlu0 %v1537, 125
        %v1540 = vpop.permute.xlu0 %1539
        %v1542 = vadd.f32 %v1535, %v1540
        %s1543 = sld [smem:[#allocation15 + $0x4e]]
        %s1544 = sld [smem:[#allocation15 + $0x4f]]
        %v1545 = vstv %s1543
        %v1546 = vmul.f32 %v1545, %v1487
        %1548 = vrot.lane.b32.xlu0 %v1546, 124
        %v1549 = vpop.permute.xlu0 %1548
        %v1551 = vadd.f32 %v1542, %v1549
        %v1552 = vstv %s1544
        %v1553 = vmul.f32 %v1552, %v1491
        %1555 = vrot.lane.b32.xlu0 %v1553, 124
        %v1556 = vpop.permute.xlu0 %1555
        %v1558 = vadd.f32 %v1551, %v1556
        %s1559 = sld [smem:[#allocation15 + $0x50]]
        %s1560 = sld [smem:[#allocation15 + $0x51]]
        %v1561 = vstv %s1559
        %v1562 = vmul.f32 %v1561, %v1487
        %1564 = vrot.lane.b32.xlu0 %v1562, 123
        %v1565 = vpop.permute.xlu0 %1564
        %v1567 = vadd.f32 %v1558, %v1565
        %v1568 = vstv %s1560
        %v1569 = vmul.f32 %v1568, %v1491
        %1571 = vrot.lane.b32.xlu0 %v1569, 123
        %v1572 = vpop.permute.xlu0 %1571
        %v1574 = vadd.f32 %v1567, %v1572
        %s1575 = sld [smem:[#allocation15 + $0x52]]
        %s1576 = sld [smem:[#allocation15 + $0x53]]
        %v1577 = vstv %s1575
        %v1578 = vmul.f32 %v1577, %v1487
        %1580 = vrot.lane.b32.xlu0 %v1578, 122
        %v1581 = vpop.permute.xlu0 %1580
        %v1583 = vadd.f32 %v1574, %v1581
        %v1584 = vstv %s1576
        %v1585 = vmul.f32 %v1584, %v1491
        %1587 = vrot.lane.b32.xlu0 %v1585, 122
        %v1588 = vpop.permute.xlu0 %1587
        %v1590 = vadd.f32 %v1583, %v1588
        %s1591 = sld [smem:[#allocation15 + $0x54]]
        %s1592 = sld [smem:[#allocation15 + $0x55]]
        %v1593 = vld [vmem:[#allocation2 + $0x6] sm:$0xff]
        %v1594 = vstv %s1591
        %v1595 = vmul.f32 %v1594, %v1593
        %v1596 = vadd.f32 %v1590, %v1595
        %v1597 = vld [vmem:[%s960 + $0x6] sm:$0xff]
        %v1598 = vstv %s1592
        %v1599 = vmul.f32 %v1598, %v1597
        %v1600 = vadd.f32 %v1596, %v1599
        %s1601 = sld [smem:[#allocation15 + $0x56]]
        %s1602 = sld [smem:[#allocation15 + $0x57]]
        %v1603 = vstv %s1601
        %v1604 = vmul.f32 %v1603, %v1593
        %1606 = vrot.lane.b32.xlu0 %v1604, 127
        %v1607 = vpop.permute.xlu0 %1606
        %v1609 = vadd.f32 %v1600, %v1607
        %v1610 = vstv %s1602
        %v1611 = vmul.f32 %v1610, %v1597
        %1613 = vrot.lane.b32.xlu0 %v1611, 127
        %v1614 = vpop.permute.xlu0 %1613
        %v1616 = vadd.f32 %v1609, %v1614
        %s1617 = sld [smem:[#allocation15 + $0x58]]
        %s1618 = sld [smem:[#allocation15 + $0x59]]
        %v1619 = vstv %s1617
        %v1620 = vmul.f32 %v1619, %v1593
        %1622 = vrot.lane.b32.xlu0 %v1620, 126
        %v1623 = vpop.permute.xlu0 %1622
        %v1625 = vadd.f32 %v1616, %v1623
        %v1626 = vstv %s1618
        %v1627 = vmul.f32 %v1626, %v1597
        %1629 = vrot.lane.b32.xlu0 %v1627, 126
        %v1630 = vpop.permute.xlu0 %1629
        %v1632 = vadd.f32 %v1625, %v1630
        %s1633 = sld [smem:[#allocation15 + $0x5a]]
        %s1634 = sld [smem:[#allocation15 + $0x5b]]
        %v1635 = vstv %s1633
        %v1636 = vmul.f32 %v1635, %v1593
        %1638 = vrot.lane.b32.xlu0 %v1636, 125
        %v1639 = vpop.permute.xlu0 %1638
        %v1641 = vadd.f32 %v1632, %v1639
        %v1642 = vstv %s1634
        %v1643 = vmul.f32 %v1642, %v1597
        %1645 = vrot.lane.b32.xlu0 %v1643, 125
        %v1646 = vpop.permute.xlu0 %1645
        %v1648 = vadd.f32 %v1641, %v1646
        %s1649 = sld [smem:[#allocation15 + $0x5c]]
        %s1650 = sld [smem:[#allocation15 + $0x5d]]
        %v1651 = vstv %s1649
        %v1652 = vmul.f32 %v1651, %v1593
        %1654 = vrot.lane.b32.xlu0 %v1652, 124
        %v1655 = vpop.permute.xlu0 %1654
        %v1657 = vadd.f32 %v1648, %v1655
        %v1658 = vstv %s1650
        %v1659 = vmul.f32 %v1658, %v1597
        %1661 = vrot.lane.b32.xlu0 %v1659, 124
        %v1662 = vpop.permute.xlu0 %1661
        %v1664 = vadd.f32 %v1657, %v1662
        %s1665 = sld [smem:[#allocation15 + $0x5e]]
        %s1666 = sld [smem:[#allocation15 + $0x5f]]
        %v1667 = vstv %s1665
        %v1668 = vmul.f32 %v1667, %v1593
        %1670 = vrot.lane.b32.xlu0 %v1668, 123
        %v1671 = vpop.permute.xlu0 %1670
        %v1673 = vadd.f32 %v1664, %v1671
        %v1674 = vstv %s1666
        %v1675 = vmul.f32 %v1674, %v1597
        %1677 = vrot.lane.b32.xlu0 %v1675, 123
        %v1678 = vpop.permute.xlu0 %1677
        %v1680 = vadd.f32 %v1673, %v1678
        %s1681 = sld [smem:[#allocation15 + $0x60]]
        %s1682 = sld [smem:[#allocation15 + $0x61]]
        %v1683 = vstv %s1681
        %v1684 = vmul.f32 %v1683, %v1593
        %1686 = vrot.lane.b32.xlu0 %v1684, 122
        %v1687 = vpop.permute.xlu0 %1686
        %v1689 = vadd.f32 %v1680, %v1687
        %v1690 = vstv %s1682
        %v1691 = vmul.f32 %v1690, %v1597
        %1693 = vrot.lane.b32.xlu0 %v1691, 122
        %v1694 = vpop.permute.xlu0 %1693
        %v1696 = vadd.f32 %v1689, %v1694
        %v1697 = vxor.u32 %v1696, 2147483648
        %v1698 = vmul.f32 %v1697, 1.442695
        %v1699 = vpow.pop %v1698
        %v1700 = vadd.f32 %v1699, 1.0
        %v1701 = vrcp.pop %v1700
        %v1702 = vmul.f32 1.0, %v1701
        %v1703 = vlaneseq
        %v1704 = vshrl.u32 %v1703, 7
        %v1705 = vsub.s32 0, %v1704
        %v1706 = vrot.slane %v1702, %v1705
        %1708 = vbcast.lane.b32.xlu0 %v1706, 256
        %v1709 = vpop.permute.xlu0 %1708
        %v1710 = vlaneseq
        %v1711 = vshrl.u32 %v1710, 7
        %v1712 = vsub.s32 1, %v1711
        %v1713 = vrot.slane %v1702, %v1712
        %1715 = vbcast.lane.b32.xlu0 %v1713, 256
        %v1716 = vpop.permute.xlu0 %1715
        %v1717 = vlaneseq
        %v1718 = vshrl.u32 %v1717, 7
        %v1719 = vsub.s32 2, %v1718
        %v1720 = vrot.slane %v1702, %v1719
        %1722 = vbcast.lane.b32.xlu0 %v1720, 256
        %v1723 = vpop.permute.xlu0 %1722
        %v1724 = vlaneseq
        %v1725 = vshrl.u32 %v1724, 7
        %v1726 = vsub.s32 3, %v1725
        %v1727 = vrot.slane %v1702, %v1726
        %1729 = vbcast.lane.b32.xlu0 %v1727, 256
        %v1730 = vpop.permute.xlu0 %1729
        %v1731 = vlaneseq
        %v1732 = vshrl.u32 %v1731, 7
        %v1733 = vsub.s32 4, %v1732
        %v1734 = vrot.slane %v1702, %v1733
        %1736 = vbcast.lane.b32.xlu0 %v1734, 256
        %v1737 = vpop.permute.xlu0 %1736
        %v1738 = vlaneseq
        %v1739 = vshrl.u32 %v1738, 7
        %v1740 = vsub.s32 5, %v1739
        %v1741 = vrot.slane %v1702, %v1740
        %1743 = vbcast.lane.b32.xlu0 %v1741, 256
        %v1744 = vpop.permute.xlu0 %1743
        %v1745 = vlaneseq
        %v1746 = vshrl.u32 %v1745, 7
        %v1747 = vsub.s32 6, %v1746
        %v1748 = vrot.slane %v1702, %v1747
        %1750 = vbcast.lane.b32.xlu0 %v1748, 256
        %v1751 = vpop.permute.xlu0 %1750
        %v1752 = vlaneseq
        %v1753 = vshrl.u32 %v1752, 7
        %v1754 = vsub.s32 7, %v1753
        %v1755 = vrot.slane %v1702, %v1754
        %1757 = vbcast.lane.b32.xlu0 %v1755, 256
        %v1758 = vpop.permute.xlu0 %1757
        %v1759 = vmul.f32 %v721, %v1709
        %v1760 = vmul.f32 %v722, %v1716
        %v1761 = vmul.f32 %v723, %v1723
        %v1762 = vmul.f32 %v724, %v1730
        %v1763 = vmul.f32 %v725, %v1737
        %v1764 = vmul.f32 %v726, %v1744
        %v1765 = vmul.f32 %v727, %v1751
        %v1766 = vmul.f32 %v728, %v1758
        %v1767 = vld [vmem:[%s401] sm:$0xff]
        %v1768 = vld [vmem:[%s401 + $0x8] sm:$0xff]
        %v1769 = vld [vmem:[%s401 + $0x10] sm:$0xff]
        %v1770 = vld [vmem:[%s401 + $0x18] sm:$0xff]
        %v1771 = vld [vmem:[%s401 + $0x20] sm:$0xff]
        %v1772 = vld [vmem:[%s401 + $0x28] sm:$0xff]
        %v1773 = vld [vmem:[%s401 + $0x30] sm:$0xff]
        %v1774 = vld [vmem:[%s401 + $0x38] sm:$0xff]
        %v1775 = vadd.f32 %v1759, %v1767
        %v1776 = vadd.f32 %v1760, %v1768
        %v1777 = vadd.f32 %v1761, %v1769
        %v1778 = vadd.f32 %v1762, %v1770
        %v1779 = vadd.f32 %v1763, %v1771
        %v1780 = vadd.f32 %v1764, %v1772
        %v1781 = vadd.f32 %v1765, %v1773
        %v1782 = vadd.f32 %v1766, %v1774
        %v1783 = vmax.f32 %v1775, 0.0
        %v1784 = vmax.f32 %v1776, 0.0
        %v1785 = vmax.f32 %v1777, 0.0
        %v1786 = vmax.f32 %v1778, 0.0
        %v1787 = vmax.f32 %v1779, 0.0
        %v1788 = vmax.f32 %v1780, 0.0
        %v1789 = vmax.f32 %v1781, 0.0
        %v1790 = vmax.f32 %v1782, 0.0
        %1791 = vst.msk [vmem:[%s439] sm:$0xff] %vm503, %v1783
        %1792 = vst.msk [vmem:[%s439 + $0x8] sm:$0xff] %vm503, %v1784
        %1793 = vst.msk [vmem:[%s439 + $0x10] sm:$0xff] %vm503, %v1785
        %1794 = vst.msk [vmem:[%s439 + $0x18] sm:$0xff] %vm503, %v1786
        %1795 = vst.msk [vmem:[%s439 + $0x20] sm:$0xff] %vm503, %v1787
        %1796 = vst.msk [vmem:[%s439 + $0x28] sm:$0xff] %vm503, %v1788
        %1797 = vst.msk [vmem:[%s439 + $0x30] sm:$0xff] %vm503, %v1789
        %1798 = vst.msk [vmem:[%s439 + $0x38] sm:$0xff] %vm503, %v1790
        %s1799 = sand.u32 %s215, 1
        %s1800 = scalar_lea.sflag [#allocation5], %s1799
        %s1801 = sand.u32 %s215, 1
        %s1802 = smul.addr %s1801, 64
        %s1803 = scalar_lea.vmem [#allocation17], %s1802
        // Predicated region
        $region85: #{basic_block_forward.5} parent=51 // pred_check
          %p1804 = pneg %p225
        $region86: #{basic_block_forward.5} parent=51 // pred_check_branch
          %1806 = sbr.rel (%p1804) target = $region88
        $region87: #{basic_block_forward.5} parent=51 // pred_region
          %s1808 = ssub.s32 1024, 1024
          %1809 = vsyncadd %s1800, %s1808
          %s1810 = smul.addr %s29, 8
          %s1811 = smul.addr %s1810, 128
          %s1812 = scalar_lea.hbm %s8, %s1811
          %s1813 = sshll.u32 %s1803, 4
          %s1814 = int_to_ptr.vmem [resolvable:$true] %s1813
          %1819 = dma.vmem_to_hbm [thread:$0]  %s1814, 1024, %s1812, %s1800, 128, 128, 8
        $region88: #{basic_block_forward.5} parent=51 // pred_fallthru
          _
      $region52: #{basic_block_forward.5} parent=5 // pred_fallthru
        _
      %p1820 = scmp.le.s32.totalorder 2, %s24
      // Predicated region
      $region89: #{basic_block_forward.5} parent=5 // pred_check
        %p1821 = pneg %p1820
      $region90: #{basic_block_forward.5} parent=5 // pred_check_branch
        %1823 = sbr.rel (%p1821) target = $region92
      $region91: #{basic_block_forward.5} parent=5 // pred_region
        %s1824 = ssub.s32 %s24, 2
        // Predicated region
        $region93: #{basic_block_forward.5} parent=91 // pred_check
          %p1825 = pneg %p231
        $region94: #{basic_block_forward.5} parent=91 // pred_check_branch
          %1827 = sbr.rel (%p1825) target = $region96
        $region95: #{basic_block_forward.5} parent=91 // pred_region
          %s1828 = sand.u32 %s216, 1
          %s1829 = scalar_lea.sflag [#allocation5], %s1828
          %s1830 = sand.u32 %s216, 1
          %s1831 = smul.addr %s1830, 64
          %s1832 = scalar_lea.vmem [#allocation17], %s1831
          %1833 = dma.done %s1829, 1024
        $region96: #{basic_block_forward.5} parent=91 // pred_fallthru
          _
      $region92: #{basic_block_forward.5} parent=5 // pred_fallthru
        _
    $region6: #{basic_block_forward.5} parent=1 // loop_footer
      %s28 = sadd.s32 1, %s24
    $region7: #{basic_block_forward.5} parent=1 // loop_footer_branch
      %23 = sbr.rel target = $region3
    $region8: #{basic_block_forward.5} parent=1 // loop_exit
      _
    %1834 = vsyncpa [#allocation4], 1
    %s1835 = scalar_lea.sflag [#allocation4], 1
    %1836 = vsyncpa %s1835, 1
    %1837 = vsyncpa [#allocation8], 1
    %1838 = vsyncpa [#allocation11], 1
    %1839 = vsyncpa [#allocation14], 1
    %1840 = vsyncpa [#allocation5], 1
    %s1841 = scalar_lea.sflag [#allocation5], 1
    %1842 = vsyncpa %s1841, 1
    %1843 = vsyncpa [#allocation6], 1
    %s1844 = scalar_lea.sflag [#allocation6], 1
    %1845 = vsyncpa %s1844, 1

</llo_original>
